<compile_context>
chip_gen: v7x
topology: tpu7x:2x2x1
jax: 0.10.0
libtpu: 0.0.40
codegen_flags: <defaults>
</compile_context>

<pallas_src>
import jax
import jax.numpy as jnp
from jax.experimental import pallas as pl
from jax.experimental.pallas import tpu as pltpu

C_IN = 1024
C_OUT = 16384
TN = 4096                       # output-channel tile (lane-dense, multiple of 128)
NT = C_OUT // TN                # number of weight tiles / grid steps


def decoder_kernel(x_ref, w_ref, s_ref, b_ref, o_ref):
    # x_ref: (B, C_IN) bf16    w_ref: (C_IN, TN) int8
    # s_ref: (1, TN)  f32      b_ref: (1, TN)  f32      o_ref: (B, TN) f32
    w_bf = w_ref[...].astype(jnp.bfloat16)              # exact: |q| <= 127
    acc = jnp.dot(x_ref[...], w_bf, preferred_element_type=jnp.float32)
    o_ref[...] = jnp.tanh(acc * s_ref[...] + b_ref[...]).astype(o_ref.dtype)


def quantize_and_pack(w, b):
    """One-time parameter prep (per model, not per call).

    w: (C_IN, C_OUT) f32  (the Conv1d weight (C_OUT, C_IN, 1) stored transposed)
       -> w_q:     (NT, C_IN, TN) int8, tile-contiguous in HBM
          scale2d: (1, C_OUT) f32 per-output-channel dequant scale
    b: (C_OUT,) f32 -> (1, C_OUT) f32
    """
    absmax = jnp.max(jnp.abs(w), axis=0)                       # (C_OUT,)
    scale = jnp.maximum(absmax, 1e-30) / 127.0
    w_q = jnp.clip(jnp.round(w / scale[None, :]), -127, 127).astype(jnp.int8)
    w_q_packed = w_q.reshape(C_IN, NT, TN).transpose(1, 0, 2)  # (NT, C_IN, TN)
    return w_q_packed, scale.reshape(1, C_OUT), b.reshape(1, C_OUT)


def _build_decoder_call(B, *, conservative):
    cost = pl.CostEstimate(
        flops=2 * B * C_IN * C_OUT,
        transcendentals=B * C_OUT,
        bytes_accessed=(C_IN * C_OUT * 1          # int8 weight stream (dominant)
                        + B * C_IN * 2            # x (bf16)
                        + 2 * C_OUT * 4           # scale + bias
                        + B * C_OUT * 4),         # output
    )
    if conservative:
        # Maximum-compatibility path: default double-buffering, "parallel" axis.
        w_spec = pl.BlockSpec((None, C_IN, TN), lambda j: (j, 0, 0))
        dims = ("parallel",)
    else:
        # Split weight tiles across TensorCores (v7x) + triple-buffer the
        # weight stream to hide DMA-issue gaps between grid steps.
        w_spec = pl.BlockSpec((None, C_IN, TN), lambda j: (j, 0, 0),
                              pipeline_mode=pl.Buffered(3))
        dims = (pltpu.CORE_PARALLEL,)

    return pl.pallas_call(
        decoder_kernel,
        out_shape=jax.ShapeDtypeStruct((B, C_OUT), jnp.float32),
        grid_spec=pltpu.PrefetchScalarGridSpec(
            num_scalar_prefetch=0,
            grid=(NT,),
            in_specs=[
                # x: constant index_map -> VMEM-resident across all grid steps.
                pl.BlockSpec((B, C_IN), lambda j: (0, 0)),
                # W: one contiguous (C_IN, TN) int8 slab per step.
                w_spec,
                # per-output-channel dequant scale tile.
                pl.BlockSpec((1, TN), lambda j: (0, j)),
                # bias tile.
                pl.BlockSpec((1, TN), lambda j: (0, j)),
            ],
            out_specs=pl.BlockSpec((B, TN), lambda j: (0, j)),
        ),
        compiler_params=pltpu.CompilerParams(
            dimension_semantics=dims,
            vmem_limit_bytes=32 << 20,   # explicit: v5e scoped default is 16 MiB
        ),
        cost_estimate=cost,
    )


def decoder_forward(x, w_q_packed, scale2d, b2d, *, conservative=False):
    """x: (B, C_IN) f32 -> (B, 2, 8192) f32 (matches torch .view(-1, 2, 8192))."""
    B = x.shape[0]
    x_bf = x.astype(jnp.bfloat16)     # pre-cast once in the wrapper, not per step
    y = _build_decoder_call(B, conservative=conservative)(
        x_bf, w_q_packed, scale2d, b2d)
    # torch: conv output (B, 16384, 1) .view(-1, 2, 8192)
    return y.reshape(-1, 2, 8192)


if __name__ == "__main__":
    key = jax.random.PRNGKey(0)
    kx, kw, kb = jax.random.split(key, 3)

    B = 2
    # Synthetic parameters with the shapes implied by nn.Conv1d(1024, 16384, 1);
    # the (C_OUT, C_IN, 1) conv weight is stored transposed as (C_IN, C_OUT).
    w = jax.random.normal(kw, (C_IN, C_OUT), dtype=jnp.float32) * 0.02
    b = jax.random.normal(kb, (C_OUT,), dtype=jnp.float32) * 0.02
    x = jax.random.normal(kx, (B, C_IN), dtype=jnp.float32)

    w_q_packed, scale2d, b2d = quantize_and_pack(w, b)

    try:
        out = jax.block_until_ready(
            decoder_forward(x, w_q_packed, scale2d, b2d, conservative=False))
    except Exception:
        # Fallback for TPU generations / toolchains where CORE_PARALLEL or
        # Buffered(3) lowering is unavailable; semantics are identical.
        out = jax.block_until_ready(
            decoder_forward(x, w_q_packed, scale2d, b2d, conservative=True))
    assert out.shape == (B, 2, 8192), out.shape

    # Reference at matching numerics (bf16 x, dequantized int8 weights, f32
    # math): tight tolerance.
    w_deq = (w_q_packed.transpose(1, 0, 2).reshape(C_IN, C_OUT)
             .astype(jnp.float32) * scale2d)
    x_bf = x.astype(jnp.bfloat16).astype(jnp.float32)
    ref_q = jnp.tanh(
        jnp.dot(x_bf, w_deq, precision=jax.lax.Precision.HIGHEST) + b[None, :]
    ).reshape(-1, 2, 8192)
    err_q = float(jnp.max(jnp.abs(out - ref_q)))
    assert jnp.allclose(out, ref_q, atol=2e-3, rtol=2e-3), err_q

    # Sanity check against the full-f32 module semantics: loose tolerance
    # (only deviation is int8 weights + bf16 activations on the HBM-bound path).
    ref_f32 = jnp.tanh(
        jnp.dot(x, w, precision=jax.lax.Precision.HIGHEST) + b[None, :]
    ).reshape(-1, 2, 8192)
    err_f32 = float(jnp.max(jnp.abs(out - ref_f32)))
    assert jnp.allclose(out, ref_f32, atol=5e-2, rtol=5e-2), err_f32

    print("KERNEL_OK")
</pallas_src>

<mosaic_0001>
module attributes {stable_mosaic.version = 11 : i64} {
  func.func @decoder_kernel(%arg0: i32, %arg1: memref<2x1024xbf16, #tpu.memory_space<vmem>>, %arg2: memref<1x1024x4096xi8, #tpu.memory_space<vmem>>, %arg3: memref<1x4096xf32, #tpu.memory_space<vmem>>, %arg4: memref<1x4096xf32, #tpu.memory_space<vmem>>, %arg5: memref<2x4096xf32, #tpu.memory_space<vmem>>) attributes {dimension_semantics = [#tpu.dimension_semantics<parallel>], iteration_bounds = array<i64: 4>, scalar_prefetch = 0 : i64, scratch_operands = 0 : i64, tpu.core_type = #tpu.core_type<tc>, window_params = [{pipeline_mode = #tpu.pipeline_mode<synchronous>, transform_indices = @transform_0, window_bounds = array<i64: 2, 1024>}, {transform_indices = @transform_1, window_bounds = array<i64: 1, 1024, 4096>}, {transform_indices = @transform_2, window_bounds = array<i64: 1, 4096>}, {transform_indices = @transform_3, window_bounds = array<i64: 1, 4096>}, {transform_indices = @transform_4, window_bounds = array<i64: 2, 4096>}]} {
    %c0 = arith.constant 0 : index
    %c0_0 = arith.constant 0 : index
    %c0_1 = arith.constant 0 : index
    %0 = vector.load %arg2[%c0, %c0_0, %c0_1] : memref<1x1024x4096xi8, #tpu.memory_space<vmem>>, vector<1x1024x4096xi8>
    %1 = vector.shape_cast %0 : vector<1x1024x4096xi8> to vector<1024x4096xi8>
    %2 = arith.sitofp %1 : vector<1024x4096xi8> to vector<1024x4096xbf16>
    %c0_2 = arith.constant 0 : index
    %c0_3 = arith.constant 0 : index
    %3 = vector.load %arg1[%c0_2, %c0_3] : memref<2x1024xbf16, #tpu.memory_space<vmem>>, vector<2x1024xbf16>
    %cst = arith.constant dense<0.000000e+00> : vector<2x4096xf32>
    %4 = tpu.matmul %3, %2, %cst {dimension_numbers = #tpu.dot_dimension_numbers<[1], [0], [0], [1], [0, 0, 1, 1], [], []>} : vector<2x1024xbf16>, vector<1024x4096xbf16>, vector<2x4096xf32> -> vector<2x4096xf32>
    %c0_4 = arith.constant 0 : index
    %c0_5 = arith.constant 0 : index
    %5 = vector.load %arg3[%c0_4, %c0_5] : memref<1x4096xf32, #tpu.memory_space<vmem>>, vector<1x4096xf32>
    %6 = vector.broadcast %5 : vector<1x4096xf32> to vector<2x4096xf32>
    %7 = arith.mulf %4, %6 : vector<2x4096xf32>
    %c0_6 = arith.constant 0 : index
    %c0_7 = arith.constant 0 : index
    %8 = vector.load %arg4[%c0_6, %c0_7] : memref<1x4096xf32, #tpu.memory_space<vmem>>, vector<1x4096xf32>
    %9 = vector.broadcast %8 : vector<1x4096xf32> to vector<2x4096xf32>
    %10 = arith.addf %7, %9 : vector<2x4096xf32>
    %11 = math.tanh %10 : vector<2x4096xf32>
    %c0_8 = arith.constant 0 : index
    %c0_9 = arith.constant 0 : index
    %12 = vector.load %arg5[%c0_8, %c0_9] : memref<2x4096xf32, #tpu.memory_space<vmem>>, vector<2x4096xf32>
    tpu.vector_store %arg5[%c0_8, %c0_9], %11 {strides = array<i32>} : memref<2x4096xf32, #tpu.memory_space<vmem>>, vector<2x4096xf32>,
    return
  }
  func.func @transform_0(%arg0: i32) -> (i32, i32) {
    %c0_i32 = arith.constant 0 : i32
    %c0_i32_0 = arith.constant 0 : i32
    %c0_i32_1 = arith.constant 0 : i32
    return %c0_i32, %c0_i32_0 : i32, i32
  }
  func.func @transform_1(%arg0: i32) -> (i32, i32, i32) {
    %c0_i32 = arith.constant 0 : i32
    %c0_i32_0 = arith.constant 0 : i32
    %c0_i32_1 = arith.constant 0 : i32
    return %arg0, %c0_i32, %c0_i32_0 : i32, i32, i32
  }
  func.func @transform_2(%arg0: i32) -> (i32, i32) {
    %c0_i32 = arith.constant 0 : i32
    %c0_i32_0 = arith.constant 0 : i32
    return %c0_i32, %arg0 : i32, i32
  }
  func.func @transform_3(%arg0: i32) -> (i32, i32) {
    %c0_i32 = arith.constant 0 : i32
    %c0_i32_0 = arith.constant 0 : i32
    return %c0_i32, %arg0 : i32, i32
  }
  func.func @transform_4(%arg0: i32) -> (i32, i32) {
    %c0_i32 = arith.constant 0 : i32
    %c0_i32_0 = arith.constant 0 : i32
    return %c0_i32, %arg0 : i32, i32
  }
}

</mosaic_0001>

<llo_original>
// kernel: tpu_custom_call.1
$region0: #{tpu_custom_call.1}
  #allocation0 [shape = 'u32[]', space=smem, size = 0x4, offset = 0x4, fixed_abs, tag = 'smem constant byte address 0x4 - core index']
  #allocation1 [shape = 'u32[144,128]{1,0:T(1,128)}', space=vmem, size = 0x12000, scoped, tag = 'internal scratch']
  %s0 = inlined_call_operand.hbm [shape: bf16[2,1024], index: 0, kind: input, shape index: {}]
  %s1 = inlined_call_operand.hbm [shape: s8[4,1024,4096], index: 1, kind: input, shape index: {}]
  %s2 = inlined_call_operand.hbm [shape: f32[1,16384], index: 2, kind: input, shape index: {}]
  %s3 = inlined_call_operand.hbm [shape: f32[1,16384], index: 3, kind: input, shape index: {}]
  %s4 = inlined_call_operand.hbm [shape: f32[2,16384], index: 4, kind: output, shape index: {}]
  %s5 = sld [smem:[#allocation0]]
  $region65: #{tpu_custom_call.1} parent=0
    _
  %s7 = ssub.s32 1, %s5
  %s8 = scalar_select 0, %s7, %s5
  $region1: #{tpu_custom_call.1} parent=0
    #allocation2 [shape = 'u8[4096]{0}', space=vmem, size = 0x1000, scoped, tag = 'input window, operand 0, single buffered']
    #allocation3 [shape = 's32[2]{0}', space=sflag, size = 0x8, scoped, tag = 'scoped memory for tpu_custom_call.1']
    #allocation4 [shape = 's32[2]{0}', space=sflag, size = 0x8, scoped, tag = 'scoped memory for tpu_custom_call.1']
    #allocation5 [shape = 'u8[8388608]{0}', space=vmem, size = 0x800000, scoped, tag = 'input window, operand 1']
    #allocation6 [shape = 's32[2]{0}', space=sflag, size = 0x8, scoped, tag = 'scoped memory for tpu_custom_call.1']
    #allocation7 [shape = 'u8[32768]{0}', space=vmem, size = 0x8000, scoped, tag = 'input window, operand 2']
    #allocation8 [shape = 'u8[32768]{0}', space=vmem, size = 0x8000, scoped, tag = 'input window, operand 3']
    #allocation9 [shape = 's32[2]{0}', space=sflag, size = 0x8, scoped, tag = 'scoped memory for tpu_custom_call.1']
    #allocation10 [shape = 'u8[65536]{0}', space=vmem, size = 0x10000, scoped, tag = 'output window, operand 0']
    %9 = vsyncpa [#allocation3], 0
    %10 = vsyncpa [#allocation6], 0
    %s11 = scalar_lea.sflag [#allocation6], 1
    %12 = vsyncpa %s11, 0
    %13 = vsyncpa [#allocation9], 0
    %s14 = scalar_lea.sflag [#allocation9], 1
    %15 = vsyncpa %s14, 0
    %16 = vsyncpa [#allocation4], 0
    %s17 = scalar_lea.sflag [#allocation4], 1
    %18 = vsyncpa %s17, 0
    loop: start=0, step=1, limit=6
    $region2: #{tpu_custom_call.1} parent=1 // loop_pre_header
      _
    $region3: #{tpu_custom_call.1} parent=1 // loop_header
      %s20 = sphi 0, %s24
      %p21 = scmp.ge.s32.totalorder %s20, 6
      %s28 = sphi 0, %s28
      %s30 = sphi 0, %s28
      %s31 = sphi 0, %s30
      %s45 = sphi 0, %s31
      %s51 = sphi 0, %s53
      %s54 = sphi 0, %s51
      %s55 = sphi 0, %s54
      %s71 = sphi 0, %s55
      %s77 = sphi 0, %s79
      %s80 = sphi 0, %s77
      %s81 = sphi 0, %s80
      %s97 = sphi 0, %s81
      %s103 = sphi 0, %s105
      %s106 = sphi 0, %s103
      %s107 = sphi 0, %s106
      %s123 = sphi 0, %s107
      %s129 = sphi 0, %s131
      %s132 = sphi 0, %s129
      %s133 = sphi 0, %s132
      %s149 = sphi 0, %s133
    $region4: #{tpu_custom_call.1} parent=1 // loop_header_branch
      %23 = sbr.rel (%p21) target = $region8
    $region5: #{tpu_custom_call.1} parent=1 // loop_body
      %s25 = ssub.s32 %s20, 1
      %s26 = ssub.s32 %s20, 2
      %s27 = sadd.s32 %s20, 1
      %s29 = sadd.s32 %s28, 1
      %p32 = scmp.eq.s32.totalorder %s20, 3
      %p33 = scmp.ne.s32.totalorder %s28, %s30
      %p34 = scmp.eq.s32.totalorder %s20, 0
      %p35 = por %p33, %p34
      %p36 = scmp.ne.s32.totalorder %s28, %s30
      %p37 = scmp.eq.s32.totalorder %s25, 3
      %p38 = por %p36, %p37
      %p39 = scmp.ne.s32.totalorder %s30, %s31
      %p40 = scmp.eq.s32.totalorder %s25, 0
      %p41 = por %p39, %p40
      %p42 = scmp.ne.s32.totalorder %s30, %s31
      %p43 = scmp.eq.s32.totalorder %s26, 3
      %p44 = por %p42, %p43
      %p46 = scmp.ne.s32.totalorder %s31, %s45
      %p47 = scmp.eq.s32.totalorder %s26, 0
      %p48 = por %p46, %p47
      %s49 = ssub.s32 %s20, %s27
      %p50 = scmp.eq.s32.totalorder %s49, 0
      %s52 = sadd.s32 %s51, 1
      %s53 = scalar_select %p50, %s51, %s52
      %p56 = pneg %p50
      %p57 = scmp.eq.s32.totalorder %s20, 3
      %p58 = por %p56, %p57
      %p59 = scmp.ne.s32.totalorder %s51, %s54
      %p60 = scmp.eq.s32.totalorder %s20, 0
      %p61 = por %p59, %p60
      %p62 = scmp.ne.s32.totalorder %s51, %s54
      %p63 = scmp.eq.s32.totalorder %s25, 3
      %p64 = por %p62, %p63
      %p65 = scmp.ne.s32.totalorder %s54, %s55
      %p66 = scmp.eq.s32.totalorder %s25, 0
      %p67 = por %p65, %p66
      %p68 = scmp.ne.s32.totalorder %s54, %s55
      %p69 = scmp.eq.s32.totalorder %s26, 3
      %p70 = por %p68, %p69
      %p72 = scmp.ne.s32.totalorder %s55, %s71
      %p73 = scmp.eq.s32.totalorder %s26, 0
      %p74 = por %p72, %p73
      %s75 = ssub.s32 %s20, %s27
      %p76 = scmp.eq.s32.totalorder %s75, 0
      %s78 = sadd.s32 %s77, 1
      %s79 = scalar_select %p76, %s77, %s78
      %p82 = pneg %p76
      %p83 = scmp.eq.s32.totalorder %s20, 3
      %p84 = por %p82, %p83
      %p85 = scmp.ne.s32.totalorder %s77, %s80
      %p86 = scmp.eq.s32.totalorder %s20, 0
      %p87 = por %p85, %p86
      %p88 = scmp.ne.s32.totalorder %s77, %s80
      %p89 = scmp.eq.s32.totalorder %s25, 3
      %p90 = por %p88, %p89
      %p91 = scmp.ne.s32.totalorder %s80, %s81
      %p92 = scmp.eq.s32.totalorder %s25, 0
      %p93 = por %p91, %p92
      %p94 = scmp.ne.s32.totalorder %s80, %s81
      %p95 = scmp.eq.s32.totalorder %s26, 3
      %p96 = por %p94, %p95
      %p98 = scmp.ne.s32.totalorder %s81, %s97
      %p99 = scmp.eq.s32.totalorder %s26, 0
      %p100 = por %p98, %p99
      %s101 = ssub.s32 %s20, %s27
      %p102 = scmp.eq.s32.totalorder %s101, 0
      %s104 = sadd.s32 %s103, 1
      %s105 = scalar_select %p102, %s103, %s104
      %p108 = pneg %p102
      %p109 = scmp.eq.s32.totalorder %s20, 3
      %p110 = por %p108, %p109
      %p111 = scmp.ne.s32.totalorder %s103, %s106
      %p112 = scmp.eq.s32.totalorder %s20, 0
      %p113 = por %p111, %p112
      %p114 = scmp.ne.s32.totalorder %s103, %s106
      %p115 = scmp.eq.s32.totalorder %s25, 3
      %p116 = por %p114, %p115
      %p117 = scmp.ne.s32.totalorder %s106, %s107
      %p118 = scmp.eq.s32.totalorder %s25, 0
      %p119 = por %p117, %p118
      %p120 = scmp.ne.s32.totalorder %s106, %s107
      %p121 = scmp.eq.s32.totalorder %s26, 3
      %p122 = por %p120, %p121
      %p124 = scmp.ne.s32.totalorder %s107, %s123
      %p125 = scmp.eq.s32.totalorder %s26, 0
      %p126 = por %p124, %p125
      %s127 = ssub.s32 %s20, %s27
      %p128 = scmp.eq.s32.totalorder %s127, 0
      %s130 = sadd.s32 %s129, 1
      %s131 = scalar_select %p128, %s129, %s130
      %p134 = pneg %p128
      %p135 = scmp.eq.s32.totalorder %s20, 3
      %p136 = por %p134, %p135
      %p137 = scmp.ne.s32.totalorder %s129, %s132
      %p138 = scmp.eq.s32.totalorder %s20, 0
      %p139 = por %p137, %p138
      %p140 = scmp.ne.s32.totalorder %s129, %s132
      %p141 = scmp.eq.s32.totalorder %s25, 3
      %p142 = por %p140, %p141
      %p143 = scmp.ne.s32.totalorder %s132, %s133
      %p144 = scmp.eq.s32.totalorder %s25, 0
      %p145 = por %p143, %p144
      %p146 = scmp.ne.s32.totalorder %s132, %s133
      %p147 = scmp.eq.s32.totalorder %s26, 3
      %p148 = por %p146, %p147
      %p150 = scmp.ne.s32.totalorder %s133, %s149
      %p151 = scmp.eq.s32.totalorder %s26, 0
      %p152 = por %p150, %p151
      %p153 = scmp.le.s32.totalorder 1, %s20
      %p154 = scmp.lt.s32.totalorder %s20, 5
      %p155 = pnand %p153, %p154
      %p156 = pneg %p155
      // Predicated region
      $region9: #{tpu_custom_call.1} parent=5 // pred_check
        _
      $region10: #{tpu_custom_call.1} parent=5 // pred_check_branch
        %158 = sbr.rel (%p155) target = $region12
      $region11: #{tpu_custom_call.1} parent=5 // pred_region
        %s159 = ssub.s32 %s20, 1
        // Predicated region
        $region13: #{tpu_custom_call.1} parent=11 // pred_check
          %p160 = pneg %p41
        $region14: #{tpu_custom_call.1} parent=11 // pred_check_branch
          %162 = sbr.rel (%p160) target = $region16
        $region15: #{tpu_custom_call.1} parent=11 // pred_region
          %s164 = ssub.s32 128, 128
          %165 = vsyncadd [#allocation3], %s164
          %s167 = sshll.u32 [#allocation2], 4
          %s168 = int_to_ptr.vmem [resolvable:$true] %s167
          %170 = dma.hbm_to_vmem [thread:$0]  %s0, 128, %s168, [#allocation3]
        $region16: #{tpu_custom_call.1} parent=11 // pred_fallthru
          _
      $region12: #{tpu_custom_call.1} parent=5 // pred_fallthru
        _
      %p171 = scmp.lt.s32.totalorder %s20, 4
      // Predicated region
      $region17: #{tpu_custom_call.1} parent=5 // pred_check
        %p172 = pneg %p171
      $region18: #{tpu_custom_call.1} parent=5 // pred_check_branch
        %174 = sbr.rel (%p172) target = $region20
      $region19: #{tpu_custom_call.1} parent=5 // pred_region
        // Predicated region
        $region21: #{tpu_custom_call.1} parent=19 // pred_check
          %p175 = pneg %p61
        $region22: #{tpu_custom_call.1} parent=19 // pred_check_branch
          %177 = sbr.rel (%p175) target = $region24
        $region23: #{tpu_custom_call.1} parent=19 // pred_region
          %s178 = sand.u32 %s20, 1
          %s179 = scalar_lea.sflag [#allocation6], %s178
          %s180 = sand.u32 %s51, 1
          %s181 = smul.addr %s180, 8192
          %s182 = scalar_lea.vmem [#allocation5], %s181
          %s184 = ssub.s32 131072, 131072
          %185 = vsyncadd %s179, %s184
          %s186 = smul.addr %s20, 1024
          %s187 = smul.addr %s186, 128
          %s188 = scalar_lea.hbm %s1, %s187
          %s189 = sshll.u32 %s182, 4
          %s190 = int_to_ptr.vmem [resolvable:$true] %s189
          %195 = dma.hbm_to_vmem [thread:$0]  %s188, 131072, %s190, %s179, 4096, 4096, 256
        $region24: #{tpu_custom_call.1} parent=19 // pred_fallthru
          _
        // Predicated region
        $region25: #{tpu_custom_call.1} parent=19 // pred_check
          %p196 = pneg %p87
        $region26: #{tpu_custom_call.1} parent=19 // pred_check_branch
          %198 = sbr.rel (%p196) target = $region28
        $region27: #{tpu_custom_call.1} parent=19 // pred_region
          %s199 = sand.u32 %s20, 1
          %s200 = scalar_lea.sflag [#allocation6], %s199
          %s201 = sand.u32 %s77, 1
          %s202 = smul.addr %s201, 32
          %s203 = scalar_lea.vmem [#allocation7], %s202
          %s204 = smul.u32 32, %s20
          %s206 = ssub.s32 512, 512
          %207 = vsyncadd %s200, %s206
          %s208 = smul.addr %s204, 16
          %s209 = scalar_lea.hbm %s2, %s208
          %s211 = sshll.u32 %s203, 4
          %s212 = int_to_ptr.vmem [resolvable:$true] %s211
          %214 = dma.hbm_to_vmem [thread:$0]  %s209, 512, %s212, %s200
        $region28: #{tpu_custom_call.1} parent=19 // pred_fallthru
          _
        // Predicated region
        $region29: #{tpu_custom_call.1} parent=19 // pred_check
          %p215 = pneg %p113
        $region30: #{tpu_custom_call.1} parent=19 // pred_check_branch
          %217 = sbr.rel (%p215) target = $region32
        $region31: #{tpu_custom_call.1} parent=19 // pred_region
          %s218 = sand.u32 %s103, 1
          %s219 = scalar_lea.sflag [#allocation9], %s218
          %s220 = sand.u32 %s103, 1
          %s221 = smul.addr %s220, 32
          %s222 = scalar_lea.vmem [#allocation8], %s221
          %s223 = smul.u32 32, %s20
          %s225 = ssub.s32 512, 512
          %226 = vsyncadd %s219, %s225
          %s227 = smul.addr %s223, 16
          %s228 = scalar_lea.hbm %s3, %s227
          %s230 = sshll.u32 %s222, 4
          %s231 = int_to_ptr.vmem [resolvable:$true] %s230
          %233 = dma.hbm_to_vmem [thread:$0]  %s228, 512, %s231, %s219
        $region32: #{tpu_custom_call.1} parent=19 // pred_fallthru
          _
      $region20: #{tpu_custom_call.1} parent=5 // pred_fallthru
        _
      %p234 = scmp.le.s32.totalorder 1, %s20
      %p235 = scmp.lt.s32.totalorder %s20, 5
      %p236 = pnand %p234, %p235
      %p237 = pneg %p236
      // Predicated region
      $region33: #{tpu_custom_call.1} parent=5 // pred_check
        _
      $region34: #{tpu_custom_call.1} parent=5 // pred_check_branch
        %239 = sbr.rel (%p236) target = $region36
      $region35: #{tpu_custom_call.1} parent=5 // pred_region
        %s240 = ssub.s32 %s20, 1
        // Predicated region
        $region37: #{tpu_custom_call.1} parent=35 // pred_check
          %p241 = pneg %p41
        $region38: #{tpu_custom_call.1} parent=35 // pred_check_branch
          %243 = sbr.rel (%p241) target = $region40
        $region39: #{tpu_custom_call.1} parent=35 // pred_region
          %244 = dma.done [#allocation3], 128
        $region40: #{tpu_custom_call.1} parent=35 // pred_fallthru
          _
        %s245 = sand.u32 %s25, 1
        %s246 = scalar_lea.sflag [#allocation6], %s245
        %s247 = sand.u32 %s54, 1
        %s248 = smul.addr %s247, 8192
        %s249 = scalar_lea.vmem [#allocation5], %s248
        // Predicated region
        $region41: #{tpu_custom_call.1} parent=35 // pred_check
          %p250 = pneg %p67
        $region42: #{tpu_custom_call.1} parent=35 // pred_check_branch
          %252 = sbr.rel (%p250) target = $region44
        $region43: #{tpu_custom_call.1} parent=35 // pred_region
          %253 = dma.done %s246, 131072
        $region44: #{tpu_custom_call.1} parent=35 // pred_fallthru
          _
        %s254 = sand.u32 %s25, 1
        %s255 = scalar_lea.sflag [#allocation6], %s254
        %s256 = sand.u32 %s80, 1
        %s257 = smul.addr %s256, 32
        %s258 = scalar_lea.vmem [#allocation7], %s257
        // Predicated region
        $region45: #{tpu_custom_call.1} parent=35 // pred_check
          %p259 = pneg %p93
        $region46: #{tpu_custom_call.1} parent=35 // pred_check_branch
          %261 = sbr.rel (%p259) target = $region48
        $region47: #{tpu_custom_call.1} parent=35 // pred_region
          %262 = dma.done %s255, 512
        $region48: #{tpu_custom_call.1} parent=35 // pred_fallthru
          _
        %s263 = sand.u32 %s106, 1
        %s264 = scalar_lea.sflag [#allocation9], %s263
        %s265 = sand.u32 %s106, 1
        %s266 = smul.addr %s265, 32
        %s267 = scalar_lea.vmem [#allocation8], %s266
        // Predicated region
        $region49: #{tpu_custom_call.1} parent=35 // pred_check
          %p268 = pneg %p119
        $region50: #{tpu_custom_call.1} parent=35 // pred_check_branch
          %270 = sbr.rel (%p268) target = $region52
        $region51: #{tpu_custom_call.1} parent=35 // pred_region
          %271 = dma.done %s264, 512
        $region52: #{tpu_custom_call.1} parent=35 // pred_fallthru
          _
        %p272 = pneg %p41
        %p273 = pneg %p38
        %s274 = sand.u32 %s25, 1
        %s275 = scalar_lea.sflag [#allocation6], %s274
        %s276 = sand.u32 %s54, 1
        %s277 = smul.addr %s276, 8192
        %s278 = scalar_lea.vmem [#allocation5], %s277
        %p279 = pneg %p67
        %p280 = pneg %p64
        %s281 = sand.u32 %s25, 1
        %s282 = scalar_lea.sflag [#allocation6], %s281
        %s283 = sand.u32 %s80, 1
        %s284 = smul.addr %s283, 32
        %s285 = scalar_lea.vmem [#allocation7], %s284
        %p286 = pneg %p93
        %p287 = pneg %p90
        %s288 = sand.u32 %s106, 1
        %s289 = scalar_lea.sflag [#allocation9], %s288
        %s290 = sand.u32 %s106, 1
        %s291 = smul.addr %s290, 32
        %s292 = scalar_lea.vmem [#allocation8], %s291
        %p293 = pneg %p119
        %p294 = pneg %p116
        %p295 = pneg %p145
        %p296 = pneg %p142
        %s297 = sand.u32 %s132, 1
        %s298 = scalar_lea.sflag [#allocation4], %s297
        %s299 = sand.u32 %s132, 1
        %s300 = smul.addr %s299, 64
        %s301 = scalar_lea.vmem [#allocation10], %s300
        %s302 = smul.u32 32, %s25
        %s303 = smul.u32 32, %s25
        %s304 = smul.u32 32, %s25
        %v305 = vld [vmem:[%s249] sm:$0xff]
        %v306 = vld [vmem:[%s249 + $0x8] sm:$0xff]
        %v307 = vld [vmem:[%s249 + $0x10] sm:$0xff]
        %v308 = vld [vmem:[%s249 + $0x18] sm:$0xff]
        %v309 = vld [vmem:[%s249 + $0x20] sm:$0xff]
        %v310 = vld [vmem:[%s249 + $0x28] sm:$0xff]
        %v311 = vld [vmem:[%s249 + $0x30] sm:$0xff]
        %v312 = vld [vmem:[%s249 + $0x38] sm:$0xff]
        %v313 = vld [vmem:[%s249 + $0x40] sm:$0xff]
        %v314 = vld [vmem:[%s249 + $0x48] sm:$0xff]
        %v315 = vld [vmem:[%s249 + $0x50] sm:$0xff]
        %v316 = vld [vmem:[%s249 + $0x58] sm:$0xff]
        %v317 = vld [vmem:[%s249 + $0x60] sm:$0xff]
        %v318 = vld [vmem:[%s249 + $0x68] sm:$0xff]
        %v319 = vld [vmem:[%s249 + $0x70] sm:$0xff]
        %v320 = vld [vmem:[%s249 + $0x78] sm:$0xff]
        %v321 = vld [vmem:[%s249 + $0x80] sm:$0xff]
        %v322 = vld [vmem:[%s249 + $0x88] sm:$0xff]
        %v323 = vld [vmem:[%s249 + $0x90] sm:$0xff]
        %v324 = vld [vmem:[%s249 + $0x98] sm:$0xff]
        %v325 = vld [vmem:[%s249 + $0xa0] sm:$0xff]
        %v326 = vld [vmem:[%s249 + $0xa8] sm:$0xff]
        %v327 = vld [vmem:[%s249 + $0xb0] sm:$0xff]
        %v328 = vld [vmem:[%s249 + $0xb8] sm:$0xff]
        %v329 = vld [vmem:[%s249 + $0xc0] sm:$0xff]
        %v330 = vld [vmem:[%s249 + $0xc8] sm:$0xff]
        %v331 = vld [vmem:[%s249 + $0xd0] sm:$0xff]
        %v332 = vld [vmem:[%s249 + $0xd8] sm:$0xff]
        %v333 = vld [vmem:[%s249 + $0xe0] sm:$0xff]
        %v334 = vld [vmem:[%s249 + $0xe8] sm:$0xff]
        %v335 = vld [vmem:[%s249 + $0xf0] sm:$0xff]
        %v336 = vld [vmem:[%s249 + $0xf8] sm:$0xff]
        %v337 = vld [vmem:[%s249 + $0x100] sm:$0xff]
        %v338 = vld [vmem:[%s249 + $0x108] sm:$0xff]
        %v339 = vld [vmem:[%s249 + $0x110] sm:$0xff]
        %v340 = vld [vmem:[%s249 + $0x118] sm:$0xff]
        %v341 = vld [vmem:[%s249 + $0x120] sm:$0xff]
        %v342 = vld [vmem:[%s249 + $0x128] sm:$0xff]
        %v343 = vld [vmem:[%s249 + $0x130] sm:$0xff]
        %v344 = vld [vmem:[%s249 + $0x138] sm:$0xff]
        %v345 = vld [vmem:[%s249 + $0x140] sm:$0xff]
        %v346 = vld [vmem:[%s249 + $0x148] sm:$0xff]
        %v347 = vld [vmem:[%s249 + $0x150] sm:$0xff]
        %v348 = vld [vmem:[%s249 + $0x158] sm:$0xff]
        %v349 = vld [vmem:[%s249 + $0x160] sm:$0xff]
        %v350 = vld [vmem:[%s249 + $0x168] sm:$0xff]
        %v351 = vld [vmem:[%s249 + $0x170] sm:$0xff]
        %v352 = vld [vmem:[%s249 + $0x178] sm:$0xff]
        %v353 = vld [vmem:[%s249 + $0x180] sm:$0xff]
        %v354 = vld [vmem:[%s249 + $0x188] sm:$0xff]
        %v355 = vld [vmem:[%s249 + $0x190] sm:$0xff]
        %v356 = vld [vmem:[%s249 + $0x198] sm:$0xff]
        %v357 = vld [vmem:[%s249 + $0x1a0] sm:$0xff]
        %v358 = vld [vmem:[%s249 + $0x1a8] sm:$0xff]
        %v359 = vld [vmem:[%s249 + $0x1b0] sm:$0xff]
        %v360 = vld [vmem:[%s249 + $0x1b8] sm:$0xff]
        %v361 = vld [vmem:[%s249 + $0x1c0] sm:$0xff]
        %v362 = vld [vmem:[%s249 + $0x1c8] sm:$0xff]
        %v363 = vld [vmem:[%s249 + $0x1d0] sm:$0xff]
        %v364 = vld [vmem:[%s249 + $0x1d8] sm:$0xff]
        %v365 = vld [vmem:[%s249 + $0x1e0] sm:$0xff]
        %v366 = vld [vmem:[%s249 + $0x1e8] sm:$0xff]
        %v367 = vld [vmem:[%s249 + $0x1f0] sm:$0xff]
        %v368 = vld [vmem:[%s249 + $0x1f8] sm:$0xff]
        %v369 = vld [vmem:[%s249 + $0x200] sm:$0xff]
        %v370 = vld [vmem:[%s249 + $0x208] sm:$0xff]
        %v371 = vld [vmem:[%s249 + $0x210] sm:$0xff]
        %v372 = vld [vmem:[%s249 + $0x218] sm:$0xff]
        %v373 = vld [vmem:[%s249 + $0x220] sm:$0xff]
        %v374 = vld [vmem:[%s249 + $0x228] sm:$0xff]
        %v375 = vld [vmem:[%s249 + $0x230] sm:$0xff]
        %v376 = vld [vmem:[%s249 + $0x238] sm:$0xff]
        %v377 = vld [vmem:[%s249 + $0x240] sm:$0xff]
        %v378 = vld [vmem:[%s249 + $0x248] sm:$0xff]
        %v379 = vld [vmem:[%s249 + $0x250] sm:$0xff]
        %v380 = vld [vmem:[%s249 + $0x258] sm:$0xff]
        %v381 = vld [vmem:[%s249 + $0x260] sm:$0xff]
        %v382 = vld [vmem:[%s249 + $0x268] sm:$0xff]
        %v383 = vld [vmem:[%s249 + $0x270] sm:$0xff]
        %v384 = vld [vmem:[%s249 + $0x278] sm:$0xff]
        %v385 = vld [vmem:[%s249 + $0x280] sm:$0xff]
        %v386 = vld [vmem:[%s249 + $0x288] sm:$0xff]
        %v387 = vld [vmem:[%s249 + $0x290] sm:$0xff]
        %v388 = vld [vmem:[%s249 + $0x298] sm:$0xff]
        %v389 = vld [vmem:[%s249 + $0x2a0] sm:$0xff]
        %v390 = vld [vmem:[%s249 + $0x2a8] sm:$0xff]
        %v391 = vld [vmem:[%s249 + $0x2b0] sm:$0xff]
        %v392 = vld [vmem:[%s249 + $0x2b8] sm:$0xff]
        %v393 = vld [vmem:[%s249 + $0x2c0] sm:$0xff]
        %v394 = vld [vmem:[%s249 + $0x2c8] sm:$0xff]
        %v395 = vld [vmem:[%s249 + $0x2d0] sm:$0xff]
        %v396 = vld [vmem:[%s249 + $0x2d8] sm:$0xff]
        %v397 = vld [vmem:[%s249 + $0x2e0] sm:$0xff]
        %v398 = vld [vmem:[%s249 + $0x2e8] sm:$0xff]
        %v399 = vld [vmem:[%s249 + $0x2f0] sm:$0xff]
        %v400 = vld [vmem:[%s249 + $0x2f8] sm:$0xff]
        %v401 = vld [vmem:[%s249 + $0x300] sm:$0xff]
        %v402 = vld [vmem:[%s249 + $0x308] sm:$0xff]
        %v403 = vld [vmem:[%s249 + $0x310] sm:$0xff]
        %v404 = vld [vmem:[%s249 + $0x318] sm:$0xff]
        %v405 = vld [vmem:[%s249 + $0x320] sm:$0xff]
        %v406 = vld [vmem:[%s249 + $0x328] sm:$0xff]
        %v407 = vld [vmem:[%s249 + $0x330] sm:$0xff]
        %v408 = vld [vmem:[%s249 + $0x338] sm:$0xff]
        %v409 = vld [vmem:[%s249 + $0x340] sm:$0xff]
        %v410 = vld [vmem:[%s249 + $0x348] sm:$0xff]
        %v411 = vld [vmem:[%s249 + $0x350] sm:$0xff]
        %v412 = vld [vmem:[%s249 + $0x358] sm:$0xff]
        %v413 = vld [vmem:[%s249 + $0x360] sm:$0xff]
        %v414 = vld [vmem:[%s249 + $0x368] sm:$0xff]
        %v415 = vld [vmem:[%s249 + $0x370] sm:$0xff]
        %v416 = vld [vmem:[%s249 + $0x378] sm:$0xff]
        %v417 = vld [vmem:[%s249 + $0x380] sm:$0xff]
        %v418 = vld [vmem:[%s249 + $0x388] sm:$0xff]
        %v419 = vld [vmem:[%s249 + $0x390] sm:$0xff]
        %v420 = vld [vmem:[%s249 + $0x398] sm:$0xff]
        %v421 = vld [vmem:[%s249 + $0x3a0] sm:$0xff]
        %v422 = vld [vmem:[%s249 + $0x3a8] sm:$0xff]
        %v423 = vld [vmem:[%s249 + $0x3b0] sm:$0xff]
        %v424 = vld [vmem:[%s249 + $0x3b8] sm:$0xff]
        %v425 = vld [vmem:[%s249 + $0x3c0] sm:$0xff]
        %v426 = vld [vmem:[%s249 + $0x3c8] sm:$0xff]
        %v427 = vld [vmem:[%s249 + $0x3d0] sm:$0xff]
        %v428 = vld [vmem:[%s249 + $0x3d8] sm:$0xff]
        %v429 = vld [vmem:[%s249 + $0x3e0] sm:$0xff]
        %v430 = vld [vmem:[%s249 + $0x3e8] sm:$0xff]
        %v431 = vld [vmem:[%s249 + $0x3f0] sm:$0xff]
        %v432 = vld [vmem:[%s249 + $0x3f8] sm:$0xff]
        %v433 = vld [vmem:[%s249 + $0x400] sm:$0xff]
        %v434 = vld [vmem:[%s249 + $0x408] sm:$0xff]
        %v435 = vld [vmem:[%s249 + $0x410] sm:$0xff]
        %v436 = vld [vmem:[%s249 + $0x418] sm:$0xff]
        %v437 = vld [vmem:[%s249 + $0x420] sm:$0xff]
        %v438 = vld [vmem:[%s249 + $0x428] sm:$0xff]
        %v439 = vld [vmem:[%s249 + $0x430] sm:$0xff]
        %v440 = vld [vmem:[%s249 + $0x438] sm:$0xff]
        %v441 = vld [vmem:[%s249 + $0x440] sm:$0xff]
        %v442 = vld [vmem:[%s249 + $0x448] sm:$0xff]
        %v443 = vld [vmem:[%s249 + $0x450] sm:$0xff]
        %v444 = vld [vmem:[%s249 + $0x458] sm:$0xff]
        %v445 = vld [vmem:[%s249 + $0x460] sm:$0xff]
        %v446 = vld [vmem:[%s249 + $0x468] sm:$0xff]
        %v447 = vld [vmem:[%s249 + $0x470] sm:$0xff]
        %v448 = vld [vmem:[%s249 + $0x478] sm:$0xff]
        %v449 = vld [vmem:[%s249 + $0x480] sm:$0xff]
        %v450 = vld [vmem:[%s249 + $0x488] sm:$0xff]
        %v451 = vld [vmem:[%s249 + $0x490] sm:$0xff]
        %v452 = vld [vmem:[%s249 + $0x498] sm:$0xff]
        %v453 = vld [vmem:[%s249 + $0x4a0] sm:$0xff]
        %v454 = vld [vmem:[%s249 + $0x4a8] sm:$0xff]
        %v455 = vld [vmem:[%s249 + $0x4b0] sm:$0xff]
        %v456 = vld [vmem:[%s249 + $0x4b8] sm:$0xff]
        %v457 = vld [vmem:[%s249 + $0x4c0] sm:$0xff]
        %v458 = vld [vmem:[%s249 + $0x4c8] sm:$0xff]
        %v459 = vld [vmem:[%s249 + $0x4d0] sm:$0xff]
        %v460 = vld [vmem:[%s249 + $0x4d8] sm:$0xff]
        %v461 = vld [vmem:[%s249 + $0x4e0] sm:$0xff]
        %v462 = vld [vmem:[%s249 + $0x4e8] sm:$0xff]
        %v463 = vld [vmem:[%s249 + $0x4f0] sm:$0xff]
        %v464 = vld [vmem:[%s249 + $0x4f8] sm:$0xff]
        %v465 = vld [vmem:[%s249 + $0x500] sm:$0xff]
        %v466 = vld [vmem:[%s249 + $0x508] sm:$0xff]
        %v467 = vld [vmem:[%s249 + $0x510] sm:$0xff]
        %v468 = vld [vmem:[%s249 + $0x518] sm:$0xff]
        %v469 = vld [vmem:[%s249 + $0x520] sm:$0xff]
        %v470 = vld [vmem:[%s249 + $0x528] sm:$0xff]
        %v471 = vld [vmem:[%s249 + $0x530] sm:$0xff]
        %v472 = vld [vmem:[%s249 + $0x538] sm:$0xff]
        %v473 = vld [vmem:[%s249 + $0x540] sm:$0xff]
        %v474 = vld [vmem:[%s249 + $0x548] sm:$0xff]
        %v475 = vld [vmem:[%s249 + $0x550] sm:$0xff]
        %v476 = vld [vmem:[%s249 + $0x558] sm:$0xff]
        %v477 = vld [vmem:[%s249 + $0x560] sm:$0xff]
        %v478 = vld [vmem:[%s249 + $0x568] sm:$0xff]
        %v479 = vld [vmem:[%s249 + $0x570] sm:$0xff]
        %v480 = vld [vmem:[%s249 + $0x578] sm:$0xff]
        %v481 = vld [vmem:[%s249 + $0x580] sm:$0xff]
        %v482 = vld [vmem:[%s249 + $0x588] sm:$0xff]
        %v483 = vld [vmem:[%s249 + $0x590] sm:$0xff]
        %v484 = vld [vmem:[%s249 + $0x598] sm:$0xff]
        %v485 = vld [vmem:[%s249 + $0x5a0] sm:$0xff]
        %v486 = vld [vmem:[%s249 + $0x5a8] sm:$0xff]
        %v487 = vld [vmem:[%s249 + $0x5b0] sm:$0xff]
        %v488 = vld [vmem:[%s249 + $0x5b8] sm:$0xff]
        %v489 = vld [vmem:[%s249 + $0x5c0] sm:$0xff]
        %v490 = vld [vmem:[%s249 + $0x5c8] sm:$0xff]
        %v491 = vld [vmem:[%s249 + $0x5d0] sm:$0xff]
        %v492 = vld [vmem:[%s249 + $0x5d8] sm:$0xff]
        %v493 = vld [vmem:[%s249 + $0x5e0] sm:$0xff]
        %v494 = vld [vmem:[%s249 + $0x5e8] sm:$0xff]
        %v495 = vld [vmem:[%s249 + $0x5f0] sm:$0xff]
        %v496 = vld [vmem:[%s249 + $0x5f8] sm:$0xff]
        %v497 = vld [vmem:[%s249 + $0x600] sm:$0xff]
        %v498 = vld [vmem:[%s249 + $0x608] sm:$0xff]
        %v499 = vld [vmem:[%s249 + $0x610] sm:$0xff]
        %v500 = vld [vmem:[%s249 + $0x618] sm:$0xff]
        %v501 = vld [vmem:[%s249 + $0x620] sm:$0xff]
        %v502 = vld [vmem:[%s249 + $0x628] sm:$0xff]
        %v503 = vld [vmem:[%s249 + $0x630] sm:$0xff]
        %v504 = vld [vmem:[%s249 + $0x638] sm:$0xff]
        %v505 = vld [vmem:[%s249 + $0x640] sm:$0xff]
        %v506 = vld [vmem:[%s249 + $0x648] sm:$0xff]
        %v507 = vld [vmem:[%s249 + $0x650] sm:$0xff]
        %v508 = vld [vmem:[%s249 + $0x658] sm:$0xff]
        %v509 = vld [vmem:[%s249 + $0x660] sm:$0xff]
        %v510 = vld [vmem:[%s249 + $0x668] sm:$0xff]
        %v511 = vld [vmem:[%s249 + $0x670] sm:$0xff]
        %v512 = vld [vmem:[%s249 + $0x678] sm:$0xff]
        %v513 = vld [vmem:[%s249 + $0x680] sm:$0xff]
        %v514 = vld [vmem:[%s249 + $0x688] sm:$0xff]
        %v515 = vld [vmem:[%s249 + $0x690] sm:$0xff]
        %v516 = vld [vmem:[%s249 + $0x698] sm:$0xff]
        %v517 = vld [vmem:[%s249 + $0x6a0] sm:$0xff]
        %v518 = vld [vmem:[%s249 + $0x6a8] sm:$0xff]
        %v519 = vld [vmem:[%s249 + $0x6b0] sm:$0xff]
        %v520 = vld [vmem:[%s249 + $0x6b8] sm:$0xff]
        %v521 = vld [vmem:[%s249 + $0x6c0] sm:$0xff]
        %v522 = vld [vmem:[%s249 + $0x6c8] sm:$0xff]
        %v523 = vld [vmem:[%s249 + $0x6d0] sm:$0xff]
        %v524 = vld [vmem:[%s249 + $0x6d8] sm:$0xff]
        %v525 = vld [vmem:[%s249 + $0x6e0] sm:$0xff]
        %v526 = vld [vmem:[%s249 + $0x6e8] sm:$0xff]
        %v527 = vld [vmem:[%s249 + $0x6f0] sm:$0xff]
        %v528 = vld [vmem:[%s249 + $0x6f8] sm:$0xff]
        %v529 = vld [vmem:[%s249 + $0x700] sm:$0xff]
        %v530 = vld [vmem:[%s249 + $0x708] sm:$0xff]
        %v531 = vld [vmem:[%s249 + $0x710] sm:$0xff]
        %v532 = vld [vmem:[%s249 + $0x718] sm:$0xff]
        %v533 = vld [vmem:[%s249 + $0x720] sm:$0xff]
        %v534 = vld [vmem:[%s249 + $0x728] sm:$0xff]
        %v535 = vld [vmem:[%s249 + $0x730] sm:$0xff]
        %v536 = vld [vmem:[%s249 + $0x738] sm:$0xff]
        %v537 = vld [vmem:[%s249 + $0x740] sm:$0xff]
        %v538 = vld [vmem:[%s249 + $0x748] sm:$0xff]
        %v539 = vld [vmem:[%s249 + $0x750] sm:$0xff]
        %v540 = vld [vmem:[%s249 + $0x758] sm:$0xff]
        %v541 = vld [vmem:[%s249 + $0x760] sm:$0xff]
        %v542 = vld [vmem:[%s249 + $0x768] sm:$0xff]
        %v543 = vld [vmem:[%s249 + $0x770] sm:$0xff]
        %v544 = vld [vmem:[%s249 + $0x778] sm:$0xff]
        %v545 = vld [vmem:[%s249 + $0x780] sm:$0xff]
        %v546 = vld [vmem:[%s249 + $0x788] sm:$0xff]
        %v547 = vld [vmem:[%s249 + $0x790] sm:$0xff]
        %v548 = vld [vmem:[%s249 + $0x798] sm:$0xff]
        %v549 = vld [vmem:[%s249 + $0x7a0] sm:$0xff]
        %v550 = vld [vmem:[%s249 + $0x7a8] sm:$0xff]
        %v551 = vld [vmem:[%s249 + $0x7b0] sm:$0xff]
        %v552 = vld [vmem:[%s249 + $0x7b8] sm:$0xff]
        %v553 = vld [vmem:[%s249 + $0x7c0] sm:$0xff]
        %v554 = vld [vmem:[%s249 + $0x7c8] sm:$0xff]
        %v555 = vld [vmem:[%s249 + $0x7d0] sm:$0xff]
        %v556 = vld [vmem:[%s249 + $0x7d8] sm:$0xff]
        %v557 = vld [vmem:[%s249 + $0x7e0] sm:$0xff]
        %v558 = vld [vmem:[%s249 + $0x7e8] sm:$0xff]
        %v559 = vld [vmem:[%s249 + $0x7f0] sm:$0xff]
        %v560 = vld [vmem:[%s249 + $0x7f8] sm:$0xff]
        %v561 = vld [vmem:[%s249 + $0x800] sm:$0xff]
        %v562 = vld [vmem:[%s249 + $0x808] sm:$0xff]
        %v563 = vld [vmem:[%s249 + $0x810] sm:$0xff]
        %v564 = vld [vmem:[%s249 + $0x818] sm:$0xff]
        %v565 = vld [vmem:[%s249 + $0x820] sm:$0xff]
        %v566 = vld [vmem:[%s249 + $0x828] sm:$0xff]
        %v567 = vld [vmem:[%s249 + $0x830] sm:$0xff]
        %v568 = vld [vmem:[%s249 + $0x838] sm:$0xff]
        %v569 = vld [vmem:[%s249 + $0x840] sm:$0xff]
        %v570 = vld [vmem:[%s249 + $0x848] sm:$0xff]
        %v571 = vld [vmem:[%s249 + $0x850] sm:$0xff]
        %v572 = vld [vmem:[%s249 + $0x858] sm:$0xff]
        %v573 = vld [vmem:[%s249 + $0x860] sm:$0xff]
        %v574 = vld [vmem:[%s249 + $0x868] sm:$0xff]
        %v575 = vld [vmem:[%s249 + $0x870] sm:$0xff]
        %v576 = vld [vmem:[%s249 + $0x878] sm:$0xff]
        %v577 = vld [vmem:[%s249 + $0x880] sm:$0xff]
        %v578 = vld [vmem:[%s249 + $0x888] sm:$0xff]
        %v579 = vld [vmem:[%s249 + $0x890] sm:$0xff]
        %v580 = vld [vmem:[%s249 + $0x898] sm:$0xff]
        %v581 = vld [vmem:[%s249 + $0x8a0] sm:$0xff]
        %v582 = vld [vmem:[%s249 + $0x8a8] sm:$0xff]
        %v583 = vld [vmem:[%s249 + $0x8b0] sm:$0xff]
        %v584 = vld [vmem:[%s249 + $0x8b8] sm:$0xff]
        %v585 = vld [vmem:[%s249 + $0x8c0] sm:$0xff]
        %v586 = vld [vmem:[%s249 + $0x8c8] sm:$0xff]
        %v587 = vld [vmem:[%s249 + $0x8d0] sm:$0xff]
        %v588 = vld [vmem:[%s249 + $0x8d8] sm:$0xff]
        %v589 = vld [vmem:[%s249 + $0x8e0] sm:$0xff]
        %v590 = vld [vmem:[%s249 + $0x8e8] sm:$0xff]
        %v591 = vld [vmem:[%s249 + $0x8f0] sm:$0xff]
        %v592 = vld [vmem:[%s249 + $0x8f8] sm:$0xff]
        %v593 = vld [vmem:[%s249 + $0x900] sm:$0xff]
        %v594 = vld [vmem:[%s249 + $0x908] sm:$0xff]
        %v595 = vld [vmem:[%s249 + $0x910] sm:$0xff]
        %v596 = vld [vmem:[%s249 + $0x918] sm:$0xff]
        %v597 = vld [vmem:[%s249 + $0x920] sm:$0xff]
        %v598 = vld [vmem:[%s249 + $0x928] sm:$0xff]
        %v599 = vld [vmem:[%s249 + $0x930] sm:$0xff]
        %v600 = vld [vmem:[%s249 + $0x938] sm:$0xff]
        %v601 = vld [vmem:[%s249 + $0x940] sm:$0xff]
        %v602 = vld [vmem:[%s249 + $0x948] sm:$0xff]
        %v603 = vld [vmem:[%s249 + $0x950] sm:$0xff]
        %v604 = vld [vmem:[%s249 + $0x958] sm:$0xff]
        %v605 = vld [vmem:[%s249 + $0x960] sm:$0xff]
        %v606 = vld [vmem:[%s249 + $0x968] sm:$0xff]
        %v607 = vld [vmem:[%s249 + $0x970] sm:$0xff]
        %v608 = vld [vmem:[%s249 + $0x978] sm:$0xff]
        %v609 = vld [vmem:[%s249 + $0x980] sm:$0xff]
        %v610 = vld [vmem:[%s249 + $0x988] sm:$0xff]
        %v611 = vld [vmem:[%s249 + $0x990] sm:$0xff]
        %v612 = vld [vmem:[%s249 + $0x998] sm:$0xff]
        %v613 = vld [vmem:[%s249 + $0x9a0] sm:$0xff]
        %v614 = vld [vmem:[%s249 + $0x9a8] sm:$0xff]
        %v615 = vld [vmem:[%s249 + $0x9b0] sm:$0xff]
        %v616 = vld [vmem:[%s249 + $0x9b8] sm:$0xff]
        %v617 = vld [vmem:[%s249 + $0x9c0] sm:$0xff]
        %v618 = vld [vmem:[%s249 + $0x9c8] sm:$0xff]
        %v619 = vld [vmem:[%s249 + $0x9d0] sm:$0xff]
        %v620 = vld [vmem:[%s249 + $0x9d8] sm:$0xff]
        %v621 = vld [vmem:[%s249 + $0x9e0] sm:$0xff]
        %v622 = vld [vmem:[%s249 + $0x9e8] sm:$0xff]
        %v623 = vld [vmem:[%s249 + $0x9f0] sm:$0xff]
        %v624 = vld [vmem:[%s249 + $0x9f8] sm:$0xff]
        %v625 = vld [vmem:[%s249 + $0xa00] sm:$0xff]
        %v626 = vld [vmem:[%s249 + $0xa08] sm:$0xff]
        %v627 = vld [vmem:[%s249 + $0xa10] sm:$0xff]
        %v628 = vld [vmem:[%s249 + $0xa18] sm:$0xff]
        %v629 = vld [vmem:[%s249 + $0xa20] sm:$0xff]
        %v630 = vld [vmem:[%s249 + $0xa28] sm:$0xff]
        %v631 = vld [vmem:[%s249 + $0xa30] sm:$0xff]
        %v632 = vld [vmem:[%s249 + $0xa38] sm:$0xff]
        %v633 = vld [vmem:[%s249 + $0xa40] sm:$0xff]
        %v634 = vld [vmem:[%s249 + $0xa48] sm:$0xff]
        %v635 = vld [vmem:[%s249 + $0xa50] sm:$0xff]
        %v636 = vld [vmem:[%s249 + $0xa58] sm:$0xff]
        %v637 = vld [vmem:[%s249 + $0xa60] sm:$0xff]
        %v638 = vld [vmem:[%s249 + $0xa68] sm:$0xff]
        %v639 = vld [vmem:[%s249 + $0xa70] sm:$0xff]
        %v640 = vld [vmem:[%s249 + $0xa78] sm:$0xff]
        %v641 = vld [vmem:[%s249 + $0xa80] sm:$0xff]
        %v642 = vld [vmem:[%s249 + $0xa88] sm:$0xff]
        %v643 = vld [vmem:[%s249 + $0xa90] sm:$0xff]
        %v644 = vld [vmem:[%s249 + $0xa98] sm:$0xff]
        %v645 = vld [vmem:[%s249 + $0xaa0] sm:$0xff]
        %v646 = vld [vmem:[%s249 + $0xaa8] sm:$0xff]
        %v647 = vld [vmem:[%s249 + $0xab0] sm:$0xff]
        %v648 = vld [vmem:[%s249 + $0xab8] sm:$0xff]
        %v649 = vld [vmem:[%s249 + $0xac0] sm:$0xff]
        %v650 = vld [vmem:[%s249 + $0xac8] sm:$0xff]
        %v651 = vld [vmem:[%s249 + $0xad0] sm:$0xff]
        %v652 = vld [vmem:[%s249 + $0xad8] sm:$0xff]
        %v653 = vld [vmem:[%s249 + $0xae0] sm:$0xff]
        %v654 = vld [vmem:[%s249 + $0xae8] sm:$0xff]
        %v655 = vld [vmem:[%s249 + $0xaf0] sm:$0xff]
        %v656 = vld [vmem:[%s249 + $0xaf8] sm:$0xff]
        %v657 = vld [vmem:[%s249 + $0xb00] sm:$0xff]
        %v658 = vld [vmem:[%s249 + $0xb08] sm:$0xff]
        %v659 = vld [vmem:[%s249 + $0xb10] sm:$0xff]
        %v660 = vld [vmem:[%s249 + $0xb18] sm:$0xff]
        %v661 = vld [vmem:[%s249 + $0xb20] sm:$0xff]
        %v662 = vld [vmem:[%s249 + $0xb28] sm:$0xff]
        %v663 = vld [vmem:[%s249 + $0xb30] sm:$0xff]
        %v664 = vld [vmem:[%s249 + $0xb38] sm:$0xff]
        %v665 = vld [vmem:[%s249 + $0xb40] sm:$0xff]
        %v666 = vld [vmem:[%s249 + $0xb48] sm:$0xff]
        %v667 = vld [vmem:[%s249 + $0xb50] sm:$0xff]
        %v668 = vld [vmem:[%s249 + $0xb58] sm:$0xff]
        %v669 = vld [vmem:[%s249 + $0xb60] sm:$0xff]
        %v670 = vld [vmem:[%s249 + $0xb68] sm:$0xff]
        %v671 = vld [vmem:[%s249 + $0xb70] sm:$0xff]
        %v672 = vld [vmem:[%s249 + $0xb78] sm:$0xff]
        %v673 = vld [vmem:[%s249 + $0xb80] sm:$0xff]
        %v674 = vld [vmem:[%s249 + $0xb88] sm:$0xff]
        %v675 = vld [vmem:[%s249 + $0xb90] sm:$0xff]
        %v676 = vld [vmem:[%s249 + $0xb98] sm:$0xff]
        %v677 = vld [vmem:[%s249 + $0xba0] sm:$0xff]
        %v678 = vld [vmem:[%s249 + $0xba8] sm:$0xff]
        %v679 = vld [vmem:[%s249 + $0xbb0] sm:$0xff]
        %v680 = vld [vmem:[%s249 + $0xbb8] sm:$0xff]
        %v681 = vld [vmem:[%s249 + $0xbc0] sm:$0xff]
        %v682 = vld [vmem:[%s249 + $0xbc8] sm:$0xff]
        %v683 = vld [vmem:[%s249 + $0xbd0] sm:$0xff]
        %v684 = vld [vmem:[%s249 + $0xbd8] sm:$0xff]
        %v685 = vld [vmem:[%s249 + $0xbe0] sm:$0xff]
        %v686 = vld [vmem:[%s249 + $0xbe8] sm:$0xff]
        %v687 = vld [vmem:[%s249 + $0xbf0] sm:$0xff]
        %v688 = vld [vmem:[%s249 + $0xbf8] sm:$0xff]
        %v689 = vld [vmem:[%s249 + $0xc00] sm:$0xff]
        %v690 = vld [vmem:[%s249 + $0xc08] sm:$0xff]
        %v691 = vld [vmem:[%s249 + $0xc10] sm:$0xff]
        %v692 = vld [vmem:[%s249 + $0xc18] sm:$0xff]
        %v693 = vld [vmem:[%s249 + $0xc20] sm:$0xff]
        %v694 = vld [vmem:[%s249 + $0xc28] sm:$0xff]
        %v695 = vld [vmem:[%s249 + $0xc30] sm:$0xff]
        %v696 = vld [vmem:[%s249 + $0xc38] sm:$0xff]
        %v697 = vld [vmem:[%s249 + $0xc40] sm:$0xff]
        %v698 = vld [vmem:[%s249 + $0xc48] sm:$0xff]
        %v699 = vld [vmem:[%s249 + $0xc50] sm:$0xff]
        %v700 = vld [vmem:[%s249 + $0xc58] sm:$0xff]
        %v701 = vld [vmem:[%s249 + $0xc60] sm:$0xff]
        %v702 = vld [vmem:[%s249 + $0xc68] sm:$0xff]
        %v703 = vld [vmem:[%s249 + $0xc70] sm:$0xff]
        %v704 = vld [vmem:[%s249 + $0xc78] sm:$0xff]
        %v705 = vld [vmem:[%s249 + $0xc80] sm:$0xff]
        %v706 = vld [vmem:[%s249 + $0xc88] sm:$0xff]
        %v707 = vld [vmem:[%s249 + $0xc90] sm:$0xff]
        %v708 = vld [vmem:[%s249 + $0xc98] sm:$0xff]
        %v709 = vld [vmem:[%s249 + $0xca0] sm:$0xff]
        %v710 = vld [vmem:[%s249 + $0xca8] sm:$0xff]
        %v711 = vld [vmem:[%s249 + $0xcb0] sm:$0xff]
        %v712 = vld [vmem:[%s249 + $0xcb8] sm:$0xff]
        %v713 = vld [vmem:[%s249 + $0xcc0] sm:$0xff]
        %v714 = vld [vmem:[%s249 + $0xcc8] sm:$0xff]
        %v715 = vld [vmem:[%s249 + $0xcd0] sm:$0xff]
        %v716 = vld [vmem:[%s249 + $0xcd8] sm:$0xff]
        %v717 = vld [vmem:[%s249 + $0xce0] sm:$0xff]
        %v718 = vld [vmem:[%s249 + $0xce8] sm:$0xff]
        %v719 = vld [vmem:[%s249 + $0xcf0] sm:$0xff]
        %v720 = vld [vmem:[%s249 + $0xcf8] sm:$0xff]
        %v721 = vld [vmem:[%s249 + $0xd00] sm:$0xff]
        %v722 = vld [vmem:[%s249 + $0xd08] sm:$0xff]
        %v723 = vld [vmem:[%s249 + $0xd10] sm:$0xff]
        %v724 = vld [vmem:[%s249 + $0xd18] sm:$0xff]
        %v725 = vld [vmem:[%s249 + $0xd20] sm:$0xff]
        %v726 = vld [vmem:[%s249 + $0xd28] sm:$0xff]
        %v727 = vld [vmem:[%s249 + $0xd30] sm:$0xff]
        %v728 = vld [vmem:[%s249 + $0xd38] sm:$0xff]
        %v729 = vld [vmem:[%s249 + $0xd40] sm:$0xff]
        %v730 = vld [vmem:[%s249 + $0xd48] sm:$0xff]
        %v731 = vld [vmem:[%s249 + $0xd50] sm:$0xff]
        %v732 = vld [vmem:[%s249 + $0xd58] sm:$0xff]
        %v733 = vld [vmem:[%s249 + $0xd60] sm:$0xff]
        %v734 = vld [vmem:[%s249 + $0xd68] sm:$0xff]
        %v735 = vld [vmem:[%s249 + $0xd70] sm:$0xff]
        %v736 = vld [vmem:[%s249 + $0xd78] sm:$0xff]
        %v737 = vld [vmem:[%s249 + $0xd80] sm:$0xff]
        %v738 = vld [vmem:[%s249 + $0xd88] sm:$0xff]
        %v739 = vld [vmem:[%s249 + $0xd90] sm:$0xff]
        %v740 = vld [vmem:[%s249 + $0xd98] sm:$0xff]
        %v741 = vld [vmem:[%s249 + $0xda0] sm:$0xff]
        %v742 = vld [vmem:[%s249 + $0xda8] sm:$0xff]
        %v743 = vld [vmem:[%s249 + $0xdb0] sm:$0xff]
        %v744 = vld [vmem:[%s249 + $0xdb8] sm:$0xff]
        %v745 = vld [vmem:[%s249 + $0xdc0] sm:$0xff]
        %v746 = vld [vmem:[%s249 + $0xdc8] sm:$0xff]
        %v747 = vld [vmem:[%s249 + $0xdd0] sm:$0xff]
        %v748 = vld [vmem:[%s249 + $0xdd8] sm:$0xff]
        %v749 = vld [vmem:[%s249 + $0xde0] sm:$0xff]
        %v750 = vld [vmem:[%s249 + $0xde8] sm:$0xff]
        %v751 = vld [vmem:[%s249 + $0xdf0] sm:$0xff]
        %v752 = vld [vmem:[%s249 + $0xdf8] sm:$0xff]
        %v753 = vld [vmem:[%s249 + $0xe00] sm:$0xff]
        %v754 = vld [vmem:[%s249 + $0xe08] sm:$0xff]
        %v755 = vld [vmem:[%s249 + $0xe10] sm:$0xff]
        %v756 = vld [vmem:[%s249 + $0xe18] sm:$0xff]
        %v757 = vld [vmem:[%s249 + $0xe20] sm:$0xff]
        %v758 = vld [vmem:[%s249 + $0xe28] sm:$0xff]
        %v759 = vld [vmem:[%s249 + $0xe30] sm:$0xff]
        %v760 = vld [vmem:[%s249 + $0xe38] sm:$0xff]
        %v761 = vld [vmem:[%s249 + $0xe40] sm:$0xff]
        %v762 = vld [vmem:[%s249 + $0xe48] sm:$0xff]
        %v763 = vld [vmem:[%s249 + $0xe50] sm:$0xff]
        %v764 = vld [vmem:[%s249 + $0xe58] sm:$0xff]
        %v765 = vld [vmem:[%s249 + $0xe60] sm:$0xff]
        %v766 = vld [vmem:[%s249 + $0xe68] sm:$0xff]
        %v767 = vld [vmem:[%s249 + $0xe70] sm:$0xff]
        %v768 = vld [vmem:[%s249 + $0xe78] sm:$0xff]
        %v769 = vld [vmem:[%s249 + $0xe80] sm:$0xff]
        %v770 = vld [vmem:[%s249 + $0xe88] sm:$0xff]
        %v771 = vld [vmem:[%s249 + $0xe90] sm:$0xff]
        %v772 = vld [vmem:[%s249 + $0xe98] sm:$0xff]
        %v773 = vld [vmem:[%s249 + $0xea0] sm:$0xff]
        %v774 = vld [vmem:[%s249 + $0xea8] sm:$0xff]
        %v775 = vld [vmem:[%s249 + $0xeb0] sm:$0xff]
        %v776 = vld [vmem:[%s249 + $0xeb8] sm:$0xff]
        %v777 = vld [vmem:[%s249 + $0xec0] sm:$0xff]
        %v778 = vld [vmem:[%s249 + $0xec8] sm:$0xff]
        %v779 = vld [vmem:[%s249 + $0xed0] sm:$0xff]
        %v780 = vld [vmem:[%s249 + $0xed8] sm:$0xff]
        %v781 = vld [vmem:[%s249 + $0xee0] sm:$0xff]
        %v782 = vld [vmem:[%s249 + $0xee8] sm:$0xff]
        %v783 = vld [vmem:[%s249 + $0xef0] sm:$0xff]
        %v784 = vld [vmem:[%s249 + $0xef8] sm:$0xff]
        %v785 = vld [vmem:[%s249 + $0xf00] sm:$0xff]
        %v786 = vld [vmem:[%s249 + $0xf08] sm:$0xff]
        %v787 = vld [vmem:[%s249 + $0xf10] sm:$0xff]
        %v788 = vld [vmem:[%s249 + $0xf18] sm:$0xff]
        %v789 = vld [vmem:[%s249 + $0xf20] sm:$0xff]
        %v790 = vld [vmem:[%s249 + $0xf28] sm:$0xff]
        %v791 = vld [vmem:[%s249 + $0xf30] sm:$0xff]
        %v792 = vld [vmem:[%s249 + $0xf38] sm:$0xff]
        %v793 = vld [vmem:[%s249 + $0xf40] sm:$0xff]
        %v794 = vld [vmem:[%s249 + $0xf48] sm:$0xff]
        %v795 = vld [vmem:[%s249 + $0xf50] sm:$0xff]
        %v796 = vld [vmem:[%s249 + $0xf58] sm:$0xff]
        %v797 = vld [vmem:[%s249 + $0xf60] sm:$0xff]
        %v798 = vld [vmem:[%s249 + $0xf68] sm:$0xff]
        %v799 = vld [vmem:[%s249 + $0xf70] sm:$0xff]
        %v800 = vld [vmem:[%s249 + $0xf78] sm:$0xff]
        %v801 = vld [vmem:[%s249 + $0xf80] sm:$0xff]
        %v802 = vld [vmem:[%s249 + $0xf88] sm:$0xff]
        %v803 = vld [vmem:[%s249 + $0xf90] sm:$0xff]
        %v804 = vld [vmem:[%s249 + $0xf98] sm:$0xff]
        %v805 = vld [vmem:[%s249 + $0xfa0] sm:$0xff]
        %v806 = vld [vmem:[%s249 + $0xfa8] sm:$0xff]
        %v807 = vld [vmem:[%s249 + $0xfb0] sm:$0xff]
        %v808 = vld [vmem:[%s249 + $0xfb8] sm:$0xff]
        %v809 = vld [vmem:[%s249 + $0xfc0] sm:$0xff]
        %v810 = vld [vmem:[%s249 + $0xfc8] sm:$0xff]
        %v811 = vld [vmem:[%s249 + $0xfd0] sm:$0xff]
        %v812 = vld [vmem:[%s249 + $0xfd8] sm:$0xff]
        %v813 = vld [vmem:[%s249 + $0xfe0] sm:$0xff]
        %v814 = vld [vmem:[%s249 + $0xfe8] sm:$0xff]
        %v815 = vld [vmem:[%s249 + $0xff0] sm:$0xff]
        %v816 = vld [vmem:[%s249 + $0xff8] sm:$0xff]
        %v817 = vld [vmem:[%s249 + $0x1000] sm:$0xff]
        %v818 = vld [vmem:[%s249 + $0x1008] sm:$0xff]
        %v819 = vld [vmem:[%s249 + $0x1010] sm:$0xff]
        %v820 = vld [vmem:[%s249 + $0x1018] sm:$0xff]
        %v821 = vld [vmem:[%s249 + $0x1020] sm:$0xff]
        %v822 = vld [vmem:[%s249 + $0x1028] sm:$0xff]
        %v823 = vld [vmem:[%s249 + $0x1030] sm:$0xff]
        %v824 = vld [vmem:[%s249 + $0x1038] sm:$0xff]
        %v825 = vld [vmem:[%s249 + $0x1040] sm:$0xff]
        %v826 = vld [vmem:[%s249 + $0x1048] sm:$0xff]
        %v827 = vld [vmem:[%s249 + $0x1050] sm:$0xff]
        %v828 = vld [vmem:[%s249 + $0x1058] sm:$0xff]
        %v829 = vld [vmem:[%s249 + $0x1060] sm:$0xff]
        %v830 = vld [vmem:[%s249 + $0x1068] sm:$0xff]
        %v831 = vld [vmem:[%s249 + $0x1070] sm:$0xff]
        %v832 = vld [vmem:[%s249 + $0x1078] sm:$0xff]
        %v833 = vld [vmem:[%s249 + $0x1080] sm:$0xff]
        %v834 = vld [vmem:[%s249 + $0x1088] sm:$0xff]
        %v835 = vld [vmem:[%s249 + $0x1090] sm:$0xff]
        %v836 = vld [vmem:[%s249 + $0x1098] sm:$0xff]
        %v837 = vld [vmem:[%s249 + $0x10a0] sm:$0xff]
        %v838 = vld [vmem:[%s249 + $0x10a8] sm:$0xff]
        %v839 = vld [vmem:[%s249 + $0x10b0] sm:$0xff]
        %v840 = vld [vmem:[%s249 + $0x10b8] sm:$0xff]
        %v841 = vld [vmem:[%s249 + $0x10c0] sm:$0xff]
        %v842 = vld [vmem:[%s249 + $0x10c8] sm:$0xff]
        %v843 = vld [vmem:[%s249 + $0x10d0] sm:$0xff]
        %v844 = vld [vmem:[%s249 + $0x10d8] sm:$0xff]
        %v845 = vld [vmem:[%s249 + $0x10e0] sm:$0xff]
        %v846 = vld [vmem:[%s249 + $0x10e8] sm:$0xff]
        %v847 = vld [vmem:[%s249 + $0x10f0] sm:$0xff]
        %v848 = vld [vmem:[%s249 + $0x10f8] sm:$0xff]
        %v849 = vld [vmem:[%s249 + $0x1100] sm:$0xff]
        %v850 = vld [vmem:[%s249 + $0x1108] sm:$0xff]
        %v851 = vld [vmem:[%s249 + $0x1110] sm:$0xff]
        %v852 = vld [vmem:[%s249 + $0x1118] sm:$0xff]
        %v853 = vld [vmem:[%s249 + $0x1120] sm:$0xff]
        %v854 = vld [vmem:[%s249 + $0x1128] sm:$0xff]
        %v855 = vld [vmem:[%s249 + $0x1130] sm:$0xff]
        %v856 = vld [vmem:[%s249 + $0x1138] sm:$0xff]
        %v857 = vld [vmem:[%s249 + $0x1140] sm:$0xff]
        %v858 = vld [vmem:[%s249 + $0x1148] sm:$0xff]
        %v859 = vld [vmem:[%s249 + $0x1150] sm:$0xff]
        %v860 = vld [vmem:[%s249 + $0x1158] sm:$0xff]
        %v861 = vld [vmem:[%s249 + $0x1160] sm:$0xff]
        %v862 = vld [vmem:[%s249 + $0x1168] sm:$0xff]
        %v863 = vld [vmem:[%s249 + $0x1170] sm:$0xff]
        %v864 = vld [vmem:[%s249 + $0x1178] sm:$0xff]
        %v865 = vld [vmem:[%s249 + $0x1180] sm:$0xff]
        %v866 = vld [vmem:[%s249 + $0x1188] sm:$0xff]
        %v867 = vld [vmem:[%s249 + $0x1190] sm:$0xff]
        %v868 = vld [vmem:[%s249 + $0x1198] sm:$0xff]
        %v869 = vld [vmem:[%s249 + $0x11a0] sm:$0xff]
        %v870 = vld [vmem:[%s249 + $0x11a8] sm:$0xff]
        %v871 = vld [vmem:[%s249 + $0x11b0] sm:$0xff]
        %v872 = vld [vmem:[%s249 + $0x11b8] sm:$0xff]
        %v873 = vld [vmem:[%s249 + $0x11c0] sm:$0xff]
        %v874 = vld [vmem:[%s249 + $0x11c8] sm:$0xff]
        %v875 = vld [vmem:[%s249 + $0x11d0] sm:$0xff]
        %v876 = vld [vmem:[%s249 + $0x11d8] sm:$0xff]
        %v877 = vld [vmem:[%s249 + $0x11e0] sm:$0xff]
        %v878 = vld [vmem:[%s249 + $0x11e8] sm:$0xff]
        %v879 = vld [vmem:[%s249 + $0x11f0] sm:$0xff]
        %v880 = vld [vmem:[%s249 + $0x11f8] sm:$0xff]
        %v881 = vld [vmem:[%s249 + $0x1200] sm:$0xff]
        %v882 = vld [vmem:[%s249 + $0x1208] sm:$0xff]
        %v883 = vld [vmem:[%s249 + $0x1210] sm:$0xff]
        %v884 = vld [vmem:[%s249 + $0x1218] sm:$0xff]
        %v885 = vld [vmem:[%s249 + $0x1220] sm:$0xff]
        %v886 = vld [vmem:[%s249 + $0x1228] sm:$0xff]
        %v887 = vld [vmem:[%s249 + $0x1230] sm:$0xff]
        %v888 = vld [vmem:[%s249 + $0x1238] sm:$0xff]
        %v889 = vld [vmem:[%s249 + $0x1240] sm:$0xff]
        %v890 = vld [vmem:[%s249 + $0x1248] sm:$0xff]
        %v891 = vld [vmem:[%s249 + $0x1250] sm:$0xff]
        %v892 = vld [vmem:[%s249 + $0x1258] sm:$0xff]
        %v893 = vld [vmem:[%s249 + $0x1260] sm:$0xff]
        %v894 = vld [vmem:[%s249 + $0x1268] sm:$0xff]
        %v895 = vld [vmem:[%s249 + $0x1270] sm:$0xff]
        %v896 = vld [vmem:[%s249 + $0x1278] sm:$0xff]
        %v897 = vld [vmem:[%s249 + $0x1280] sm:$0xff]
        %v898 = vld [vmem:[%s249 + $0x1288] sm:$0xff]
        %v899 = vld [vmem:[%s249 + $0x1290] sm:$0xff]
        %v900 = vld [vmem:[%s249 + $0x1298] sm:$0xff]
        %v901 = vld [vmem:[%s249 + $0x12a0] sm:$0xff]
        %v902 = vld [vmem:[%s249 + $0x12a8] sm:$0xff]
        %v903 = vld [vmem:[%s249 + $0x12b0] sm:$0xff]
        %v904 = vld [vmem:[%s249 + $0x12b8] sm:$0xff]
        %v905 = vld [vmem:[%s249 + $0x12c0] sm:$0xff]
        %v906 = vld [vmem:[%s249 + $0x12c8] sm:$0xff]
        %v907 = vld [vmem:[%s249 + $0x12d0] sm:$0xff]
        %v908 = vld [vmem:[%s249 + $0x12d8] sm:$0xff]
        %v909 = vld [vmem:[%s249 + $0x12e0] sm:$0xff]
        %v910 = vld [vmem:[%s249 + $0x12e8] sm:$0xff]
        %v911 = vld [vmem:[%s249 + $0x12f0] sm:$0xff]
        %v912 = vld [vmem:[%s249 + $0x12f8] sm:$0xff]
        %v913 = vld [vmem:[%s249 + $0x1300] sm:$0xff]
        %v914 = vld [vmem:[%s249 + $0x1308] sm:$0xff]
        %v915 = vld [vmem:[%s249 + $0x1310] sm:$0xff]
        %v916 = vld [vmem:[%s249 + $0x1318] sm:$0xff]
        %v917 = vld [vmem:[%s249 + $0x1320] sm:$0xff]
        %v918 = vld [vmem:[%s249 + $0x1328] sm:$0xff]
        %v919 = vld [vmem:[%s249 + $0x1330] sm:$0xff]
        %v920 = vld [vmem:[%s249 + $0x1338] sm:$0xff]
        %v921 = vld [vmem:[%s249 + $0x1340] sm:$0xff]
        %v922 = vld [vmem:[%s249 + $0x1348] sm:$0xff]
        %v923 = vld [vmem:[%s249 + $0x1350] sm:$0xff]
        %v924 = vld [vmem:[%s249 + $0x1358] sm:$0xff]
        %v925 = vld [vmem:[%s249 + $0x1360] sm:$0xff]
        %v926 = vld [vmem:[%s249 + $0x1368] sm:$0xff]
        %v927 = vld [vmem:[%s249 + $0x1370] sm:$0xff]
        %v928 = vld [vmem:[%s249 + $0x1378] sm:$0xff]
        %v929 = vld [vmem:[%s249 + $0x1380] sm:$0xff]
        %v930 = vld [vmem:[%s249 + $0x1388] sm:$0xff]
        %v931 = vld [vmem:[%s249 + $0x1390] sm:$0xff]
        %v932 = vld [vmem:[%s249 + $0x1398] sm:$0xff]
        %v933 = vld [vmem:[%s249 + $0x13a0] sm:$0xff]
        %v934 = vld [vmem:[%s249 + $0x13a8] sm:$0xff]
        %v935 = vld [vmem:[%s249 + $0x13b0] sm:$0xff]
        %v936 = vld [vmem:[%s249 + $0x13b8] sm:$0xff]
        %v937 = vld [vmem:[%s249 + $0x13c0] sm:$0xff]
        %v938 = vld [vmem:[%s249 + $0x13c8] sm:$0xff]
        %v939 = vld [vmem:[%s249 + $0x13d0] sm:$0xff]
        %v940 = vld [vmem:[%s249 + $0x13d8] sm:$0xff]
        %v941 = vld [vmem:[%s249 + $0x13e0] sm:$0xff]
        %v942 = vld [vmem:[%s249 + $0x13e8] sm:$0xff]
        %v943 = vld [vmem:[%s249 + $0x13f0] sm:$0xff]
        %v944 = vld [vmem:[%s249 + $0x13f8] sm:$0xff]
        %v945 = vld [vmem:[%s249 + $0x1400] sm:$0xff]
        %v946 = vld [vmem:[%s249 + $0x1408] sm:$0xff]
        %v947 = vld [vmem:[%s249 + $0x1410] sm:$0xff]
        %v948 = vld [vmem:[%s249 + $0x1418] sm:$0xff]
        %v949 = vld [vmem:[%s249 + $0x1420] sm:$0xff]
        %v950 = vld [vmem:[%s249 + $0x1428] sm:$0xff]
        %v951 = vld [vmem:[%s249 + $0x1430] sm:$0xff]
        %v952 = vld [vmem:[%s249 + $0x1438] sm:$0xff]
        %v953 = vld [vmem:[%s249 + $0x1440] sm:$0xff]
        %v954 = vld [vmem:[%s249 + $0x1448] sm:$0xff]
        %v955 = vld [vmem:[%s249 + $0x1450] sm:$0xff]
        %v956 = vld [vmem:[%s249 + $0x1458] sm:$0xff]
        %v957 = vld [vmem:[%s249 + $0x1460] sm:$0xff]
        %v958 = vld [vmem:[%s249 + $0x1468] sm:$0xff]
        %v959 = vld [vmem:[%s249 + $0x1470] sm:$0xff]
        %v960 = vld [vmem:[%s249 + $0x1478] sm:$0xff]
        %v961 = vld [vmem:[%s249 + $0x1480] sm:$0xff]
        %v962 = vld [vmem:[%s249 + $0x1488] sm:$0xff]
        %v963 = vld [vmem:[%s249 + $0x1490] sm:$0xff]
        %v964 = vld [vmem:[%s249 + $0x1498] sm:$0xff]
        %v965 = vld [vmem:[%s249 + $0x14a0] sm:$0xff]
        %v966 = vld [vmem:[%s249 + $0x14a8] sm:$0xff]
        %v967 = vld [vmem:[%s249 + $0x14b0] sm:$0xff]
        %v968 = vld [vmem:[%s249 + $0x14b8] sm:$0xff]
        %v969 = vld [vmem:[%s249 + $0x14c0] sm:$0xff]
        %v970 = vld [vmem:[%s249 + $0x14c8] sm:$0xff]
        %v971 = vld [vmem:[%s249 + $0x14d0] sm:$0xff]
        %v972 = vld [vmem:[%s249 + $0x14d8] sm:$0xff]
        %v973 = vld [vmem:[%s249 + $0x14e0] sm:$0xff]
        %v974 = vld [vmem:[%s249 + $0x14e8] sm:$0xff]
        %v975 = vld [vmem:[%s249 + $0x14f0] sm:$0xff]
        %v976 = vld [vmem:[%s249 + $0x14f8] sm:$0xff]
        %v977 = vld [vmem:[%s249 + $0x1500] sm:$0xff]
        %v978 = vld [vmem:[%s249 + $0x1508] sm:$0xff]
        %v979 = vld [vmem:[%s249 + $0x1510] sm:$0xff]
        %v980 = vld [vmem:[%s249 + $0x1518] sm:$0xff]
        %v981 = vld [vmem:[%s249 + $0x1520] sm:$0xff]
        %v982 = vld [vmem:[%s249 + $0x1528] sm:$0xff]
        %v983 = vld [vmem:[%s249 + $0x1530] sm:$0xff]
        %v984 = vld [vmem:[%s249 + $0x1538] sm:$0xff]
        %v985 = vld [vmem:[%s249 + $0x1540] sm:$0xff]
        %v986 = vld [vmem:[%s249 + $0x1548] sm:$0xff]
        %v987 = vld [vmem:[%s249 + $0x1550] sm:$0xff]
        %v988 = vld [vmem:[%s249 + $0x1558] sm:$0xff]
        %v989 = vld [vmem:[%s249 + $0x1560] sm:$0xff]
        %v990 = vld [vmem:[%s249 + $0x1568] sm:$0xff]
        %v991 = vld [vmem:[%s249 + $0x1570] sm:$0xff]
        %v992 = vld [vmem:[%s249 + $0x1578] sm:$0xff]
        %v993 = vld [vmem:[%s249 + $0x1580] sm:$0xff]
        %v994 = vld [vmem:[%s249 + $0x1588] sm:$0xff]
        %v995 = vld [vmem:[%s249 + $0x1590] sm:$0xff]
        %v996 = vld [vmem:[%s249 + $0x1598] sm:$0xff]
        %v997 = vld [vmem:[%s249 + $0x15a0] sm:$0xff]
        %v998 = vld [vmem:[%s249 + $0x15a8] sm:$0xff]
        %v999 = vld [vmem:[%s249 + $0x15b0] sm:$0xff]
        %v1000 = vld [vmem:[%s249 + $0x15b8] sm:$0xff]
        %v1001 = vld [vmem:[%s249 + $0x15c0] sm:$0xff]
        %v1002 = vld [vmem:[%s249 + $0x15c8] sm:$0xff]
        %v1003 = vld [vmem:[%s249 + $0x15d0] sm:$0xff]
        %v1004 = vld [vmem:[%s249 + $0x15d8] sm:$0xff]
        %v1005 = vld [vmem:[%s249 + $0x15e0] sm:$0xff]
        %v1006 = vld [vmem:[%s249 + $0x15e8] sm:$0xff]
        %v1007 = vld [vmem:[%s249 + $0x15f0] sm:$0xff]
        %v1008 = vld [vmem:[%s249 + $0x15f8] sm:$0xff]
        %v1009 = vld [vmem:[%s249 + $0x1600] sm:$0xff]
        %v1010 = vld [vmem:[%s249 + $0x1608] sm:$0xff]
        %v1011 = vld [vmem:[%s249 + $0x1610] sm:$0xff]
        %v1012 = vld [vmem:[%s249 + $0x1618] sm:$0xff]
        %v1013 = vld [vmem:[%s249 + $0x1620] sm:$0xff]
        %v1014 = vld [vmem:[%s249 + $0x1628] sm:$0xff]
        %v1015 = vld [vmem:[%s249 + $0x1630] sm:$0xff]
        %v1016 = vld [vmem:[%s249 + $0x1638] sm:$0xff]
        %v1017 = vld [vmem:[%s249 + $0x1640] sm:$0xff]
        %v1018 = vld [vmem:[%s249 + $0x1648] sm:$0xff]
        %v1019 = vld [vmem:[%s249 + $0x1650] sm:$0xff]
        %v1020 = vld [vmem:[%s249 + $0x1658] sm:$0xff]
        %v1021 = vld [vmem:[%s249 + $0x1660] sm:$0xff]
        %v1022 = vld [vmem:[%s249 + $0x1668] sm:$0xff]
        %v1023 = vld [vmem:[%s249 + $0x1670] sm:$0xff]
        %v1024 = vld [vmem:[%s249 + $0x1678] sm:$0xff]
        %v1025 = vld [vmem:[%s249 + $0x1680] sm:$0xff]
        %v1026 = vld [vmem:[%s249 + $0x1688] sm:$0xff]
        %v1027 = vld [vmem:[%s249 + $0x1690] sm:$0xff]
        %v1028 = vld [vmem:[%s249 + $0x1698] sm:$0xff]
        %v1029 = vld [vmem:[%s249 + $0x16a0] sm:$0xff]
        %v1030 = vld [vmem:[%s249 + $0x16a8] sm:$0xff]
        %v1031 = vld [vmem:[%s249 + $0x16b0] sm:$0xff]
        %v1032 = vld [vmem:[%s249 + $0x16b8] sm:$0xff]
        %v1033 = vld [vmem:[%s249 + $0x16c0] sm:$0xff]
        %v1034 = vld [vmem:[%s249 + $0x16c8] sm:$0xff]
        %v1035 = vld [vmem:[%s249 + $0x16d0] sm:$0xff]
        %v1036 = vld [vmem:[%s249 + $0x16d8] sm:$0xff]
        %v1037 = vld [vmem:[%s249 + $0x16e0] sm:$0xff]
        %v1038 = vld [vmem:[%s249 + $0x16e8] sm:$0xff]
        %v1039 = vld [vmem:[%s249 + $0x16f0] sm:$0xff]
        %v1040 = vld [vmem:[%s249 + $0x16f8] sm:$0xff]
        %v1041 = vld [vmem:[%s249 + $0x1700] sm:$0xff]
        %v1042 = vld [vmem:[%s249 + $0x1708] sm:$0xff]
        %v1043 = vld [vmem:[%s249 + $0x1710] sm:$0xff]
        %v1044 = vld [vmem:[%s249 + $0x1718] sm:$0xff]
        %v1045 = vld [vmem:[%s249 + $0x1720] sm:$0xff]
        %v1046 = vld [vmem:[%s249 + $0x1728] sm:$0xff]
        %v1047 = vld [vmem:[%s249 + $0x1730] sm:$0xff]
        %v1048 = vld [vmem:[%s249 + $0x1738] sm:$0xff]
        %v1049 = vld [vmem:[%s249 + $0x1740] sm:$0xff]
        %v1050 = vld [vmem:[%s249 + $0x1748] sm:$0xff]
        %v1051 = vld [vmem:[%s249 + $0x1750] sm:$0xff]
        %v1052 = vld [vmem:[%s249 + $0x1758] sm:$0xff]
        %v1053 = vld [vmem:[%s249 + $0x1760] sm:$0xff]
        %v1054 = vld [vmem:[%s249 + $0x1768] sm:$0xff]
        %v1055 = vld [vmem:[%s249 + $0x1770] sm:$0xff]
        %v1056 = vld [vmem:[%s249 + $0x1778] sm:$0xff]
        %v1057 = vld [vmem:[%s249 + $0x1780] sm:$0xff]
        %v1058 = vld [vmem:[%s249 + $0x1788] sm:$0xff]
        %v1059 = vld [vmem:[%s249 + $0x1790] sm:$0xff]
        %v1060 = vld [vmem:[%s249 + $0x1798] sm:$0xff]
        %v1061 = vld [vmem:[%s249 + $0x17a0] sm:$0xff]
        %v1062 = vld [vmem:[%s249 + $0x17a8] sm:$0xff]
        %v1063 = vld [vmem:[%s249 + $0x17b0] sm:$0xff]
        %v1064 = vld [vmem:[%s249 + $0x17b8] sm:$0xff]
        %v1065 = vld [vmem:[%s249 + $0x17c0] sm:$0xff]
        %v1066 = vld [vmem:[%s249 + $0x17c8] sm:$0xff]
        %v1067 = vld [vmem:[%s249 + $0x17d0] sm:$0xff]
        %v1068 = vld [vmem:[%s249 + $0x17d8] sm:$0xff]
        %v1069 = vld [vmem:[%s249 + $0x17e0] sm:$0xff]
        %v1070 = vld [vmem:[%s249 + $0x17e8] sm:$0xff]
        %v1071 = vld [vmem:[%s249 + $0x17f0] sm:$0xff]
        %v1072 = vld [vmem:[%s249 + $0x17f8] sm:$0xff]
        %v1073 = vld [vmem:[%s249 + $0x1800] sm:$0xff]
        %v1074 = vld [vmem:[%s249 + $0x1808] sm:$0xff]
        %v1075 = vld [vmem:[%s249 + $0x1810] sm:$0xff]
        %v1076 = vld [vmem:[%s249 + $0x1818] sm:$0xff]
        %v1077 = vld [vmem:[%s249 + $0x1820] sm:$0xff]
        %v1078 = vld [vmem:[%s249 + $0x1828] sm:$0xff]
        %v1079 = vld [vmem:[%s249 + $0x1830] sm:$0xff]
        %v1080 = vld [vmem:[%s249 + $0x1838] sm:$0xff]
        %v1081 = vld [vmem:[%s249 + $0x1840] sm:$0xff]
        %v1082 = vld [vmem:[%s249 + $0x1848] sm:$0xff]
        %v1083 = vld [vmem:[%s249 + $0x1850] sm:$0xff]
        %v1084 = vld [vmem:[%s249 + $0x1858] sm:$0xff]
        %v1085 = vld [vmem:[%s249 + $0x1860] sm:$0xff]
        %v1086 = vld [vmem:[%s249 + $0x1868] sm:$0xff]
        %v1087 = vld [vmem:[%s249 + $0x1870] sm:$0xff]
        %v1088 = vld [vmem:[%s249 + $0x1878] sm:$0xff]
        %v1089 = vld [vmem:[%s249 + $0x1880] sm:$0xff]
        %v1090 = vld [vmem:[%s249 + $0x1888] sm:$0xff]
        %v1091 = vld [vmem:[%s249 + $0x1890] sm:$0xff]
        %v1092 = vld [vmem:[%s249 + $0x1898] sm:$0xff]
        %v1093 = vld [vmem:[%s249 + $0x18a0] sm:$0xff]
        %v1094 = vld [vmem:[%s249 + $0x18a8] sm:$0xff]
        %v1095 = vld [vmem:[%s249 + $0x18b0] sm:$0xff]
        %v1096 = vld [vmem:[%s249 + $0x18b8] sm:$0xff]
        %v1097 = vld [vmem:[%s249 + $0x18c0] sm:$0xff]
        %v1098 = vld [vmem:[%s249 + $0x18c8] sm:$0xff]
        %v1099 = vld [vmem:[%s249 + $0x18d0] sm:$0xff]
        %v1100 = vld [vmem:[%s249 + $0x18d8] sm:$0xff]
        %v1101 = vld [vmem:[%s249 + $0x18e0] sm:$0xff]
        %v1102 = vld [vmem:[%s249 + $0x18e8] sm:$0xff]
        %v1103 = vld [vmem:[%s249 + $0x18f0] sm:$0xff]
        %v1104 = vld [vmem:[%s249 + $0x18f8] sm:$0xff]
        %v1105 = vld [vmem:[%s249 + $0x1900] sm:$0xff]
        %v1106 = vld [vmem:[%s249 + $0x1908] sm:$0xff]
        %v1107 = vld [vmem:[%s249 + $0x1910] sm:$0xff]
        %v1108 = vld [vmem:[%s249 + $0x1918] sm:$0xff]
        %v1109 = vld [vmem:[%s249 + $0x1920] sm:$0xff]
        %v1110 = vld [vmem:[%s249 + $0x1928] sm:$0xff]
        %v1111 = vld [vmem:[%s249 + $0x1930] sm:$0xff]
        %v1112 = vld [vmem:[%s249 + $0x1938] sm:$0xff]
        %v1113 = vld [vmem:[%s249 + $0x1940] sm:$0xff]
        %v1114 = vld [vmem:[%s249 + $0x1948] sm:$0xff]
        %v1115 = vld [vmem:[%s249 + $0x1950] sm:$0xff]
        %v1116 = vld [vmem:[%s249 + $0x1958] sm:$0xff]
        %v1117 = vld [vmem:[%s249 + $0x1960] sm:$0xff]
        %v1118 = vld [vmem:[%s249 + $0x1968] sm:$0xff]
        %v1119 = vld [vmem:[%s249 + $0x1970] sm:$0xff]
        %v1120 = vld [vmem:[%s249 + $0x1978] sm:$0xff]
        %v1121 = vld [vmem:[%s249 + $0x1980] sm:$0xff]
        %v1122 = vld [vmem:[%s249 + $0x1988] sm:$0xff]
        %v1123 = vld [vmem:[%s249 + $0x1990] sm:$0xff]
        %v1124 = vld [vmem:[%s249 + $0x1998] sm:$0xff]
        %v1125 = vld [vmem:[%s249 + $0x19a0] sm:$0xff]
        %v1126 = vld [vmem:[%s249 + $0x19a8] sm:$0xff]
        %v1127 = vld [vmem:[%s249 + $0x19b0] sm:$0xff]
        %v1128 = vld [vmem:[%s249 + $0x19b8] sm:$0xff]
        %v1129 = vld [vmem:[%s249 + $0x19c0] sm:$0xff]
        %v1130 = vld [vmem:[%s249 + $0x19c8] sm:$0xff]
        %v1131 = vld [vmem:[%s249 + $0x19d0] sm:$0xff]
        %v1132 = vld [vmem:[%s249 + $0x19d8] sm:$0xff]
        %v1133 = vld [vmem:[%s249 + $0x19e0] sm:$0xff]
        %v1134 = vld [vmem:[%s249 + $0x19e8] sm:$0xff]
        %v1135 = vld [vmem:[%s249 + $0x19f0] sm:$0xff]
        %v1136 = vld [vmem:[%s249 + $0x19f8] sm:$0xff]
        %v1137 = vld [vmem:[%s249 + $0x1a00] sm:$0xff]
        %v1138 = vld [vmem:[%s249 + $0x1a08] sm:$0xff]
        %v1139 = vld [vmem:[%s249 + $0x1a10] sm:$0xff]
        %v1140 = vld [vmem:[%s249 + $0x1a18] sm:$0xff]
        %v1141 = vld [vmem:[%s249 + $0x1a20] sm:$0xff]
        %v1142 = vld [vmem:[%s249 + $0x1a28] sm:$0xff]
        %v1143 = vld [vmem:[%s249 + $0x1a30] sm:$0xff]
        %v1144 = vld [vmem:[%s249 + $0x1a38] sm:$0xff]
        %v1145 = vld [vmem:[%s249 + $0x1a40] sm:$0xff]
        %v1146 = vld [vmem:[%s249 + $0x1a48] sm:$0xff]
        %v1147 = vld [vmem:[%s249 + $0x1a50] sm:$0xff]
        %v1148 = vld [vmem:[%s249 + $0x1a58] sm:$0xff]
        %v1149 = vld [vmem:[%s249 + $0x1a60] sm:$0xff]
        %v1150 = vld [vmem:[%s249 + $0x1a68] sm:$0xff]
        %v1151 = vld [vmem:[%s249 + $0x1a70] sm:$0xff]
        %v1152 = vld [vmem:[%s249 + $0x1a78] sm:$0xff]
        %v1153 = vld [vmem:[%s249 + $0x1a80] sm:$0xff]
        %v1154 = vld [vmem:[%s249 + $0x1a88] sm:$0xff]
        %v1155 = vld [vmem:[%s249 + $0x1a90] sm:$0xff]
        %v1156 = vld [vmem:[%s249 + $0x1a98] sm:$0xff]
        %v1157 = vld [vmem:[%s249 + $0x1aa0] sm:$0xff]
        %v1158 = vld [vmem:[%s249 + $0x1aa8] sm:$0xff]
        %v1159 = vld [vmem:[%s249 + $0x1ab0] sm:$0xff]
        %v1160 = vld [vmem:[%s249 + $0x1ab8] sm:$0xff]
        %v1161 = vld [vmem:[%s249 + $0x1ac0] sm:$0xff]
        %v1162 = vld [vmem:[%s249 + $0x1ac8] sm:$0xff]
        %v1163 = vld [vmem:[%s249 + $0x1ad0] sm:$0xff]
        %v1164 = vld [vmem:[%s249 + $0x1ad8] sm:$0xff]
        %v1165 = vld [vmem:[%s249 + $0x1ae0] sm:$0xff]
        %v1166 = vld [vmem:[%s249 + $0x1ae8] sm:$0xff]
        %v1167 = vld [vmem:[%s249 + $0x1af0] sm:$0xff]
        %v1168 = vld [vmem:[%s249 + $0x1af8] sm:$0xff]
        %v1169 = vld [vmem:[%s249 + $0x1b00] sm:$0xff]
        %v1170 = vld [vmem:[%s249 + $0x1b08] sm:$0xff]
        %v1171 = vld [vmem:[%s249 + $0x1b10] sm:$0xff]
        %v1172 = vld [vmem:[%s249 + $0x1b18] sm:$0xff]
        %v1173 = vld [vmem:[%s249 + $0x1b20] sm:$0xff]
        %v1174 = vld [vmem:[%s249 + $0x1b28] sm:$0xff]
        %v1175 = vld [vmem:[%s249 + $0x1b30] sm:$0xff]
        %v1176 = vld [vmem:[%s249 + $0x1b38] sm:$0xff]
        %v1177 = vld [vmem:[%s249 + $0x1b40] sm:$0xff]
        %v1178 = vld [vmem:[%s249 + $0x1b48] sm:$0xff]
        %v1179 = vld [vmem:[%s249 + $0x1b50] sm:$0xff]
        %v1180 = vld [vmem:[%s249 + $0x1b58] sm:$0xff]
        %v1181 = vld [vmem:[%s249 + $0x1b60] sm:$0xff]
        %v1182 = vld [vmem:[%s249 + $0x1b68] sm:$0xff]
        %v1183 = vld [vmem:[%s249 + $0x1b70] sm:$0xff]
        %v1184 = vld [vmem:[%s249 + $0x1b78] sm:$0xff]
        %v1185 = vld [vmem:[%s249 + $0x1b80] sm:$0xff]
        %v1186 = vld [vmem:[%s249 + $0x1b88] sm:$0xff]
        %v1187 = vld [vmem:[%s249 + $0x1b90] sm:$0xff]
        %v1188 = vld [vmem:[%s249 + $0x1b98] sm:$0xff]
        %v1189 = vld [vmem:[%s249 + $0x1ba0] sm:$0xff]
        %v1190 = vld [vmem:[%s249 + $0x1ba8] sm:$0xff]
        %v1191 = vld [vmem:[%s249 + $0x1bb0] sm:$0xff]
        %v1192 = vld [vmem:[%s249 + $0x1bb8] sm:$0xff]
        %v1193 = vld [vmem:[%s249 + $0x1bc0] sm:$0xff]
        %v1194 = vld [vmem:[%s249 + $0x1bc8] sm:$0xff]
        %v1195 = vld [vmem:[%s249 + $0x1bd0] sm:$0xff]
        %v1196 = vld [vmem:[%s249 + $0x1bd8] sm:$0xff]
        %v1197 = vld [vmem:[%s249 + $0x1be0] sm:$0xff]
        %v1198 = vld [vmem:[%s249 + $0x1be8] sm:$0xff]
        %v1199 = vld [vmem:[%s249 + $0x1bf0] sm:$0xff]
        %v1200 = vld [vmem:[%s249 + $0x1bf8] sm:$0xff]
        %v1201 = vld [vmem:[%s249 + $0x1c00] sm:$0xff]
        %v1202 = vld [vmem:[%s249 + $0x1c08] sm:$0xff]
        %v1203 = vld [vmem:[%s249 + $0x1c10] sm:$0xff]
        %v1204 = vld [vmem:[%s249 + $0x1c18] sm:$0xff]
        %v1205 = vld [vmem:[%s249 + $0x1c20] sm:$0xff]
        %v1206 = vld [vmem:[%s249 + $0x1c28] sm:$0xff]
        %v1207 = vld [vmem:[%s249 + $0x1c30] sm:$0xff]
        %v1208 = vld [vmem:[%s249 + $0x1c38] sm:$0xff]
        %v1209 = vld [vmem:[%s249 + $0x1c40] sm:$0xff]
        %v1210 = vld [vmem:[%s249 + $0x1c48] sm:$0xff]
        %v1211 = vld [vmem:[%s249 + $0x1c50] sm:$0xff]
        %v1212 = vld [vmem:[%s249 + $0x1c58] sm:$0xff]
        %v1213 = vld [vmem:[%s249 + $0x1c60] sm:$0xff]
        %v1214 = vld [vmem:[%s249 + $0x1c68] sm:$0xff]
        %v1215 = vld [vmem:[%s249 + $0x1c70] sm:$0xff]
        %v1216 = vld [vmem:[%s249 + $0x1c78] sm:$0xff]
        %v1217 = vld [vmem:[%s249 + $0x1c80] sm:$0xff]
        %v1218 = vld [vmem:[%s249 + $0x1c88] sm:$0xff]
        %v1219 = vld [vmem:[%s249 + $0x1c90] sm:$0xff]
        %v1220 = vld [vmem:[%s249 + $0x1c98] sm:$0xff]
        %v1221 = vld [vmem:[%s249 + $0x1ca0] sm:$0xff]
        %v1222 = vld [vmem:[%s249 + $0x1ca8] sm:$0xff]
        %v1223 = vld [vmem:[%s249 + $0x1cb0] sm:$0xff]
        %v1224 = vld [vmem:[%s249 + $0x1cb8] sm:$0xff]
        %v1225 = vld [vmem:[%s249 + $0x1cc0] sm:$0xff]
        %v1226 = vld [vmem:[%s249 + $0x1cc8] sm:$0xff]
        %v1227 = vld [vmem:[%s249 + $0x1cd0] sm:$0xff]
        %v1228 = vld [vmem:[%s249 + $0x1cd8] sm:$0xff]
        %v1229 = vld [vmem:[%s249 + $0x1ce0] sm:$0xff]
        %v1230 = vld [vmem:[%s249 + $0x1ce8] sm:$0xff]
        %v1231 = vld [vmem:[%s249 + $0x1cf0] sm:$0xff]
        %v1232 = vld [vmem:[%s249 + $0x1cf8] sm:$0xff]
        %v1233 = vld [vmem:[%s249 + $0x1d00] sm:$0xff]
        %v1234 = vld [vmem:[%s249 + $0x1d08] sm:$0xff]
        %v1235 = vld [vmem:[%s249 + $0x1d10] sm:$0xff]
        %v1236 = vld [vmem:[%s249 + $0x1d18] sm:$0xff]
        %v1237 = vld [vmem:[%s249 + $0x1d20] sm:$0xff]
        %v1238 = vld [vmem:[%s249 + $0x1d28] sm:$0xff]
        %v1239 = vld [vmem:[%s249 + $0x1d30] sm:$0xff]
        %v1240 = vld [vmem:[%s249 + $0x1d38] sm:$0xff]
        %v1241 = vld [vmem:[%s249 + $0x1d40] sm:$0xff]
        %v1242 = vld [vmem:[%s249 + $0x1d48] sm:$0xff]
        %v1243 = vld [vmem:[%s249 + $0x1d50] sm:$0xff]
        %v1244 = vld [vmem:[%s249 + $0x1d58] sm:$0xff]
        %v1245 = vld [vmem:[%s249 + $0x1d60] sm:$0xff]
        %v1246 = vld [vmem:[%s249 + $0x1d68] sm:$0xff]
        %v1247 = vld [vmem:[%s249 + $0x1d70] sm:$0xff]
        %v1248 = vld [vmem:[%s249 + $0x1d78] sm:$0xff]
        %v1249 = vld [vmem:[%s249 + $0x1d80] sm:$0xff]
        %v1250 = vld [vmem:[%s249 + $0x1d88] sm:$0xff]
        %v1251 = vld [vmem:[%s249 + $0x1d90] sm:$0xff]
        %v1252 = vld [vmem:[%s249 + $0x1d98] sm:$0xff]
        %v1253 = vld [vmem:[%s249 + $0x1da0] sm:$0xff]
        %v1254 = vld [vmem:[%s249 + $0x1da8] sm:$0xff]
        %v1255 = vld [vmem:[%s249 + $0x1db0] sm:$0xff]
        %v1256 = vld [vmem:[%s249 + $0x1db8] sm:$0xff]
        %v1257 = vld [vmem:[%s249 + $0x1dc0] sm:$0xff]
        %v1258 = vld [vmem:[%s249 + $0x1dc8] sm:$0xff]
        %v1259 = vld [vmem:[%s249 + $0x1dd0] sm:$0xff]
        %v1260 = vld [vmem:[%s249 + $0x1dd8] sm:$0xff]
        %v1261 = vld [vmem:[%s249 + $0x1de0] sm:$0xff]
        %v1262 = vld [vmem:[%s249 + $0x1de8] sm:$0xff]
        %v1263 = vld [vmem:[%s249 + $0x1df0] sm:$0xff]
        %v1264 = vld [vmem:[%s249 + $0x1df8] sm:$0xff]
        %v1265 = vld [vmem:[%s249 + $0x1e00] sm:$0xff]
        %v1266 = vld [vmem:[%s249 + $0x1e08] sm:$0xff]
        %v1267 = vld [vmem:[%s249 + $0x1e10] sm:$0xff]
        %v1268 = vld [vmem:[%s249 + $0x1e18] sm:$0xff]
        %v1269 = vld [vmem:[%s249 + $0x1e20] sm:$0xff]
        %v1270 = vld [vmem:[%s249 + $0x1e28] sm:$0xff]
        %v1271 = vld [vmem:[%s249 + $0x1e30] sm:$0xff]
        %v1272 = vld [vmem:[%s249 + $0x1e38] sm:$0xff]
        %v1273 = vld [vmem:[%s249 + $0x1e40] sm:$0xff]
        %v1274 = vld [vmem:[%s249 + $0x1e48] sm:$0xff]
        %v1275 = vld [vmem:[%s249 + $0x1e50] sm:$0xff]
        %v1276 = vld [vmem:[%s249 + $0x1e58] sm:$0xff]
        %v1277 = vld [vmem:[%s249 + $0x1e60] sm:$0xff]
        %v1278 = vld [vmem:[%s249 + $0x1e68] sm:$0xff]
        %v1279 = vld [vmem:[%s249 + $0x1e70] sm:$0xff]
        %v1280 = vld [vmem:[%s249 + $0x1e78] sm:$0xff]
        %v1281 = vld [vmem:[%s249 + $0x1e80] sm:$0xff]
        %v1282 = vld [vmem:[%s249 + $0x1e88] sm:$0xff]
        %v1283 = vld [vmem:[%s249 + $0x1e90] sm:$0xff]
        %v1284 = vld [vmem:[%s249 + $0x1e98] sm:$0xff]
        %v1285 = vld [vmem:[%s249 + $0x1ea0] sm:$0xff]
        %v1286 = vld [vmem:[%s249 + $0x1ea8] sm:$0xff]
        %v1287 = vld [vmem:[%s249 + $0x1eb0] sm:$0xff]
        %v1288 = vld [vmem:[%s249 + $0x1eb8] sm:$0xff]
        %v1289 = vld [vmem:[%s249 + $0x1ec0] sm:$0xff]
        %v1290 = vld [vmem:[%s249 + $0x1ec8] sm:$0xff]
        %v1291 = vld [vmem:[%s249 + $0x1ed0] sm:$0xff]
        %v1292 = vld [vmem:[%s249 + $0x1ed8] sm:$0xff]
        %v1293 = vld [vmem:[%s249 + $0x1ee0] sm:$0xff]
        %v1294 = vld [vmem:[%s249 + $0x1ee8] sm:$0xff]
        %v1295 = vld [vmem:[%s249 + $0x1ef0] sm:$0xff]
        %v1296 = vld [vmem:[%s249 + $0x1ef8] sm:$0xff]
        %v1297 = vld [vmem:[%s249 + $0x1f00] sm:$0xff]
        %v1298 = vld [vmem:[%s249 + $0x1f08] sm:$0xff]
        %v1299 = vld [vmem:[%s249 + $0x1f10] sm:$0xff]
        %v1300 = vld [vmem:[%s249 + $0x1f18] sm:$0xff]
        %v1301 = vld [vmem:[%s249 + $0x1f20] sm:$0xff]
        %v1302 = vld [vmem:[%s249 + $0x1f28] sm:$0xff]
        %v1303 = vld [vmem:[%s249 + $0x1f30] sm:$0xff]
        %v1304 = vld [vmem:[%s249 + $0x1f38] sm:$0xff]
        %v1305 = vld [vmem:[%s249 + $0x1f40] sm:$0xff]
        %v1306 = vld [vmem:[%s249 + $0x1f48] sm:$0xff]
        %v1307 = vld [vmem:[%s249 + $0x1f50] sm:$0xff]
        %v1308 = vld [vmem:[%s249 + $0x1f58] sm:$0xff]
        %v1309 = vld [vmem:[%s249 + $0x1f60] sm:$0xff]
        %v1310 = vld [vmem:[%s249 + $0x1f68] sm:$0xff]
        %v1311 = vld [vmem:[%s249 + $0x1f70] sm:$0xff]
        %v1312 = vld [vmem:[%s249 + $0x1f78] sm:$0xff]
        %v1313 = vld [vmem:[%s249 + $0x1f80] sm:$0xff]
        %v1314 = vld [vmem:[%s249 + $0x1f88] sm:$0xff]
        %v1315 = vld [vmem:[%s249 + $0x1f90] sm:$0xff]
        %v1316 = vld [vmem:[%s249 + $0x1f98] sm:$0xff]
        %v1317 = vld [vmem:[%s249 + $0x1fa0] sm:$0xff]
        %v1318 = vld [vmem:[%s249 + $0x1fa8] sm:$0xff]
        %v1319 = vld [vmem:[%s249 + $0x1fb0] sm:$0xff]
        %v1320 = vld [vmem:[%s249 + $0x1fb8] sm:$0xff]
        %v1321 = vld [vmem:[%s249 + $0x1fc0] sm:$0xff]
        %v1322 = vld [vmem:[%s249 + $0x1fc8] sm:$0xff]
        %v1323 = vld [vmem:[%s249 + $0x1fd0] sm:$0xff]
        %v1324 = vld [vmem:[%s249 + $0x1fd8] sm:$0xff]
        %v1325 = vld [vmem:[%s249 + $0x1fe0] sm:$0xff]
        %v1326 = vld [vmem:[%s249 + $0x1fe8] sm:$0xff]
        %v1327 = vld [vmem:[%s249 + $0x1ff0] sm:$0xff]
        %v1328 = vld [vmem:[%s249 + $0x1ff8] sm:$0xff]
        %v1329 = vunpack.c.l.s8.bf16 %v305
        %v1330 = vunpack.c.l.s8.bf16 %v306
        %v1331 = vunpack.c.l.s8.bf16 %v307
        %v1332 = vunpack.c.l.s8.bf16 %v308
        %v1333 = vunpack.c.l.s8.bf16 %v309
        %v1334 = vunpack.c.l.s8.bf16 %v310
        %v1335 = vunpack.c.l.s8.bf16 %v311
        %v1336 = vunpack.c.l.s8.bf16 %v312
        %v1337 = vunpack.c.l.s8.bf16 %v313
        %v1338 = vunpack.c.l.s8.bf16 %v314
        %v1339 = vunpack.c.l.s8.bf16 %v315
        %v1340 = vunpack.c.l.s8.bf16 %v316
        %v1341 = vunpack.c.l.s8.bf16 %v317
        %v1342 = vunpack.c.l.s8.bf16 %v318
        %v1343 = vunpack.c.l.s8.bf16 %v319
        %v1344 = vunpack.c.l.s8.bf16 %v320
        %v1345 = vunpack.c.l.s8.bf16 %v321
        %v1346 = vunpack.c.l.s8.bf16 %v322
        %v1347 = vunpack.c.l.s8.bf16 %v323
        %v1348 = vunpack.c.l.s8.bf16 %v324
        %v1349 = vunpack.c.l.s8.bf16 %v325
        %v1350 = vunpack.c.l.s8.bf16 %v326
        %v1351 = vunpack.c.l.s8.bf16 %v327
        %v1352 = vunpack.c.l.s8.bf16 %v328
        %v1353 = vunpack.c.l.s8.bf16 %v329
        %v1354 = vunpack.c.l.s8.bf16 %v330
        %v1355 = vunpack.c.l.s8.bf16 %v331
        %v1356 = vunpack.c.l.s8.bf16 %v332
        %v1357 = vunpack.c.l.s8.bf16 %v333
        %v1358 = vunpack.c.l.s8.bf16 %v334
        %v1359 = vunpack.c.l.s8.bf16 %v335
        %v1360 = vunpack.c.l.s8.bf16 %v336
        %v1361 = vunpack.c.h.s8.bf16 %v305
        %v1362 = vunpack.c.h.s8.bf16 %v306
        %v1363 = vunpack.c.h.s8.bf16 %v307
        %v1364 = vunpack.c.h.s8.bf16 %v308
        %v1365 = vunpack.c.h.s8.bf16 %v309
        %v1366 = vunpack.c.h.s8.bf16 %v310
        %v1367 = vunpack.c.h.s8.bf16 %v311
        %v1368 = vunpack.c.h.s8.bf16 %v312
        %v1369 = vunpack.c.h.s8.bf16 %v313
        %v1370 = vunpack.c.h.s8.bf16 %v314
        %v1371 = vunpack.c.h.s8.bf16 %v315
        %v1372 = vunpack.c.h.s8.bf16 %v316
        %v1373 = vunpack.c.h.s8.bf16 %v317
        %v1374 = vunpack.c.h.s8.bf16 %v318
        %v1375 = vunpack.c.h.s8.bf16 %v319
        %v1376 = vunpack.c.h.s8.bf16 %v320
        %v1377 = vunpack.c.h.s8.bf16 %v321
        %v1378 = vunpack.c.h.s8.bf16 %v322
        %v1379 = vunpack.c.h.s8.bf16 %v323
        %v1380 = vunpack.c.h.s8.bf16 %v324
        %v1381 = vunpack.c.h.s8.bf16 %v325
        %v1382 = vunpack.c.h.s8.bf16 %v326
        %v1383 = vunpack.c.h.s8.bf16 %v327
        %v1384 = vunpack.c.h.s8.bf16 %v328
        %v1385 = vunpack.c.h.s8.bf16 %v329
        %v1386 = vunpack.c.h.s8.bf16 %v330
        %v1387 = vunpack.c.h.s8.bf16 %v331
        %v1388 = vunpack.c.h.s8.bf16 %v332
        %v1389 = vunpack.c.h.s8.bf16 %v333
        %v1390 = vunpack.c.h.s8.bf16 %v334
        %v1391 = vunpack.c.h.s8.bf16 %v335
        %v1392 = vunpack.c.h.s8.bf16 %v336
        %v1393 = vunpack.c.l.s8.bf16 %v337
        %v1394 = vunpack.c.l.s8.bf16 %v338
        %v1395 = vunpack.c.l.s8.bf16 %v339
        %v1396 = vunpack.c.l.s8.bf16 %v340
        %v1397 = vunpack.c.l.s8.bf16 %v341
        %v1398 = vunpack.c.l.s8.bf16 %v342
        %v1399 = vunpack.c.l.s8.bf16 %v343
        %v1400 = vunpack.c.l.s8.bf16 %v344
        %v1401 = vunpack.c.l.s8.bf16 %v345
        %v1402 = vunpack.c.l.s8.bf16 %v346
        %v1403 = vunpack.c.l.s8.bf16 %v347
        %v1404 = vunpack.c.l.s8.bf16 %v348
        %v1405 = vunpack.c.l.s8.bf16 %v349
        %v1406 = vunpack.c.l.s8.bf16 %v350
        %v1407 = vunpack.c.l.s8.bf16 %v351
        %v1408 = vunpack.c.l.s8.bf16 %v352
        %v1409 = vunpack.c.l.s8.bf16 %v353
        %v1410 = vunpack.c.l.s8.bf16 %v354
        %v1411 = vunpack.c.l.s8.bf16 %v355
        %v1412 = vunpack.c.l.s8.bf16 %v356
        %v1413 = vunpack.c.l.s8.bf16 %v357
        %v1414 = vunpack.c.l.s8.bf16 %v358
        %v1415 = vunpack.c.l.s8.bf16 %v359
        %v1416 = vunpack.c.l.s8.bf16 %v360
        %v1417 = vunpack.c.l.s8.bf16 %v361
        %v1418 = vunpack.c.l.s8.bf16 %v362
        %v1419 = vunpack.c.l.s8.bf16 %v363
        %v1420 = vunpack.c.l.s8.bf16 %v364
        %v1421 = vunpack.c.l.s8.bf16 %v365
        %v1422 = vunpack.c.l.s8.bf16 %v366
        %v1423 = vunpack.c.l.s8.bf16 %v367
        %v1424 = vunpack.c.l.s8.bf16 %v368
        %v1425 = vunpack.c.h.s8.bf16 %v337
        %v1426 = vunpack.c.h.s8.bf16 %v338
        %v1427 = vunpack.c.h.s8.bf16 %v339
        %v1428 = vunpack.c.h.s8.bf16 %v340
        %v1429 = vunpack.c.h.s8.bf16 %v341
        %v1430 = vunpack.c.h.s8.bf16 %v342
        %v1431 = vunpack.c.h.s8.bf16 %v343
        %v1432 = vunpack.c.h.s8.bf16 %v344
        %v1433 = vunpack.c.h.s8.bf16 %v345
        %v1434 = vunpack.c.h.s8.bf16 %v346
        %v1435 = vunpack.c.h.s8.bf16 %v347
        %v1436 = vunpack.c.h.s8.bf16 %v348
        %v1437 = vunpack.c.h.s8.bf16 %v349
        %v1438 = vunpack.c.h.s8.bf16 %v350
        %v1439 = vunpack.c.h.s8.bf16 %v351
        %v1440 = vunpack.c.h.s8.bf16 %v352
        %v1441 = vunpack.c.h.s8.bf16 %v353
        %v1442 = vunpack.c.h.s8.bf16 %v354
        %v1443 = vunpack.c.h.s8.bf16 %v355
        %v1444 = vunpack.c.h.s8.bf16 %v356
        %v1445 = vunpack.c.h.s8.bf16 %v357
        %v1446 = vunpack.c.h.s8.bf16 %v358
        %v1447 = vunpack.c.h.s8.bf16 %v359
        %v1448 = vunpack.c.h.s8.bf16 %v360
        %v1449 = vunpack.c.h.s8.bf16 %v361
        %v1450 = vunpack.c.h.s8.bf16 %v362
        %v1451 = vunpack.c.h.s8.bf16 %v363
        %v1452 = vunpack.c.h.s8.bf16 %v364
        %v1453 = vunpack.c.h.s8.bf16 %v365
        %v1454 = vunpack.c.h.s8.bf16 %v366
        %v1455 = vunpack.c.h.s8.bf16 %v367
        %v1456 = vunpack.c.h.s8.bf16 %v368
        %v1457 = vunpack.c.l.s8.bf16 %v369
        %v1458 = vunpack.c.l.s8.bf16 %v370
        %v1459 = vunpack.c.l.s8.bf16 %v371
        %v1460 = vunpack.c.l.s8.bf16 %v372
        %v1461 = vunpack.c.l.s8.bf16 %v373
        %v1462 = vunpack.c.l.s8.bf16 %v374
        %v1463 = vunpack.c.l.s8.bf16 %v375
        %v1464 = vunpack.c.l.s8.bf16 %v376
        %v1465 = vunpack.c.l.s8.bf16 %v377
        %v1466 = vunpack.c.l.s8.bf16 %v378
        %v1467 = vunpack.c.l.s8.bf16 %v379
        %v1468 = vunpack.c.l.s8.bf16 %v380
        %v1469 = vunpack.c.l.s8.bf16 %v381
        %v1470 = vunpack.c.l.s8.bf16 %v382
        %v1471 = vunpack.c.l.s8.bf16 %v383
        %v1472 = vunpack.c.l.s8.bf16 %v384
        %v1473 = vunpack.c.l.s8.bf16 %v385
        %v1474 = vunpack.c.l.s8.bf16 %v386
        %v1475 = vunpack.c.l.s8.bf16 %v387
        %v1476 = vunpack.c.l.s8.bf16 %v388
        %v1477 = vunpack.c.l.s8.bf16 %v389
        %v1478 = vunpack.c.l.s8.bf16 %v390
        %v1479 = vunpack.c.l.s8.bf16 %v391
        %v1480 = vunpack.c.l.s8.bf16 %v392
        %v1481 = vunpack.c.l.s8.bf16 %v393
        %v1482 = vunpack.c.l.s8.bf16 %v394
        %v1483 = vunpack.c.l.s8.bf16 %v395
        %v1484 = vunpack.c.l.s8.bf16 %v396
        %v1485 = vunpack.c.l.s8.bf16 %v397
        %v1486 = vunpack.c.l.s8.bf16 %v398
        %v1487 = vunpack.c.l.s8.bf16 %v399
        %v1488 = vunpack.c.l.s8.bf16 %v400
        %v1489 = vunpack.c.h.s8.bf16 %v369
        %v1490 = vunpack.c.h.s8.bf16 %v370
        %v1491 = vunpack.c.h.s8.bf16 %v371
        %v1492 = vunpack.c.h.s8.bf16 %v372
        %v1493 = vunpack.c.h.s8.bf16 %v373
        %v1494 = vunpack.c.h.s8.bf16 %v374
        %v1495 = vunpack.c.h.s8.bf16 %v375
        %v1496 = vunpack.c.h.s8.bf16 %v376
        %v1497 = vunpack.c.h.s8.bf16 %v377
        %v1498 = vunpack.c.h.s8.bf16 %v378
        %v1499 = vunpack.c.h.s8.bf16 %v379
        %v1500 = vunpack.c.h.s8.bf16 %v380
        %v1501 = vunpack.c.h.s8.bf16 %v381
        %v1502 = vunpack.c.h.s8.bf16 %v382
        %v1503 = vunpack.c.h.s8.bf16 %v383
        %v1504 = vunpack.c.h.s8.bf16 %v384
        %v1505 = vunpack.c.h.s8.bf16 %v385
        %v1506 = vunpack.c.h.s8.bf16 %v386
        %v1507 = vunpack.c.h.s8.bf16 %v387
        %v1508 = vunpack.c.h.s8.bf16 %v388
        %v1509 = vunpack.c.h.s8.bf16 %v389
        %v1510 = vunpack.c.h.s8.bf16 %v390
        %v1511 = vunpack.c.h.s8.bf16 %v391
        %v1512 = vunpack.c.h.s8.bf16 %v392
        %v1513 = vunpack.c.h.s8.bf16 %v393
        %v1514 = vunpack.c.h.s8.bf16 %v394
        %v1515 = vunpack.c.h.s8.bf16 %v395
        %v1516 = vunpack.c.h.s8.bf16 %v396
        %v1517 = vunpack.c.h.s8.bf16 %v397
        %v1518 = vunpack.c.h.s8.bf16 %v398
        %v1519 = vunpack.c.h.s8.bf16 %v399
        %v1520 = vunpack.c.h.s8.bf16 %v400
        %v1521 = vunpack.c.l.s8.bf16 %v401
        %v1522 = vunpack.c.l.s8.bf16 %v402
        %v1523 = vunpack.c.l.s8.bf16 %v403
        %v1524 = vunpack.c.l.s8.bf16 %v404
        %v1525 = vunpack.c.l.s8.bf16 %v405
        %v1526 = vunpack.c.l.s8.bf16 %v406
        %v1527 = vunpack.c.l.s8.bf16 %v407
        %v1528 = vunpack.c.l.s8.bf16 %v408
        %v1529 = vunpack.c.l.s8.bf16 %v409
        %v1530 = vunpack.c.l.s8.bf16 %v410
        %v1531 = vunpack.c.l.s8.bf16 %v411
        %v1532 = vunpack.c.l.s8.bf16 %v412
        %v1533 = vunpack.c.l.s8.bf16 %v413
        %v1534 = vunpack.c.l.s8.bf16 %v414
        %v1535 = vunpack.c.l.s8.bf16 %v415
        %v1536 = vunpack.c.l.s8.bf16 %v416
        %v1537 = vunpack.c.l.s8.bf16 %v417
        %v1538 = vunpack.c.l.s8.bf16 %v418
        %v1539 = vunpack.c.l.s8.bf16 %v419
        %v1540 = vunpack.c.l.s8.bf16 %v420
        %v1541 = vunpack.c.l.s8.bf16 %v421
        %v1542 = vunpack.c.l.s8.bf16 %v422
        %v1543 = vunpack.c.l.s8.bf16 %v423
        %v1544 = vunpack.c.l.s8.bf16 %v424
        %v1545 = vunpack.c.l.s8.bf16 %v425
        %v1546 = vunpack.c.l.s8.bf16 %v426
        %v1547 = vunpack.c.l.s8.bf16 %v427
        %v1548 = vunpack.c.l.s8.bf16 %v428
        %v1549 = vunpack.c.l.s8.bf16 %v429
        %v1550 = vunpack.c.l.s8.bf16 %v430
        %v1551 = vunpack.c.l.s8.bf16 %v431
        %v1552 = vunpack.c.l.s8.bf16 %v432
        %v1553 = vunpack.c.h.s8.bf16 %v401
        %v1554 = vunpack.c.h.s8.bf16 %v402
        %v1555 = vunpack.c.h.s8.bf16 %v403
        %v1556 = vunpack.c.h.s8.bf16 %v404
        %v1557 = vunpack.c.h.s8.bf16 %v405
        %v1558 = vunpack.c.h.s8.bf16 %v406
        %v1559 = vunpack.c.h.s8.bf16 %v407
        %v1560 = vunpack.c.h.s8.bf16 %v408
        %v1561 = vunpack.c.h.s8.bf16 %v409
        %v1562 = vunpack.c.h.s8.bf16 %v410
        %v1563 = vunpack.c.h.s8.bf16 %v411
        %v1564 = vunpack.c.h.s8.bf16 %v412
        %v1565 = vunpack.c.h.s8.bf16 %v413
        %v1566 = vunpack.c.h.s8.bf16 %v414
        %v1567 = vunpack.c.h.s8.bf16 %v415
        %v1568 = vunpack.c.h.s8.bf16 %v416
        %v1569 = vunpack.c.h.s8.bf16 %v417
        %v1570 = vunpack.c.h.s8.bf16 %v418
        %v1571 = vunpack.c.h.s8.bf16 %v419
        %v1572 = vunpack.c.h.s8.bf16 %v420
        %v1573 = vunpack.c.h.s8.bf16 %v421
        %v1574 = vunpack.c.h.s8.bf16 %v422
        %v1575 = vunpack.c.h.s8.bf16 %v423
        %v1576 = vunpack.c.h.s8.bf16 %v424
        %v1577 = vunpack.c.h.s8.bf16 %v425
        %v1578 = vunpack.c.h.s8.bf16 %v426
        %v1579 = vunpack.c.h.s8.bf16 %v427
        %v1580 = vunpack.c.h.s8.bf16 %v428
        %v1581 = vunpack.c.h.s8.bf16 %v429
        %v1582 = vunpack.c.h.s8.bf16 %v430
        %v1583 = vunpack.c.h.s8.bf16 %v431
        %v1584 = vunpack.c.h.s8.bf16 %v432
        %v1585 = vunpack.c.l.s8.bf16 %v433
        %v1586 = vunpack.c.l.s8.bf16 %v434
        %v1587 = vunpack.c.l.s8.bf16 %v435
        %v1588 = vunpack.c.l.s8.bf16 %v436
        %v1589 = vunpack.c.l.s8.bf16 %v437
        %v1590 = vunpack.c.l.s8.bf16 %v438
        %v1591 = vunpack.c.l.s8.bf16 %v439
        %v1592 = vunpack.c.l.s8.bf16 %v440
        %v1593 = vunpack.c.l.s8.bf16 %v441
        %v1594 = vunpack.c.l.s8.bf16 %v442
        %v1595 = vunpack.c.l.s8.bf16 %v443
        %v1596 = vunpack.c.l.s8.bf16 %v444
        %v1597 = vunpack.c.l.s8.bf16 %v445
        %v1598 = vunpack.c.l.s8.bf16 %v446
        %v1599 = vunpack.c.l.s8.bf16 %v447
        %v1600 = vunpack.c.l.s8.bf16 %v448
        %v1601 = vunpack.c.l.s8.bf16 %v449
        %v1602 = vunpack.c.l.s8.bf16 %v450
        %v1603 = vunpack.c.l.s8.bf16 %v451
        %v1604 = vunpack.c.l.s8.bf16 %v452
        %v1605 = vunpack.c.l.s8.bf16 %v453
        %v1606 = vunpack.c.l.s8.bf16 %v454
        %v1607 = vunpack.c.l.s8.bf16 %v455
        %v1608 = vunpack.c.l.s8.bf16 %v456
        %v1609 = vunpack.c.l.s8.bf16 %v457
        %v1610 = vunpack.c.l.s8.bf16 %v458
        %v1611 = vunpack.c.l.s8.bf16 %v459
        %v1612 = vunpack.c.l.s8.bf16 %v460
        %v1613 = vunpack.c.l.s8.bf16 %v461
        %v1614 = vunpack.c.l.s8.bf16 %v462
        %v1615 = vunpack.c.l.s8.bf16 %v463
        %v1616 = vunpack.c.l.s8.bf16 %v464
        %v1617 = vunpack.c.h.s8.bf16 %v433
        %v1618 = vunpack.c.h.s8.bf16 %v434
        %v1619 = vunpack.c.h.s8.bf16 %v435
        %v1620 = vunpack.c.h.s8.bf16 %v436
        %v1621 = vunpack.c.h.s8.bf16 %v437
        %v1622 = vunpack.c.h.s8.bf16 %v438
        %v1623 = vunpack.c.h.s8.bf16 %v439
        %v1624 = vunpack.c.h.s8.bf16 %v440
        %v1625 = vunpack.c.h.s8.bf16 %v441
        %v1626 = vunpack.c.h.s8.bf16 %v442
        %v1627 = vunpack.c.h.s8.bf16 %v443
        %v1628 = vunpack.c.h.s8.bf16 %v444
        %v1629 = vunpack.c.h.s8.bf16 %v445
        %v1630 = vunpack.c.h.s8.bf16 %v446
        %v1631 = vunpack.c.h.s8.bf16 %v447
        %v1632 = vunpack.c.h.s8.bf16 %v448
        %v1633 = vunpack.c.h.s8.bf16 %v449
        %v1634 = vunpack.c.h.s8.bf16 %v450
        %v1635 = vunpack.c.h.s8.bf16 %v451
        %v1636 = vunpack.c.h.s8.bf16 %v452
        %v1637 = vunpack.c.h.s8.bf16 %v453
        %v1638 = vunpack.c.h.s8.bf16 %v454
        %v1639 = vunpack.c.h.s8.bf16 %v455
        %v1640 = vunpack.c.h.s8.bf16 %v456
        %v1641 = vunpack.c.h.s8.bf16 %v457
        %v1642 = vunpack.c.h.s8.bf16 %v458
        %v1643 = vunpack.c.h.s8.bf16 %v459
        %v1644 = vunpack.c.h.s8.bf16 %v460
        %v1645 = vunpack.c.h.s8.bf16 %v461
        %v1646 = vunpack.c.h.s8.bf16 %v462
        %v1647 = vunpack.c.h.s8.bf16 %v463
        %v1648 = vunpack.c.h.s8.bf16 %v464
        %v1649 = vunpack.c.l.s8.bf16 %v465
        %v1650 = vunpack.c.l.s8.bf16 %v466
        %v1651 = vunpack.c.l.s8.bf16 %v467
        %v1652 = vunpack.c.l.s8.bf16 %v468
        %v1653 = vunpack.c.l.s8.bf16 %v469
        %v1654 = vunpack.c.l.s8.bf16 %v470
        %v1655 = vunpack.c.l.s8.bf16 %v471
        %v1656 = vunpack.c.l.s8.bf16 %v472
        %v1657 = vunpack.c.l.s8.bf16 %v473
        %v1658 = vunpack.c.l.s8.bf16 %v474
        %v1659 = vunpack.c.l.s8.bf16 %v475
        %v1660 = vunpack.c.l.s8.bf16 %v476
        %v1661 = vunpack.c.l.s8.bf16 %v477
        %v1662 = vunpack.c.l.s8.bf16 %v478
        %v1663 = vunpack.c.l.s8.bf16 %v479
        %v1664 = vunpack.c.l.s8.bf16 %v480
        %v1665 = vunpack.c.l.s8.bf16 %v481
        %v1666 = vunpack.c.l.s8.bf16 %v482
        %v1667 = vunpack.c.l.s8.bf16 %v483
        %v1668 = vunpack.c.l.s8.bf16 %v484
        %v1669 = vunpack.c.l.s8.bf16 %v485
        %v1670 = vunpack.c.l.s8.bf16 %v486
        %v1671 = vunpack.c.l.s8.bf16 %v487
        %v1672 = vunpack.c.l.s8.bf16 %v488
        %v1673 = vunpack.c.l.s8.bf16 %v489
        %v1674 = vunpack.c.l.s8.bf16 %v490
        %v1675 = vunpack.c.l.s8.bf16 %v491
        %v1676 = vunpack.c.l.s8.bf16 %v492
        %v1677 = vunpack.c.l.s8.bf16 %v493
        %v1678 = vunpack.c.l.s8.bf16 %v494
        %v1679 = vunpack.c.l.s8.bf16 %v495
        %v1680 = vunpack.c.l.s8.bf16 %v496
        %v1681 = vunpack.c.h.s8.bf16 %v465
        %v1682 = vunpack.c.h.s8.bf16 %v466
        %v1683 = vunpack.c.h.s8.bf16 %v467
        %v1684 = vunpack.c.h.s8.bf16 %v468
        %v1685 = vunpack.c.h.s8.bf16 %v469
        %v1686 = vunpack.c.h.s8.bf16 %v470
        %v1687 = vunpack.c.h.s8.bf16 %v471
        %v1688 = vunpack.c.h.s8.bf16 %v472
        %v1689 = vunpack.c.h.s8.bf16 %v473
        %v1690 = vunpack.c.h.s8.bf16 %v474
        %v1691 = vunpack.c.h.s8.bf16 %v475
        %v1692 = vunpack.c.h.s8.bf16 %v476
        %v1693 = vunpack.c.h.s8.bf16 %v477
        %v1694 = vunpack.c.h.s8.bf16 %v478
        %v1695 = vunpack.c.h.s8.bf16 %v479
        %v1696 = vunpack.c.h.s8.bf16 %v480
        %v1697 = vunpack.c.h.s8.bf16 %v481
        %v1698 = vunpack.c.h.s8.bf16 %v482
        %v1699 = vunpack.c.h.s8.bf16 %v483
        %v1700 = vunpack.c.h.s8.bf16 %v484
        %v1701 = vunpack.c.h.s8.bf16 %v485
        %v1702 = vunpack.c.h.s8.bf16 %v486
        %v1703 = vunpack.c.h.s8.bf16 %v487
        %v1704 = vunpack.c.h.s8.bf16 %v488
        %v1705 = vunpack.c.h.s8.bf16 %v489
        %v1706 = vunpack.c.h.s8.bf16 %v490
        %v1707 = vunpack.c.h.s8.bf16 %v491
        %v1708 = vunpack.c.h.s8.bf16 %v492
        %v1709 = vunpack.c.h.s8.bf16 %v493
        %v1710 = vunpack.c.h.s8.bf16 %v494
        %v1711 = vunpack.c.h.s8.bf16 %v495
        %v1712 = vunpack.c.h.s8.bf16 %v496
        %v1713 = vunpack.c.l.s8.bf16 %v497
        %v1714 = vunpack.c.l.s8.bf16 %v498
        %v1715 = vunpack.c.l.s8.bf16 %v499
        %v1716 = vunpack.c.l.s8.bf16 %v500
        %v1717 = vunpack.c.l.s8.bf16 %v501
        %v1718 = vunpack.c.l.s8.bf16 %v502
        %v1719 = vunpack.c.l.s8.bf16 %v503
        %v1720 = vunpack.c.l.s8.bf16 %v504
        %v1721 = vunpack.c.l.s8.bf16 %v505
        %v1722 = vunpack.c.l.s8.bf16 %v506
        %v1723 = vunpack.c.l.s8.bf16 %v507
        %v1724 = vunpack.c.l.s8.bf16 %v508
        %v1725 = vunpack.c.l.s8.bf16 %v509
        %v1726 = vunpack.c.l.s8.bf16 %v510
        %v1727 = vunpack.c.l.s8.bf16 %v511
        %v1728 = vunpack.c.l.s8.bf16 %v512
        %v1729 = vunpack.c.l.s8.bf16 %v513
        %v1730 = vunpack.c.l.s8.bf16 %v514
        %v1731 = vunpack.c.l.s8.bf16 %v515
        %v1732 = vunpack.c.l.s8.bf16 %v516
        %v1733 = vunpack.c.l.s8.bf16 %v517
        %v1734 = vunpack.c.l.s8.bf16 %v518
        %v1735 = vunpack.c.l.s8.bf16 %v519
        %v1736 = vunpack.c.l.s8.bf16 %v520
        %v1737 = vunpack.c.l.s8.bf16 %v521
        %v1738 = vunpack.c.l.s8.bf16 %v522
        %v1739 = vunpack.c.l.s8.bf16 %v523
        %v1740 = vunpack.c.l.s8.bf16 %v524
        %v1741 = vunpack.c.l.s8.bf16 %v525
        %v1742 = vunpack.c.l.s8.bf16 %v526
        %v1743 = vunpack.c.l.s8.bf16 %v527
        %v1744 = vunpack.c.l.s8.bf16 %v528
        %v1745 = vunpack.c.h.s8.bf16 %v497
        %v1746 = vunpack.c.h.s8.bf16 %v498
        %v1747 = vunpack.c.h.s8.bf16 %v499
        %v1748 = vunpack.c.h.s8.bf16 %v500
        %v1749 = vunpack.c.h.s8.bf16 %v501
        %v1750 = vunpack.c.h.s8.bf16 %v502
        %v1751 = vunpack.c.h.s8.bf16 %v503
        %v1752 = vunpack.c.h.s8.bf16 %v504
        %v1753 = vunpack.c.h.s8.bf16 %v505
        %v1754 = vunpack.c.h.s8.bf16 %v506
        %v1755 = vunpack.c.h.s8.bf16 %v507
        %v1756 = vunpack.c.h.s8.bf16 %v508
        %v1757 = vunpack.c.h.s8.bf16 %v509
        %v1758 = vunpack.c.h.s8.bf16 %v510
        %v1759 = vunpack.c.h.s8.bf16 %v511
        %v1760 = vunpack.c.h.s8.bf16 %v512
        %v1761 = vunpack.c.h.s8.bf16 %v513
        %v1762 = vunpack.c.h.s8.bf16 %v514
        %v1763 = vunpack.c.h.s8.bf16 %v515
        %v1764 = vunpack.c.h.s8.bf16 %v516
        %v1765 = vunpack.c.h.s8.bf16 %v517
        %v1766 = vunpack.c.h.s8.bf16 %v518
        %v1767 = vunpack.c.h.s8.bf16 %v519
        %v1768 = vunpack.c.h.s8.bf16 %v520
        %v1769 = vunpack.c.h.s8.bf16 %v521
        %v1770 = vunpack.c.h.s8.bf16 %v522
        %v1771 = vunpack.c.h.s8.bf16 %v523
        %v1772 = vunpack.c.h.s8.bf16 %v524
        %v1773 = vunpack.c.h.s8.bf16 %v525
        %v1774 = vunpack.c.h.s8.bf16 %v526
        %v1775 = vunpack.c.h.s8.bf16 %v527
        %v1776 = vunpack.c.h.s8.bf16 %v528
        %v1777 = vunpack.c.l.s8.bf16 %v529
        %v1778 = vunpack.c.l.s8.bf16 %v530
        %v1779 = vunpack.c.l.s8.bf16 %v531
        %v1780 = vunpack.c.l.s8.bf16 %v532
        %v1781 = vunpack.c.l.s8.bf16 %v533
        %v1782 = vunpack.c.l.s8.bf16 %v534
        %v1783 = vunpack.c.l.s8.bf16 %v535
        %v1784 = vunpack.c.l.s8.bf16 %v536
        %v1785 = vunpack.c.l.s8.bf16 %v537
        %v1786 = vunpack.c.l.s8.bf16 %v538
        %v1787 = vunpack.c.l.s8.bf16 %v539
        %v1788 = vunpack.c.l.s8.bf16 %v540
        %v1789 = vunpack.c.l.s8.bf16 %v541
        %v1790 = vunpack.c.l.s8.bf16 %v542
        %v1791 = vunpack.c.l.s8.bf16 %v543
        %v1792 = vunpack.c.l.s8.bf16 %v544
        %v1793 = vunpack.c.l.s8.bf16 %v545
        %v1794 = vunpack.c.l.s8.bf16 %v546
        %v1795 = vunpack.c.l.s8.bf16 %v547
        %v1796 = vunpack.c.l.s8.bf16 %v548
        %v1797 = vunpack.c.l.s8.bf16 %v549
        %v1798 = vunpack.c.l.s8.bf16 %v550
        %v1799 = vunpack.c.l.s8.bf16 %v551
        %v1800 = vunpack.c.l.s8.bf16 %v552
        %v1801 = vunpack.c.l.s8.bf16 %v553
        %v1802 = vunpack.c.l.s8.bf16 %v554
        %v1803 = vunpack.c.l.s8.bf16 %v555
        %v1804 = vunpack.c.l.s8.bf16 %v556
        %v1805 = vunpack.c.l.s8.bf16 %v557
        %v1806 = vunpack.c.l.s8.bf16 %v558
        %v1807 = vunpack.c.l.s8.bf16 %v559
        %v1808 = vunpack.c.l.s8.bf16 %v560
        %v1809 = vunpack.c.h.s8.bf16 %v529
        %v1810 = vunpack.c.h.s8.bf16 %v530
        %v1811 = vunpack.c.h.s8.bf16 %v531
        %v1812 = vunpack.c.h.s8.bf16 %v532
        %v1813 = vunpack.c.h.s8.bf16 %v533
        %v1814 = vunpack.c.h.s8.bf16 %v534
        %v1815 = vunpack.c.h.s8.bf16 %v535
        %v1816 = vunpack.c.h.s8.bf16 %v536
        %v1817 = vunpack.c.h.s8.bf16 %v537
        %v1818 = vunpack.c.h.s8.bf16 %v538
        %v1819 = vunpack.c.h.s8.bf16 %v539
        %v1820 = vunpack.c.h.s8.bf16 %v540
        %v1821 = vunpack.c.h.s8.bf16 %v541
        %v1822 = vunpack.c.h.s8.bf16 %v542
        %v1823 = vunpack.c.h.s8.bf16 %v543
        %v1824 = vunpack.c.h.s8.bf16 %v544
        %v1825 = vunpack.c.h.s8.bf16 %v545
        %v1826 = vunpack.c.h.s8.bf16 %v546
        %v1827 = vunpack.c.h.s8.bf16 %v547
        %v1828 = vunpack.c.h.s8.bf16 %v548
        %v1829 = vunpack.c.h.s8.bf16 %v549
        %v1830 = vunpack.c.h.s8.bf16 %v550
        %v1831 = vunpack.c.h.s8.bf16 %v551
        %v1832 = vunpack.c.h.s8.bf16 %v552
        %v1833 = vunpack.c.h.s8.bf16 %v553
        %v1834 = vunpack.c.h.s8.bf16 %v554
        %v1835 = vunpack.c.h.s8.bf16 %v555
        %v1836 = vunpack.c.h.s8.bf16 %v556
        %v1837 = vunpack.c.h.s8.bf16 %v557
        %v1838 = vunpack.c.h.s8.bf16 %v558
        %v1839 = vunpack.c.h.s8.bf16 %v559
        %v1840 = vunpack.c.h.s8.bf16 %v560
        %v1841 = vunpack.c.l.s8.bf16 %v561
        %v1842 = vunpack.c.l.s8.bf16 %v562
        %v1843 = vunpack.c.l.s8.bf16 %v563
        %v1844 = vunpack.c.l.s8.bf16 %v564
        %v1845 = vunpack.c.l.s8.bf16 %v565
        %v1846 = vunpack.c.l.s8.bf16 %v566
        %v1847 = vunpack.c.l.s8.bf16 %v567
        %v1848 = vunpack.c.l.s8.bf16 %v568
        %v1849 = vunpack.c.l.s8.bf16 %v569
        %v1850 = vunpack.c.l.s8.bf16 %v570
        %v1851 = vunpack.c.l.s8.bf16 %v571
        %v1852 = vunpack.c.l.s8.bf16 %v572
        %v1853 = vunpack.c.l.s8.bf16 %v573
        %v1854 = vunpack.c.l.s8.bf16 %v574
        %v1855 = vunpack.c.l.s8.bf16 %v575
        %v1856 = vunpack.c.l.s8.bf16 %v576
        %v1857 = vunpack.c.l.s8.bf16 %v577
        %v1858 = vunpack.c.l.s8.bf16 %v578
        %v1859 = vunpack.c.l.s8.bf16 %v579
        %v1860 = vunpack.c.l.s8.bf16 %v580
        %v1861 = vunpack.c.l.s8.bf16 %v581
        %v1862 = vunpack.c.l.s8.bf16 %v582
        %v1863 = vunpack.c.l.s8.bf16 %v583
        %v1864 = vunpack.c.l.s8.bf16 %v584
        %v1865 = vunpack.c.l.s8.bf16 %v585
        %v1866 = vunpack.c.l.s8.bf16 %v586
        %v1867 = vunpack.c.l.s8.bf16 %v587
        %v1868 = vunpack.c.l.s8.bf16 %v588
        %v1869 = vunpack.c.l.s8.bf16 %v589
        %v1870 = vunpack.c.l.s8.bf16 %v590
        %v1871 = vunpack.c.l.s8.bf16 %v591
        %v1872 = vunpack.c.l.s8.bf16 %v592
        %v1873 = vunpack.c.h.s8.bf16 %v561
        %v1874 = vunpack.c.h.s8.bf16 %v562
        %v1875 = vunpack.c.h.s8.bf16 %v563
        %v1876 = vunpack.c.h.s8.bf16 %v564
        %v1877 = vunpack.c.h.s8.bf16 %v565
        %v1878 = vunpack.c.h.s8.bf16 %v566
        %v1879 = vunpack.c.h.s8.bf16 %v567
        %v1880 = vunpack.c.h.s8.bf16 %v568
        %v1881 = vunpack.c.h.s8.bf16 %v569
        %v1882 = vunpack.c.h.s8.bf16 %v570
        %v1883 = vunpack.c.h.s8.bf16 %v571
        %v1884 = vunpack.c.h.s8.bf16 %v572
        %v1885 = vunpack.c.h.s8.bf16 %v573
        %v1886 = vunpack.c.h.s8.bf16 %v574
        %v1887 = vunpack.c.h.s8.bf16 %v575
        %v1888 = vunpack.c.h.s8.bf16 %v576
        %v1889 = vunpack.c.h.s8.bf16 %v577
        %v1890 = vunpack.c.h.s8.bf16 %v578
        %v1891 = vunpack.c.h.s8.bf16 %v579
        %v1892 = vunpack.c.h.s8.bf16 %v580
        %v1893 = vunpack.c.h.s8.bf16 %v581
        %v1894 = vunpack.c.h.s8.bf16 %v582
        %v1895 = vunpack.c.h.s8.bf16 %v583
        %v1896 = vunpack.c.h.s8.bf16 %v584
        %v1897 = vunpack.c.h.s8.bf16 %v585
        %v1898 = vunpack.c.h.s8.bf16 %v586
        %v1899 = vunpack.c.h.s8.bf16 %v587
        %v1900 = vunpack.c.h.s8.bf16 %v588
        %v1901 = vunpack.c.h.s8.bf16 %v589
        %v1902 = vunpack.c.h.s8.bf16 %v590
        %v1903 = vunpack.c.h.s8.bf16 %v591
        %v1904 = vunpack.c.h.s8.bf16 %v592
        %v1905 = vunpack.c.l.s8.bf16 %v593
        %v1906 = vunpack.c.l.s8.bf16 %v594
        %v1907 = vunpack.c.l.s8.bf16 %v595
        %v1908 = vunpack.c.l.s8.bf16 %v596
        %v1909 = vunpack.c.l.s8.bf16 %v597
        %v1910 = vunpack.c.l.s8.bf16 %v598
        %v1911 = vunpack.c.l.s8.bf16 %v599
        %v1912 = vunpack.c.l.s8.bf16 %v600
        %v1913 = vunpack.c.l.s8.bf16 %v601
        %v1914 = vunpack.c.l.s8.bf16 %v602
        %v1915 = vunpack.c.l.s8.bf16 %v603
        %v1916 = vunpack.c.l.s8.bf16 %v604
        %v1917 = vunpack.c.l.s8.bf16 %v605
        %v1918 = vunpack.c.l.s8.bf16 %v606
        %v1919 = vunpack.c.l.s8.bf16 %v607
        %v1920 = vunpack.c.l.s8.bf16 %v608
        %v1921 = vunpack.c.l.s8.bf16 %v609
        %v1922 = vunpack.c.l.s8.bf16 %v610
        %v1923 = vunpack.c.l.s8.bf16 %v611
        %v1924 = vunpack.c.l.s8.bf16 %v612
        %v1925 = vunpack.c.l.s8.bf16 %v613
        %v1926 = vunpack.c.l.s8.bf16 %v614
        %v1927 = vunpack.c.l.s8.bf16 %v615
        %v1928 = vunpack.c.l.s8.bf16 %v616
        %v1929 = vunpack.c.l.s8.bf16 %v617
        %v1930 = vunpack.c.l.s8.bf16 %v618
        %v1931 = vunpack.c.l.s8.bf16 %v619
        %v1932 = vunpack.c.l.s8.bf16 %v620
        %v1933 = vunpack.c.l.s8.bf16 %v621
        %v1934 = vunpack.c.l.s8.bf16 %v622
        %v1935 = vunpack.c.l.s8.bf16 %v623
        %v1936 = vunpack.c.l.s8.bf16 %v624
        %v1937 = vunpack.c.h.s8.bf16 %v593
        %v1938 = vunpack.c.h.s8.bf16 %v594
        %v1939 = vunpack.c.h.s8.bf16 %v595
        %v1940 = vunpack.c.h.s8.bf16 %v596
        %v1941 = vunpack.c.h.s8.bf16 %v597
        %v1942 = vunpack.c.h.s8.bf16 %v598
        %v1943 = vunpack.c.h.s8.bf16 %v599
        %v1944 = vunpack.c.h.s8.bf16 %v600
        %v1945 = vunpack.c.h.s8.bf16 %v601
        %v1946 = vunpack.c.h.s8.bf16 %v602
        %v1947 = vunpack.c.h.s8.bf16 %v603
        %v1948 = vunpack.c.h.s8.bf16 %v604
        %v1949 = vunpack.c.h.s8.bf16 %v605
        %v1950 = vunpack.c.h.s8.bf16 %v606
        %v1951 = vunpack.c.h.s8.bf16 %v607
        %v1952 = vunpack.c.h.s8.bf16 %v608
        %v1953 = vunpack.c.h.s8.bf16 %v609
        %v1954 = vunpack.c.h.s8.bf16 %v610
        %v1955 = vunpack.c.h.s8.bf16 %v611
        %v1956 = vunpack.c.h.s8.bf16 %v612
        %v1957 = vunpack.c.h.s8.bf16 %v613
        %v1958 = vunpack.c.h.s8.bf16 %v614
        %v1959 = vunpack.c.h.s8.bf16 %v615
        %v1960 = vunpack.c.h.s8.bf16 %v616
        %v1961 = vunpack.c.h.s8.bf16 %v617
        %v1962 = vunpack.c.h.s8.bf16 %v618
        %v1963 = vunpack.c.h.s8.bf16 %v619
        %v1964 = vunpack.c.h.s8.bf16 %v620
        %v1965 = vunpack.c.h.s8.bf16 %v621
        %v1966 = vunpack.c.h.s8.bf16 %v622
        %v1967 = vunpack.c.h.s8.bf16 %v623
        %v1968 = vunpack.c.h.s8.bf16 %v624
        %v1969 = vunpack.c.l.s8.bf16 %v625
        %v1970 = vunpack.c.l.s8.bf16 %v626
        %v1971 = vunpack.c.l.s8.bf16 %v627
        %v1972 = vunpack.c.l.s8.bf16 %v628
        %v1973 = vunpack.c.l.s8.bf16 %v629
        %v1974 = vunpack.c.l.s8.bf16 %v630
        %v1975 = vunpack.c.l.s8.bf16 %v631
        %v1976 = vunpack.c.l.s8.bf16 %v632
        %v1977 = vunpack.c.l.s8.bf16 %v633
        %v1978 = vunpack.c.l.s8.bf16 %v634
        %v1979 = vunpack.c.l.s8.bf16 %v635
        %v1980 = vunpack.c.l.s8.bf16 %v636
        %v1981 = vunpack.c.l.s8.bf16 %v637
        %v1982 = vunpack.c.l.s8.bf16 %v638
        %v1983 = vunpack.c.l.s8.bf16 %v639
        %v1984 = vunpack.c.l.s8.bf16 %v640
        %v1985 = vunpack.c.l.s8.bf16 %v641
        %v1986 = vunpack.c.l.s8.bf16 %v642
        %v1987 = vunpack.c.l.s8.bf16 %v643
        %v1988 = vunpack.c.l.s8.bf16 %v644
        %v1989 = vunpack.c.l.s8.bf16 %v645
        %v1990 = vunpack.c.l.s8.bf16 %v646
        %v1991 = vunpack.c.l.s8.bf16 %v647
        %v1992 = vunpack.c.l.s8.bf16 %v648
        %v1993 = vunpack.c.l.s8.bf16 %v649
        %v1994 = vunpack.c.l.s8.bf16 %v650
        %v1995 = vunpack.c.l.s8.bf16 %v651
        %v1996 = vunpack.c.l.s8.bf16 %v652
        %v1997 = vunpack.c.l.s8.bf16 %v653
        %v1998 = vunpack.c.l.s8.bf16 %v654
        %v1999 = vunpack.c.l.s8.bf16 %v655
        %v2000 = vunpack.c.l.s8.bf16 %v656
        %v2001 = vunpack.c.h.s8.bf16 %v625
        %v2002 = vunpack.c.h.s8.bf16 %v626
        %v2003 = vunpack.c.h.s8.bf16 %v627
        %v2004 = vunpack.c.h.s8.bf16 %v628
        %v2005 = vunpack.c.h.s8.bf16 %v629
        %v2006 = vunpack.c.h.s8.bf16 %v630
        %v2007 = vunpack.c.h.s8.bf16 %v631
        %v2008 = vunpack.c.h.s8.bf16 %v632
        %v2009 = vunpack.c.h.s8.bf16 %v633
        %v2010 = vunpack.c.h.s8.bf16 %v634
        %v2011 = vunpack.c.h.s8.bf16 %v635
        %v2012 = vunpack.c.h.s8.bf16 %v636
        %v2013 = vunpack.c.h.s8.bf16 %v637
        %v2014 = vunpack.c.h.s8.bf16 %v638
        %v2015 = vunpack.c.h.s8.bf16 %v639
        %v2016 = vunpack.c.h.s8.bf16 %v640
        %v2017 = vunpack.c.h.s8.bf16 %v641
        %v2018 = vunpack.c.h.s8.bf16 %v642
        %v2019 = vunpack.c.h.s8.bf16 %v643
        %v2020 = vunpack.c.h.s8.bf16 %v644
        %v2021 = vunpack.c.h.s8.bf16 %v645
        %v2022 = vunpack.c.h.s8.bf16 %v646
        %v2023 = vunpack.c.h.s8.bf16 %v647
        %v2024 = vunpack.c.h.s8.bf16 %v648
        %v2025 = vunpack.c.h.s8.bf16 %v649
        %v2026 = vunpack.c.h.s8.bf16 %v650
        %v2027 = vunpack.c.h.s8.bf16 %v651
        %v2028 = vunpack.c.h.s8.bf16 %v652
        %v2029 = vunpack.c.h.s8.bf16 %v653
        %v2030 = vunpack.c.h.s8.bf16 %v654
        %v2031 = vunpack.c.h.s8.bf16 %v655
        %v2032 = vunpack.c.h.s8.bf16 %v656
        %v2033 = vunpack.c.l.s8.bf16 %v657
        %v2034 = vunpack.c.l.s8.bf16 %v658
        %v2035 = vunpack.c.l.s8.bf16 %v659
        %v2036 = vunpack.c.l.s8.bf16 %v660
        %v2037 = vunpack.c.l.s8.bf16 %v661
        %v2038 = vunpack.c.l.s8.bf16 %v662
        %v2039 = vunpack.c.l.s8.bf16 %v663
        %v2040 = vunpack.c.l.s8.bf16 %v664
        %v2041 = vunpack.c.l.s8.bf16 %v665
        %v2042 = vunpack.c.l.s8.bf16 %v666
        %v2043 = vunpack.c.l.s8.bf16 %v667
        %v2044 = vunpack.c.l.s8.bf16 %v668
        %v2045 = vunpack.c.l.s8.bf16 %v669
        %v2046 = vunpack.c.l.s8.bf16 %v670
        %v2047 = vunpack.c.l.s8.bf16 %v671
        %v2048 = vunpack.c.l.s8.bf16 %v672
        %v2049 = vunpack.c.l.s8.bf16 %v673
        %v2050 = vunpack.c.l.s8.bf16 %v674
        %v2051 = vunpack.c.l.s8.bf16 %v675
        %v2052 = vunpack.c.l.s8.bf16 %v676
        %v2053 = vunpack.c.l.s8.bf16 %v677
        %v2054 = vunpack.c.l.s8.bf16 %v678
        %v2055 = vunpack.c.l.s8.bf16 %v679
        %v2056 = vunpack.c.l.s8.bf16 %v680
        %v2057 = vunpack.c.l.s8.bf16 %v681
        %v2058 = vunpack.c.l.s8.bf16 %v682
        %v2059 = vunpack.c.l.s8.bf16 %v683
        %v2060 = vunpack.c.l.s8.bf16 %v684
        %v2061 = vunpack.c.l.s8.bf16 %v685
        %v2062 = vunpack.c.l.s8.bf16 %v686
        %v2063 = vunpack.c.l.s8.bf16 %v687
        %v2064 = vunpack.c.l.s8.bf16 %v688
        %v2065 = vunpack.c.h.s8.bf16 %v657
        %v2066 = vunpack.c.h.s8.bf16 %v658
        %v2067 = vunpack.c.h.s8.bf16 %v659
        %v2068 = vunpack.c.h.s8.bf16 %v660
        %v2069 = vunpack.c.h.s8.bf16 %v661
        %v2070 = vunpack.c.h.s8.bf16 %v662
        %v2071 = vunpack.c.h.s8.bf16 %v663
        %v2072 = vunpack.c.h.s8.bf16 %v664
        %v2073 = vunpack.c.h.s8.bf16 %v665
        %v2074 = vunpack.c.h.s8.bf16 %v666
        %v2075 = vunpack.c.h.s8.bf16 %v667
        %v2076 = vunpack.c.h.s8.bf16 %v668
        %v2077 = vunpack.c.h.s8.bf16 %v669
        %v2078 = vunpack.c.h.s8.bf16 %v670
        %v2079 = vunpack.c.h.s8.bf16 %v671
        %v2080 = vunpack.c.h.s8.bf16 %v672
        %v2081 = vunpack.c.h.s8.bf16 %v673
        %v2082 = vunpack.c.h.s8.bf16 %v674
        %v2083 = vunpack.c.h.s8.bf16 %v675
        %v2084 = vunpack.c.h.s8.bf16 %v676
        %v2085 = vunpack.c.h.s8.bf16 %v677
        %v2086 = vunpack.c.h.s8.bf16 %v678
        %v2087 = vunpack.c.h.s8.bf16 %v679
        %v2088 = vunpack.c.h.s8.bf16 %v680
        %v2089 = vunpack.c.h.s8.bf16 %v681
        %v2090 = vunpack.c.h.s8.bf16 %v682
        %v2091 = vunpack.c.h.s8.bf16 %v683
        %v2092 = vunpack.c.h.s8.bf16 %v684
        %v2093 = vunpack.c.h.s8.bf16 %v685
        %v2094 = vunpack.c.h.s8.bf16 %v686
        %v2095 = vunpack.c.h.s8.bf16 %v687
        %v2096 = vunpack.c.h.s8.bf16 %v688
        %v2097 = vunpack.c.l.s8.bf16 %v689
        %v2098 = vunpack.c.l.s8.bf16 %v690
        %v2099 = vunpack.c.l.s8.bf16 %v691
        %v2100 = vunpack.c.l.s8.bf16 %v692
        %v2101 = vunpack.c.l.s8.bf16 %v693
        %v2102 = vunpack.c.l.s8.bf16 %v694
        %v2103 = vunpack.c.l.s8.bf16 %v695
        %v2104 = vunpack.c.l.s8.bf16 %v696
        %v2105 = vunpack.c.l.s8.bf16 %v697
        %v2106 = vunpack.c.l.s8.bf16 %v698
        %v2107 = vunpack.c.l.s8.bf16 %v699
        %v2108 = vunpack.c.l.s8.bf16 %v700
        %v2109 = vunpack.c.l.s8.bf16 %v701
        %v2110 = vunpack.c.l.s8.bf16 %v702
        %v2111 = vunpack.c.l.s8.bf16 %v703
        %v2112 = vunpack.c.l.s8.bf16 %v704
        %v2113 = vunpack.c.l.s8.bf16 %v705
        %v2114 = vunpack.c.l.s8.bf16 %v706
        %v2115 = vunpack.c.l.s8.bf16 %v707
        %v2116 = vunpack.c.l.s8.bf16 %v708
        %v2117 = vunpack.c.l.s8.bf16 %v709
        %v2118 = vunpack.c.l.s8.bf16 %v710
        %v2119 = vunpack.c.l.s8.bf16 %v711
        %v2120 = vunpack.c.l.s8.bf16 %v712
        %v2121 = vunpack.c.l.s8.bf16 %v713
        %v2122 = vunpack.c.l.s8.bf16 %v714
        %v2123 = vunpack.c.l.s8.bf16 %v715
        %v2124 = vunpack.c.l.s8.bf16 %v716
        %v2125 = vunpack.c.l.s8.bf16 %v717
        %v2126 = vunpack.c.l.s8.bf16 %v718
        %v2127 = vunpack.c.l.s8.bf16 %v719
        %v2128 = vunpack.c.l.s8.bf16 %v720
        %v2129 = vunpack.c.h.s8.bf16 %v689
        %v2130 = vunpack.c.h.s8.bf16 %v690
        %v2131 = vunpack.c.h.s8.bf16 %v691
        %v2132 = vunpack.c.h.s8.bf16 %v692
        %v2133 = vunpack.c.h.s8.bf16 %v693
        %v2134 = vunpack.c.h.s8.bf16 %v694
        %v2135 = vunpack.c.h.s8.bf16 %v695
        %v2136 = vunpack.c.h.s8.bf16 %v696
        %v2137 = vunpack.c.h.s8.bf16 %v697
        %v2138 = vunpack.c.h.s8.bf16 %v698
        %v2139 = vunpack.c.h.s8.bf16 %v699
        %v2140 = vunpack.c.h.s8.bf16 %v700
        %v2141 = vunpack.c.h.s8.bf16 %v701
        %v2142 = vunpack.c.h.s8.bf16 %v702
        %v2143 = vunpack.c.h.s8.bf16 %v703
        %v2144 = vunpack.c.h.s8.bf16 %v704
        %v2145 = vunpack.c.h.s8.bf16 %v705
        %v2146 = vunpack.c.h.s8.bf16 %v706
        %v2147 = vunpack.c.h.s8.bf16 %v707
        %v2148 = vunpack.c.h.s8.bf16 %v708
        %v2149 = vunpack.c.h.s8.bf16 %v709
        %v2150 = vunpack.c.h.s8.bf16 %v710
        %v2151 = vunpack.c.h.s8.bf16 %v711
        %v2152 = vunpack.c.h.s8.bf16 %v712
        %v2153 = vunpack.c.h.s8.bf16 %v713
        %v2154 = vunpack.c.h.s8.bf16 %v714
        %v2155 = vunpack.c.h.s8.bf16 %v715
        %v2156 = vunpack.c.h.s8.bf16 %v716
        %v2157 = vunpack.c.h.s8.bf16 %v717
        %v2158 = vunpack.c.h.s8.bf16 %v718
        %v2159 = vunpack.c.h.s8.bf16 %v719
        %v2160 = vunpack.c.h.s8.bf16 %v720
        %v2161 = vunpack.c.l.s8.bf16 %v721
        %v2162 = vunpack.c.l.s8.bf16 %v722
        %v2163 = vunpack.c.l.s8.bf16 %v723
        %v2164 = vunpack.c.l.s8.bf16 %v724
        %v2165 = vunpack.c.l.s8.bf16 %v725
        %v2166 = vunpack.c.l.s8.bf16 %v726
        %v2167 = vunpack.c.l.s8.bf16 %v727
        %v2168 = vunpack.c.l.s8.bf16 %v728
        %v2169 = vunpack.c.l.s8.bf16 %v729
        %v2170 = vunpack.c.l.s8.bf16 %v730
        %v2171 = vunpack.c.l.s8.bf16 %v731
        %v2172 = vunpack.c.l.s8.bf16 %v732
        %v2173 = vunpack.c.l.s8.bf16 %v733
        %v2174 = vunpack.c.l.s8.bf16 %v734
        %v2175 = vunpack.c.l.s8.bf16 %v735
        %v2176 = vunpack.c.l.s8.bf16 %v736
        %v2177 = vunpack.c.l.s8.bf16 %v737
        %v2178 = vunpack.c.l.s8.bf16 %v738
        %v2179 = vunpack.c.l.s8.bf16 %v739
        %v2180 = vunpack.c.l.s8.bf16 %v740
        %v2181 = vunpack.c.l.s8.bf16 %v741
        %v2182 = vunpack.c.l.s8.bf16 %v742
        %v2183 = vunpack.c.l.s8.bf16 %v743
        %v2184 = vunpack.c.l.s8.bf16 %v744
        %v2185 = vunpack.c.l.s8.bf16 %v745
        %v2186 = vunpack.c.l.s8.bf16 %v746
        %v2187 = vunpack.c.l.s8.bf16 %v747
        %v2188 = vunpack.c.l.s8.bf16 %v748
        %v2189 = vunpack.c.l.s8.bf16 %v749
        %v2190 = vunpack.c.l.s8.bf16 %v750
        %v2191 = vunpack.c.l.s8.bf16 %v751
        %v2192 = vunpack.c.l.s8.bf16 %v752
        %v2193 = vunpack.c.h.s8.bf16 %v721
        %v2194 = vunpack.c.h.s8.bf16 %v722
        %v2195 = vunpack.c.h.s8.bf16 %v723
        %v2196 = vunpack.c.h.s8.bf16 %v724
        %v2197 = vunpack.c.h.s8.bf16 %v725
        %v2198 = vunpack.c.h.s8.bf16 %v726
        %v2199 = vunpack.c.h.s8.bf16 %v727
        %v2200 = vunpack.c.h.s8.bf16 %v728
        %v2201 = vunpack.c.h.s8.bf16 %v729
        %v2202 = vunpack.c.h.s8.bf16 %v730
        %v2203 = vunpack.c.h.s8.bf16 %v731
        %v2204 = vunpack.c.h.s8.bf16 %v732
        %v2205 = vunpack.c.h.s8.bf16 %v733
        %v2206 = vunpack.c.h.s8.bf16 %v734
        %v2207 = vunpack.c.h.s8.bf16 %v735
        %v2208 = vunpack.c.h.s8.bf16 %v736
        %v2209 = vunpack.c.h.s8.bf16 %v737
        %v2210 = vunpack.c.h.s8.bf16 %v738
        %v2211 = vunpack.c.h.s8.bf16 %v739
        %v2212 = vunpack.c.h.s8.bf16 %v740
        %v2213 = vunpack.c.h.s8.bf16 %v741
        %v2214 = vunpack.c.h.s8.bf16 %v742
        %v2215 = vunpack.c.h.s8.bf16 %v743
        %v2216 = vunpack.c.h.s8.bf16 %v744
        %v2217 = vunpack.c.h.s8.bf16 %v745
        %v2218 = vunpack.c.h.s8.bf16 %v746
        %v2219 = vunpack.c.h.s8.bf16 %v747
        %v2220 = vunpack.c.h.s8.bf16 %v748
        %v2221 = vunpack.c.h.s8.bf16 %v749
        %v2222 = vunpack.c.h.s8.bf16 %v750
        %v2223 = vunpack.c.h.s8.bf16 %v751
        %v2224 = vunpack.c.h.s8.bf16 %v752
        %v2225 = vunpack.c.l.s8.bf16 %v753
        %v2226 = vunpack.c.l.s8.bf16 %v754
        %v2227 = vunpack.c.l.s8.bf16 %v755
        %v2228 = vunpack.c.l.s8.bf16 %v756
        %v2229 = vunpack.c.l.s8.bf16 %v757
        %v2230 = vunpack.c.l.s8.bf16 %v758
        %v2231 = vunpack.c.l.s8.bf16 %v759
        %v2232 = vunpack.c.l.s8.bf16 %v760
        %v2233 = vunpack.c.l.s8.bf16 %v761
        %v2234 = vunpack.c.l.s8.bf16 %v762
        %v2235 = vunpack.c.l.s8.bf16 %v763
        %v2236 = vunpack.c.l.s8.bf16 %v764
        %v2237 = vunpack.c.l.s8.bf16 %v765
        %v2238 = vunpack.c.l.s8.bf16 %v766
        %v2239 = vunpack.c.l.s8.bf16 %v767
        %v2240 = vunpack.c.l.s8.bf16 %v768
        %v2241 = vunpack.c.l.s8.bf16 %v769
        %v2242 = vunpack.c.l.s8.bf16 %v770
        %v2243 = vunpack.c.l.s8.bf16 %v771
        %v2244 = vunpack.c.l.s8.bf16 %v772
        %v2245 = vunpack.c.l.s8.bf16 %v773
        %v2246 = vunpack.c.l.s8.bf16 %v774
        %v2247 = vunpack.c.l.s8.bf16 %v775
        %v2248 = vunpack.c.l.s8.bf16 %v776
        %v2249 = vunpack.c.l.s8.bf16 %v777
        %v2250 = vunpack.c.l.s8.bf16 %v778
        %v2251 = vunpack.c.l.s8.bf16 %v779
        %v2252 = vunpack.c.l.s8.bf16 %v780
        %v2253 = vunpack.c.l.s8.bf16 %v781
        %v2254 = vunpack.c.l.s8.bf16 %v782
        %v2255 = vunpack.c.l.s8.bf16 %v783
        %v2256 = vunpack.c.l.s8.bf16 %v784
        %v2257 = vunpack.c.h.s8.bf16 %v753
        %v2258 = vunpack.c.h.s8.bf16 %v754
        %v2259 = vunpack.c.h.s8.bf16 %v755
        %v2260 = vunpack.c.h.s8.bf16 %v756
        %v2261 = vunpack.c.h.s8.bf16 %v757
        %v2262 = vunpack.c.h.s8.bf16 %v758
        %v2263 = vunpack.c.h.s8.bf16 %v759
        %v2264 = vunpack.c.h.s8.bf16 %v760
        %v2265 = vunpack.c.h.s8.bf16 %v761
        %v2266 = vunpack.c.h.s8.bf16 %v762
        %v2267 = vunpack.c.h.s8.bf16 %v763
        %v2268 = vunpack.c.h.s8.bf16 %v764
        %v2269 = vunpack.c.h.s8.bf16 %v765
        %v2270 = vunpack.c.h.s8.bf16 %v766
        %v2271 = vunpack.c.h.s8.bf16 %v767
        %v2272 = vunpack.c.h.s8.bf16 %v768
        %v2273 = vunpack.c.h.s8.bf16 %v769
        %v2274 = vunpack.c.h.s8.bf16 %v770
        %v2275 = vunpack.c.h.s8.bf16 %v771
        %v2276 = vunpack.c.h.s8.bf16 %v772
        %v2277 = vunpack.c.h.s8.bf16 %v773
        %v2278 = vunpack.c.h.s8.bf16 %v774
        %v2279 = vunpack.c.h.s8.bf16 %v775
        %v2280 = vunpack.c.h.s8.bf16 %v776
        %v2281 = vunpack.c.h.s8.bf16 %v777
        %v2282 = vunpack.c.h.s8.bf16 %v778
        %v2283 = vunpack.c.h.s8.bf16 %v779
        %v2284 = vunpack.c.h.s8.bf16 %v780
        %v2285 = vunpack.c.h.s8.bf16 %v781
        %v2286 = vunpack.c.h.s8.bf16 %v782
        %v2287 = vunpack.c.h.s8.bf16 %v783
        %v2288 = vunpack.c.h.s8.bf16 %v784
        %v2289 = vunpack.c.l.s8.bf16 %v785
        %v2290 = vunpack.c.l.s8.bf16 %v786
        %v2291 = vunpack.c.l.s8.bf16 %v787
        %v2292 = vunpack.c.l.s8.bf16 %v788
        %v2293 = vunpack.c.l.s8.bf16 %v789
        %v2294 = vunpack.c.l.s8.bf16 %v790
        %v2295 = vunpack.c.l.s8.bf16 %v791
        %v2296 = vunpack.c.l.s8.bf16 %v792
        %v2297 = vunpack.c.l.s8.bf16 %v793
        %v2298 = vunpack.c.l.s8.bf16 %v794
        %v2299 = vunpack.c.l.s8.bf16 %v795
        %v2300 = vunpack.c.l.s8.bf16 %v796
        %v2301 = vunpack.c.l.s8.bf16 %v797
        %v2302 = vunpack.c.l.s8.bf16 %v798
        %v2303 = vunpack.c.l.s8.bf16 %v799
        %v2304 = vunpack.c.l.s8.bf16 %v800
        %v2305 = vunpack.c.l.s8.bf16 %v801
        %v2306 = vunpack.c.l.s8.bf16 %v802
        %v2307 = vunpack.c.l.s8.bf16 %v803
        %v2308 = vunpack.c.l.s8.bf16 %v804
        %v2309 = vunpack.c.l.s8.bf16 %v805
        %v2310 = vunpack.c.l.s8.bf16 %v806
        %v2311 = vunpack.c.l.s8.bf16 %v807
        %v2312 = vunpack.c.l.s8.bf16 %v808
        %v2313 = vunpack.c.l.s8.bf16 %v809
        %v2314 = vunpack.c.l.s8.bf16 %v810
        %v2315 = vunpack.c.l.s8.bf16 %v811
        %v2316 = vunpack.c.l.s8.bf16 %v812
        %v2317 = vunpack.c.l.s8.bf16 %v813
        %v2318 = vunpack.c.l.s8.bf16 %v814
        %v2319 = vunpack.c.l.s8.bf16 %v815
        %v2320 = vunpack.c.l.s8.bf16 %v816
        %v2321 = vunpack.c.h.s8.bf16 %v785
        %v2322 = vunpack.c.h.s8.bf16 %v786
        %v2323 = vunpack.c.h.s8.bf16 %v787
        %v2324 = vunpack.c.h.s8.bf16 %v788
        %v2325 = vunpack.c.h.s8.bf16 %v789
        %v2326 = vunpack.c.h.s8.bf16 %v790
        %v2327 = vunpack.c.h.s8.bf16 %v791
        %v2328 = vunpack.c.h.s8.bf16 %v792
        %v2329 = vunpack.c.h.s8.bf16 %v793
        %v2330 = vunpack.c.h.s8.bf16 %v794
        %v2331 = vunpack.c.h.s8.bf16 %v795
        %v2332 = vunpack.c.h.s8.bf16 %v796
        %v2333 = vunpack.c.h.s8.bf16 %v797
        %v2334 = vunpack.c.h.s8.bf16 %v798
        %v2335 = vunpack.c.h.s8.bf16 %v799
        %v2336 = vunpack.c.h.s8.bf16 %v800
        %v2337 = vunpack.c.h.s8.bf16 %v801
        %v2338 = vunpack.c.h.s8.bf16 %v802
        %v2339 = vunpack.c.h.s8.bf16 %v803
        %v2340 = vunpack.c.h.s8.bf16 %v804
        %v2341 = vunpack.c.h.s8.bf16 %v805
        %v2342 = vunpack.c.h.s8.bf16 %v806
        %v2343 = vunpack.c.h.s8.bf16 %v807
        %v2344 = vunpack.c.h.s8.bf16 %v808
        %v2345 = vunpack.c.h.s8.bf16 %v809
        %v2346 = vunpack.c.h.s8.bf16 %v810
        %v2347 = vunpack.c.h.s8.bf16 %v811
        %v2348 = vunpack.c.h.s8.bf16 %v812
        %v2349 = vunpack.c.h.s8.bf16 %v813
        %v2350 = vunpack.c.h.s8.bf16 %v814
        %v2351 = vunpack.c.h.s8.bf16 %v815
        %v2352 = vunpack.c.h.s8.bf16 %v816
        %v2353 = vunpack.c.l.s8.bf16 %v817
        %v2354 = vunpack.c.l.s8.bf16 %v818
        %v2355 = vunpack.c.l.s8.bf16 %v819
        %v2356 = vunpack.c.l.s8.bf16 %v820
        %v2357 = vunpack.c.l.s8.bf16 %v821
        %v2358 = vunpack.c.l.s8.bf16 %v822
        %v2359 = vunpack.c.l.s8.bf16 %v823
        %v2360 = vunpack.c.l.s8.bf16 %v824
        %v2361 = vunpack.c.l.s8.bf16 %v825
        %v2362 = vunpack.c.l.s8.bf16 %v826
        %v2363 = vunpack.c.l.s8.bf16 %v827
        %v2364 = vunpack.c.l.s8.bf16 %v828
        %v2365 = vunpack.c.l.s8.bf16 %v829
        %v2366 = vunpack.c.l.s8.bf16 %v830
        %v2367 = vunpack.c.l.s8.bf16 %v831
        %v2368 = vunpack.c.l.s8.bf16 %v832
        %v2369 = vunpack.c.l.s8.bf16 %v833
        %v2370 = vunpack.c.l.s8.bf16 %v834
        %v2371 = vunpack.c.l.s8.bf16 %v835
        %v2372 = vunpack.c.l.s8.bf16 %v836
        %v2373 = vunpack.c.l.s8.bf16 %v837
        %v2374 = vunpack.c.l.s8.bf16 %v838
        %v2375 = vunpack.c.l.s8.bf16 %v839
        %v2376 = vunpack.c.l.s8.bf16 %v840
        %v2377 = vunpack.c.l.s8.bf16 %v841
        %v2378 = vunpack.c.l.s8.bf16 %v842
        %v2379 = vunpack.c.l.s8.bf16 %v843
        %v2380 = vunpack.c.l.s8.bf16 %v844
        %v2381 = vunpack.c.l.s8.bf16 %v845
        %v2382 = vunpack.c.l.s8.bf16 %v846
        %v2383 = vunpack.c.l.s8.bf16 %v847
        %v2384 = vunpack.c.l.s8.bf16 %v848
        %v2385 = vunpack.c.h.s8.bf16 %v817
        %v2386 = vunpack.c.h.s8.bf16 %v818
        %v2387 = vunpack.c.h.s8.bf16 %v819
        %v2388 = vunpack.c.h.s8.bf16 %v820
        %v2389 = vunpack.c.h.s8.bf16 %v821
        %v2390 = vunpack.c.h.s8.bf16 %v822
        %v2391 = vunpack.c.h.s8.bf16 %v823
        %v2392 = vunpack.c.h.s8.bf16 %v824
        %v2393 = vunpack.c.h.s8.bf16 %v825
        %v2394 = vunpack.c.h.s8.bf16 %v826
        %v2395 = vunpack.c.h.s8.bf16 %v827
        %v2396 = vunpack.c.h.s8.bf16 %v828
        %v2397 = vunpack.c.h.s8.bf16 %v829
        %v2398 = vunpack.c.h.s8.bf16 %v830
        %v2399 = vunpack.c.h.s8.bf16 %v831
        %v2400 = vunpack.c.h.s8.bf16 %v832
        %v2401 = vunpack.c.h.s8.bf16 %v833
        %v2402 = vunpack.c.h.s8.bf16 %v834
        %v2403 = vunpack.c.h.s8.bf16 %v835
        %v2404 = vunpack.c.h.s8.bf16 %v836
        %v2405 = vunpack.c.h.s8.bf16 %v837
        %v2406 = vunpack.c.h.s8.bf16 %v838
        %v2407 = vunpack.c.h.s8.bf16 %v839
        %v2408 = vunpack.c.h.s8.bf16 %v840
        %v2409 = vunpack.c.h.s8.bf16 %v841
        %v2410 = vunpack.c.h.s8.bf16 %v842
        %v2411 = vunpack.c.h.s8.bf16 %v843
        %v2412 = vunpack.c.h.s8.bf16 %v844
        %v2413 = vunpack.c.h.s8.bf16 %v845
        %v2414 = vunpack.c.h.s8.bf16 %v846
        %v2415 = vunpack.c.h.s8.bf16 %v847
        %v2416 = vunpack.c.h.s8.bf16 %v848
        %v2417 = vunpack.c.l.s8.bf16 %v849
        %v2418 = vunpack.c.l.s8.bf16 %v850
        %v2419 = vunpack.c.l.s8.bf16 %v851
        %v2420 = vunpack.c.l.s8.bf16 %v852
        %v2421 = vunpack.c.l.s8.bf16 %v853
        %v2422 = vunpack.c.l.s8.bf16 %v854
        %v2423 = vunpack.c.l.s8.bf16 %v855
        %v2424 = vunpack.c.l.s8.bf16 %v856
        %v2425 = vunpack.c.l.s8.bf16 %v857
        %v2426 = vunpack.c.l.s8.bf16 %v858
        %v2427 = vunpack.c.l.s8.bf16 %v859
        %v2428 = vunpack.c.l.s8.bf16 %v860
        %v2429 = vunpack.c.l.s8.bf16 %v861
        %v2430 = vunpack.c.l.s8.bf16 %v862
        %v2431 = vunpack.c.l.s8.bf16 %v863
        %v2432 = vunpack.c.l.s8.bf16 %v864
        %v2433 = vunpack.c.l.s8.bf16 %v865
        %v2434 = vunpack.c.l.s8.bf16 %v866
        %v2435 = vunpack.c.l.s8.bf16 %v867
        %v2436 = vunpack.c.l.s8.bf16 %v868
        %v2437 = vunpack.c.l.s8.bf16 %v869
        %v2438 = vunpack.c.l.s8.bf16 %v870
        %v2439 = vunpack.c.l.s8.bf16 %v871
        %v2440 = vunpack.c.l.s8.bf16 %v872
        %v2441 = vunpack.c.l.s8.bf16 %v873
        %v2442 = vunpack.c.l.s8.bf16 %v874
        %v2443 = vunpack.c.l.s8.bf16 %v875
        %v2444 = vunpack.c.l.s8.bf16 %v876
        %v2445 = vunpack.c.l.s8.bf16 %v877
        %v2446 = vunpack.c.l.s8.bf16 %v878
        %v2447 = vunpack.c.l.s8.bf16 %v879
        %v2448 = vunpack.c.l.s8.bf16 %v880
        %v2449 = vunpack.c.h.s8.bf16 %v849
        %v2450 = vunpack.c.h.s8.bf16 %v850
        %v2451 = vunpack.c.h.s8.bf16 %v851
        %v2452 = vunpack.c.h.s8.bf16 %v852
        %v2453 = vunpack.c.h.s8.bf16 %v853
        %v2454 = vunpack.c.h.s8.bf16 %v854
        %v2455 = vunpack.c.h.s8.bf16 %v855
        %v2456 = vunpack.c.h.s8.bf16 %v856
        %v2457 = vunpack.c.h.s8.bf16 %v857
        %v2458 = vunpack.c.h.s8.bf16 %v858
        %v2459 = vunpack.c.h.s8.bf16 %v859
        %v2460 = vunpack.c.h.s8.bf16 %v860
        %v2461 = vunpack.c.h.s8.bf16 %v861
        %v2462 = vunpack.c.h.s8.bf16 %v862
        %v2463 = vunpack.c.h.s8.bf16 %v863
        %v2464 = vunpack.c.h.s8.bf16 %v864
        %v2465 = vunpack.c.h.s8.bf16 %v865
        %v2466 = vunpack.c.h.s8.bf16 %v866
        %v2467 = vunpack.c.h.s8.bf16 %v867
        %v2468 = vunpack.c.h.s8.bf16 %v868
        %v2469 = vunpack.c.h.s8.bf16 %v869
        %v2470 = vunpack.c.h.s8.bf16 %v870
        %v2471 = vunpack.c.h.s8.bf16 %v871
        %v2472 = vunpack.c.h.s8.bf16 %v872
        %v2473 = vunpack.c.h.s8.bf16 %v873
        %v2474 = vunpack.c.h.s8.bf16 %v874
        %v2475 = vunpack.c.h.s8.bf16 %v875
        %v2476 = vunpack.c.h.s8.bf16 %v876
        %v2477 = vunpack.c.h.s8.bf16 %v877
        %v2478 = vunpack.c.h.s8.bf16 %v878
        %v2479 = vunpack.c.h.s8.bf16 %v879
        %v2480 = vunpack.c.h.s8.bf16 %v880
        %v2481 = vunpack.c.l.s8.bf16 %v881
        %v2482 = vunpack.c.l.s8.bf16 %v882
        %v2483 = vunpack.c.l.s8.bf16 %v883
        %v2484 = vunpack.c.l.s8.bf16 %v884
        %v2485 = vunpack.c.l.s8.bf16 %v885
        %v2486 = vunpack.c.l.s8.bf16 %v886
        %v2487 = vunpack.c.l.s8.bf16 %v887
        %v2488 = vunpack.c.l.s8.bf16 %v888
        %v2489 = vunpack.c.l.s8.bf16 %v889
        %v2490 = vunpack.c.l.s8.bf16 %v890
        %v2491 = vunpack.c.l.s8.bf16 %v891
        %v2492 = vunpack.c.l.s8.bf16 %v892
        %v2493 = vunpack.c.l.s8.bf16 %v893
        %v2494 = vunpack.c.l.s8.bf16 %v894
        %v2495 = vunpack.c.l.s8.bf16 %v895
        %v2496 = vunpack.c.l.s8.bf16 %v896
        %v2497 = vunpack.c.l.s8.bf16 %v897
        %v2498 = vunpack.c.l.s8.bf16 %v898
        %v2499 = vunpack.c.l.s8.bf16 %v899
        %v2500 = vunpack.c.l.s8.bf16 %v900
        %v2501 = vunpack.c.l.s8.bf16 %v901
        %v2502 = vunpack.c.l.s8.bf16 %v902
        %v2503 = vunpack.c.l.s8.bf16 %v903
        %v2504 = vunpack.c.l.s8.bf16 %v904
        %v2505 = vunpack.c.l.s8.bf16 %v905
        %v2506 = vunpack.c.l.s8.bf16 %v906
        %v2507 = vunpack.c.l.s8.bf16 %v907
        %v2508 = vunpack.c.l.s8.bf16 %v908
        %v2509 = vunpack.c.l.s8.bf16 %v909
        %v2510 = vunpack.c.l.s8.bf16 %v910
        %v2511 = vunpack.c.l.s8.bf16 %v911
        %v2512 = vunpack.c.l.s8.bf16 %v912
        %v2513 = vunpack.c.h.s8.bf16 %v881
        %v2514 = vunpack.c.h.s8.bf16 %v882
        %v2515 = vunpack.c.h.s8.bf16 %v883
        %v2516 = vunpack.c.h.s8.bf16 %v884
        %v2517 = vunpack.c.h.s8.bf16 %v885
        %v2518 = vunpack.c.h.s8.bf16 %v886
        %v2519 = vunpack.c.h.s8.bf16 %v887
        %v2520 = vunpack.c.h.s8.bf16 %v888
        %v2521 = vunpack.c.h.s8.bf16 %v889
        %v2522 = vunpack.c.h.s8.bf16 %v890
        %v2523 = vunpack.c.h.s8.bf16 %v891
        %v2524 = vunpack.c.h.s8.bf16 %v892
        %v2525 = vunpack.c.h.s8.bf16 %v893
        %v2526 = vunpack.c.h.s8.bf16 %v894
        %v2527 = vunpack.c.h.s8.bf16 %v895
        %v2528 = vunpack.c.h.s8.bf16 %v896
        %v2529 = vunpack.c.h.s8.bf16 %v897
        %v2530 = vunpack.c.h.s8.bf16 %v898
        %v2531 = vunpack.c.h.s8.bf16 %v899
        %v2532 = vunpack.c.h.s8.bf16 %v900
        %v2533 = vunpack.c.h.s8.bf16 %v901
        %v2534 = vunpack.c.h.s8.bf16 %v902
        %v2535 = vunpack.c.h.s8.bf16 %v903
        %v2536 = vunpack.c.h.s8.bf16 %v904
        %v2537 = vunpack.c.h.s8.bf16 %v905
        %v2538 = vunpack.c.h.s8.bf16 %v906
        %v2539 = vunpack.c.h.s8.bf16 %v907
        %v2540 = vunpack.c.h.s8.bf16 %v908
        %v2541 = vunpack.c.h.s8.bf16 %v909
        %v2542 = vunpack.c.h.s8.bf16 %v910
        %v2543 = vunpack.c.h.s8.bf16 %v911
        %v2544 = vunpack.c.h.s8.bf16 %v912
        %v2545 = vunpack.c.l.s8.bf16 %v913
        %v2546 = vunpack.c.l.s8.bf16 %v914
        %v2547 = vunpack.c.l.s8.bf16 %v915
        %v2548 = vunpack.c.l.s8.bf16 %v916
        %v2549 = vunpack.c.l.s8.bf16 %v917
        %v2550 = vunpack.c.l.s8.bf16 %v918
        %v2551 = vunpack.c.l.s8.bf16 %v919
        %v2552 = vunpack.c.l.s8.bf16 %v920
        %v2553 = vunpack.c.l.s8.bf16 %v921
        %v2554 = vunpack.c.l.s8.bf16 %v922
        %v2555 = vunpack.c.l.s8.bf16 %v923
        %v2556 = vunpack.c.l.s8.bf16 %v924
        %v2557 = vunpack.c.l.s8.bf16 %v925
        %v2558 = vunpack.c.l.s8.bf16 %v926
        %v2559 = vunpack.c.l.s8.bf16 %v927
        %v2560 = vunpack.c.l.s8.bf16 %v928
        %v2561 = vunpack.c.l.s8.bf16 %v929
        %v2562 = vunpack.c.l.s8.bf16 %v930
        %v2563 = vunpack.c.l.s8.bf16 %v931
        %v2564 = vunpack.c.l.s8.bf16 %v932
        %v2565 = vunpack.c.l.s8.bf16 %v933
        %v2566 = vunpack.c.l.s8.bf16 %v934
        %v2567 = vunpack.c.l.s8.bf16 %v935
        %v2568 = vunpack.c.l.s8.bf16 %v936
        %v2569 = vunpack.c.l.s8.bf16 %v937
        %v2570 = vunpack.c.l.s8.bf16 %v938
        %v2571 = vunpack.c.l.s8.bf16 %v939
        %v2572 = vunpack.c.l.s8.bf16 %v940
        %v2573 = vunpack.c.l.s8.bf16 %v941
        %v2574 = vunpack.c.l.s8.bf16 %v942
        %v2575 = vunpack.c.l.s8.bf16 %v943
        %v2576 = vunpack.c.l.s8.bf16 %v944
        %v2577 = vunpack.c.h.s8.bf16 %v913
        %v2578 = vunpack.c.h.s8.bf16 %v914
        %v2579 = vunpack.c.h.s8.bf16 %v915
        %v2580 = vunpack.c.h.s8.bf16 %v916
        %v2581 = vunpack.c.h.s8.bf16 %v917
        %v2582 = vunpack.c.h.s8.bf16 %v918
        %v2583 = vunpack.c.h.s8.bf16 %v919
        %v2584 = vunpack.c.h.s8.bf16 %v920
        %v2585 = vunpack.c.h.s8.bf16 %v921
        %v2586 = vunpack.c.h.s8.bf16 %v922
        %v2587 = vunpack.c.h.s8.bf16 %v923
        %v2588 = vunpack.c.h.s8.bf16 %v924
        %v2589 = vunpack.c.h.s8.bf16 %v925
        %v2590 = vunpack.c.h.s8.bf16 %v926
        %v2591 = vunpack.c.h.s8.bf16 %v927
        %v2592 = vunpack.c.h.s8.bf16 %v928
        %v2593 = vunpack.c.h.s8.bf16 %v929
        %v2594 = vunpack.c.h.s8.bf16 %v930
        %v2595 = vunpack.c.h.s8.bf16 %v931
        %v2596 = vunpack.c.h.s8.bf16 %v932
        %v2597 = vunpack.c.h.s8.bf16 %v933
        %v2598 = vunpack.c.h.s8.bf16 %v934
        %v2599 = vunpack.c.h.s8.bf16 %v935
        %v2600 = vunpack.c.h.s8.bf16 %v936
        %v2601 = vunpack.c.h.s8.bf16 %v937
        %v2602 = vunpack.c.h.s8.bf16 %v938
        %v2603 = vunpack.c.h.s8.bf16 %v939
        %v2604 = vunpack.c.h.s8.bf16 %v940
        %v2605 = vunpack.c.h.s8.bf16 %v941
        %v2606 = vunpack.c.h.s8.bf16 %v942
        %v2607 = vunpack.c.h.s8.bf16 %v943
        %v2608 = vunpack.c.h.s8.bf16 %v944
        %v2609 = vunpack.c.l.s8.bf16 %v945
        %v2610 = vunpack.c.l.s8.bf16 %v946
        %v2611 = vunpack.c.l.s8.bf16 %v947
        %v2612 = vunpack.c.l.s8.bf16 %v948
        %v2613 = vunpack.c.l.s8.bf16 %v949
        %v2614 = vunpack.c.l.s8.bf16 %v950
        %v2615 = vunpack.c.l.s8.bf16 %v951
        %v2616 = vunpack.c.l.s8.bf16 %v952
        %v2617 = vunpack.c.l.s8.bf16 %v953
        %v2618 = vunpack.c.l.s8.bf16 %v954
        %v2619 = vunpack.c.l.s8.bf16 %v955
        %v2620 = vunpack.c.l.s8.bf16 %v956
        %v2621 = vunpack.c.l.s8.bf16 %v957
        %v2622 = vunpack.c.l.s8.bf16 %v958
        %v2623 = vunpack.c.l.s8.bf16 %v959
        %v2624 = vunpack.c.l.s8.bf16 %v960
        %v2625 = vunpack.c.l.s8.bf16 %v961
        %v2626 = vunpack.c.l.s8.bf16 %v962
        %v2627 = vunpack.c.l.s8.bf16 %v963
        %v2628 = vunpack.c.l.s8.bf16 %v964
        %v2629 = vunpack.c.l.s8.bf16 %v965
        %v2630 = vunpack.c.l.s8.bf16 %v966
        %v2631 = vunpack.c.l.s8.bf16 %v967
        %v2632 = vunpack.c.l.s8.bf16 %v968
        %v2633 = vunpack.c.l.s8.bf16 %v969
        %v2634 = vunpack.c.l.s8.bf16 %v970
        %v2635 = vunpack.c.l.s8.bf16 %v971
        %v2636 = vunpack.c.l.s8.bf16 %v972
        %v2637 = vunpack.c.l.s8.bf16 %v973
        %v2638 = vunpack.c.l.s8.bf16 %v974
        %v2639 = vunpack.c.l.s8.bf16 %v975
        %v2640 = vunpack.c.l.s8.bf16 %v976
        %v2641 = vunpack.c.h.s8.bf16 %v945
        %v2642 = vunpack.c.h.s8.bf16 %v946
        %v2643 = vunpack.c.h.s8.bf16 %v947
        %v2644 = vunpack.c.h.s8.bf16 %v948
        %v2645 = vunpack.c.h.s8.bf16 %v949
        %v2646 = vunpack.c.h.s8.bf16 %v950
        %v2647 = vunpack.c.h.s8.bf16 %v951
        %v2648 = vunpack.c.h.s8.bf16 %v952
        %v2649 = vunpack.c.h.s8.bf16 %v953
        %v2650 = vunpack.c.h.s8.bf16 %v954
        %v2651 = vunpack.c.h.s8.bf16 %v955
        %v2652 = vunpack.c.h.s8.bf16 %v956
        %v2653 = vunpack.c.h.s8.bf16 %v957
        %v2654 = vunpack.c.h.s8.bf16 %v958
        %v2655 = vunpack.c.h.s8.bf16 %v959
        %v2656 = vunpack.c.h.s8.bf16 %v960
        %v2657 = vunpack.c.h.s8.bf16 %v961
        %v2658 = vunpack.c.h.s8.bf16 %v962
        %v2659 = vunpack.c.h.s8.bf16 %v963
        %v2660 = vunpack.c.h.s8.bf16 %v964
        %v2661 = vunpack.c.h.s8.bf16 %v965
        %v2662 = vunpack.c.h.s8.bf16 %v966
        %v2663 = vunpack.c.h.s8.bf16 %v967
        %v2664 = vunpack.c.h.s8.bf16 %v968
        %v2665 = vunpack.c.h.s8.bf16 %v969
        %v2666 = vunpack.c.h.s8.bf16 %v970
        %v2667 = vunpack.c.h.s8.bf16 %v971
        %v2668 = vunpack.c.h.s8.bf16 %v972
        %v2669 = vunpack.c.h.s8.bf16 %v973
        %v2670 = vunpack.c.h.s8.bf16 %v974
        %v2671 = vunpack.c.h.s8.bf16 %v975
        %v2672 = vunpack.c.h.s8.bf16 %v976
        %v2673 = vunpack.c.l.s8.bf16 %v977
        %v2674 = vunpack.c.l.s8.bf16 %v978
        %v2675 = vunpack.c.l.s8.bf16 %v979
        %v2676 = vunpack.c.l.s8.bf16 %v980
        %v2677 = vunpack.c.l.s8.bf16 %v981
        %v2678 = vunpack.c.l.s8.bf16 %v982
        %v2679 = vunpack.c.l.s8.bf16 %v983
        %v2680 = vunpack.c.l.s8.bf16 %v984
        %v2681 = vunpack.c.l.s8.bf16 %v985
        %v2682 = vunpack.c.l.s8.bf16 %v986
        %v2683 = vunpack.c.l.s8.bf16 %v987
        %v2684 = vunpack.c.l.s8.bf16 %v988
        %v2685 = vunpack.c.l.s8.bf16 %v989
        %v2686 = vunpack.c.l.s8.bf16 %v990
        %v2687 = vunpack.c.l.s8.bf16 %v991
        %v2688 = vunpack.c.l.s8.bf16 %v992
        %v2689 = vunpack.c.l.s8.bf16 %v993
        %v2690 = vunpack.c.l.s8.bf16 %v994
        %v2691 = vunpack.c.l.s8.bf16 %v995
        %v2692 = vunpack.c.l.s8.bf16 %v996
        %v2693 = vunpack.c.l.s8.bf16 %v997
        %v2694 = vunpack.c.l.s8.bf16 %v998
        %v2695 = vunpack.c.l.s8.bf16 %v999
        %v2696 = vunpack.c.l.s8.bf16 %v1000
        %v2697 = vunpack.c.l.s8.bf16 %v1001
        %v2698 = vunpack.c.l.s8.bf16 %v1002
        %v2699 = vunpack.c.l.s8.bf16 %v1003
        %v2700 = vunpack.c.l.s8.bf16 %v1004
        %v2701 = vunpack.c.l.s8.bf16 %v1005
        %v2702 = vunpack.c.l.s8.bf16 %v1006
        %v2703 = vunpack.c.l.s8.bf16 %v1007
        %v2704 = vunpack.c.l.s8.bf16 %v1008
        %v2705 = vunpack.c.h.s8.bf16 %v977
        %v2706 = vunpack.c.h.s8.bf16 %v978
        %v2707 = vunpack.c.h.s8.bf16 %v979
        %v2708 = vunpack.c.h.s8.bf16 %v980
        %v2709 = vunpack.c.h.s8.bf16 %v981
        %v2710 = vunpack.c.h.s8.bf16 %v982
        %v2711 = vunpack.c.h.s8.bf16 %v983
        %v2712 = vunpack.c.h.s8.bf16 %v984
        %v2713 = vunpack.c.h.s8.bf16 %v985
        %v2714 = vunpack.c.h.s8.bf16 %v986
        %v2715 = vunpack.c.h.s8.bf16 %v987
        %v2716 = vunpack.c.h.s8.bf16 %v988
        %v2717 = vunpack.c.h.s8.bf16 %v989
        %v2718 = vunpack.c.h.s8.bf16 %v990
        %v2719 = vunpack.c.h.s8.bf16 %v991
        %v2720 = vunpack.c.h.s8.bf16 %v992
        %v2721 = vunpack.c.h.s8.bf16 %v993
        %v2722 = vunpack.c.h.s8.bf16 %v994
        %v2723 = vunpack.c.h.s8.bf16 %v995
        %v2724 = vunpack.c.h.s8.bf16 %v996
        %v2725 = vunpack.c.h.s8.bf16 %v997
        %v2726 = vunpack.c.h.s8.bf16 %v998
        %v2727 = vunpack.c.h.s8.bf16 %v999
        %v2728 = vunpack.c.h.s8.bf16 %v1000
        %v2729 = vunpack.c.h.s8.bf16 %v1001
        %v2730 = vunpack.c.h.s8.bf16 %v1002
        %v2731 = vunpack.c.h.s8.bf16 %v1003
        %v2732 = vunpack.c.h.s8.bf16 %v1004
        %v2733 = vunpack.c.h.s8.bf16 %v1005
        %v2734 = vunpack.c.h.s8.bf16 %v1006
        %v2735 = vunpack.c.h.s8.bf16 %v1007
        %v2736 = vunpack.c.h.s8.bf16 %v1008
        %v2737 = vunpack.c.l.s8.bf16 %v1009
        %v2738 = vunpack.c.l.s8.bf16 %v1010
        %v2739 = vunpack.c.l.s8.bf16 %v1011
        %v2740 = vunpack.c.l.s8.bf16 %v1012
        %v2741 = vunpack.c.l.s8.bf16 %v1013
        %v2742 = vunpack.c.l.s8.bf16 %v1014
        %v2743 = vunpack.c.l.s8.bf16 %v1015
        %v2744 = vunpack.c.l.s8.bf16 %v1016
        %v2745 = vunpack.c.l.s8.bf16 %v1017
        %v2746 = vunpack.c.l.s8.bf16 %v1018
        %v2747 = vunpack.c.l.s8.bf16 %v1019
        %v2748 = vunpack.c.l.s8.bf16 %v1020
        %v2749 = vunpack.c.l.s8.bf16 %v1021
        %v2750 = vunpack.c.l.s8.bf16 %v1022
        %v2751 = vunpack.c.l.s8.bf16 %v1023
        %v2752 = vunpack.c.l.s8.bf16 %v1024
        %v2753 = vunpack.c.l.s8.bf16 %v1025
        %v2754 = vunpack.c.l.s8.bf16 %v1026
        %v2755 = vunpack.c.l.s8.bf16 %v1027
        %v2756 = vunpack.c.l.s8.bf16 %v1028
        %v2757 = vunpack.c.l.s8.bf16 %v1029
        %v2758 = vunpack.c.l.s8.bf16 %v1030
        %v2759 = vunpack.c.l.s8.bf16 %v1031
        %v2760 = vunpack.c.l.s8.bf16 %v1032
        %v2761 = vunpack.c.l.s8.bf16 %v1033
        %v2762 = vunpack.c.l.s8.bf16 %v1034
        %v2763 = vunpack.c.l.s8.bf16 %v1035
        %v2764 = vunpack.c.l.s8.bf16 %v1036
        %v2765 = vunpack.c.l.s8.bf16 %v1037
        %v2766 = vunpack.c.l.s8.bf16 %v1038
        %v2767 = vunpack.c.l.s8.bf16 %v1039
        %v2768 = vunpack.c.l.s8.bf16 %v1040
        %v2769 = vunpack.c.h.s8.bf16 %v1009
        %v2770 = vunpack.c.h.s8.bf16 %v1010
        %v2771 = vunpack.c.h.s8.bf16 %v1011
        %v2772 = vunpack.c.h.s8.bf16 %v1012
        %v2773 = vunpack.c.h.s8.bf16 %v1013
        %v2774 = vunpack.c.h.s8.bf16 %v1014
        %v2775 = vunpack.c.h.s8.bf16 %v1015
        %v2776 = vunpack.c.h.s8.bf16 %v1016
        %v2777 = vunpack.c.h.s8.bf16 %v1017
        %v2778 = vunpack.c.h.s8.bf16 %v1018
        %v2779 = vunpack.c.h.s8.bf16 %v1019
        %v2780 = vunpack.c.h.s8.bf16 %v1020
        %v2781 = vunpack.c.h.s8.bf16 %v1021
        %v2782 = vunpack.c.h.s8.bf16 %v1022
        %v2783 = vunpack.c.h.s8.bf16 %v1023
        %v2784 = vunpack.c.h.s8.bf16 %v1024
        %v2785 = vunpack.c.h.s8.bf16 %v1025
        %v2786 = vunpack.c.h.s8.bf16 %v1026
        %v2787 = vunpack.c.h.s8.bf16 %v1027
        %v2788 = vunpack.c.h.s8.bf16 %v1028
        %v2789 = vunpack.c.h.s8.bf16 %v1029
        %v2790 = vunpack.c.h.s8.bf16 %v1030
        %v2791 = vunpack.c.h.s8.bf16 %v1031
        %v2792 = vunpack.c.h.s8.bf16 %v1032
        %v2793 = vunpack.c.h.s8.bf16 %v1033
        %v2794 = vunpack.c.h.s8.bf16 %v1034
        %v2795 = vunpack.c.h.s8.bf16 %v1035
        %v2796 = vunpack.c.h.s8.bf16 %v1036
        %v2797 = vunpack.c.h.s8.bf16 %v1037
        %v2798 = vunpack.c.h.s8.bf16 %v1038
        %v2799 = vunpack.c.h.s8.bf16 %v1039
        %v2800 = vunpack.c.h.s8.bf16 %v1040
        %v2801 = vunpack.c.l.s8.bf16 %v1041
        %v2802 = vunpack.c.l.s8.bf16 %v1042
        %v2803 = vunpack.c.l.s8.bf16 %v1043
        %v2804 = vunpack.c.l.s8.bf16 %v1044
        %v2805 = vunpack.c.l.s8.bf16 %v1045
        %v2806 = vunpack.c.l.s8.bf16 %v1046
        %v2807 = vunpack.c.l.s8.bf16 %v1047
        %v2808 = vunpack.c.l.s8.bf16 %v1048
        %v2809 = vunpack.c.l.s8.bf16 %v1049
        %v2810 = vunpack.c.l.s8.bf16 %v1050
        %v2811 = vunpack.c.l.s8.bf16 %v1051
        %v2812 = vunpack.c.l.s8.bf16 %v1052
        %v2813 = vunpack.c.l.s8.bf16 %v1053
        %v2814 = vunpack.c.l.s8.bf16 %v1054
        %v2815 = vunpack.c.l.s8.bf16 %v1055
        %v2816 = vunpack.c.l.s8.bf16 %v1056
        %v2817 = vunpack.c.l.s8.bf16 %v1057
        %v2818 = vunpack.c.l.s8.bf16 %v1058
        %v2819 = vunpack.c.l.s8.bf16 %v1059
        %v2820 = vunpack.c.l.s8.bf16 %v1060
        %v2821 = vunpack.c.l.s8.bf16 %v1061
        %v2822 = vunpack.c.l.s8.bf16 %v1062
        %v2823 = vunpack.c.l.s8.bf16 %v1063
        %v2824 = vunpack.c.l.s8.bf16 %v1064
        %v2825 = vunpack.c.l.s8.bf16 %v1065
        %v2826 = vunpack.c.l.s8.bf16 %v1066
        %v2827 = vunpack.c.l.s8.bf16 %v1067
        %v2828 = vunpack.c.l.s8.bf16 %v1068
        %v2829 = vunpack.c.l.s8.bf16 %v1069
        %v2830 = vunpack.c.l.s8.bf16 %v1070
        %v2831 = vunpack.c.l.s8.bf16 %v1071
        %v2832 = vunpack.c.l.s8.bf16 %v1072
        %v2833 = vunpack.c.h.s8.bf16 %v1041
        %v2834 = vunpack.c.h.s8.bf16 %v1042
        %v2835 = vunpack.c.h.s8.bf16 %v1043
        %v2836 = vunpack.c.h.s8.bf16 %v1044
        %v2837 = vunpack.c.h.s8.bf16 %v1045
        %v2838 = vunpack.c.h.s8.bf16 %v1046
        %v2839 = vunpack.c.h.s8.bf16 %v1047
        %v2840 = vunpack.c.h.s8.bf16 %v1048
        %v2841 = vunpack.c.h.s8.bf16 %v1049
        %v2842 = vunpack.c.h.s8.bf16 %v1050
        %v2843 = vunpack.c.h.s8.bf16 %v1051
        %v2844 = vunpack.c.h.s8.bf16 %v1052
        %v2845 = vunpack.c.h.s8.bf16 %v1053
        %v2846 = vunpack.c.h.s8.bf16 %v1054
        %v2847 = vunpack.c.h.s8.bf16 %v1055
        %v2848 = vunpack.c.h.s8.bf16 %v1056
        %v2849 = vunpack.c.h.s8.bf16 %v1057
        %v2850 = vunpack.c.h.s8.bf16 %v1058
        %v2851 = vunpack.c.h.s8.bf16 %v1059
        %v2852 = vunpack.c.h.s8.bf16 %v1060
        %v2853 = vunpack.c.h.s8.bf16 %v1061
        %v2854 = vunpack.c.h.s8.bf16 %v1062
        %v2855 = vunpack.c.h.s8.bf16 %v1063
        %v2856 = vunpack.c.h.s8.bf16 %v1064
        %v2857 = vunpack.c.h.s8.bf16 %v1065
        %v2858 = vunpack.c.h.s8.bf16 %v1066
        %v2859 = vunpack.c.h.s8.bf16 %v1067
        %v2860 = vunpack.c.h.s8.bf16 %v1068
        %v2861 = vunpack.c.h.s8.bf16 %v1069
        %v2862 = vunpack.c.h.s8.bf16 %v1070
        %v2863 = vunpack.c.h.s8.bf16 %v1071
        %v2864 = vunpack.c.h.s8.bf16 %v1072
        %v2865 = vunpack.c.l.s8.bf16 %v1073
        %v2866 = vunpack.c.l.s8.bf16 %v1074
        %v2867 = vunpack.c.l.s8.bf16 %v1075
        %v2868 = vunpack.c.l.s8.bf16 %v1076
        %v2869 = vunpack.c.l.s8.bf16 %v1077
        %v2870 = vunpack.c.l.s8.bf16 %v1078
        %v2871 = vunpack.c.l.s8.bf16 %v1079
        %v2872 = vunpack.c.l.s8.bf16 %v1080
        %v2873 = vunpack.c.l.s8.bf16 %v1081
        %v2874 = vunpack.c.l.s8.bf16 %v1082
        %v2875 = vunpack.c.l.s8.bf16 %v1083
        %v2876 = vunpack.c.l.s8.bf16 %v1084
        %v2877 = vunpack.c.l.s8.bf16 %v1085
        %v2878 = vunpack.c.l.s8.bf16 %v1086
        %v2879 = vunpack.c.l.s8.bf16 %v1087
        %v2880 = vunpack.c.l.s8.bf16 %v1088
        %v2881 = vunpack.c.l.s8.bf16 %v1089
        %v2882 = vunpack.c.l.s8.bf16 %v1090
        %v2883 = vunpack.c.l.s8.bf16 %v1091
        %v2884 = vunpack.c.l.s8.bf16 %v1092
        %v2885 = vunpack.c.l.s8.bf16 %v1093
        %v2886 = vunpack.c.l.s8.bf16 %v1094
        %v2887 = vunpack.c.l.s8.bf16 %v1095
        %v2888 = vunpack.c.l.s8.bf16 %v1096
        %v2889 = vunpack.c.l.s8.bf16 %v1097
        %v2890 = vunpack.c.l.s8.bf16 %v1098
        %v2891 = vunpack.c.l.s8.bf16 %v1099
        %v2892 = vunpack.c.l.s8.bf16 %v1100
        %v2893 = vunpack.c.l.s8.bf16 %v1101
        %v2894 = vunpack.c.l.s8.bf16 %v1102
        %v2895 = vunpack.c.l.s8.bf16 %v1103
        %v2896 = vunpack.c.l.s8.bf16 %v1104
        %v2897 = vunpack.c.h.s8.bf16 %v1073
        %v2898 = vunpack.c.h.s8.bf16 %v1074
        %v2899 = vunpack.c.h.s8.bf16 %v1075
        %v2900 = vunpack.c.h.s8.bf16 %v1076
        %v2901 = vunpack.c.h.s8.bf16 %v1077
        %v2902 = vunpack.c.h.s8.bf16 %v1078
        %v2903 = vunpack.c.h.s8.bf16 %v1079
        %v2904 = vunpack.c.h.s8.bf16 %v1080
        %v2905 = vunpack.c.h.s8.bf16 %v1081
        %v2906 = vunpack.c.h.s8.bf16 %v1082
        %v2907 = vunpack.c.h.s8.bf16 %v1083
        %v2908 = vunpack.c.h.s8.bf16 %v1084
        %v2909 = vunpack.c.h.s8.bf16 %v1085
        %v2910 = vunpack.c.h.s8.bf16 %v1086
        %v2911 = vunpack.c.h.s8.bf16 %v1087
        %v2912 = vunpack.c.h.s8.bf16 %v1088
        %v2913 = vunpack.c.h.s8.bf16 %v1089
        %v2914 = vunpack.c.h.s8.bf16 %v1090
        %v2915 = vunpack.c.h.s8.bf16 %v1091
        %v2916 = vunpack.c.h.s8.bf16 %v1092
        %v2917 = vunpack.c.h.s8.bf16 %v1093
        %v2918 = vunpack.c.h.s8.bf16 %v1094
        %v2919 = vunpack.c.h.s8.bf16 %v1095
        %v2920 = vunpack.c.h.s8.bf16 %v1096
        %v2921 = vunpack.c.h.s8.bf16 %v1097
        %v2922 = vunpack.c.h.s8.bf16 %v1098
        %v2923 = vunpack.c.h.s8.bf16 %v1099
        %v2924 = vunpack.c.h.s8.bf16 %v1100
        %v2925 = vunpack.c.h.s8.bf16 %v1101
        %v2926 = vunpack.c.h.s8.bf16 %v1102
        %v2927 = vunpack.c.h.s8.bf16 %v1103
        %v2928 = vunpack.c.h.s8.bf16 %v1104
        %v2929 = vunpack.c.l.s8.bf16 %v1105
        %v2930 = vunpack.c.l.s8.bf16 %v1106
        %v2931 = vunpack.c.l.s8.bf16 %v1107
        %v2932 = vunpack.c.l.s8.bf16 %v1108
        %v2933 = vunpack.c.l.s8.bf16 %v1109
        %v2934 = vunpack.c.l.s8.bf16 %v1110
        %v2935 = vunpack.c.l.s8.bf16 %v1111
        %v2936 = vunpack.c.l.s8.bf16 %v1112
        %v2937 = vunpack.c.l.s8.bf16 %v1113
        %v2938 = vunpack.c.l.s8.bf16 %v1114
        %v2939 = vunpack.c.l.s8.bf16 %v1115
        %v2940 = vunpack.c.l.s8.bf16 %v1116
        %v2941 = vunpack.c.l.s8.bf16 %v1117
        %v2942 = vunpack.c.l.s8.bf16 %v1118
        %v2943 = vunpack.c.l.s8.bf16 %v1119
        %v2944 = vunpack.c.l.s8.bf16 %v1120
        %v2945 = vunpack.c.l.s8.bf16 %v1121
        %v2946 = vunpack.c.l.s8.bf16 %v1122
        %v2947 = vunpack.c.l.s8.bf16 %v1123
        %v2948 = vunpack.c.l.s8.bf16 %v1124
        %v2949 = vunpack.c.l.s8.bf16 %v1125
        %v2950 = vunpack.c.l.s8.bf16 %v1126
        %v2951 = vunpack.c.l.s8.bf16 %v1127
        %v2952 = vunpack.c.l.s8.bf16 %v1128
        %v2953 = vunpack.c.l.s8.bf16 %v1129
        %v2954 = vunpack.c.l.s8.bf16 %v1130
        %v2955 = vunpack.c.l.s8.bf16 %v1131
        %v2956 = vunpack.c.l.s8.bf16 %v1132
        %v2957 = vunpack.c.l.s8.bf16 %v1133
        %v2958 = vunpack.c.l.s8.bf16 %v1134
        %v2959 = vunpack.c.l.s8.bf16 %v1135
        %v2960 = vunpack.c.l.s8.bf16 %v1136
        %v2961 = vunpack.c.h.s8.bf16 %v1105
        %v2962 = vunpack.c.h.s8.bf16 %v1106
        %v2963 = vunpack.c.h.s8.bf16 %v1107
        %v2964 = vunpack.c.h.s8.bf16 %v1108
        %v2965 = vunpack.c.h.s8.bf16 %v1109
        %v2966 = vunpack.c.h.s8.bf16 %v1110
        %v2967 = vunpack.c.h.s8.bf16 %v1111
        %v2968 = vunpack.c.h.s8.bf16 %v1112
        %v2969 = vunpack.c.h.s8.bf16 %v1113
        %v2970 = vunpack.c.h.s8.bf16 %v1114
        %v2971 = vunpack.c.h.s8.bf16 %v1115
        %v2972 = vunpack.c.h.s8.bf16 %v1116
        %v2973 = vunpack.c.h.s8.bf16 %v1117
        %v2974 = vunpack.c.h.s8.bf16 %v1118
        %v2975 = vunpack.c.h.s8.bf16 %v1119
        %v2976 = vunpack.c.h.s8.bf16 %v1120
        %v2977 = vunpack.c.h.s8.bf16 %v1121
        %v2978 = vunpack.c.h.s8.bf16 %v1122
        %v2979 = vunpack.c.h.s8.bf16 %v1123
        %v2980 = vunpack.c.h.s8.bf16 %v1124
        %v2981 = vunpack.c.h.s8.bf16 %v1125
        %v2982 = vunpack.c.h.s8.bf16 %v1126
        %v2983 = vunpack.c.h.s8.bf16 %v1127
        %v2984 = vunpack.c.h.s8.bf16 %v1128
        %v2985 = vunpack.c.h.s8.bf16 %v1129
        %v2986 = vunpack.c.h.s8.bf16 %v1130
        %v2987 = vunpack.c.h.s8.bf16 %v1131
        %v2988 = vunpack.c.h.s8.bf16 %v1132
        %v2989 = vunpack.c.h.s8.bf16 %v1133
        %v2990 = vunpack.c.h.s8.bf16 %v1134
        %v2991 = vunpack.c.h.s8.bf16 %v1135
        %v2992 = vunpack.c.h.s8.bf16 %v1136
        %v2993 = vunpack.c.l.s8.bf16 %v1137
        %v2994 = vunpack.c.l.s8.bf16 %v1138
        %v2995 = vunpack.c.l.s8.bf16 %v1139
        %v2996 = vunpack.c.l.s8.bf16 %v1140
        %v2997 = vunpack.c.l.s8.bf16 %v1141
        %v2998 = vunpack.c.l.s8.bf16 %v1142
        %v2999 = vunpack.c.l.s8.bf16 %v1143
        %v3000 = vunpack.c.l.s8.bf16 %v1144
        %v3001 = vunpack.c.l.s8.bf16 %v1145
        %v3002 = vunpack.c.l.s8.bf16 %v1146
        %v3003 = vunpack.c.l.s8.bf16 %v1147
        %v3004 = vunpack.c.l.s8.bf16 %v1148
        %v3005 = vunpack.c.l.s8.bf16 %v1149
        %v3006 = vunpack.c.l.s8.bf16 %v1150
        %v3007 = vunpack.c.l.s8.bf16 %v1151
        %v3008 = vunpack.c.l.s8.bf16 %v1152
        %v3009 = vunpack.c.l.s8.bf16 %v1153
        %v3010 = vunpack.c.l.s8.bf16 %v1154
        %v3011 = vunpack.c.l.s8.bf16 %v1155
        %v3012 = vunpack.c.l.s8.bf16 %v1156
        %v3013 = vunpack.c.l.s8.bf16 %v1157
        %v3014 = vunpack.c.l.s8.bf16 %v1158
        %v3015 = vunpack.c.l.s8.bf16 %v1159
        %v3016 = vunpack.c.l.s8.bf16 %v1160
        %v3017 = vunpack.c.l.s8.bf16 %v1161
        %v3018 = vunpack.c.l.s8.bf16 %v1162
        %v3019 = vunpack.c.l.s8.bf16 %v1163
        %v3020 = vunpack.c.l.s8.bf16 %v1164
        %v3021 = vunpack.c.l.s8.bf16 %v1165
        %v3022 = vunpack.c.l.s8.bf16 %v1166
        %v3023 = vunpack.c.l.s8.bf16 %v1167
        %v3024 = vunpack.c.l.s8.bf16 %v1168
        %v3025 = vunpack.c.h.s8.bf16 %v1137
        %v3026 = vunpack.c.h.s8.bf16 %v1138
        %v3027 = vunpack.c.h.s8.bf16 %v1139
        %v3028 = vunpack.c.h.s8.bf16 %v1140
        %v3029 = vunpack.c.h.s8.bf16 %v1141
        %v3030 = vunpack.c.h.s8.bf16 %v1142
        %v3031 = vunpack.c.h.s8.bf16 %v1143
        %v3032 = vunpack.c.h.s8.bf16 %v1144
        %v3033 = vunpack.c.h.s8.bf16 %v1145
        %v3034 = vunpack.c.h.s8.bf16 %v1146
        %v3035 = vunpack.c.h.s8.bf16 %v1147
        %v3036 = vunpack.c.h.s8.bf16 %v1148
        %v3037 = vunpack.c.h.s8.bf16 %v1149
        %v3038 = vunpack.c.h.s8.bf16 %v1150
        %v3039 = vunpack.c.h.s8.bf16 %v1151
        %v3040 = vunpack.c.h.s8.bf16 %v1152
        %v3041 = vunpack.c.h.s8.bf16 %v1153
        %v3042 = vunpack.c.h.s8.bf16 %v1154
        %v3043 = vunpack.c.h.s8.bf16 %v1155
        %v3044 = vunpack.c.h.s8.bf16 %v1156
        %v3045 = vunpack.c.h.s8.bf16 %v1157
        %v3046 = vunpack.c.h.s8.bf16 %v1158
        %v3047 = vunpack.c.h.s8.bf16 %v1159
        %v3048 = vunpack.c.h.s8.bf16 %v1160
        %v3049 = vunpack.c.h.s8.bf16 %v1161
        %v3050 = vunpack.c.h.s8.bf16 %v1162
        %v3051 = vunpack.c.h.s8.bf16 %v1163
        %v3052 = vunpack.c.h.s8.bf16 %v1164
        %v3053 = vunpack.c.h.s8.bf16 %v1165
        %v3054 = vunpack.c.h.s8.bf16 %v1166
        %v3055 = vunpack.c.h.s8.bf16 %v1167
        %v3056 = vunpack.c.h.s8.bf16 %v1168
        %v3057 = vunpack.c.l.s8.bf16 %v1169
        %v3058 = vunpack.c.l.s8.bf16 %v1170
        %v3059 = vunpack.c.l.s8.bf16 %v1171
        %v3060 = vunpack.c.l.s8.bf16 %v1172
        %v3061 = vunpack.c.l.s8.bf16 %v1173
        %v3062 = vunpack.c.l.s8.bf16 %v1174
        %v3063 = vunpack.c.l.s8.bf16 %v1175
        %v3064 = vunpack.c.l.s8.bf16 %v1176
        %v3065 = vunpack.c.l.s8.bf16 %v1177
        %v3066 = vunpack.c.l.s8.bf16 %v1178
        %v3067 = vunpack.c.l.s8.bf16 %v1179
        %v3068 = vunpack.c.l.s8.bf16 %v1180
        %v3069 = vunpack.c.l.s8.bf16 %v1181
        %v3070 = vunpack.c.l.s8.bf16 %v1182
        %v3071 = vunpack.c.l.s8.bf16 %v1183
        %v3072 = vunpack.c.l.s8.bf16 %v1184
        %v3073 = vunpack.c.l.s8.bf16 %v1185
        %v3074 = vunpack.c.l.s8.bf16 %v1186
        %v3075 = vunpack.c.l.s8.bf16 %v1187
        %v3076 = vunpack.c.l.s8.bf16 %v1188
        %v3077 = vunpack.c.l.s8.bf16 %v1189
        %v3078 = vunpack.c.l.s8.bf16 %v1190
        %v3079 = vunpack.c.l.s8.bf16 %v1191
        %v3080 = vunpack.c.l.s8.bf16 %v1192
        %v3081 = vunpack.c.l.s8.bf16 %v1193
        %v3082 = vunpack.c.l.s8.bf16 %v1194
        %v3083 = vunpack.c.l.s8.bf16 %v1195
        %v3084 = vunpack.c.l.s8.bf16 %v1196
        %v3085 = vunpack.c.l.s8.bf16 %v1197
        %v3086 = vunpack.c.l.s8.bf16 %v1198
        %v3087 = vunpack.c.l.s8.bf16 %v1199
        %v3088 = vunpack.c.l.s8.bf16 %v1200
        %v3089 = vunpack.c.h.s8.bf16 %v1169
        %v3090 = vunpack.c.h.s8.bf16 %v1170
        %v3091 = vunpack.c.h.s8.bf16 %v1171
        %v3092 = vunpack.c.h.s8.bf16 %v1172
        %v3093 = vunpack.c.h.s8.bf16 %v1173
        %v3094 = vunpack.c.h.s8.bf16 %v1174
        %v3095 = vunpack.c.h.s8.bf16 %v1175
        %v3096 = vunpack.c.h.s8.bf16 %v1176
        %v3097 = vunpack.c.h.s8.bf16 %v1177
        %v3098 = vunpack.c.h.s8.bf16 %v1178
        %v3099 = vunpack.c.h.s8.bf16 %v1179
        %v3100 = vunpack.c.h.s8.bf16 %v1180
        %v3101 = vunpack.c.h.s8.bf16 %v1181
        %v3102 = vunpack.c.h.s8.bf16 %v1182
        %v3103 = vunpack.c.h.s8.bf16 %v1183
        %v3104 = vunpack.c.h.s8.bf16 %v1184
        %v3105 = vunpack.c.h.s8.bf16 %v1185
        %v3106 = vunpack.c.h.s8.bf16 %v1186
        %v3107 = vunpack.c.h.s8.bf16 %v1187
        %v3108 = vunpack.c.h.s8.bf16 %v1188
        %v3109 = vunpack.c.h.s8.bf16 %v1189
        %v3110 = vunpack.c.h.s8.bf16 %v1190
        %v3111 = vunpack.c.h.s8.bf16 %v1191
        %v3112 = vunpack.c.h.s8.bf16 %v1192
        %v3113 = vunpack.c.h.s8.bf16 %v1193
        %v3114 = vunpack.c.h.s8.bf16 %v1194
        %v3115 = vunpack.c.h.s8.bf16 %v1195
        %v3116 = vunpack.c.h.s8.bf16 %v1196
        %v3117 = vunpack.c.h.s8.bf16 %v1197
        %v3118 = vunpack.c.h.s8.bf16 %v1198
        %v3119 = vunpack.c.h.s8.bf16 %v1199
        %v3120 = vunpack.c.h.s8.bf16 %v1200
        %v3121 = vunpack.c.l.s8.bf16 %v1201
        %v3122 = vunpack.c.l.s8.bf16 %v1202
        %v3123 = vunpack.c.l.s8.bf16 %v1203
        %v3124 = vunpack.c.l.s8.bf16 %v1204
        %v3125 = vunpack.c.l.s8.bf16 %v1205
        %v3126 = vunpack.c.l.s8.bf16 %v1206
        %v3127 = vunpack.c.l.s8.bf16 %v1207
        %v3128 = vunpack.c.l.s8.bf16 %v1208
        %v3129 = vunpack.c.l.s8.bf16 %v1209
        %v3130 = vunpack.c.l.s8.bf16 %v1210
        %v3131 = vunpack.c.l.s8.bf16 %v1211
        %v3132 = vunpack.c.l.s8.bf16 %v1212
        %v3133 = vunpack.c.l.s8.bf16 %v1213
        %v3134 = vunpack.c.l.s8.bf16 %v1214
        %v3135 = vunpack.c.l.s8.bf16 %v1215
        %v3136 = vunpack.c.l.s8.bf16 %v1216
        %v3137 = vunpack.c.l.s8.bf16 %v1217
        %v3138 = vunpack.c.l.s8.bf16 %v1218
        %v3139 = vunpack.c.l.s8.bf16 %v1219
        %v3140 = vunpack.c.l.s8.bf16 %v1220
        %v3141 = vunpack.c.l.s8.bf16 %v1221
        %v3142 = vunpack.c.l.s8.bf16 %v1222
        %v3143 = vunpack.c.l.s8.bf16 %v1223
        %v3144 = vunpack.c.l.s8.bf16 %v1224
        %v3145 = vunpack.c.l.s8.bf16 %v1225
        %v3146 = vunpack.c.l.s8.bf16 %v1226
        %v3147 = vunpack.c.l.s8.bf16 %v1227
        %v3148 = vunpack.c.l.s8.bf16 %v1228
        %v3149 = vunpack.c.l.s8.bf16 %v1229
        %v3150 = vunpack.c.l.s8.bf16 %v1230
        %v3151 = vunpack.c.l.s8.bf16 %v1231
        %v3152 = vunpack.c.l.s8.bf16 %v1232
        %v3153 = vunpack.c.h.s8.bf16 %v1201
        %v3154 = vunpack.c.h.s8.bf16 %v1202
        %v3155 = vunpack.c.h.s8.bf16 %v1203
        %v3156 = vunpack.c.h.s8.bf16 %v1204
        %v3157 = vunpack.c.h.s8.bf16 %v1205
        %v3158 = vunpack.c.h.s8.bf16 %v1206
        %v3159 = vunpack.c.h.s8.bf16 %v1207
        %v3160 = vunpack.c.h.s8.bf16 %v1208
        %v3161 = vunpack.c.h.s8.bf16 %v1209
        %v3162 = vunpack.c.h.s8.bf16 %v1210
        %v3163 = vunpack.c.h.s8.bf16 %v1211
        %v3164 = vunpack.c.h.s8.bf16 %v1212
        %v3165 = vunpack.c.h.s8.bf16 %v1213
        %v3166 = vunpack.c.h.s8.bf16 %v1214
        %v3167 = vunpack.c.h.s8.bf16 %v1215
        %v3168 = vunpack.c.h.s8.bf16 %v1216
        %v3169 = vunpack.c.h.s8.bf16 %v1217
        %v3170 = vunpack.c.h.s8.bf16 %v1218
        %v3171 = vunpack.c.h.s8.bf16 %v1219
        %v3172 = vunpack.c.h.s8.bf16 %v1220
        %v3173 = vunpack.c.h.s8.bf16 %v1221
        %v3174 = vunpack.c.h.s8.bf16 %v1222
        %v3175 = vunpack.c.h.s8.bf16 %v1223
        %v3176 = vunpack.c.h.s8.bf16 %v1224
        %v3177 = vunpack.c.h.s8.bf16 %v1225
        %v3178 = vunpack.c.h.s8.bf16 %v1226
        %v3179 = vunpack.c.h.s8.bf16 %v1227
        %v3180 = vunpack.c.h.s8.bf16 %v1228
        %v3181 = vunpack.c.h.s8.bf16 %v1229
        %v3182 = vunpack.c.h.s8.bf16 %v1230
        %v3183 = vunpack.c.h.s8.bf16 %v1231
        %v3184 = vunpack.c.h.s8.bf16 %v1232
        %v3185 = vunpack.c.l.s8.bf16 %v1233
        %v3186 = vunpack.c.l.s8.bf16 %v1234
        %v3187 = vunpack.c.l.s8.bf16 %v1235
        %v3188 = vunpack.c.l.s8.bf16 %v1236
        %v3189 = vunpack.c.l.s8.bf16 %v1237
        %v3190 = vunpack.c.l.s8.bf16 %v1238
        %v3191 = vunpack.c.l.s8.bf16 %v1239
        %v3192 = vunpack.c.l.s8.bf16 %v1240
        %v3193 = vunpack.c.l.s8.bf16 %v1241
        %v3194 = vunpack.c.l.s8.bf16 %v1242
        %v3195 = vunpack.c.l.s8.bf16 %v1243
        %v3196 = vunpack.c.l.s8.bf16 %v1244
        %v3197 = vunpack.c.l.s8.bf16 %v1245
        %v3198 = vunpack.c.l.s8.bf16 %v1246
        %v3199 = vunpack.c.l.s8.bf16 %v1247
        %v3200 = vunpack.c.l.s8.bf16 %v1248
        %v3201 = vunpack.c.l.s8.bf16 %v1249
        %v3202 = vunpack.c.l.s8.bf16 %v1250
        %v3203 = vunpack.c.l.s8.bf16 %v1251
        %v3204 = vunpack.c.l.s8.bf16 %v1252
        %v3205 = vunpack.c.l.s8.bf16 %v1253
        %v3206 = vunpack.c.l.s8.bf16 %v1254
        %v3207 = vunpack.c.l.s8.bf16 %v1255
        %v3208 = vunpack.c.l.s8.bf16 %v1256
        %v3209 = vunpack.c.l.s8.bf16 %v1257
        %v3210 = vunpack.c.l.s8.bf16 %v1258
        %v3211 = vunpack.c.l.s8.bf16 %v1259
        %v3212 = vunpack.c.l.s8.bf16 %v1260
        %v3213 = vunpack.c.l.s8.bf16 %v1261
        %v3214 = vunpack.c.l.s8.bf16 %v1262
        %v3215 = vunpack.c.l.s8.bf16 %v1263
        %v3216 = vunpack.c.l.s8.bf16 %v1264
        %v3217 = vunpack.c.h.s8.bf16 %v1233
        %v3218 = vunpack.c.h.s8.bf16 %v1234
        %v3219 = vunpack.c.h.s8.bf16 %v1235
        %v3220 = vunpack.c.h.s8.bf16 %v1236
        %v3221 = vunpack.c.h.s8.bf16 %v1237
        %v3222 = vunpack.c.h.s8.bf16 %v1238
        %v3223 = vunpack.c.h.s8.bf16 %v1239
        %v3224 = vunpack.c.h.s8.bf16 %v1240
        %v3225 = vunpack.c.h.s8.bf16 %v1241
        %v3226 = vunpack.c.h.s8.bf16 %v1242
        %v3227 = vunpack.c.h.s8.bf16 %v1243
        %v3228 = vunpack.c.h.s8.bf16 %v1244
        %v3229 = vunpack.c.h.s8.bf16 %v1245
        %v3230 = vunpack.c.h.s8.bf16 %v1246
        %v3231 = vunpack.c.h.s8.bf16 %v1247
        %v3232 = vunpack.c.h.s8.bf16 %v1248
        %v3233 = vunpack.c.h.s8.bf16 %v1249
        %v3234 = vunpack.c.h.s8.bf16 %v1250
        %v3235 = vunpack.c.h.s8.bf16 %v1251
        %v3236 = vunpack.c.h.s8.bf16 %v1252
        %v3237 = vunpack.c.h.s8.bf16 %v1253
        %v3238 = vunpack.c.h.s8.bf16 %v1254
        %v3239 = vunpack.c.h.s8.bf16 %v1255
        %v3240 = vunpack.c.h.s8.bf16 %v1256
        %v3241 = vunpack.c.h.s8.bf16 %v1257
        %v3242 = vunpack.c.h.s8.bf16 %v1258
        %v3243 = vunpack.c.h.s8.bf16 %v1259
        %v3244 = vunpack.c.h.s8.bf16 %v1260
        %v3245 = vunpack.c.h.s8.bf16 %v1261
        %v3246 = vunpack.c.h.s8.bf16 %v1262
        %v3247 = vunpack.c.h.s8.bf16 %v1263
        %v3248 = vunpack.c.h.s8.bf16 %v1264
        %v3249 = vunpack.c.l.s8.bf16 %v1265
        %v3250 = vunpack.c.l.s8.bf16 %v1266
        %v3251 = vunpack.c.l.s8.bf16 %v1267
        %v3252 = vunpack.c.l.s8.bf16 %v1268
        %v3253 = vunpack.c.l.s8.bf16 %v1269
        %v3254 = vunpack.c.l.s8.bf16 %v1270
        %v3255 = vunpack.c.l.s8.bf16 %v1271
        %v3256 = vunpack.c.l.s8.bf16 %v1272
        %v3257 = vunpack.c.l.s8.bf16 %v1273
        %v3258 = vunpack.c.l.s8.bf16 %v1274
        %v3259 = vunpack.c.l.s8.bf16 %v1275
        %v3260 = vunpack.c.l.s8.bf16 %v1276
        %v3261 = vunpack.c.l.s8.bf16 %v1277
        %v3262 = vunpack.c.l.s8.bf16 %v1278
        %v3263 = vunpack.c.l.s8.bf16 %v1279
        %v3264 = vunpack.c.l.s8.bf16 %v1280
        %v3265 = vunpack.c.l.s8.bf16 %v1281
        %v3266 = vunpack.c.l.s8.bf16 %v1282
        %v3267 = vunpack.c.l.s8.bf16 %v1283
        %v3268 = vunpack.c.l.s8.bf16 %v1284
        %v3269 = vunpack.c.l.s8.bf16 %v1285
        %v3270 = vunpack.c.l.s8.bf16 %v1286
        %v3271 = vunpack.c.l.s8.bf16 %v1287
        %v3272 = vunpack.c.l.s8.bf16 %v1288
        %v3273 = vunpack.c.l.s8.bf16 %v1289
        %v3274 = vunpack.c.l.s8.bf16 %v1290
        %v3275 = vunpack.c.l.s8.bf16 %v1291
        %v3276 = vunpack.c.l.s8.bf16 %v1292
        %v3277 = vunpack.c.l.s8.bf16 %v1293
        %v3278 = vunpack.c.l.s8.bf16 %v1294
        %v3279 = vunpack.c.l.s8.bf16 %v1295
        %v3280 = vunpack.c.l.s8.bf16 %v1296
        %v3281 = vunpack.c.h.s8.bf16 %v1265
        %v3282 = vunpack.c.h.s8.bf16 %v1266
        %v3283 = vunpack.c.h.s8.bf16 %v1267
        %v3284 = vunpack.c.h.s8.bf16 %v1268
        %v3285 = vunpack.c.h.s8.bf16 %v1269
        %v3286 = vunpack.c.h.s8.bf16 %v1270
        %v3287 = vunpack.c.h.s8.bf16 %v1271
        %v3288 = vunpack.c.h.s8.bf16 %v1272
        %v3289 = vunpack.c.h.s8.bf16 %v1273
        %v3290 = vunpack.c.h.s8.bf16 %v1274
        %v3291 = vunpack.c.h.s8.bf16 %v1275
        %v3292 = vunpack.c.h.s8.bf16 %v1276
        %v3293 = vunpack.c.h.s8.bf16 %v1277
        %v3294 = vunpack.c.h.s8.bf16 %v1278
        %v3295 = vunpack.c.h.s8.bf16 %v1279
        %v3296 = vunpack.c.h.s8.bf16 %v1280
        %v3297 = vunpack.c.h.s8.bf16 %v1281
        %v3298 = vunpack.c.h.s8.bf16 %v1282
        %v3299 = vunpack.c.h.s8.bf16 %v1283
        %v3300 = vunpack.c.h.s8.bf16 %v1284
        %v3301 = vunpack.c.h.s8.bf16 %v1285
        %v3302 = vunpack.c.h.s8.bf16 %v1286
        %v3303 = vunpack.c.h.s8.bf16 %v1287
        %v3304 = vunpack.c.h.s8.bf16 %v1288
        %v3305 = vunpack.c.h.s8.bf16 %v1289
        %v3306 = vunpack.c.h.s8.bf16 %v1290
        %v3307 = vunpack.c.h.s8.bf16 %v1291
        %v3308 = vunpack.c.h.s8.bf16 %v1292
        %v3309 = vunpack.c.h.s8.bf16 %v1293
        %v3310 = vunpack.c.h.s8.bf16 %v1294
        %v3311 = vunpack.c.h.s8.bf16 %v1295
        %v3312 = vunpack.c.h.s8.bf16 %v1296
        %v3313 = vunpack.c.l.s8.bf16 %v1297
        %v3314 = vunpack.c.l.s8.bf16 %v1298
        %v3315 = vunpack.c.l.s8.bf16 %v1299
        %v3316 = vunpack.c.l.s8.bf16 %v1300
        %v3317 = vunpack.c.l.s8.bf16 %v1301
        %v3318 = vunpack.c.l.s8.bf16 %v1302
        %v3319 = vunpack.c.l.s8.bf16 %v1303
        %v3320 = vunpack.c.l.s8.bf16 %v1304
        %v3321 = vunpack.c.l.s8.bf16 %v1305
        %v3322 = vunpack.c.l.s8.bf16 %v1306
        %v3323 = vunpack.c.l.s8.bf16 %v1307
        %v3324 = vunpack.c.l.s8.bf16 %v1308
        %v3325 = vunpack.c.l.s8.bf16 %v1309
        %v3326 = vunpack.c.l.s8.bf16 %v1310
        %v3327 = vunpack.c.l.s8.bf16 %v1311
        %v3328 = vunpack.c.l.s8.bf16 %v1312
        %v3329 = vunpack.c.l.s8.bf16 %v1313
        %v3330 = vunpack.c.l.s8.bf16 %v1314
        %v3331 = vunpack.c.l.s8.bf16 %v1315
        %v3332 = vunpack.c.l.s8.bf16 %v1316
        %v3333 = vunpack.c.l.s8.bf16 %v1317
        %v3334 = vunpack.c.l.s8.bf16 %v1318
        %v3335 = vunpack.c.l.s8.bf16 %v1319
        %v3336 = vunpack.c.l.s8.bf16 %v1320
        %v3337 = vunpack.c.l.s8.bf16 %v1321
        %v3338 = vunpack.c.l.s8.bf16 %v1322
        %v3339 = vunpack.c.l.s8.bf16 %v1323
        %v3340 = vunpack.c.l.s8.bf16 %v1324
        %v3341 = vunpack.c.l.s8.bf16 %v1325
        %v3342 = vunpack.c.l.s8.bf16 %v1326
        %v3343 = vunpack.c.l.s8.bf16 %v1327
        %v3344 = vunpack.c.l.s8.bf16 %v1328
        %v3345 = vunpack.c.h.s8.bf16 %v1297
        %v3346 = vunpack.c.h.s8.bf16 %v1298
        %v3347 = vunpack.c.h.s8.bf16 %v1299
        %v3348 = vunpack.c.h.s8.bf16 %v1300
        %v3349 = vunpack.c.h.s8.bf16 %v1301
        %v3350 = vunpack.c.h.s8.bf16 %v1302
        %v3351 = vunpack.c.h.s8.bf16 %v1303
        %v3352 = vunpack.c.h.s8.bf16 %v1304
        %v3353 = vunpack.c.h.s8.bf16 %v1305
        %v3354 = vunpack.c.h.s8.bf16 %v1306
        %v3355 = vunpack.c.h.s8.bf16 %v1307
        %v3356 = vunpack.c.h.s8.bf16 %v1308
        %v3357 = vunpack.c.h.s8.bf16 %v1309
        %v3358 = vunpack.c.h.s8.bf16 %v1310
        %v3359 = vunpack.c.h.s8.bf16 %v1311
        %v3360 = vunpack.c.h.s8.bf16 %v1312
        %v3361 = vunpack.c.h.s8.bf16 %v1313
        %v3362 = vunpack.c.h.s8.bf16 %v1314
        %v3363 = vunpack.c.h.s8.bf16 %v1315
        %v3364 = vunpack.c.h.s8.bf16 %v1316
        %v3365 = vunpack.c.h.s8.bf16 %v1317
        %v3366 = vunpack.c.h.s8.bf16 %v1318
        %v3367 = vunpack.c.h.s8.bf16 %v1319
        %v3368 = vunpack.c.h.s8.bf16 %v1320
        %v3369 = vunpack.c.h.s8.bf16 %v1321
        %v3370 = vunpack.c.h.s8.bf16 %v1322
        %v3371 = vunpack.c.h.s8.bf16 %v1323
        %v3372 = vunpack.c.h.s8.bf16 %v1324
        %v3373 = vunpack.c.h.s8.bf16 %v1325
        %v3374 = vunpack.c.h.s8.bf16 %v1326
        %v3375 = vunpack.c.h.s8.bf16 %v1327
        %v3376 = vunpack.c.h.s8.bf16 %v1328
        %v3377 = vld [vmem:[#allocation2] sm:$0xff]
        %v3379 = vcombine.high %v3377, %v3377
        %v3381 = vunpack.c.l.s4 1966171168
        %v3382 = vunpack.c.0.s8 %v3381
        %v3383 = vlaneseq
        %v3384 = vshrl.u32 %v3383, 7
        %v3385 = vsub.s32 %v3382, %v3384
        %v3386 = vrot.slane %v3377, %v3385
        %v3388 = vunpack.c.l.s4 1966171168
        %v3389 = vunpack.c.0.s8 %v3388
        %v3390 = vlaneseq
        %v3391 = vshrl.u32 %v3390, 7
        %v3392 = vsub.s32 %v3389, %v3391
        %v3393 = vrot.slane %v3379, %v3392
        %v3394 = vcombine.high %v3386, %v3386
        %v3395 = vcombine.high %v3393, %v3393
        %v3397 = vunpack.c.l.s4 1966171168
        %v3398 = vunpack.c.0.s8 %v3397
        %v3399 = vlaneseq
        %v3400 = vshrl.u32 %v3399, 7
        %v3401 = vsub.s32 %v3398, %v3400
        %v3402 = vrot.slane %v3386, %v3401
        %v3404 = vunpack.c.l.s4 1966171168
        %v3405 = vunpack.c.0.s8 %v3404
        %v3406 = vlaneseq
        %v3407 = vshrl.u32 %v3406, 7
        %v3408 = vsub.s32 %v3405, %v3407
        %v3409 = vrot.slane %v3393, %v3408
        %v3411 = vunpack.c.l.s4 1966171168
        %v3412 = vunpack.c.0.s8 %v3411
        %v3413 = vlaneseq
        %v3414 = vshrl.u32 %v3413, 7
        %v3415 = vsub.s32 %v3412, %v3414
        %v3416 = vrot.slane %v3394, %v3415
        %v3418 = vunpack.c.l.s4 1966171168
        %v3419 = vunpack.c.0.s8 %v3418
        %v3420 = vlaneseq
        %v3421 = vshrl.u32 %v3420, 7
        %v3422 = vsub.s32 %v3419, %v3421
        %v3423 = vrot.slane %v3395, %v3422
        %v3424 = vcombine.high %v3402, %v3402
        %v3425 = vcombine.high %v3409, %v3409
        %v3426 = vcombine.high %v3416, %v3416
        %v3427 = vcombine.high %v3423, %v3423
        %3436 = vmatprep.subr.bf16.mxu0 %v1330
        %3437 = vmatpush1.bf16.msra.mxu0 %v1329
        %3438 = vmatprep.subr.bf16.mxu0 %v1362
        %3439 = vmatpush1.bf16.msra.mxu0 %v1361
        %3440 = vmatprep.subr.bf16.mxu0 %v1394
        %3441 = vmatpush1.bf16.msra.mxu0 %v1393
        %3442 = vmatprep.subr.bf16.mxu0 %v1426
        %3443 = vmatpush1.bf16.msra.mxu0 %v1425
        %3444 = vmatprep.subr.bf16.mxu0 %v1458
        %3445 = vmatpush1.bf16.msra.mxu0 %v1457
        %3446 = vmatprep.subr.bf16.mxu0 %v1490
        %3447 = vmatpush1.bf16.msra.mxu0 %v1489
        %3448 = vmatprep.subr.bf16.mxu0 %v1522
        %3449 = vmatpush1.bf16.msra.mxu0 %v1521
        %3450 = vmatprep.subr.bf16.mxu0 %v1554
        %3451 = vmatpush1.bf16.msra.mxu0 %v1553
        %3452 = vmatprep.subr.bf16.mxu0 %v1586
        %3453 = vmatpush1.bf16.msra.mxu0 %v1585
        %3454 = vmatprep.subr.bf16.mxu0 %v1618
        %3455 = vmatpush1.bf16.msra.mxu0 %v1617
        %3456 = vmatprep.subr.bf16.mxu0 %v1650
        %3457 = vmatpush1.bf16.msra.mxu0 %v1649
        %3458 = vmatprep.subr.bf16.mxu0 %v1682
        %3459 = vmatpush1.bf16.msra.mxu0 %v1681
        %3460 = vmatprep.subr.bf16.mxu0 %v1714
        %3461 = vmatpush1.bf16.msra.mxu0 %v1713
        %3462 = vmatprep.subr.bf16.mxu0 %v1746
        %3463 = vmatpush1.bf16.msra.mxu0 %v1745
        %3464 = vmatprep.subr.bf16.mxu0 %v1778
        %3465 = vmatpush1.bf16.msra.mxu0 %v1777
        %3466 = vmatprep.subr.bf16.mxu0 %v1810
        %3467 = vmatpush1.bf16.msra.mxu0 %v1809
        %3468 = vmatprep.mubr.bf16.mxu0 %v3416
        %3469 = vmatmul.mubr.bf16.gmra.mrb[0].mxu0 %v3402
        %v3470 = vpop.f32.mrb[0].mxu0
        %v3471 = vadd.f32 0.0, %v3470
        %v3472 = vpop.f32.mrb[0].mxu0
        %v3473 = vadd.f32 0.0, %v3472
        %v3474 = vpop.f32.mrb[0].mxu0
        %v3475 = vpop.f32.mrb[0].mxu0
        %3476 = vdwg.mxu0
        %3477 = vmatprep.subr.bf16.mxu0 %v1842
        %3478 = vmatpush1.bf16.msra.mxu0 %v1841
        %3479 = vmatprep.subr.bf16.mxu0 %v1874
        %3480 = vmatpush1.bf16.msra.mxu0 %v1873
        %3481 = vmatprep.subr.bf16.mxu0 %v1906
        %3482 = vmatpush1.bf16.msra.mxu0 %v1905
        %3483 = vmatprep.subr.bf16.mxu0 %v1938
        %3484 = vmatpush1.bf16.msra.mxu0 %v1937
        %3485 = vmatprep.subr.bf16.mxu0 %v1970
        %3486 = vmatpush1.bf16.msra.mxu0 %v1969
        %3487 = vmatprep.subr.bf16.mxu0 %v2002
        %3488 = vmatpush1.bf16.msra.mxu0 %v2001
        %3489 = vmatprep.subr.bf16.mxu0 %v2034
        %3490 = vmatpush1.bf16.msra.mxu0 %v2033
        %3491 = vmatprep.subr.bf16.mxu0 %v2066
        %3492 = vmatpush1.bf16.msra.mxu0 %v2065
        %3493 = vmatprep.subr.bf16.mxu0 %v2098
        %3494 = vmatpush1.bf16.msra.mxu0 %v2097
        %3495 = vmatprep.subr.bf16.mxu0 %v2130
        %3496 = vmatpush1.bf16.msra.mxu0 %v2129
        %3497 = vmatprep.subr.bf16.mxu0 %v2162
        %3498 = vmatpush1.bf16.msra.mxu0 %v2161
        %3499 = vmatprep.subr.bf16.mxu0 %v2194
        %3500 = vmatpush1.bf16.msra.mxu0 %v2193
        %3501 = vmatprep.subr.bf16.mxu0 %v2226
        %3502 = vmatpush1.bf16.msra.mxu0 %v2225
        %3503 = vmatprep.subr.bf16.mxu0 %v2258
        %3504 = vmatpush1.bf16.msra.mxu0 %v2257
        %3505 = vmatprep.subr.bf16.mxu0 %v2290
        %3506 = vmatpush1.bf16.msra.mxu0 %v2289
        %3507 = vmatprep.subr.bf16.mxu0 %v2322
        %3508 = vmatpush1.bf16.msra.mxu0 %v2321
        %3509 = vmatprep.mubr.bf16.mxu0 %v3426
        %3510 = vmatmul.mubr.bf16.gmra.mrb[0].mxu0 %v3424
        %v3511 = vpop.f32.mrb[0].mxu0
        %v3512 = vadd.f32 %v3471, %v3511
        %v3513 = vpop.f32.mrb[0].mxu0
        %v3514 = vadd.f32 %v3473, %v3513
        %v3515 = vpop.f32.mrb[0].mxu0
        %v3516 = vpop.f32.mrb[0].mxu0
        %3517 = vdwg.mxu0
        %3518 = vmatprep.subr.bf16.mxu0 %v2354
        %3519 = vmatpush1.bf16.msra.mxu0 %v2353
        %3520 = vmatprep.subr.bf16.mxu0 %v2386
        %3521 = vmatpush1.bf16.msra.mxu0 %v2385
        %3522 = vmatprep.subr.bf16.mxu0 %v2418
        %3523 = vmatpush1.bf16.msra.mxu0 %v2417
        %3524 = vmatprep.subr.bf16.mxu0 %v2450
        %3525 = vmatpush1.bf16.msra.mxu0 %v2449
        %3526 = vmatprep.subr.bf16.mxu0 %v2482
        %3527 = vmatpush1.bf16.msra.mxu0 %v2481
        %3528 = vmatprep.subr.bf16.mxu0 %v2514
        %3529 = vmatpush1.bf16.msra.mxu0 %v2513
        %3530 = vmatprep.subr.bf16.mxu0 %v2546
        %3531 = vmatpush1.bf16.msra.mxu0 %v2545
        %3532 = vmatprep.subr.bf16.mxu0 %v2578
        %3533 = vmatpush1.bf16.msra.mxu0 %v2577
        %3534 = vmatprep.subr.bf16.mxu0 %v2610
        %3535 = vmatpush1.bf16.msra.mxu0 %v2609
        %3536 = vmatprep.subr.bf16.mxu0 %v2642
        %3537 = vmatpush1.bf16.msra.mxu0 %v2641
        %3538 = vmatprep.subr.bf16.mxu0 %v2674
        %3539 = vmatpush1.bf16.msra.mxu0 %v2673
        %3540 = vmatprep.subr.bf16.mxu0 %v2706
        %3541 = vmatpush1.bf16.msra.mxu0 %v2705
        %3542 = vmatprep.subr.bf16.mxu0 %v2738
        %3543 = vmatpush1.bf16.msra.mxu0 %v2737
        %3544 = vmatprep.subr.bf16.mxu0 %v2770
        %3545 = vmatpush1.bf16.msra.mxu0 %v2769
        %3546 = vmatprep.subr.bf16.mxu0 %v2802
        %3547 = vmatpush1.bf16.msra.mxu0 %v2801
        %3548 = vmatprep.subr.bf16.mxu0 %v2834
        %3549 = vmatpush1.bf16.msra.mxu0 %v2833
        %3550 = vmatprep.mubr.bf16.mxu0 %v3423
        %3551 = vmatmul.mubr.bf16.gmra.mrb[0].mxu0 %v3409
        %v3552 = vpop.f32.mrb[0].mxu0
        %v3553 = vadd.f32 %v3512, %v3552
        %v3554 = vpop.f32.mrb[0].mxu0
        %v3555 = vadd.f32 %v3514, %v3554
        %v3556 = vpop.f32.mrb[0].mxu0
        %v3557 = vpop.f32.mrb[0].mxu0
        %3558 = vdwg.mxu0
        %3559 = vmatprep.subr.bf16.mxu0 %v2866
        %3560 = vmatpush1.bf16.msra.mxu0 %v2865
        %3561 = vmatprep.subr.bf16.mxu0 %v2898
        %3562 = vmatpush1.bf16.msra.mxu0 %v2897
        %3563 = vmatprep.subr.bf16.mxu0 %v2930
        %3564 = vmatpush1.bf16.msra.mxu0 %v2929
        %3565 = vmatprep.subr.bf16.mxu0 %v2962
        %3566 = vmatpush1.bf16.msra.mxu0 %v2961
        %3567 = vmatprep.subr.bf16.mxu0 %v2994
        %3568 = vmatpush1.bf16.msra.mxu0 %v2993
        %3569 = vmatprep.subr.bf16.mxu0 %v3026
        %3570 = vmatpush1.bf16.msra.mxu0 %v3025
        %3571 = vmatprep.subr.bf16.mxu0 %v3058
        %3572 = vmatpush1.bf16.msra.mxu0 %v3057
        %3573 = vmatprep.subr.bf16.mxu0 %v3090
        %3574 = vmatpush1.bf16.msra.mxu0 %v3089
        %3575 = vmatprep.subr.bf16.mxu0 %v3122
        %3576 = vmatpush1.bf16.msra.mxu0 %v3121
        %3577 = vmatprep.subr.bf16.mxu0 %v3154
        %3578 = vmatpush1.bf16.msra.mxu0 %v3153
        %3579 = vmatprep.subr.bf16.mxu0 %v3186
        %3580 = vmatpush1.bf16.msra.mxu0 %v3185
        %3581 = vmatprep.subr.bf16.mxu0 %v3218
        %3582 = vmatpush1.bf16.msra.mxu0 %v3217
        %3583 = vmatprep.subr.bf16.mxu0 %v3250
        %3584 = vmatpush1.bf16.msra.mxu0 %v3249
        %3585 = vmatprep.subr.bf16.mxu0 %v3282
        %3586 = vmatpush1.bf16.msra.mxu0 %v3281
        %3587 = vmatprep.subr.bf16.mxu0 %v3314
        %3588 = vmatpush1.bf16.msra.mxu0 %v3313
        %3589 = vmatprep.subr.bf16.mxu0 %v3346
        %3590 = vmatpush1.bf16.msra.mxu0 %v3345
        %3591 = vmatprep.mubr.bf16.mxu0 %v3427
        %3592 = vmatmul.mubr.bf16.gmra.mrb[0].mxu0 %v3425
        %v3593 = vpop.f32.mrb[0].mxu0
        %v3594 = vadd.f32 %v3553, %v3593
        %v3595 = vpop.f32.mrb[0].mxu0
        %v3596 = vadd.f32 %v3555, %v3595
        %v3597 = vpop.f32.mrb[0].mxu0
        %v3598 = vpop.f32.mrb[0].mxu0
        %3599 = vdwg.mxu0
        %3600 = vmatprep.subr.bf16.mxu0 %v1332
        %3601 = vmatpush1.bf16.msra.mxu0 %v1331
        %3602 = vmatprep.subr.bf16.mxu0 %v1364
        %3603 = vmatpush1.bf16.msra.mxu0 %v1363
        %3604 = vmatprep.subr.bf16.mxu0 %v1396
        %3605 = vmatpush1.bf16.msra.mxu0 %v1395
        %3606 = vmatprep.subr.bf16.mxu0 %v1428
        %3607 = vmatpush1.bf16.msra.mxu0 %v1427
        %3608 = vmatprep.subr.bf16.mxu0 %v1460
        %3609 = vmatpush1.bf16.msra.mxu0 %v1459
        %3610 = vmatprep.subr.bf16.mxu0 %v1492
        %3611 = vmatpush1.bf16.msra.mxu0 %v1491
        %3612 = vmatprep.subr.bf16.mxu0 %v1524
        %3613 = vmatpush1.bf16.msra.mxu0 %v1523
        %3614 = vmatprep.subr.bf16.mxu0 %v1556
        %3615 = vmatpush1.bf16.msra.mxu0 %v1555
        %3616 = vmatprep.subr.bf16.mxu0 %v1588
        %3617 = vmatpush1.bf16.msra.mxu0 %v1587
        %3618 = vmatprep.subr.bf16.mxu0 %v1620
        %3619 = vmatpush1.bf16.msra.mxu0 %v1619
        %3620 = vmatprep.subr.bf16.mxu0 %v1652
        %3621 = vmatpush1.bf16.msra.mxu0 %v1651
        %3622 = vmatprep.subr.bf16.mxu0 %v1684
        %3623 = vmatpush1.bf16.msra.mxu0 %v1683
        %3624 = vmatprep.subr.bf16.mxu0 %v1716
        %3625 = vmatpush1.bf16.msra.mxu0 %v1715
        %3626 = vmatprep.subr.bf16.mxu0 %v1748
        %3627 = vmatpush1.bf16.msra.mxu0 %v1747
        %3628 = vmatprep.subr.bf16.mxu0 %v1780
        %3629 = vmatpush1.bf16.msra.mxu0 %v1779
        %3630 = vmatprep.subr.bf16.mxu0 %v1812
        %3631 = vmatpush1.bf16.msra.mxu0 %v1811
        %3632 = vmatprep.mubr.bf16.mxu0 %v3416
        %3633 = vmatmul.mubr.bf16.gmra.mrb[0].mxu0 %v3402
        %v3634 = vpop.f32.mrb[0].mxu0
        %v3635 = vadd.f32 0.0, %v3634
        %v3636 = vpop.f32.mrb[0].mxu0
        %v3637 = vadd.f32 0.0, %v3636
        %v3638 = vpop.f32.mrb[0].mxu0
        %v3639 = vpop.f32.mrb[0].mxu0
        %3640 = vdwg.mxu0
        %3641 = vmatprep.subr.bf16.mxu0 %v1844
        %3642 = vmatpush1.bf16.msra.mxu0 %v1843
        %3643 = vmatprep.subr.bf16.mxu0 %v1876
        %3644 = vmatpush1.bf16.msra.mxu0 %v1875
        %3645 = vmatprep.subr.bf16.mxu0 %v1908
        %3646 = vmatpush1.bf16.msra.mxu0 %v1907
        %3647 = vmatprep.subr.bf16.mxu0 %v1940
        %3648 = vmatpush1.bf16.msra.mxu0 %v1939
        %3649 = vmatprep.subr.bf16.mxu0 %v1972
        %3650 = vmatpush1.bf16.msra.mxu0 %v1971
        %3651 = vmatprep.subr.bf16.mxu0 %v2004
        %3652 = vmatpush1.bf16.msra.mxu0 %v2003
        %3653 = vmatprep.subr.bf16.mxu0 %v2036
        %3654 = vmatpush1.bf16.msra.mxu0 %v2035
        %3655 = vmatprep.subr.bf16.mxu0 %v2068
        %3656 = vmatpush1.bf16.msra.mxu0 %v2067
        %3657 = vmatprep.subr.bf16.mxu0 %v2100
        %3658 = vmatpush1.bf16.msra.mxu0 %v2099
        %3659 = vmatprep.subr.bf16.mxu0 %v2132
        %3660 = vmatpush1.bf16.msra.mxu0 %v2131
        %3661 = vmatprep.subr.bf16.mxu0 %v2164
        %3662 = vmatpush1.bf16.msra.mxu0 %v2163
        %3663 = vmatprep.subr.bf16.mxu0 %v2196
        %3664 = vmatpush1.bf16.msra.mxu0 %v2195
        %3665 = vmatprep.subr.bf16.mxu0 %v2228
        %3666 = vmatpush1.bf16.msra.mxu0 %v2227
        %3667 = vmatprep.subr.bf16.mxu0 %v2260
        %3668 = vmatpush1.bf16.msra.mxu0 %v2259
        %3669 = vmatprep.subr.bf16.mxu0 %v2292
        %3670 = vmatpush1.bf16.msra.mxu0 %v2291
        %3671 = vmatprep.subr.bf16.mxu0 %v2324
        %3672 = vmatpush1.bf16.msra.mxu0 %v2323
        %3673 = vmatprep.mubr.bf16.mxu0 %v3426
        %3674 = vmatmul.mubr.bf16.gmra.mrb[0].mxu0 %v3424
        %v3675 = vpop.f32.mrb[0].mxu0
        %v3676 = vadd.f32 %v3635, %v3675
        %v3677 = vpop.f32.mrb[0].mxu0
        %v3678 = vadd.f32 %v3637, %v3677
        %v3679 = vpop.f32.mrb[0].mxu0
        %v3680 = vpop.f32.mrb[0].mxu0
        %3681 = vdwg.mxu0
        %3682 = vmatprep.subr.bf16.mxu0 %v2356
        %3683 = vmatpush1.bf16.msra.mxu0 %v2355
        %3684 = vmatprep.subr.bf16.mxu0 %v2388
        %3685 = vmatpush1.bf16.msra.mxu0 %v2387
        %3686 = vmatprep.subr.bf16.mxu0 %v2420
        %3687 = vmatpush1.bf16.msra.mxu0 %v2419
        %3688 = vmatprep.subr.bf16.mxu0 %v2452
        %3689 = vmatpush1.bf16.msra.mxu0 %v2451
        %3690 = vmatprep.subr.bf16.mxu0 %v2484
        %3691 = vmatpush1.bf16.msra.mxu0 %v2483
        %3692 = vmatprep.subr.bf16.mxu0 %v2516
        %3693 = vmatpush1.bf16.msra.mxu0 %v2515
        %3694 = vmatprep.subr.bf16.mxu0 %v2548
        %3695 = vmatpush1.bf16.msra.mxu0 %v2547
        %3696 = vmatprep.subr.bf16.mxu0 %v2580
        %3697 = vmatpush1.bf16.msra.mxu0 %v2579
        %3698 = vmatprep.subr.bf16.mxu0 %v2612
        %3699 = vmatpush1.bf16.msra.mxu0 %v2611
        %3700 = vmatprep.subr.bf16.mxu0 %v2644
        %3701 = vmatpush1.bf16.msra.mxu0 %v2643
        %3702 = vmatprep.subr.bf16.mxu0 %v2676
        %3703 = vmatpush1.bf16.msra.mxu0 %v2675
        %3704 = vmatprep.subr.bf16.mxu0 %v2708
        %3705 = vmatpush1.bf16.msra.mxu0 %v2707
        %3706 = vmatprep.subr.bf16.mxu0 %v2740
        %3707 = vmatpush1.bf16.msra.mxu0 %v2739
        %3708 = vmatprep.subr.bf16.mxu0 %v2772
        %3709 = vmatpush1.bf16.msra.mxu0 %v2771
        %3710 = vmatprep.subr.bf16.mxu0 %v2804
        %3711 = vmatpush1.bf16.msra.mxu0 %v2803
        %3712 = vmatprep.subr.bf16.mxu0 %v2836
        %3713 = vmatpush1.bf16.msra.mxu0 %v2835
        %3714 = vmatprep.mubr.bf16.mxu0 %v3423
        %3715 = vmatmul.mubr.bf16.gmra.mrb[0].mxu0 %v3409
        %v3716 = vpop.f32.mrb[0].mxu0
        %v3717 = vadd.f32 %v3676, %v3716
        %v3718 = vpop.f32.mrb[0].mxu0
        %v3719 = vadd.f32 %v3678, %v3718
        %v3720 = vpop.f32.mrb[0].mxu0
        %v3721 = vpop.f32.mrb[0].mxu0
        %3722 = vdwg.mxu0
        %3723 = vmatprep.subr.bf16.mxu0 %v2868
        %3724 = vmatpush1.bf16.msra.mxu0 %v2867
        %3725 = vmatprep.subr.bf16.mxu0 %v2900
        %3726 = vmatpush1.bf16.msra.mxu0 %v2899
        %3727 = vmatprep.subr.bf16.mxu0 %v2932
        %3728 = vmatpush1.bf16.msra.mxu0 %v2931
        %3729 = vmatprep.subr.bf16.mxu0 %v2964
        %3730 = vmatpush1.bf16.msra.mxu0 %v2963
        %3731 = vmatprep.subr.bf16.mxu0 %v2996
        %3732 = vmatpush1.bf16.msra.mxu0 %v2995
        %3733 = vmatprep.subr.bf16.mxu0 %v3028
        %3734 = vmatpush1.bf16.msra.mxu0 %v3027
        %3735 = vmatprep.subr.bf16.mxu0 %v3060
        %3736 = vmatpush1.bf16.msra.mxu0 %v3059
        %3737 = vmatprep.subr.bf16.mxu0 %v3092
        %3738 = vmatpush1.bf16.msra.mxu0 %v3091
        %3739 = vmatprep.subr.bf16.mxu0 %v3124
        %3740 = vmatpush1.bf16.msra.mxu0 %v3123
        %3741 = vmatprep.subr.bf16.mxu0 %v3156
        %3742 = vmatpush1.bf16.msra.mxu0 %v3155
        %3743 = vmatprep.subr.bf16.mxu0 %v3188
        %3744 = vmatpush1.bf16.msra.mxu0 %v3187
        %3745 = vmatprep.subr.bf16.mxu0 %v3220
        %3746 = vmatpush1.bf16.msra.mxu0 %v3219
        %3747 = vmatprep.subr.bf16.mxu0 %v3252
        %3748 = vmatpush1.bf16.msra.mxu0 %v3251
        %3749 = vmatprep.subr.bf16.mxu0 %v3284
        %3750 = vmatpush1.bf16.msra.mxu0 %v3283
        %3751 = vmatprep.subr.bf16.mxu0 %v3316
        %3752 = vmatpush1.bf16.msra.mxu0 %v3315
        %3753 = vmatprep.subr.bf16.mxu0 %v3348
        %3754 = vmatpush1.bf16.msra.mxu0 %v3347
        %3755 = vmatprep.mubr.bf16.mxu0 %v3427
        %3756 = vmatmul.mubr.bf16.gmra.mrb[0].mxu0 %v3425
        %v3757 = vpop.f32.mrb[0].mxu0
        %v3758 = vadd.f32 %v3717, %v3757
        %v3759 = vpop.f32.mrb[0].mxu0
        %v3760 = vadd.f32 %v3719, %v3759
        %v3761 = vpop.f32.mrb[0].mxu0
        %v3762 = vpop.f32.mrb[0].mxu0
        %3763 = vdwg.mxu0
        %3764 = vmatprep.subr.bf16.mxu0 %v1334
        %3765 = vmatpush1.bf16.msra.mxu0 %v1333
        %3766 = vmatprep.subr.bf16.mxu0 %v1366
        %3767 = vmatpush1.bf16.msra.mxu0 %v1365
        %3768 = vmatprep.subr.bf16.mxu0 %v1398
        %3769 = vmatpush1.bf16.msra.mxu0 %v1397
        %3770 = vmatprep.subr.bf16.mxu0 %v1430
        %3771 = vmatpush1.bf16.msra.mxu0 %v1429
        %3772 = vmatprep.subr.bf16.mxu0 %v1462
        %3773 = vmatpush1.bf16.msra.mxu0 %v1461
        %3774 = vmatprep.subr.bf16.mxu0 %v1494
        %3775 = vmatpush1.bf16.msra.mxu0 %v1493
        %3776 = vmatprep.subr.bf16.mxu0 %v1526
        %3777 = vmatpush1.bf16.msra.mxu0 %v1525
        %3778 = vmatprep.subr.bf16.mxu0 %v1558
        %3779 = vmatpush1.bf16.msra.mxu0 %v1557
        %3780 = vmatprep.subr.bf16.mxu0 %v1590
        %3781 = vmatpush1.bf16.msra.mxu0 %v1589
        %3782 = vmatprep.subr.bf16.mxu0 %v1622
        %3783 = vmatpush1.bf16.msra.mxu0 %v1621
        %3784 = vmatprep.subr.bf16.mxu0 %v1654
        %3785 = vmatpush1.bf16.msra.mxu0 %v1653
        %3786 = vmatprep.subr.bf16.mxu0 %v1686
        %3787 = vmatpush1.bf16.msra.mxu0 %v1685
        %3788 = vmatprep.subr.bf16.mxu0 %v1718
        %3789 = vmatpush1.bf16.msra.mxu0 %v1717
        %3790 = vmatprep.subr.bf16.mxu0 %v1750
        %3791 = vmatpush1.bf16.msra.mxu0 %v1749
        %3792 = vmatprep.subr.bf16.mxu0 %v1782
        %3793 = vmatpush1.bf16.msra.mxu0 %v1781
        %3794 = vmatprep.subr.bf16.mxu0 %v1814
        %3795 = vmatpush1.bf16.msra.mxu0 %v1813
        %3796 = vmatprep.mubr.bf16.mxu0 %v3416
        %3797 = vmatmul.mubr.bf16.gmra.mrb[0].mxu0 %v3402
        %v3798 = vpop.f32.mrb[0].mxu0
        %v3799 = vadd.f32 0.0, %v3798
        %v3800 = vpop.f32.mrb[0].mxu0
        %v3801 = vadd.f32 0.0, %v3800
        %v3802 = vpop.f32.mrb[0].mxu0
        %v3803 = vpop.f32.mrb[0].mxu0
        %3804 = vdwg.mxu0
        %3805 = vmatprep.subr.bf16.mxu0 %v1846
        %3806 = vmatpush1.bf16.msra.mxu0 %v1845
        %3807 = vmatprep.subr.bf16.mxu0 %v1878
        %3808 = vmatpush1.bf16.msra.mxu0 %v1877
        %3809 = vmatprep.subr.bf16.mxu0 %v1910
        %3810 = vmatpush1.bf16.msra.mxu0 %v1909
        %3811 = vmatprep.subr.bf16.mxu0 %v1942
        %3812 = vmatpush1.bf16.msra.mxu0 %v1941
        %3813 = vmatprep.subr.bf16.mxu0 %v1974
        %3814 = vmatpush1.bf16.msra.mxu0 %v1973
        %3815 = vmatprep.subr.bf16.mxu0 %v2006
        %3816 = vmatpush1.bf16.msra.mxu0 %v2005
        %3817 = vmatprep.subr.bf16.mxu0 %v2038
        %3818 = vmatpush1.bf16.msra.mxu0 %v2037
        %3819 = vmatprep.subr.bf16.mxu0 %v2070
        %3820 = vmatpush1.bf16.msra.mxu0 %v2069
        %3821 = vmatprep.subr.bf16.mxu0 %v2102
        %3822 = vmatpush1.bf16.msra.mxu0 %v2101
        %3823 = vmatprep.subr.bf16.mxu0 %v2134
        %3824 = vmatpush1.bf16.msra.mxu0 %v2133
        %3825 = vmatprep.subr.bf16.mxu0 %v2166
        %3826 = vmatpush1.bf16.msra.mxu0 %v2165
        %3827 = vmatprep.subr.bf16.mxu0 %v2198
        %3828 = vmatpush1.bf16.msra.mxu0 %v2197
        %3829 = vmatprep.subr.bf16.mxu0 %v2230
        %3830 = vmatpush1.bf16.msra.mxu0 %v2229
        %3831 = vmatprep.subr.bf16.mxu0 %v2262
        %3832 = vmatpush1.bf16.msra.mxu0 %v2261
        %3833 = vmatprep.subr.bf16.mxu0 %v2294
        %3834 = vmatpush1.bf16.msra.mxu0 %v2293
        %3835 = vmatprep.subr.bf16.mxu0 %v2326
        %3836 = vmatpush1.bf16.msra.mxu0 %v2325
        %3837 = vmatprep.mubr.bf16.mxu0 %v3426
        %3838 = vmatmul.mubr.bf16.gmra.mrb[0].mxu0 %v3424
        %v3839 = vpop.f32.mrb[0].mxu0
        %v3840 = vadd.f32 %v3799, %v3839
        %v3841 = vpop.f32.mrb[0].mxu0
        %v3842 = vadd.f32 %v3801, %v3841
        %v3843 = vpop.f32.mrb[0].mxu0
        %v3844 = vpop.f32.mrb[0].mxu0
        %3845 = vdwg.mxu0
        %3846 = vmatprep.subr.bf16.mxu0 %v2358
        %3847 = vmatpush1.bf16.msra.mxu0 %v2357
        %3848 = vmatprep.subr.bf16.mxu0 %v2390
        %3849 = vmatpush1.bf16.msra.mxu0 %v2389
        %3850 = vmatprep.subr.bf16.mxu0 %v2422
        %3851 = vmatpush1.bf16.msra.mxu0 %v2421
        %3852 = vmatprep.subr.bf16.mxu0 %v2454
        %3853 = vmatpush1.bf16.msra.mxu0 %v2453
        %3854 = vmatprep.subr.bf16.mxu0 %v2486
        %3855 = vmatpush1.bf16.msra.mxu0 %v2485
        %3856 = vmatprep.subr.bf16.mxu0 %v2518
        %3857 = vmatpush1.bf16.msra.mxu0 %v2517
        %3858 = vmatprep.subr.bf16.mxu0 %v2550
        %3859 = vmatpush1.bf16.msra.mxu0 %v2549
        %3860 = vmatprep.subr.bf16.mxu0 %v2582
        %3861 = vmatpush1.bf16.msra.mxu0 %v2581
        %3862 = vmatprep.subr.bf16.mxu0 %v2614
        %3863 = vmatpush1.bf16.msra.mxu0 %v2613
        %3864 = vmatprep.subr.bf16.mxu0 %v2646
        %3865 = vmatpush1.bf16.msra.mxu0 %v2645
        %3866 = vmatprep.subr.bf16.mxu0 %v2678
        %3867 = vmatpush1.bf16.msra.mxu0 %v2677
        %3868 = vmatprep.subr.bf16.mxu0 %v2710
        %3869 = vmatpush1.bf16.msra.mxu0 %v2709
        %3870 = vmatprep.subr.bf16.mxu0 %v2742
        %3871 = vmatpush1.bf16.msra.mxu0 %v2741
        %3872 = vmatprep.subr.bf16.mxu0 %v2774
        %3873 = vmatpush1.bf16.msra.mxu0 %v2773
        %3874 = vmatprep.subr.bf16.mxu0 %v2806
        %3875 = vmatpush1.bf16.msra.mxu0 %v2805
        %3876 = vmatprep.subr.bf16.mxu0 %v2838
        %3877 = vmatpush1.bf16.msra.mxu0 %v2837
        %3878 = vmatprep.mubr.bf16.mxu0 %v3423
        %3879 = vmatmul.mubr.bf16.gmra.mrb[0].mxu0 %v3409
        %v3880 = vpop.f32.mrb[0].mxu0
        %v3881 = vadd.f32 %v3840, %v3880
        %v3882 = vpop.f32.mrb[0].mxu0
        %v3883 = vadd.f32 %v3842, %v3882
        %v3884 = vpop.f32.mrb[0].mxu0
        %v3885 = vpop.f32.mrb[0].mxu0
        %3886 = vdwg.mxu0
        %3887 = vmatprep.subr.bf16.mxu0 %v2870
        %3888 = vmatpush1.bf16.msra.mxu0 %v2869
        %3889 = vmatprep.subr.bf16.mxu0 %v2902
        %3890 = vmatpush1.bf16.msra.mxu0 %v2901
        %3891 = vmatprep.subr.bf16.mxu0 %v2934
        %3892 = vmatpush1.bf16.msra.mxu0 %v2933
        %3893 = vmatprep.subr.bf16.mxu0 %v2966
        %3894 = vmatpush1.bf16.msra.mxu0 %v2965
        %3895 = vmatprep.subr.bf16.mxu0 %v2998
        %3896 = vmatpush1.bf16.msra.mxu0 %v2997
        %3897 = vmatprep.subr.bf16.mxu0 %v3030
        %3898 = vmatpush1.bf16.msra.mxu0 %v3029
        %3899 = vmatprep.subr.bf16.mxu0 %v3062
        %3900 = vmatpush1.bf16.msra.mxu0 %v3061
        %3901 = vmatprep.subr.bf16.mxu0 %v3094
        %3902 = vmatpush1.bf16.msra.mxu0 %v3093
        %3903 = vmatprep.subr.bf16.mxu0 %v3126
        %3904 = vmatpush1.bf16.msra.mxu0 %v3125
        %3905 = vmatprep.subr.bf16.mxu0 %v3158
        %3906 = vmatpush1.bf16.msra.mxu0 %v3157
        %3907 = vmatprep.subr.bf16.mxu0 %v3190
        %3908 = vmatpush1.bf16.msra.mxu0 %v3189
        %3909 = vmatprep.subr.bf16.mxu0 %v3222
        %3910 = vmatpush1.bf16.msra.mxu0 %v3221
        %3911 = vmatprep.subr.bf16.mxu0 %v3254
        %3912 = vmatpush1.bf16.msra.mxu0 %v3253
        %3913 = vmatprep.subr.bf16.mxu0 %v3286
        %3914 = vmatpush1.bf16.msra.mxu0 %v3285
        %3915 = vmatprep.subr.bf16.mxu0 %v3318
        %3916 = vmatpush1.bf16.msra.mxu0 %v3317
        %3917 = vmatprep.subr.bf16.mxu0 %v3350
        %3918 = vmatpush1.bf16.msra.mxu0 %v3349
        %3919 = vmatprep.mubr.bf16.mxu0 %v3427
        %3920 = vmatmul.mubr.bf16.gmra.mrb[0].mxu0 %v3425
        %v3921 = vpop.f32.mrb[0].mxu0
        %v3922 = vadd.f32 %v3881, %v3921
        %v3923 = vpop.f32.mrb[0].mxu0
        %v3924 = vadd.f32 %v3883, %v3923
        %v3925 = vpop.f32.mrb[0].mxu0
        %v3926 = vpop.f32.mrb[0].mxu0
        %3927 = vdwg.mxu0
        %3928 = vmatprep.subr.bf16.mxu0 %v1336
        %3929 = vmatpush1.bf16.msra.mxu0 %v1335
        %3930 = vmatprep.subr.bf16.mxu0 %v1368
        %3931 = vmatpush1.bf16.msra.mxu0 %v1367
        %3932 = vmatprep.subr.bf16.mxu0 %v1400
        %3933 = vmatpush1.bf16.msra.mxu0 %v1399
        %3934 = vmatprep.subr.bf16.mxu0 %v1432
        %3935 = vmatpush1.bf16.msra.mxu0 %v1431
        %3936 = vmatprep.subr.bf16.mxu0 %v1464
        %3937 = vmatpush1.bf16.msra.mxu0 %v1463
        %3938 = vmatprep.subr.bf16.mxu0 %v1496
        %3939 = vmatpush1.bf16.msra.mxu0 %v1495
        %3940 = vmatprep.subr.bf16.mxu0 %v1528
        %3941 = vmatpush1.bf16.msra.mxu0 %v1527
        %3942 = vmatprep.subr.bf16.mxu0 %v1560
        %3943 = vmatpush1.bf16.msra.mxu0 %v1559
        %3944 = vmatprep.subr.bf16.mxu0 %v1592
        %3945 = vmatpush1.bf16.msra.mxu0 %v1591
        %3946 = vmatprep.subr.bf16.mxu0 %v1624
        %3947 = vmatpush1.bf16.msra.mxu0 %v1623
        %3948 = vmatprep.subr.bf16.mxu0 %v1656
        %3949 = vmatpush1.bf16.msra.mxu0 %v1655
        %3950 = vmatprep.subr.bf16.mxu0 %v1688
        %3951 = vmatpush1.bf16.msra.mxu0 %v1687
        %3952 = vmatprep.subr.bf16.mxu0 %v1720
        %3953 = vmatpush1.bf16.msra.mxu0 %v1719
        %3954 = vmatprep.subr.bf16.mxu0 %v1752
        %3955 = vmatpush1.bf16.msra.mxu0 %v1751
        %3956 = vmatprep.subr.bf16.mxu0 %v1784
        %3957 = vmatpush1.bf16.msra.mxu0 %v1783
        %3958 = vmatprep.subr.bf16.mxu0 %v1816
        %3959 = vmatpush1.bf16.msra.mxu0 %v1815
        %3960 = vmatprep.mubr.bf16.mxu0 %v3416
        %3961 = vmatmul.mubr.bf16.gmra.mrb[0].mxu0 %v3402
        %v3962 = vpop.f32.mrb[0].mxu0
        %v3963 = vadd.f32 0.0, %v3962
        %v3964 = vpop.f32.mrb[0].mxu0
        %v3965 = vadd.f32 0.0, %v3964
        %v3966 = vpop.f32.mrb[0].mxu0
        %v3967 = vpop.f32.mrb[0].mxu0
        %3968 = vdwg.mxu0
        %3969 = vmatprep.subr.bf16.mxu0 %v1848
        %3970 = vmatpush1.bf16.msra.mxu0 %v1847
        %3971 = vmatprep.subr.bf16.mxu0 %v1880
        %3972 = vmatpush1.bf16.msra.mxu0 %v1879
        %3973 = vmatprep.subr.bf16.mxu0 %v1912
        %3974 = vmatpush1.bf16.msra.mxu0 %v1911
        %3975 = vmatprep.subr.bf16.mxu0 %v1944
        %3976 = vmatpush1.bf16.msra.mxu0 %v1943
        %3977 = vmatprep.subr.bf16.mxu0 %v1976
        %3978 = vmatpush1.bf16.msra.mxu0 %v1975
        %3979 = vmatprep.subr.bf16.mxu0 %v2008
        %3980 = vmatpush1.bf16.msra.mxu0 %v2007
        %3981 = vmatprep.subr.bf16.mxu0 %v2040
        %3982 = vmatpush1.bf16.msra.mxu0 %v2039
        %3983 = vmatprep.subr.bf16.mxu0 %v2072
        %3984 = vmatpush1.bf16.msra.mxu0 %v2071
        %3985 = vmatprep.subr.bf16.mxu0 %v2104
        %3986 = vmatpush1.bf16.msra.mxu0 %v2103
        %3987 = vmatprep.subr.bf16.mxu0 %v2136
        %3988 = vmatpush1.bf16.msra.mxu0 %v2135
        %3989 = vmatprep.subr.bf16.mxu0 %v2168
        %3990 = vmatpush1.bf16.msra.mxu0 %v2167
        %3991 = vmatprep.subr.bf16.mxu0 %v2200
        %3992 = vmatpush1.bf16.msra.mxu0 %v2199
        %3993 = vmatprep.subr.bf16.mxu0 %v2232
        %3994 = vmatpush1.bf16.msra.mxu0 %v2231
        %3995 = vmatprep.subr.bf16.mxu0 %v2264
        %3996 = vmatpush1.bf16.msra.mxu0 %v2263
        %3997 = vmatprep.subr.bf16.mxu0 %v2296
        %3998 = vmatpush1.bf16.msra.mxu0 %v2295
        %3999 = vmatprep.subr.bf16.mxu0 %v2328
        %4000 = vmatpush1.bf16.msra.mxu0 %v2327
        %4001 = vmatprep.mubr.bf16.mxu0 %v3426
        %4002 = vmatmul.mubr.bf16.gmra.mrb[0].mxu0 %v3424
        %v4003 = vpop.f32.mrb[0].mxu0
        %v4004 = vadd.f32 %v3963, %v4003
        %v4005 = vpop.f32.mrb[0].mxu0
        %v4006 = vadd.f32 %v3965, %v4005
        %v4007 = vpop.f32.mrb[0].mxu0
        %v4008 = vpop.f32.mrb[0].mxu0
        %4009 = vdwg.mxu0
        %4010 = vmatprep.subr.bf16.mxu0 %v2360
        %4011 = vmatpush1.bf16.msra.mxu0 %v2359
        %4012 = vmatprep.subr.bf16.mxu0 %v2392
        %4013 = vmatpush1.bf16.msra.mxu0 %v2391
        %4014 = vmatprep.subr.bf16.mxu0 %v2424
        %4015 = vmatpush1.bf16.msra.mxu0 %v2423
        %4016 = vmatprep.subr.bf16.mxu0 %v2456
        %4017 = vmatpush1.bf16.msra.mxu0 %v2455
        %4018 = vmatprep.subr.bf16.mxu0 %v2488
        %4019 = vmatpush1.bf16.msra.mxu0 %v2487
        %4020 = vmatprep.subr.bf16.mxu0 %v2520
        %4021 = vmatpush1.bf16.msra.mxu0 %v2519
        %4022 = vmatprep.subr.bf16.mxu0 %v2552
        %4023 = vmatpush1.bf16.msra.mxu0 %v2551
        %4024 = vmatprep.subr.bf16.mxu0 %v2584
        %4025 = vmatpush1.bf16.msra.mxu0 %v2583
        %4026 = vmatprep.subr.bf16.mxu0 %v2616
        %4027 = vmatpush1.bf16.msra.mxu0 %v2615
        %4028 = vmatprep.subr.bf16.mxu0 %v2648
        %4029 = vmatpush1.bf16.msra.mxu0 %v2647
        %4030 = vmatprep.subr.bf16.mxu0 %v2680
        %4031 = vmatpush1.bf16.msra.mxu0 %v2679
        %4032 = vmatprep.subr.bf16.mxu0 %v2712
        %4033 = vmatpush1.bf16.msra.mxu0 %v2711
        %4034 = vmatprep.subr.bf16.mxu0 %v2744
        %4035 = vmatpush1.bf16.msra.mxu0 %v2743
        %4036 = vmatprep.subr.bf16.mxu0 %v2776
        %4037 = vmatpush1.bf16.msra.mxu0 %v2775
        %4038 = vmatprep.subr.bf16.mxu0 %v2808
        %4039 = vmatpush1.bf16.msra.mxu0 %v2807
        %4040 = vmatprep.subr.bf16.mxu0 %v2840
        %4041 = vmatpush1.bf16.msra.mxu0 %v2839
        %4042 = vmatprep.mubr.bf16.mxu0 %v3423
        %4043 = vmatmul.mubr.bf16.gmra.mrb[0].mxu0 %v3409
        %v4044 = vpop.f32.mrb[0].mxu0
        %v4045 = vadd.f32 %v4004, %v4044
        %v4046 = vpop.f32.mrb[0].mxu0
        %v4047 = vadd.f32 %v4006, %v4046
        %v4048 = vpop.f32.mrb[0].mxu0
        %v4049 = vpop.f32.mrb[0].mxu0
        %4050 = vdwg.mxu0
        %4051 = vmatprep.subr.bf16.mxu0 %v2872
        %4052 = vmatpush1.bf16.msra.mxu0 %v2871
        %4053 = vmatprep.subr.bf16.mxu0 %v2904
        %4054 = vmatpush1.bf16.msra.mxu0 %v2903
        %4055 = vmatprep.subr.bf16.mxu0 %v2936
        %4056 = vmatpush1.bf16.msra.mxu0 %v2935
        %4057 = vmatprep.subr.bf16.mxu0 %v2968
        %4058 = vmatpush1.bf16.msra.mxu0 %v2967
        %4059 = vmatprep.subr.bf16.mxu0 %v3000
        %4060 = vmatpush1.bf16.msra.mxu0 %v2999
        %4061 = vmatprep.subr.bf16.mxu0 %v3032
        %4062 = vmatpush1.bf16.msra.mxu0 %v3031
        %4063 = vmatprep.subr.bf16.mxu0 %v3064
        %4064 = vmatpush1.bf16.msra.mxu0 %v3063
        %4065 = vmatprep.subr.bf16.mxu0 %v3096
        %4066 = vmatpush1.bf16.msra.mxu0 %v3095
        %4067 = vmatprep.subr.bf16.mxu0 %v3128
        %4068 = vmatpush1.bf16.msra.mxu0 %v3127
        %4069 = vmatprep.subr.bf16.mxu0 %v3160
        %4070 = vmatpush1.bf16.msra.mxu0 %v3159
        %4071 = vmatprep.subr.bf16.mxu0 %v3192
        %4072 = vmatpush1.bf16.msra.mxu0 %v3191
        %4073 = vmatprep.subr.bf16.mxu0 %v3224
        %4074 = vmatpush1.bf16.msra.mxu0 %v3223
        %4075 = vmatprep.subr.bf16.mxu0 %v3256
        %4076 = vmatpush1.bf16.msra.mxu0 %v3255
        %4077 = vmatprep.subr.bf16.mxu0 %v3288
        %4078 = vmatpush1.bf16.msra.mxu0 %v3287
        %4079 = vmatprep.subr.bf16.mxu0 %v3320
        %4080 = vmatpush1.bf16.msra.mxu0 %v3319
        %4081 = vmatprep.subr.bf16.mxu0 %v3352
        %4082 = vmatpush1.bf16.msra.mxu0 %v3351
        %4083 = vmatprep.mubr.bf16.mxu0 %v3427
        %4084 = vmatmul.mubr.bf16.gmra.mrb[0].mxu0 %v3425
        %v4085 = vpop.f32.mrb[0].mxu0
        %v4086 = vadd.f32 %v4045, %v4085
        %v4087 = vpop.f32.mrb[0].mxu0
        %v4088 = vadd.f32 %v4047, %v4087
        %v4089 = vpop.f32.mrb[0].mxu0
        %v4090 = vpop.f32.mrb[0].mxu0
        %4091 = vdwg.mxu0
        %4092 = vmatprep.subr.bf16.mxu0 %v1338
        %4093 = vmatpush1.bf16.msra.mxu0 %v1337
        %4094 = vmatprep.subr.bf16.mxu0 %v1370
        %4095 = vmatpush1.bf16.msra.mxu0 %v1369
        %4096 = vmatprep.subr.bf16.mxu0 %v1402
        %4097 = vmatpush1.bf16.msra.mxu0 %v1401
        %4098 = vmatprep.subr.bf16.mxu0 %v1434
        %4099 = vmatpush1.bf16.msra.mxu0 %v1433
        %4100 = vmatprep.subr.bf16.mxu0 %v1466
        %4101 = vmatpush1.bf16.msra.mxu0 %v1465
        %4102 = vmatprep.subr.bf16.mxu0 %v1498
        %4103 = vmatpush1.bf16.msra.mxu0 %v1497
        %4104 = vmatprep.subr.bf16.mxu0 %v1530
        %4105 = vmatpush1.bf16.msra.mxu0 %v1529
        %4106 = vmatprep.subr.bf16.mxu0 %v1562
        %4107 = vmatpush1.bf16.msra.mxu0 %v1561
        %4108 = vmatprep.subr.bf16.mxu0 %v1594
        %4109 = vmatpush1.bf16.msra.mxu0 %v1593
        %4110 = vmatprep.subr.bf16.mxu0 %v1626
        %4111 = vmatpush1.bf16.msra.mxu0 %v1625
        %4112 = vmatprep.subr.bf16.mxu0 %v1658
        %4113 = vmatpush1.bf16.msra.mxu0 %v1657
        %4114 = vmatprep.subr.bf16.mxu0 %v1690
        %4115 = vmatpush1.bf16.msra.mxu0 %v1689
        %4116 = vmatprep.subr.bf16.mxu0 %v1722
        %4117 = vmatpush1.bf16.msra.mxu0 %v1721
        %4118 = vmatprep.subr.bf16.mxu0 %v1754
        %4119 = vmatpush1.bf16.msra.mxu0 %v1753
        %4120 = vmatprep.subr.bf16.mxu0 %v1786
        %4121 = vmatpush1.bf16.msra.mxu0 %v1785
        %4122 = vmatprep.subr.bf16.mxu0 %v1818
        %4123 = vmatpush1.bf16.msra.mxu0 %v1817
        %4124 = vmatprep.mubr.bf16.mxu0 %v3416
        %4125 = vmatmul.mubr.bf16.gmra.mrb[0].mxu0 %v3402
        %v4126 = vpop.f32.mrb[0].mxu0
        %v4127 = vadd.f32 0.0, %v4126
        %v4128 = vpop.f32.mrb[0].mxu0
        %v4129 = vadd.f32 0.0, %v4128
        %v4130 = vpop.f32.mrb[0].mxu0
        %v4131 = vpop.f32.mrb[0].mxu0
        %4132 = vdwg.mxu0
        %4133 = vmatprep.subr.bf16.mxu0 %v1850
        %4134 = vmatpush1.bf16.msra.mxu0 %v1849
        %4135 = vmatprep.subr.bf16.mxu0 %v1882
        %4136 = vmatpush1.bf16.msra.mxu0 %v1881
        %4137 = vmatprep.subr.bf16.mxu0 %v1914
        %4138 = vmatpush1.bf16.msra.mxu0 %v1913
        %4139 = vmatprep.subr.bf16.mxu0 %v1946
        %4140 = vmatpush1.bf16.msra.mxu0 %v1945
        %4141 = vmatprep.subr.bf16.mxu0 %v1978
        %4142 = vmatpush1.bf16.msra.mxu0 %v1977
        %4143 = vmatprep.subr.bf16.mxu0 %v2010
        %4144 = vmatpush1.bf16.msra.mxu0 %v2009
        %4145 = vmatprep.subr.bf16.mxu0 %v2042
        %4146 = vmatpush1.bf16.msra.mxu0 %v2041
        %4147 = vmatprep.subr.bf16.mxu0 %v2074
        %4148 = vmatpush1.bf16.msra.mxu0 %v2073
        %4149 = vmatprep.subr.bf16.mxu0 %v2106
        %4150 = vmatpush1.bf16.msra.mxu0 %v2105
        %4151 = vmatprep.subr.bf16.mxu0 %v2138
        %4152 = vmatpush1.bf16.msra.mxu0 %v2137
        %4153 = vmatprep.subr.bf16.mxu0 %v2170
        %4154 = vmatpush1.bf16.msra.mxu0 %v2169
        %4155 = vmatprep.subr.bf16.mxu0 %v2202
        %4156 = vmatpush1.bf16.msra.mxu0 %v2201
        %4157 = vmatprep.subr.bf16.mxu0 %v2234
        %4158 = vmatpush1.bf16.msra.mxu0 %v2233
        %4159 = vmatprep.subr.bf16.mxu0 %v2266
        %4160 = vmatpush1.bf16.msra.mxu0 %v2265
        %4161 = vmatprep.subr.bf16.mxu0 %v2298
        %4162 = vmatpush1.bf16.msra.mxu0 %v2297
        %4163 = vmatprep.subr.bf16.mxu0 %v2330
        %4164 = vmatpush1.bf16.msra.mxu0 %v2329
        %4165 = vmatprep.mubr.bf16.mxu0 %v3426
        %4166 = vmatmul.mubr.bf16.gmra.mrb[0].mxu0 %v3424
        %v4167 = vpop.f32.mrb[0].mxu0
        %v4168 = vadd.f32 %v4127, %v4167
        %v4169 = vpop.f32.mrb[0].mxu0
        %v4170 = vadd.f32 %v4129, %v4169
        %v4171 = vpop.f32.mrb[0].mxu0
        %v4172 = vpop.f32.mrb[0].mxu0
        %4173 = vdwg.mxu0
        %4174 = vmatprep.subr.bf16.mxu0 %v2362
        %4175 = vmatpush1.bf16.msra.mxu0 %v2361
        %4176 = vmatprep.subr.bf16.mxu0 %v2394
        %4177 = vmatpush1.bf16.msra.mxu0 %v2393
        %4178 = vmatprep.subr.bf16.mxu0 %v2426
        %4179 = vmatpush1.bf16.msra.mxu0 %v2425
        %4180 = vmatprep.subr.bf16.mxu0 %v2458
        %4181 = vmatpush1.bf16.msra.mxu0 %v2457
        %4182 = vmatprep.subr.bf16.mxu0 %v2490
        %4183 = vmatpush1.bf16.msra.mxu0 %v2489
        %4184 = vmatprep.subr.bf16.mxu0 %v2522
        %4185 = vmatpush1.bf16.msra.mxu0 %v2521
        %4186 = vmatprep.subr.bf16.mxu0 %v2554
        %4187 = vmatpush1.bf16.msra.mxu0 %v2553
        %4188 = vmatprep.subr.bf16.mxu0 %v2586
        %4189 = vmatpush1.bf16.msra.mxu0 %v2585
        %4190 = vmatprep.subr.bf16.mxu0 %v2618
        %4191 = vmatpush1.bf16.msra.mxu0 %v2617
        %4192 = vmatprep.subr.bf16.mxu0 %v2650
        %4193 = vmatpush1.bf16.msra.mxu0 %v2649
        %4194 = vmatprep.subr.bf16.mxu0 %v2682
        %4195 = vmatpush1.bf16.msra.mxu0 %v2681
        %4196 = vmatprep.subr.bf16.mxu0 %v2714
        %4197 = vmatpush1.bf16.msra.mxu0 %v2713
        %4198 = vmatprep.subr.bf16.mxu0 %v2746
        %4199 = vmatpush1.bf16.msra.mxu0 %v2745
        %4200 = vmatprep.subr.bf16.mxu0 %v2778
        %4201 = vmatpush1.bf16.msra.mxu0 %v2777
        %4202 = vmatprep.subr.bf16.mxu0 %v2810
        %4203 = vmatpush1.bf16.msra.mxu0 %v2809
        %4204 = vmatprep.subr.bf16.mxu0 %v2842
        %4205 = vmatpush1.bf16.msra.mxu0 %v2841
        %4206 = vmatprep.mubr.bf16.mxu0 %v3423
        %4207 = vmatmul.mubr.bf16.gmra.mrb[0].mxu0 %v3409
        %v4208 = vpop.f32.mrb[0].mxu0
        %v4209 = vadd.f32 %v4168, %v4208
        %v4210 = vpop.f32.mrb[0].mxu0
        %v4211 = vadd.f32 %v4170, %v4210
        %v4212 = vpop.f32.mrb[0].mxu0
        %v4213 = vpop.f32.mrb[0].mxu0
        %4214 = vdwg.mxu0
        %4215 = vmatprep.subr.bf16.mxu0 %v2874
        %4216 = vmatpush1.bf16.msra.mxu0 %v2873
        %4217 = vmatprep.subr.bf16.mxu0 %v2906
        %4218 = vmatpush1.bf16.msra.mxu0 %v2905
        %4219 = vmatprep.subr.bf16.mxu0 %v2938
        %4220 = vmatpush1.bf16.msra.mxu0 %v2937
        %4221 = vmatprep.subr.bf16.mxu0 %v2970
        %4222 = vmatpush1.bf16.msra.mxu0 %v2969
        %4223 = vmatprep.subr.bf16.mxu0 %v3002
        %4224 = vmatpush1.bf16.msra.mxu0 %v3001
        %4225 = vmatprep.subr.bf16.mxu0 %v3034
        %4226 = vmatpush1.bf16.msra.mxu0 %v3033
        %4227 = vmatprep.subr.bf16.mxu0 %v3066
        %4228 = vmatpush1.bf16.msra.mxu0 %v3065
        %4229 = vmatprep.subr.bf16.mxu0 %v3098
        %4230 = vmatpush1.bf16.msra.mxu0 %v3097
        %4231 = vmatprep.subr.bf16.mxu0 %v3130
        %4232 = vmatpush1.bf16.msra.mxu0 %v3129
        %4233 = vmatprep.subr.bf16.mxu0 %v3162
        %4234 = vmatpush1.bf16.msra.mxu0 %v3161
        %4235 = vmatprep.subr.bf16.mxu0 %v3194
        %4236 = vmatpush1.bf16.msra.mxu0 %v3193
        %4237 = vmatprep.subr.bf16.mxu0 %v3226
        %4238 = vmatpush1.bf16.msra.mxu0 %v3225
        %4239 = vmatprep.subr.bf16.mxu0 %v3258
        %4240 = vmatpush1.bf16.msra.mxu0 %v3257
        %4241 = vmatprep.subr.bf16.mxu0 %v3290
        %4242 = vmatpush1.bf16.msra.mxu0 %v3289
        %4243 = vmatprep.subr.bf16.mxu0 %v3322
        %4244 = vmatpush1.bf16.msra.mxu0 %v3321
        %4245 = vmatprep.subr.bf16.mxu0 %v3354
        %4246 = vmatpush1.bf16.msra.mxu0 %v3353
        %4247 = vmatprep.mubr.bf16.mxu0 %v3427
        %4248 = vmatmul.mubr.bf16.gmra.mrb[0].mxu0 %v3425
        %v4249 = vpop.f32.mrb[0].mxu0
        %v4250 = vadd.f32 %v4209, %v4249
        %v4251 = vpop.f32.mrb[0].mxu0
        %v4252 = vadd.f32 %v4211, %v4251
        %v4253 = vpop.f32.mrb[0].mxu0
        %v4254 = vpop.f32.mrb[0].mxu0
        %4255 = vdwg.mxu0
        %4256 = vmatprep.subr.bf16.mxu0 %v1340
        %4257 = vmatpush1.bf16.msra.mxu0 %v1339
        %4258 = vmatprep.subr.bf16.mxu0 %v1372
        %4259 = vmatpush1.bf16.msra.mxu0 %v1371
        %4260 = vmatprep.subr.bf16.mxu0 %v1404
        %4261 = vmatpush1.bf16.msra.mxu0 %v1403
        %4262 = vmatprep.subr.bf16.mxu0 %v1436
        %4263 = vmatpush1.bf16.msra.mxu0 %v1435
        %4264 = vmatprep.subr.bf16.mxu0 %v1468
        %4265 = vmatpush1.bf16.msra.mxu0 %v1467
        %4266 = vmatprep.subr.bf16.mxu0 %v1500
        %4267 = vmatpush1.bf16.msra.mxu0 %v1499
        %4268 = vmatprep.subr.bf16.mxu0 %v1532
        %4269 = vmatpush1.bf16.msra.mxu0 %v1531
        %4270 = vmatprep.subr.bf16.mxu0 %v1564
        %4271 = vmatpush1.bf16.msra.mxu0 %v1563
        %4272 = vmatprep.subr.bf16.mxu0 %v1596
        %4273 = vmatpush1.bf16.msra.mxu0 %v1595
        %4274 = vmatprep.subr.bf16.mxu0 %v1628
        %4275 = vmatpush1.bf16.msra.mxu0 %v1627
        %4276 = vmatprep.subr.bf16.mxu0 %v1660
        %4277 = vmatpush1.bf16.msra.mxu0 %v1659
        %4278 = vmatprep.subr.bf16.mxu0 %v1692
        %4279 = vmatpush1.bf16.msra.mxu0 %v1691
        %4280 = vmatprep.subr.bf16.mxu0 %v1724
        %4281 = vmatpush1.bf16.msra.mxu0 %v1723
        %4282 = vmatprep.subr.bf16.mxu0 %v1756
        %4283 = vmatpush1.bf16.msra.mxu0 %v1755
        %4284 = vmatprep.subr.bf16.mxu0 %v1788
        %4285 = vmatpush1.bf16.msra.mxu0 %v1787
        %4286 = vmatprep.subr.bf16.mxu0 %v1820
        %4287 = vmatpush1.bf16.msra.mxu0 %v1819
        %4288 = vmatprep.mubr.bf16.mxu0 %v3416
        %4289 = vmatmul.mubr.bf16.gmra.mrb[0].mxu0 %v3402
        %v4290 = vpop.f32.mrb[0].mxu0
        %v4291 = vadd.f32 0.0, %v4290
        %v4292 = vpop.f32.mrb[0].mxu0
        %v4293 = vadd.f32 0.0, %v4292
        %v4294 = vpop.f32.mrb[0].mxu0
        %v4295 = vpop.f32.mrb[0].mxu0
        %4296 = vdwg.mxu0
        %4297 = vmatprep.subr.bf16.mxu0 %v1852
        %4298 = vmatpush1.bf16.msra.mxu0 %v1851
        %4299 = vmatprep.subr.bf16.mxu0 %v1884
        %4300 = vmatpush1.bf16.msra.mxu0 %v1883
        %4301 = vmatprep.subr.bf16.mxu0 %v1916
        %4302 = vmatpush1.bf16.msra.mxu0 %v1915
        %4303 = vmatprep.subr.bf16.mxu0 %v1948
        %4304 = vmatpush1.bf16.msra.mxu0 %v1947
        %4305 = vmatprep.subr.bf16.mxu0 %v1980
        %4306 = vmatpush1.bf16.msra.mxu0 %v1979
        %4307 = vmatprep.subr.bf16.mxu0 %v2012
        %4308 = vmatpush1.bf16.msra.mxu0 %v2011
        %4309 = vmatprep.subr.bf16.mxu0 %v2044
        %4310 = vmatpush1.bf16.msra.mxu0 %v2043
        %4311 = vmatprep.subr.bf16.mxu0 %v2076
        %4312 = vmatpush1.bf16.msra.mxu0 %v2075
        %4313 = vmatprep.subr.bf16.mxu0 %v2108
        %4314 = vmatpush1.bf16.msra.mxu0 %v2107
        %4315 = vmatprep.subr.bf16.mxu0 %v2140
        %4316 = vmatpush1.bf16.msra.mxu0 %v2139
        %4317 = vmatprep.subr.bf16.mxu0 %v2172
        %4318 = vmatpush1.bf16.msra.mxu0 %v2171
        %4319 = vmatprep.subr.bf16.mxu0 %v2204
        %4320 = vmatpush1.bf16.msra.mxu0 %v2203
        %4321 = vmatprep.subr.bf16.mxu0 %v2236
        %4322 = vmatpush1.bf16.msra.mxu0 %v2235
        %4323 = vmatprep.subr.bf16.mxu0 %v2268
        %4324 = vmatpush1.bf16.msra.mxu0 %v2267
        %4325 = vmatprep.subr.bf16.mxu0 %v2300
        %4326 = vmatpush1.bf16.msra.mxu0 %v2299
        %4327 = vmatprep.subr.bf16.mxu0 %v2332
        %4328 = vmatpush1.bf16.msra.mxu0 %v2331
        %4329 = vmatprep.mubr.bf16.mxu0 %v3426
        %4330 = vmatmul.mubr.bf16.gmra.mrb[0].mxu0 %v3424
        %v4331 = vpop.f32.mrb[0].mxu0
        %v4332 = vadd.f32 %v4291, %v4331
        %v4333 = vpop.f32.mrb[0].mxu0
        %v4334 = vadd.f32 %v4293, %v4333
        %v4335 = vpop.f32.mrb[0].mxu0
        %v4336 = vpop.f32.mrb[0].mxu0
        %4337 = vdwg.mxu0
        %4338 = vmatprep.subr.bf16.mxu0 %v2364
        %4339 = vmatpush1.bf16.msra.mxu0 %v2363
        %4340 = vmatprep.subr.bf16.mxu0 %v2396
        %4341 = vmatpush1.bf16.msra.mxu0 %v2395
        %4342 = vmatprep.subr.bf16.mxu0 %v2428
        %4343 = vmatpush1.bf16.msra.mxu0 %v2427
        %4344 = vmatprep.subr.bf16.mxu0 %v2460
        %4345 = vmatpush1.bf16.msra.mxu0 %v2459
        %4346 = vmatprep.subr.bf16.mxu0 %v2492
        %4347 = vmatpush1.bf16.msra.mxu0 %v2491
        %4348 = vmatprep.subr.bf16.mxu0 %v2524
        %4349 = vmatpush1.bf16.msra.mxu0 %v2523
        %4350 = vmatprep.subr.bf16.mxu0 %v2556
        %4351 = vmatpush1.bf16.msra.mxu0 %v2555
        %4352 = vmatprep.subr.bf16.mxu0 %v2588
        %4353 = vmatpush1.bf16.msra.mxu0 %v2587
        %4354 = vmatprep.subr.bf16.mxu0 %v2620
        %4355 = vmatpush1.bf16.msra.mxu0 %v2619
        %4356 = vmatprep.subr.bf16.mxu0 %v2652
        %4357 = vmatpush1.bf16.msra.mxu0 %v2651
        %4358 = vmatprep.subr.bf16.mxu0 %v2684
        %4359 = vmatpush1.bf16.msra.mxu0 %v2683
        %4360 = vmatprep.subr.bf16.mxu0 %v2716
        %4361 = vmatpush1.bf16.msra.mxu0 %v2715
        %4362 = vmatprep.subr.bf16.mxu0 %v2748
        %4363 = vmatpush1.bf16.msra.mxu0 %v2747
        %4364 = vmatprep.subr.bf16.mxu0 %v2780
        %4365 = vmatpush1.bf16.msra.mxu0 %v2779
        %4366 = vmatprep.subr.bf16.mxu0 %v2812
        %4367 = vmatpush1.bf16.msra.mxu0 %v2811
        %4368 = vmatprep.subr.bf16.mxu0 %v2844
        %4369 = vmatpush1.bf16.msra.mxu0 %v2843
        %4370 = vmatprep.mubr.bf16.mxu0 %v3423
        %4371 = vmatmul.mubr.bf16.gmra.mrb[0].mxu0 %v3409
        %v4372 = vpop.f32.mrb[0].mxu0
        %v4373 = vadd.f32 %v4332, %v4372
        %v4374 = vpop.f32.mrb[0].mxu0
        %v4375 = vadd.f32 %v4334, %v4374
        %v4376 = vpop.f32.mrb[0].mxu0
        %v4377 = vpop.f32.mrb[0].mxu0
        %4378 = vdwg.mxu0
        %4379 = vmatprep.subr.bf16.mxu0 %v2876
        %4380 = vmatpush1.bf16.msra.mxu0 %v2875
        %4381 = vmatprep.subr.bf16.mxu0 %v2908
        %4382 = vmatpush1.bf16.msra.mxu0 %v2907
        %4383 = vmatprep.subr.bf16.mxu0 %v2940
        %4384 = vmatpush1.bf16.msra.mxu0 %v2939
        %4385 = vmatprep.subr.bf16.mxu0 %v2972
        %4386 = vmatpush1.bf16.msra.mxu0 %v2971
        %4387 = vmatprep.subr.bf16.mxu0 %v3004
        %4388 = vmatpush1.bf16.msra.mxu0 %v3003
        %4389 = vmatprep.subr.bf16.mxu0 %v3036
        %4390 = vmatpush1.bf16.msra.mxu0 %v3035
        %4391 = vmatprep.subr.bf16.mxu0 %v3068
        %4392 = vmatpush1.bf16.msra.mxu0 %v3067
        %4393 = vmatprep.subr.bf16.mxu0 %v3100
        %4394 = vmatpush1.bf16.msra.mxu0 %v3099
        %4395 = vmatprep.subr.bf16.mxu0 %v3132
        %4396 = vmatpush1.bf16.msra.mxu0 %v3131
        %4397 = vmatprep.subr.bf16.mxu0 %v3164
        %4398 = vmatpush1.bf16.msra.mxu0 %v3163
        %4399 = vmatprep.subr.bf16.mxu0 %v3196
        %4400 = vmatpush1.bf16.msra.mxu0 %v3195
        %4401 = vmatprep.subr.bf16.mxu0 %v3228
        %4402 = vmatpush1.bf16.msra.mxu0 %v3227
        %4403 = vmatprep.subr.bf16.mxu0 %v3260
        %4404 = vmatpush1.bf16.msra.mxu0 %v3259
        %4405 = vmatprep.subr.bf16.mxu0 %v3292
        %4406 = vmatpush1.bf16.msra.mxu0 %v3291
        %4407 = vmatprep.subr.bf16.mxu0 %v3324
        %4408 = vmatpush1.bf16.msra.mxu0 %v3323
        %4409 = vmatprep.subr.bf16.mxu0 %v3356
        %4410 = vmatpush1.bf16.msra.mxu0 %v3355
        %4411 = vmatprep.mubr.bf16.mxu0 %v3427
        %4412 = vmatmul.mubr.bf16.gmra.mrb[0].mxu0 %v3425
        %v4413 = vpop.f32.mrb[0].mxu0
        %v4414 = vadd.f32 %v4373, %v4413
        %v4415 = vpop.f32.mrb[0].mxu0
        %v4416 = vadd.f32 %v4375, %v4415
        %v4417 = vpop.f32.mrb[0].mxu0
        %v4418 = vpop.f32.mrb[0].mxu0
        %4419 = vdwg.mxu0
        %4420 = vmatprep.subr.bf16.mxu0 %v1342
        %4421 = vmatpush1.bf16.msra.mxu0 %v1341
        %4422 = vmatprep.subr.bf16.mxu0 %v1374
        %4423 = vmatpush1.bf16.msra.mxu0 %v1373
        %4424 = vmatprep.subr.bf16.mxu0 %v1406
        %4425 = vmatpush1.bf16.msra.mxu0 %v1405
        %4426 = vmatprep.subr.bf16.mxu0 %v1438
        %4427 = vmatpush1.bf16.msra.mxu0 %v1437
        %4428 = vmatprep.subr.bf16.mxu0 %v1470
        %4429 = vmatpush1.bf16.msra.mxu0 %v1469
        %4430 = vmatprep.subr.bf16.mxu0 %v1502
        %4431 = vmatpush1.bf16.msra.mxu0 %v1501
        %4432 = vmatprep.subr.bf16.mxu0 %v1534
        %4433 = vmatpush1.bf16.msra.mxu0 %v1533
        %4434 = vmatprep.subr.bf16.mxu0 %v1566
        %4435 = vmatpush1.bf16.msra.mxu0 %v1565
        %4436 = vmatprep.subr.bf16.mxu0 %v1598
        %4437 = vmatpush1.bf16.msra.mxu0 %v1597
        %4438 = vmatprep.subr.bf16.mxu0 %v1630
        %4439 = vmatpush1.bf16.msra.mxu0 %v1629
        %4440 = vmatprep.subr.bf16.mxu0 %v1662
        %4441 = vmatpush1.bf16.msra.mxu0 %v1661
        %4442 = vmatprep.subr.bf16.mxu0 %v1694
        %4443 = vmatpush1.bf16.msra.mxu0 %v1693
        %4444 = vmatprep.subr.bf16.mxu0 %v1726
        %4445 = vmatpush1.bf16.msra.mxu0 %v1725
        %4446 = vmatprep.subr.bf16.mxu0 %v1758
        %4447 = vmatpush1.bf16.msra.mxu0 %v1757
        %4448 = vmatprep.subr.bf16.mxu0 %v1790
        %4449 = vmatpush1.bf16.msra.mxu0 %v1789
        %4450 = vmatprep.subr.bf16.mxu0 %v1822
        %4451 = vmatpush1.bf16.msra.mxu0 %v1821
        %4452 = vmatprep.mubr.bf16.mxu0 %v3416
        %4453 = vmatmul.mubr.bf16.gmra.mrb[0].mxu0 %v3402
        %v4454 = vpop.f32.mrb[0].mxu0
        %v4455 = vadd.f32 0.0, %v4454
        %v4456 = vpop.f32.mrb[0].mxu0
        %v4457 = vadd.f32 0.0, %v4456
        %v4458 = vpop.f32.mrb[0].mxu0
        %v4459 = vpop.f32.mrb[0].mxu0
        %4460 = vdwg.mxu0
        %4461 = vmatprep.subr.bf16.mxu0 %v1854
        %4462 = vmatpush1.bf16.msra.mxu0 %v1853
        %4463 = vmatprep.subr.bf16.mxu0 %v1886
        %4464 = vmatpush1.bf16.msra.mxu0 %v1885
        %4465 = vmatprep.subr.bf16.mxu0 %v1918
        %4466 = vmatpush1.bf16.msra.mxu0 %v1917
        %4467 = vmatprep.subr.bf16.mxu0 %v1950
        %4468 = vmatpush1.bf16.msra.mxu0 %v1949
        %4469 = vmatprep.subr.bf16.mxu0 %v1982
        %4470 = vmatpush1.bf16.msra.mxu0 %v1981
        %4471 = vmatprep.subr.bf16.mxu0 %v2014
        %4472 = vmatpush1.bf16.msra.mxu0 %v2013
        %4473 = vmatprep.subr.bf16.mxu0 %v2046
        %4474 = vmatpush1.bf16.msra.mxu0 %v2045
        %4475 = vmatprep.subr.bf16.mxu0 %v2078
        %4476 = vmatpush1.bf16.msra.mxu0 %v2077
        %4477 = vmatprep.subr.bf16.mxu0 %v2110
        %4478 = vmatpush1.bf16.msra.mxu0 %v2109
        %4479 = vmatprep.subr.bf16.mxu0 %v2142
        %4480 = vmatpush1.bf16.msra.mxu0 %v2141
        %4481 = vmatprep.subr.bf16.mxu0 %v2174
        %4482 = vmatpush1.bf16.msra.mxu0 %v2173
        %4483 = vmatprep.subr.bf16.mxu0 %v2206
        %4484 = vmatpush1.bf16.msra.mxu0 %v2205
        %4485 = vmatprep.subr.bf16.mxu0 %v2238
        %4486 = vmatpush1.bf16.msra.mxu0 %v2237
        %4487 = vmatprep.subr.bf16.mxu0 %v2270
        %4488 = vmatpush1.bf16.msra.mxu0 %v2269
        %4489 = vmatprep.subr.bf16.mxu0 %v2302
        %4490 = vmatpush1.bf16.msra.mxu0 %v2301
        %4491 = vmatprep.subr.bf16.mxu0 %v2334
        %4492 = vmatpush1.bf16.msra.mxu0 %v2333
        %4493 = vmatprep.mubr.bf16.mxu0 %v3426
        %4494 = vmatmul.mubr.bf16.gmra.mrb[0].mxu0 %v3424
        %v4495 = vpop.f32.mrb[0].mxu0
        %v4496 = vadd.f32 %v4455, %v4495
        %v4497 = vpop.f32.mrb[0].mxu0
        %v4498 = vadd.f32 %v4457, %v4497
        %v4499 = vpop.f32.mrb[0].mxu0
        %v4500 = vpop.f32.mrb[0].mxu0
        %4501 = vdwg.mxu0
        %4502 = vmatprep.subr.bf16.mxu0 %v2366
        %4503 = vmatpush1.bf16.msra.mxu0 %v2365
        %4504 = vmatprep.subr.bf16.mxu0 %v2398
        %4505 = vmatpush1.bf16.msra.mxu0 %v2397
        %4506 = vmatprep.subr.bf16.mxu0 %v2430
        %4507 = vmatpush1.bf16.msra.mxu0 %v2429
        %4508 = vmatprep.subr.bf16.mxu0 %v2462
        %4509 = vmatpush1.bf16.msra.mxu0 %v2461
        %4510 = vmatprep.subr.bf16.mxu0 %v2494
        %4511 = vmatpush1.bf16.msra.mxu0 %v2493
        %4512 = vmatprep.subr.bf16.mxu0 %v2526
        %4513 = vmatpush1.bf16.msra.mxu0 %v2525
        %4514 = vmatprep.subr.bf16.mxu0 %v2558
        %4515 = vmatpush1.bf16.msra.mxu0 %v2557
        %4516 = vmatprep.subr.bf16.mxu0 %v2590
        %4517 = vmatpush1.bf16.msra.mxu0 %v2589
        %4518 = vmatprep.subr.bf16.mxu0 %v2622
        %4519 = vmatpush1.bf16.msra.mxu0 %v2621
        %4520 = vmatprep.subr.bf16.mxu0 %v2654
        %4521 = vmatpush1.bf16.msra.mxu0 %v2653
        %4522 = vmatprep.subr.bf16.mxu0 %v2686
        %4523 = vmatpush1.bf16.msra.mxu0 %v2685
        %4524 = vmatprep.subr.bf16.mxu0 %v2718
        %4525 = vmatpush1.bf16.msra.mxu0 %v2717
        %4526 = vmatprep.subr.bf16.mxu0 %v2750
        %4527 = vmatpush1.bf16.msra.mxu0 %v2749
        %4528 = vmatprep.subr.bf16.mxu0 %v2782
        %4529 = vmatpush1.bf16.msra.mxu0 %v2781
        %4530 = vmatprep.subr.bf16.mxu0 %v2814
        %4531 = vmatpush1.bf16.msra.mxu0 %v2813
        %4532 = vmatprep.subr.bf16.mxu0 %v2846
        %4533 = vmatpush1.bf16.msra.mxu0 %v2845
        %4534 = vmatprep.mubr.bf16.mxu0 %v3423
        %4535 = vmatmul.mubr.bf16.gmra.mrb[0].mxu0 %v3409
        %v4536 = vpop.f32.mrb[0].mxu0
        %v4537 = vadd.f32 %v4496, %v4536
        %v4538 = vpop.f32.mrb[0].mxu0
        %v4539 = vadd.f32 %v4498, %v4538
        %v4540 = vpop.f32.mrb[0].mxu0
        %v4541 = vpop.f32.mrb[0].mxu0
        %4542 = vdwg.mxu0
        %4543 = vmatprep.subr.bf16.mxu0 %v2878
        %4544 = vmatpush1.bf16.msra.mxu0 %v2877
        %4545 = vmatprep.subr.bf16.mxu0 %v2910
        %4546 = vmatpush1.bf16.msra.mxu0 %v2909
        %4547 = vmatprep.subr.bf16.mxu0 %v2942
        %4548 = vmatpush1.bf16.msra.mxu0 %v2941
        %4549 = vmatprep.subr.bf16.mxu0 %v2974
        %4550 = vmatpush1.bf16.msra.mxu0 %v2973
        %4551 = vmatprep.subr.bf16.mxu0 %v3006
        %4552 = vmatpush1.bf16.msra.mxu0 %v3005
        %4553 = vmatprep.subr.bf16.mxu0 %v3038
        %4554 = vmatpush1.bf16.msra.mxu0 %v3037
        %4555 = vmatprep.subr.bf16.mxu0 %v3070
        %4556 = vmatpush1.bf16.msra.mxu0 %v3069
        %4557 = vmatprep.subr.bf16.mxu0 %v3102
        %4558 = vmatpush1.bf16.msra.mxu0 %v3101
        %4559 = vmatprep.subr.bf16.mxu0 %v3134
        %4560 = vmatpush1.bf16.msra.mxu0 %v3133
        %4561 = vmatprep.subr.bf16.mxu0 %v3166
        %4562 = vmatpush1.bf16.msra.mxu0 %v3165
        %4563 = vmatprep.subr.bf16.mxu0 %v3198
        %4564 = vmatpush1.bf16.msra.mxu0 %v3197
        %4565 = vmatprep.subr.bf16.mxu0 %v3230
        %4566 = vmatpush1.bf16.msra.mxu0 %v3229
        %4567 = vmatprep.subr.bf16.mxu0 %v3262
        %4568 = vmatpush1.bf16.msra.mxu0 %v3261
        %4569 = vmatprep.subr.bf16.mxu0 %v3294
        %4570 = vmatpush1.bf16.msra.mxu0 %v3293
        %4571 = vmatprep.subr.bf16.mxu0 %v3326
        %4572 = vmatpush1.bf16.msra.mxu0 %v3325
        %4573 = vmatprep.subr.bf16.mxu0 %v3358
        %4574 = vmatpush1.bf16.msra.mxu0 %v3357
        %4575 = vmatprep.mubr.bf16.mxu0 %v3427
        %4576 = vmatmul.mubr.bf16.gmra.mrb[0].mxu0 %v3425
        %v4577 = vpop.f32.mrb[0].mxu0
        %v4578 = vadd.f32 %v4537, %v4577
        %v4579 = vpop.f32.mrb[0].mxu0
        %v4580 = vadd.f32 %v4539, %v4579
        %v4581 = vpop.f32.mrb[0].mxu0
        %v4582 = vpop.f32.mrb[0].mxu0
        %4583 = vdwg.mxu0
        %4584 = vmatprep.subr.bf16.mxu0 %v1344
        %4585 = vmatpush1.bf16.msra.mxu0 %v1343
        %4586 = vmatprep.subr.bf16.mxu0 %v1376
        %4587 = vmatpush1.bf16.msra.mxu0 %v1375
        %4588 = vmatprep.subr.bf16.mxu0 %v1408
        %4589 = vmatpush1.bf16.msra.mxu0 %v1407
        %4590 = vmatprep.subr.bf16.mxu0 %v1440
        %4591 = vmatpush1.bf16.msra.mxu0 %v1439
        %4592 = vmatprep.subr.bf16.mxu0 %v1472
        %4593 = vmatpush1.bf16.msra.mxu0 %v1471
        %4594 = vmatprep.subr.bf16.mxu0 %v1504
        %4595 = vmatpush1.bf16.msra.mxu0 %v1503
        %4596 = vmatprep.subr.bf16.mxu0 %v1536
        %4597 = vmatpush1.bf16.msra.mxu0 %v1535
        %4598 = vmatprep.subr.bf16.mxu0 %v1568
        %4599 = vmatpush1.bf16.msra.mxu0 %v1567
        %4600 = vmatprep.subr.bf16.mxu0 %v1600
        %4601 = vmatpush1.bf16.msra.mxu0 %v1599
        %4602 = vmatprep.subr.bf16.mxu0 %v1632
        %4603 = vmatpush1.bf16.msra.mxu0 %v1631
        %4604 = vmatprep.subr.bf16.mxu0 %v1664
        %4605 = vmatpush1.bf16.msra.mxu0 %v1663
        %4606 = vmatprep.subr.bf16.mxu0 %v1696
        %4607 = vmatpush1.bf16.msra.mxu0 %v1695
        %4608 = vmatprep.subr.bf16.mxu0 %v1728
        %4609 = vmatpush1.bf16.msra.mxu0 %v1727
        %4610 = vmatprep.subr.bf16.mxu0 %v1760
        %4611 = vmatpush1.bf16.msra.mxu0 %v1759
        %4612 = vmatprep.subr.bf16.mxu0 %v1792
        %4613 = vmatpush1.bf16.msra.mxu0 %v1791
        %4614 = vmatprep.subr.bf16.mxu0 %v1824
        %4615 = vmatpush1.bf16.msra.mxu0 %v1823
        %4616 = vmatprep.mubr.bf16.mxu0 %v3416
        %4617 = vmatmul.mubr.bf16.gmra.mrb[0].mxu0 %v3402
        %v4618 = vpop.f32.mrb[0].mxu0
        %v4619 = vadd.f32 0.0, %v4618
        %v4620 = vpop.f32.mrb[0].mxu0
        %v4621 = vadd.f32 0.0, %v4620
        %v4622 = vpop.f32.mrb[0].mxu0
        %v4623 = vpop.f32.mrb[0].mxu0
        %4624 = vdwg.mxu0
        %4625 = vmatprep.subr.bf16.mxu0 %v1856
        %4626 = vmatpush1.bf16.msra.mxu0 %v1855
        %4627 = vmatprep.subr.bf16.mxu0 %v1888
        %4628 = vmatpush1.bf16.msra.mxu0 %v1887
        %4629 = vmatprep.subr.bf16.mxu0 %v1920
        %4630 = vmatpush1.bf16.msra.mxu0 %v1919
        %4631 = vmatprep.subr.bf16.mxu0 %v1952
        %4632 = vmatpush1.bf16.msra.mxu0 %v1951
        %4633 = vmatprep.subr.bf16.mxu0 %v1984
        %4634 = vmatpush1.bf16.msra.mxu0 %v1983
        %4635 = vmatprep.subr.bf16.mxu0 %v2016
        %4636 = vmatpush1.bf16.msra.mxu0 %v2015
        %4637 = vmatprep.subr.bf16.mxu0 %v2048
        %4638 = vmatpush1.bf16.msra.mxu0 %v2047
        %4639 = vmatprep.subr.bf16.mxu0 %v2080
        %4640 = vmatpush1.bf16.msra.mxu0 %v2079
        %4641 = vmatprep.subr.bf16.mxu0 %v2112
        %4642 = vmatpush1.bf16.msra.mxu0 %v2111
        %4643 = vmatprep.subr.bf16.mxu0 %v2144
        %4644 = vmatpush1.bf16.msra.mxu0 %v2143
        %4645 = vmatprep.subr.bf16.mxu0 %v2176
        %4646 = vmatpush1.bf16.msra.mxu0 %v2175
        %4647 = vmatprep.subr.bf16.mxu0 %v2208
        %4648 = vmatpush1.bf16.msra.mxu0 %v2207
        %4649 = vmatprep.subr.bf16.mxu0 %v2240
        %4650 = vmatpush1.bf16.msra.mxu0 %v2239
        %4651 = vmatprep.subr.bf16.mxu0 %v2272
        %4652 = vmatpush1.bf16.msra.mxu0 %v2271
        %4653 = vmatprep.subr.bf16.mxu0 %v2304
        %4654 = vmatpush1.bf16.msra.mxu0 %v2303
        %4655 = vmatprep.subr.bf16.mxu0 %v2336
        %4656 = vmatpush1.bf16.msra.mxu0 %v2335
        %4657 = vmatprep.mubr.bf16.mxu0 %v3426
        %4658 = vmatmul.mubr.bf16.gmra.mrb[0].mxu0 %v3424
        %v4659 = vpop.f32.mrb[0].mxu0
        %v4660 = vadd.f32 %v4619, %v4659
        %v4661 = vpop.f32.mrb[0].mxu0
        %v4662 = vadd.f32 %v4621, %v4661
        %v4663 = vpop.f32.mrb[0].mxu0
        %v4664 = vpop.f32.mrb[0].mxu0
        %4665 = vdwg.mxu0
        %4666 = vmatprep.subr.bf16.mxu0 %v2368
        %4667 = vmatpush1.bf16.msra.mxu0 %v2367
        %4668 = vmatprep.subr.bf16.mxu0 %v2400
        %4669 = vmatpush1.bf16.msra.mxu0 %v2399
        %4670 = vmatprep.subr.bf16.mxu0 %v2432
        %4671 = vmatpush1.bf16.msra.mxu0 %v2431
        %4672 = vmatprep.subr.bf16.mxu0 %v2464
        %4673 = vmatpush1.bf16.msra.mxu0 %v2463
        %4674 = vmatprep.subr.bf16.mxu0 %v2496
        %4675 = vmatpush1.bf16.msra.mxu0 %v2495
        %4676 = vmatprep.subr.bf16.mxu0 %v2528
        %4677 = vmatpush1.bf16.msra.mxu0 %v2527
        %4678 = vmatprep.subr.bf16.mxu0 %v2560
        %4679 = vmatpush1.bf16.msra.mxu0 %v2559
        %4680 = vmatprep.subr.bf16.mxu0 %v2592
        %4681 = vmatpush1.bf16.msra.mxu0 %v2591
        %4682 = vmatprep.subr.bf16.mxu0 %v2624
        %4683 = vmatpush1.bf16.msra.mxu0 %v2623
        %4684 = vmatprep.subr.bf16.mxu0 %v2656
        %4685 = vmatpush1.bf16.msra.mxu0 %v2655
        %4686 = vmatprep.subr.bf16.mxu0 %v2688
        %4687 = vmatpush1.bf16.msra.mxu0 %v2687
        %4688 = vmatprep.subr.bf16.mxu0 %v2720
        %4689 = vmatpush1.bf16.msra.mxu0 %v2719
        %4690 = vmatprep.subr.bf16.mxu0 %v2752
        %4691 = vmatpush1.bf16.msra.mxu0 %v2751
        %4692 = vmatprep.subr.bf16.mxu0 %v2784
        %4693 = vmatpush1.bf16.msra.mxu0 %v2783
        %4694 = vmatprep.subr.bf16.mxu0 %v2816
        %4695 = vmatpush1.bf16.msra.mxu0 %v2815
        %4696 = vmatprep.subr.bf16.mxu0 %v2848
        %4697 = vmatpush1.bf16.msra.mxu0 %v2847
        %4698 = vmatprep.mubr.bf16.mxu0 %v3423
        %4699 = vmatmul.mubr.bf16.gmra.mrb[0].mxu0 %v3409
        %v4700 = vpop.f32.mrb[0].mxu0
        %v4701 = vadd.f32 %v4660, %v4700
        %v4702 = vpop.f32.mrb[0].mxu0
        %v4703 = vadd.f32 %v4662, %v4702
        %v4704 = vpop.f32.mrb[0].mxu0
        %v4705 = vpop.f32.mrb[0].mxu0
        %4706 = vdwg.mxu0
        %4707 = vmatprep.subr.bf16.mxu0 %v2880
        %4708 = vmatpush1.bf16.msra.mxu0 %v2879
        %4709 = vmatprep.subr.bf16.mxu0 %v2912
        %4710 = vmatpush1.bf16.msra.mxu0 %v2911
        %4711 = vmatprep.subr.bf16.mxu0 %v2944
        %4712 = vmatpush1.bf16.msra.mxu0 %v2943
        %4713 = vmatprep.subr.bf16.mxu0 %v2976
        %4714 = vmatpush1.bf16.msra.mxu0 %v2975
        %4715 = vmatprep.subr.bf16.mxu0 %v3008
        %4716 = vmatpush1.bf16.msra.mxu0 %v3007
        %4717 = vmatprep.subr.bf16.mxu0 %v3040
        %4718 = vmatpush1.bf16.msra.mxu0 %v3039
        %4719 = vmatprep.subr.bf16.mxu0 %v3072
        %4720 = vmatpush1.bf16.msra.mxu0 %v3071
        %4721 = vmatprep.subr.bf16.mxu0 %v3104
        %4722 = vmatpush1.bf16.msra.mxu0 %v3103
        %4723 = vmatprep.subr.bf16.mxu0 %v3136
        %4724 = vmatpush1.bf16.msra.mxu0 %v3135
        %4725 = vmatprep.subr.bf16.mxu0 %v3168
        %4726 = vmatpush1.bf16.msra.mxu0 %v3167
        %4727 = vmatprep.subr.bf16.mxu0 %v3200
        %4728 = vmatpush1.bf16.msra.mxu0 %v3199
        %4729 = vmatprep.subr.bf16.mxu0 %v3232
        %4730 = vmatpush1.bf16.msra.mxu0 %v3231
        %4731 = vmatprep.subr.bf16.mxu0 %v3264
        %4732 = vmatpush1.bf16.msra.mxu0 %v3263
        %4733 = vmatprep.subr.bf16.mxu0 %v3296
        %4734 = vmatpush1.bf16.msra.mxu0 %v3295
        %4735 = vmatprep.subr.bf16.mxu0 %v3328
        %4736 = vmatpush1.bf16.msra.mxu0 %v3327
        %4737 = vmatprep.subr.bf16.mxu0 %v3360
        %4738 = vmatpush1.bf16.msra.mxu0 %v3359
        %4739 = vmatprep.mubr.bf16.mxu0 %v3427
        %4740 = vmatmul.mubr.bf16.gmra.mrb[0].mxu0 %v3425
        %v4741 = vpop.f32.mrb[0].mxu0
        %v4742 = vadd.f32 %v4701, %v4741
        %v4743 = vpop.f32.mrb[0].mxu0
        %v4744 = vadd.f32 %v4703, %v4743
        %v4745 = vpop.f32.mrb[0].mxu0
        %v4746 = vpop.f32.mrb[0].mxu0
        %4747 = vdwg.mxu0
        %4748 = vmatprep.subr.bf16.mxu0 %v1346
        %4749 = vmatpush1.bf16.msra.mxu0 %v1345
        %4750 = vmatprep.subr.bf16.mxu0 %v1378
        %4751 = vmatpush1.bf16.msra.mxu0 %v1377
        %4752 = vmatprep.subr.bf16.mxu0 %v1410
        %4753 = vmatpush1.bf16.msra.mxu0 %v1409
        %4754 = vmatprep.subr.bf16.mxu0 %v1442
        %4755 = vmatpush1.bf16.msra.mxu0 %v1441
        %4756 = vmatprep.subr.bf16.mxu0 %v1474
        %4757 = vmatpush1.bf16.msra.mxu0 %v1473
        %4758 = vmatprep.subr.bf16.mxu0 %v1506
        %4759 = vmatpush1.bf16.msra.mxu0 %v1505
        %4760 = vmatprep.subr.bf16.mxu0 %v1538
        %4761 = vmatpush1.bf16.msra.mxu0 %v1537
        %4762 = vmatprep.subr.bf16.mxu0 %v1570
        %4763 = vmatpush1.bf16.msra.mxu0 %v1569
        %4764 = vmatprep.subr.bf16.mxu0 %v1602
        %4765 = vmatpush1.bf16.msra.mxu0 %v1601
        %4766 = vmatprep.subr.bf16.mxu0 %v1634
        %4767 = vmatpush1.bf16.msra.mxu0 %v1633
        %4768 = vmatprep.subr.bf16.mxu0 %v1666
        %4769 = vmatpush1.bf16.msra.mxu0 %v1665
        %4770 = vmatprep.subr.bf16.mxu0 %v1698
        %4771 = vmatpush1.bf16.msra.mxu0 %v1697
        %4772 = vmatprep.subr.bf16.mxu0 %v1730
        %4773 = vmatpush1.bf16.msra.mxu0 %v1729
        %4774 = vmatprep.subr.bf16.mxu0 %v1762
        %4775 = vmatpush1.bf16.msra.mxu0 %v1761
        %4776 = vmatprep.subr.bf16.mxu0 %v1794
        %4777 = vmatpush1.bf16.msra.mxu0 %v1793
        %4778 = vmatprep.subr.bf16.mxu0 %v1826
        %4779 = vmatpush1.bf16.msra.mxu0 %v1825
        %4780 = vmatprep.mubr.bf16.mxu0 %v3416
        %4781 = vmatmul.mubr.bf16.gmra.mrb[0].mxu0 %v3402
        %v4782 = vpop.f32.mrb[0].mxu0
        %v4783 = vadd.f32 0.0, %v4782
        %v4784 = vpop.f32.mrb[0].mxu0
        %v4785 = vadd.f32 0.0, %v4784
        %v4786 = vpop.f32.mrb[0].mxu0
        %v4787 = vpop.f32.mrb[0].mxu0
        %4788 = vdwg.mxu0
        %4789 = vmatprep.subr.bf16.mxu0 %v1858
        %4790 = vmatpush1.bf16.msra.mxu0 %v1857
        %4791 = vmatprep.subr.bf16.mxu0 %v1890
        %4792 = vmatpush1.bf16.msra.mxu0 %v1889
        %4793 = vmatprep.subr.bf16.mxu0 %v1922
        %4794 = vmatpush1.bf16.msra.mxu0 %v1921
        %4795 = vmatprep.subr.bf16.mxu0 %v1954
        %4796 = vmatpush1.bf16.msra.mxu0 %v1953
        %4797 = vmatprep.subr.bf16.mxu0 %v1986
        %4798 = vmatpush1.bf16.msra.mxu0 %v1985
        %4799 = vmatprep.subr.bf16.mxu0 %v2018
        %4800 = vmatpush1.bf16.msra.mxu0 %v2017
        %4801 = vmatprep.subr.bf16.mxu0 %v2050
        %4802 = vmatpush1.bf16.msra.mxu0 %v2049
        %4803 = vmatprep.subr.bf16.mxu0 %v2082
        %4804 = vmatpush1.bf16.msra.mxu0 %v2081
        %4805 = vmatprep.subr.bf16.mxu0 %v2114
        %4806 = vmatpush1.bf16.msra.mxu0 %v2113
        %4807 = vmatprep.subr.bf16.mxu0 %v2146
        %4808 = vmatpush1.bf16.msra.mxu0 %v2145
        %4809 = vmatprep.subr.bf16.mxu0 %v2178
        %4810 = vmatpush1.bf16.msra.mxu0 %v2177
        %4811 = vmatprep.subr.bf16.mxu0 %v2210
        %4812 = vmatpush1.bf16.msra.mxu0 %v2209
        %4813 = vmatprep.subr.bf16.mxu0 %v2242
        %4814 = vmatpush1.bf16.msra.mxu0 %v2241
        %4815 = vmatprep.subr.bf16.mxu0 %v2274
        %4816 = vmatpush1.bf16.msra.mxu0 %v2273
        %4817 = vmatprep.subr.bf16.mxu0 %v2306
        %4818 = vmatpush1.bf16.msra.mxu0 %v2305
        %4819 = vmatprep.subr.bf16.mxu0 %v2338
        %4820 = vmatpush1.bf16.msra.mxu0 %v2337
        %4821 = vmatprep.mubr.bf16.mxu0 %v3426
        %4822 = vmatmul.mubr.bf16.gmra.mrb[0].mxu0 %v3424
        %v4823 = vpop.f32.mrb[0].mxu0
        %v4824 = vadd.f32 %v4783, %v4823
        %v4825 = vpop.f32.mrb[0].mxu0
        %v4826 = vadd.f32 %v4785, %v4825
        %v4827 = vpop.f32.mrb[0].mxu0
        %v4828 = vpop.f32.mrb[0].mxu0
        %4829 = vdwg.mxu0
        %4830 = vmatprep.subr.bf16.mxu0 %v2370
        %4831 = vmatpush1.bf16.msra.mxu0 %v2369
        %4832 = vmatprep.subr.bf16.mxu0 %v2402
        %4833 = vmatpush1.bf16.msra.mxu0 %v2401
        %4834 = vmatprep.subr.bf16.mxu0 %v2434
        %4835 = vmatpush1.bf16.msra.mxu0 %v2433
        %4836 = vmatprep.subr.bf16.mxu0 %v2466
        %4837 = vmatpush1.bf16.msra.mxu0 %v2465
        %4838 = vmatprep.subr.bf16.mxu0 %v2498
        %4839 = vmatpush1.bf16.msra.mxu0 %v2497
        %4840 = vmatprep.subr.bf16.mxu0 %v2530
        %4841 = vmatpush1.bf16.msra.mxu0 %v2529
        %4842 = vmatprep.subr.bf16.mxu0 %v2562
        %4843 = vmatpush1.bf16.msra.mxu0 %v2561
        %4844 = vmatprep.subr.bf16.mxu0 %v2594
        %4845 = vmatpush1.bf16.msra.mxu0 %v2593
        %4846 = vmatprep.subr.bf16.mxu0 %v2626
        %4847 = vmatpush1.bf16.msra.mxu0 %v2625
        %4848 = vmatprep.subr.bf16.mxu0 %v2658
        %4849 = vmatpush1.bf16.msra.mxu0 %v2657
        %4850 = vmatprep.subr.bf16.mxu0 %v2690
        %4851 = vmatpush1.bf16.msra.mxu0 %v2689
        %4852 = vmatprep.subr.bf16.mxu0 %v2722
        %4853 = vmatpush1.bf16.msra.mxu0 %v2721
        %4854 = vmatprep.subr.bf16.mxu0 %v2754
        %4855 = vmatpush1.bf16.msra.mxu0 %v2753
        %4856 = vmatprep.subr.bf16.mxu0 %v2786
        %4857 = vmatpush1.bf16.msra.mxu0 %v2785
        %4858 = vmatprep.subr.bf16.mxu0 %v2818
        %4859 = vmatpush1.bf16.msra.mxu0 %v2817
        %4860 = vmatprep.subr.bf16.mxu0 %v2850
        %4861 = vmatpush1.bf16.msra.mxu0 %v2849
        %4862 = vmatprep.mubr.bf16.mxu0 %v3423
        %4863 = vmatmul.mubr.bf16.gmra.mrb[0].mxu0 %v3409
        %v4864 = vpop.f32.mrb[0].mxu0
        %v4865 = vadd.f32 %v4824, %v4864
        %v4866 = vpop.f32.mrb[0].mxu0
        %v4867 = vadd.f32 %v4826, %v4866
        %v4868 = vpop.f32.mrb[0].mxu0
        %v4869 = vpop.f32.mrb[0].mxu0
        %4870 = vdwg.mxu0
        %4871 = vmatprep.subr.bf16.mxu0 %v2882
        %4872 = vmatpush1.bf16.msra.mxu0 %v2881
        %4873 = vmatprep.subr.bf16.mxu0 %v2914
        %4874 = vmatpush1.bf16.msra.mxu0 %v2913
        %4875 = vmatprep.subr.bf16.mxu0 %v2946
        %4876 = vmatpush1.bf16.msra.mxu0 %v2945
        %4877 = vmatprep.subr.bf16.mxu0 %v2978
        %4878 = vmatpush1.bf16.msra.mxu0 %v2977
        %4879 = vmatprep.subr.bf16.mxu0 %v3010
        %4880 = vmatpush1.bf16.msra.mxu0 %v3009
        %4881 = vmatprep.subr.bf16.mxu0 %v3042
        %4882 = vmatpush1.bf16.msra.mxu0 %v3041
        %4883 = vmatprep.subr.bf16.mxu0 %v3074
        %4884 = vmatpush1.bf16.msra.mxu0 %v3073
        %4885 = vmatprep.subr.bf16.mxu0 %v3106
        %4886 = vmatpush1.bf16.msra.mxu0 %v3105
        %4887 = vmatprep.subr.bf16.mxu0 %v3138
        %4888 = vmatpush1.bf16.msra.mxu0 %v3137
        %4889 = vmatprep.subr.bf16.mxu0 %v3170
        %4890 = vmatpush1.bf16.msra.mxu0 %v3169
        %4891 = vmatprep.subr.bf16.mxu0 %v3202
        %4892 = vmatpush1.bf16.msra.mxu0 %v3201
        %4893 = vmatprep.subr.bf16.mxu0 %v3234
        %4894 = vmatpush1.bf16.msra.mxu0 %v3233
        %4895 = vmatprep.subr.bf16.mxu0 %v3266
        %4896 = vmatpush1.bf16.msra.mxu0 %v3265
        %4897 = vmatprep.subr.bf16.mxu0 %v3298
        %4898 = vmatpush1.bf16.msra.mxu0 %v3297
        %4899 = vmatprep.subr.bf16.mxu0 %v3330
        %4900 = vmatpush1.bf16.msra.mxu0 %v3329
        %4901 = vmatprep.subr.bf16.mxu0 %v3362
        %4902 = vmatpush1.bf16.msra.mxu0 %v3361
        %4903 = vmatprep.mubr.bf16.mxu0 %v3427
        %4904 = vmatmul.mubr.bf16.gmra.mrb[0].mxu0 %v3425
        %v4905 = vpop.f32.mrb[0].mxu0
        %v4906 = vadd.f32 %v4865, %v4905
        %v4907 = vpop.f32.mrb[0].mxu0
        %v4908 = vadd.f32 %v4867, %v4907
        %v4909 = vpop.f32.mrb[0].mxu0
        %v4910 = vpop.f32.mrb[0].mxu0
        %4911 = vdwg.mxu0
        %4912 = vmatprep.subr.bf16.mxu0 %v1348
        %4913 = vmatpush1.bf16.msra.mxu0 %v1347
        %4914 = vmatprep.subr.bf16.mxu0 %v1380
        %4915 = vmatpush1.bf16.msra.mxu0 %v1379
        %4916 = vmatprep.subr.bf16.mxu0 %v1412
        %4917 = vmatpush1.bf16.msra.mxu0 %v1411
        %4918 = vmatprep.subr.bf16.mxu0 %v1444
        %4919 = vmatpush1.bf16.msra.mxu0 %v1443
        %4920 = vmatprep.subr.bf16.mxu0 %v1476
        %4921 = vmatpush1.bf16.msra.mxu0 %v1475
        %4922 = vmatprep.subr.bf16.mxu0 %v1508
        %4923 = vmatpush1.bf16.msra.mxu0 %v1507
        %4924 = vmatprep.subr.bf16.mxu0 %v1540
        %4925 = vmatpush1.bf16.msra.mxu0 %v1539
        %4926 = vmatprep.subr.bf16.mxu0 %v1572
        %4927 = vmatpush1.bf16.msra.mxu0 %v1571
        %4928 = vmatprep.subr.bf16.mxu0 %v1604
        %4929 = vmatpush1.bf16.msra.mxu0 %v1603
        %4930 = vmatprep.subr.bf16.mxu0 %v1636
        %4931 = vmatpush1.bf16.msra.mxu0 %v1635
        %4932 = vmatprep.subr.bf16.mxu0 %v1668
        %4933 = vmatpush1.bf16.msra.mxu0 %v1667
        %4934 = vmatprep.subr.bf16.mxu0 %v1700
        %4935 = vmatpush1.bf16.msra.mxu0 %v1699
        %4936 = vmatprep.subr.bf16.mxu0 %v1732
        %4937 = vmatpush1.bf16.msra.mxu0 %v1731
        %4938 = vmatprep.subr.bf16.mxu0 %v1764
        %4939 = vmatpush1.bf16.msra.mxu0 %v1763
        %4940 = vmatprep.subr.bf16.mxu0 %v1796
        %4941 = vmatpush1.bf16.msra.mxu0 %v1795
        %4942 = vmatprep.subr.bf16.mxu0 %v1828
        %4943 = vmatpush1.bf16.msra.mxu0 %v1827
        %4944 = vmatprep.mubr.bf16.mxu0 %v3416
        %4945 = vmatmul.mubr.bf16.gmra.mrb[0].mxu0 %v3402
        %v4946 = vpop.f32.mrb[0].mxu0
        %v4947 = vadd.f32 0.0, %v4946
        %v4948 = vpop.f32.mrb[0].mxu0
        %v4949 = vadd.f32 0.0, %v4948
        %v4950 = vpop.f32.mrb[0].mxu0
        %v4951 = vpop.f32.mrb[0].mxu0
        %4952 = vdwg.mxu0
        %4953 = vmatprep.subr.bf16.mxu0 %v1860
        %4954 = vmatpush1.bf16.msra.mxu0 %v1859
        %4955 = vmatprep.subr.bf16.mxu0 %v1892
        %4956 = vmatpush1.bf16.msra.mxu0 %v1891
        %4957 = vmatprep.subr.bf16.mxu0 %v1924
        %4958 = vmatpush1.bf16.msra.mxu0 %v1923
        %4959 = vmatprep.subr.bf16.mxu0 %v1956
        %4960 = vmatpush1.bf16.msra.mxu0 %v1955
        %4961 = vmatprep.subr.bf16.mxu0 %v1988
        %4962 = vmatpush1.bf16.msra.mxu0 %v1987
        %4963 = vmatprep.subr.bf16.mxu0 %v2020
        %4964 = vmatpush1.bf16.msra.mxu0 %v2019
        %4965 = vmatprep.subr.bf16.mxu0 %v2052
        %4966 = vmatpush1.bf16.msra.mxu0 %v2051
        %4967 = vmatprep.subr.bf16.mxu0 %v2084
        %4968 = vmatpush1.bf16.msra.mxu0 %v2083
        %4969 = vmatprep.subr.bf16.mxu0 %v2116
        %4970 = vmatpush1.bf16.msra.mxu0 %v2115
        %4971 = vmatprep.subr.bf16.mxu0 %v2148
        %4972 = vmatpush1.bf16.msra.mxu0 %v2147
        %4973 = vmatprep.subr.bf16.mxu0 %v2180
        %4974 = vmatpush1.bf16.msra.mxu0 %v2179
        %4975 = vmatprep.subr.bf16.mxu0 %v2212
        %4976 = vmatpush1.bf16.msra.mxu0 %v2211
        %4977 = vmatprep.subr.bf16.mxu0 %v2244
        %4978 = vmatpush1.bf16.msra.mxu0 %v2243
        %4979 = vmatprep.subr.bf16.mxu0 %v2276
        %4980 = vmatpush1.bf16.msra.mxu0 %v2275
        %4981 = vmatprep.subr.bf16.mxu0 %v2308
        %4982 = vmatpush1.bf16.msra.mxu0 %v2307
        %4983 = vmatprep.subr.bf16.mxu0 %v2340
        %4984 = vmatpush1.bf16.msra.mxu0 %v2339
        %4985 = vmatprep.mubr.bf16.mxu0 %v3426
        %4986 = vmatmul.mubr.bf16.gmra.mrb[0].mxu0 %v3424
        %v4987 = vpop.f32.mrb[0].mxu0
        %v4988 = vadd.f32 %v4947, %v4987
        %v4989 = vpop.f32.mrb[0].mxu0
        %v4990 = vadd.f32 %v4949, %v4989
        %v4991 = vpop.f32.mrb[0].mxu0
        %v4992 = vpop.f32.mrb[0].mxu0
        %4993 = vdwg.mxu0
        %4994 = vmatprep.subr.bf16.mxu0 %v2372
        %4995 = vmatpush1.bf16.msra.mxu0 %v2371
        %4996 = vmatprep.subr.bf16.mxu0 %v2404
        %4997 = vmatpush1.bf16.msra.mxu0 %v2403
        %4998 = vmatprep.subr.bf16.mxu0 %v2436
        %4999 = vmatpush1.bf16.msra.mxu0 %v2435
        %5000 = vmatprep.subr.bf16.mxu0 %v2468
        %5001 = vmatpush1.bf16.msra.mxu0 %v2467
        %5002 = vmatprep.subr.bf16.mxu0 %v2500
        %5003 = vmatpush1.bf16.msra.mxu0 %v2499
        %5004 = vmatprep.subr.bf16.mxu0 %v2532
        %5005 = vmatpush1.bf16.msra.mxu0 %v2531
        %5006 = vmatprep.subr.bf16.mxu0 %v2564
        %5007 = vmatpush1.bf16.msra.mxu0 %v2563
        %5008 = vmatprep.subr.bf16.mxu0 %v2596
        %5009 = vmatpush1.bf16.msra.mxu0 %v2595
        %5010 = vmatprep.subr.bf16.mxu0 %v2628
        %5011 = vmatpush1.bf16.msra.mxu0 %v2627
        %5012 = vmatprep.subr.bf16.mxu0 %v2660
        %5013 = vmatpush1.bf16.msra.mxu0 %v2659
        %5014 = vmatprep.subr.bf16.mxu0 %v2692
        %5015 = vmatpush1.bf16.msra.mxu0 %v2691
        %5016 = vmatprep.subr.bf16.mxu0 %v2724
        %5017 = vmatpush1.bf16.msra.mxu0 %v2723
        %5018 = vmatprep.subr.bf16.mxu0 %v2756
        %5019 = vmatpush1.bf16.msra.mxu0 %v2755
        %5020 = vmatprep.subr.bf16.mxu0 %v2788
        %5021 = vmatpush1.bf16.msra.mxu0 %v2787
        %5022 = vmatprep.subr.bf16.mxu0 %v2820
        %5023 = vmatpush1.bf16.msra.mxu0 %v2819
        %5024 = vmatprep.subr.bf16.mxu0 %v2852
        %5025 = vmatpush1.bf16.msra.mxu0 %v2851
        %5026 = vmatprep.mubr.bf16.mxu0 %v3423
        %5027 = vmatmul.mubr.bf16.gmra.mrb[0].mxu0 %v3409
        %v5028 = vpop.f32.mrb[0].mxu0
        %v5029 = vadd.f32 %v4988, %v5028
        %v5030 = vpop.f32.mrb[0].mxu0
        %v5031 = vadd.f32 %v4990, %v5030
        %v5032 = vpop.f32.mrb[0].mxu0
        %v5033 = vpop.f32.mrb[0].mxu0
        %5034 = vdwg.mxu0
        %5035 = vmatprep.subr.bf16.mxu0 %v2884
        %5036 = vmatpush1.bf16.msra.mxu0 %v2883
        %5037 = vmatprep.subr.bf16.mxu0 %v2916
        %5038 = vmatpush1.bf16.msra.mxu0 %v2915
        %5039 = vmatprep.subr.bf16.mxu0 %v2948
        %5040 = vmatpush1.bf16.msra.mxu0 %v2947
        %5041 = vmatprep.subr.bf16.mxu0 %v2980
        %5042 = vmatpush1.bf16.msra.mxu0 %v2979
        %5043 = vmatprep.subr.bf16.mxu0 %v3012
        %5044 = vmatpush1.bf16.msra.mxu0 %v3011
        %5045 = vmatprep.subr.bf16.mxu0 %v3044
        %5046 = vmatpush1.bf16.msra.mxu0 %v3043
        %5047 = vmatprep.subr.bf16.mxu0 %v3076
        %5048 = vmatpush1.bf16.msra.mxu0 %v3075
        %5049 = vmatprep.subr.bf16.mxu0 %v3108
        %5050 = vmatpush1.bf16.msra.mxu0 %v3107
        %5051 = vmatprep.subr.bf16.mxu0 %v3140
        %5052 = vmatpush1.bf16.msra.mxu0 %v3139
        %5053 = vmatprep.subr.bf16.mxu0 %v3172
        %5054 = vmatpush1.bf16.msra.mxu0 %v3171
        %5055 = vmatprep.subr.bf16.mxu0 %v3204
        %5056 = vmatpush1.bf16.msra.mxu0 %v3203
        %5057 = vmatprep.subr.bf16.mxu0 %v3236
        %5058 = vmatpush1.bf16.msra.mxu0 %v3235
        %5059 = vmatprep.subr.bf16.mxu0 %v3268
        %5060 = vmatpush1.bf16.msra.mxu0 %v3267
        %5061 = vmatprep.subr.bf16.mxu0 %v3300
        %5062 = vmatpush1.bf16.msra.mxu0 %v3299
        %5063 = vmatprep.subr.bf16.mxu0 %v3332
        %5064 = vmatpush1.bf16.msra.mxu0 %v3331
        %5065 = vmatprep.subr.bf16.mxu0 %v3364
        %5066 = vmatpush1.bf16.msra.mxu0 %v3363
        %5067 = vmatprep.mubr.bf16.mxu0 %v3427
        %5068 = vmatmul.mubr.bf16.gmra.mrb[0].mxu0 %v3425
        %v5069 = vpop.f32.mrb[0].mxu0
        %v5070 = vadd.f32 %v5029, %v5069
        %v5071 = vpop.f32.mrb[0].mxu0
        %v5072 = vadd.f32 %v5031, %v5071
        %v5073 = vpop.f32.mrb[0].mxu0
        %v5074 = vpop.f32.mrb[0].mxu0
        %5075 = vdwg.mxu0
        %5076 = vmatprep.subr.bf16.mxu0 %v1350
        %5077 = vmatpush1.bf16.msra.mxu0 %v1349
        %5078 = vmatprep.subr.bf16.mxu0 %v1382
        %5079 = vmatpush1.bf16.msra.mxu0 %v1381
        %5080 = vmatprep.subr.bf16.mxu0 %v1414
        %5081 = vmatpush1.bf16.msra.mxu0 %v1413
        %5082 = vmatprep.subr.bf16.mxu0 %v1446
        %5083 = vmatpush1.bf16.msra.mxu0 %v1445
        %5084 = vmatprep.subr.bf16.mxu0 %v1478
        %5085 = vmatpush1.bf16.msra.mxu0 %v1477
        %5086 = vmatprep.subr.bf16.mxu0 %v1510
        %5087 = vmatpush1.bf16.msra.mxu0 %v1509
        %5088 = vmatprep.subr.bf16.mxu0 %v1542
        %5089 = vmatpush1.bf16.msra.mxu0 %v1541
        %5090 = vmatprep.subr.bf16.mxu0 %v1574
        %5091 = vmatpush1.bf16.msra.mxu0 %v1573
        %5092 = vmatprep.subr.bf16.mxu0 %v1606
        %5093 = vmatpush1.bf16.msra.mxu0 %v1605
        %5094 = vmatprep.subr.bf16.mxu0 %v1638
        %5095 = vmatpush1.bf16.msra.mxu0 %v1637
        %5096 = vmatprep.subr.bf16.mxu0 %v1670
        %5097 = vmatpush1.bf16.msra.mxu0 %v1669
        %5098 = vmatprep.subr.bf16.mxu0 %v1702
        %5099 = vmatpush1.bf16.msra.mxu0 %v1701
        %5100 = vmatprep.subr.bf16.mxu0 %v1734
        %5101 = vmatpush1.bf16.msra.mxu0 %v1733
        %5102 = vmatprep.subr.bf16.mxu0 %v1766
        %5103 = vmatpush1.bf16.msra.mxu0 %v1765
        %5104 = vmatprep.subr.bf16.mxu0 %v1798
        %5105 = vmatpush1.bf16.msra.mxu0 %v1797
        %5106 = vmatprep.subr.bf16.mxu0 %v1830
        %5107 = vmatpush1.bf16.msra.mxu0 %v1829
        %5108 = vmatprep.mubr.bf16.mxu0 %v3416
        %5109 = vmatmul.mubr.bf16.gmra.mrb[0].mxu0 %v3402
        %v5110 = vpop.f32.mrb[0].mxu0
        %v5111 = vadd.f32 0.0, %v5110
        %v5112 = vpop.f32.mrb[0].mxu0
        %v5113 = vadd.f32 0.0, %v5112
        %v5114 = vpop.f32.mrb[0].mxu0
        %v5115 = vpop.f32.mrb[0].mxu0
        %5116 = vdwg.mxu0
        %5117 = vmatprep.subr.bf16.mxu0 %v1862
        %5118 = vmatpush1.bf16.msra.mxu0 %v1861
        %5119 = vmatprep.subr.bf16.mxu0 %v1894
        %5120 = vmatpush1.bf16.msra.mxu0 %v1893
        %5121 = vmatprep.subr.bf16.mxu0 %v1926
        %5122 = vmatpush1.bf16.msra.mxu0 %v1925
        %5123 = vmatprep.subr.bf16.mxu0 %v1958
        %5124 = vmatpush1.bf16.msra.mxu0 %v1957
        %5125 = vmatprep.subr.bf16.mxu0 %v1990
        %5126 = vmatpush1.bf16.msra.mxu0 %v1989
        %5127 = vmatprep.subr.bf16.mxu0 %v2022
        %5128 = vmatpush1.bf16.msra.mxu0 %v2021
        %5129 = vmatprep.subr.bf16.mxu0 %v2054
        %5130 = vmatpush1.bf16.msra.mxu0 %v2053
        %5131 = vmatprep.subr.bf16.mxu0 %v2086
        %5132 = vmatpush1.bf16.msra.mxu0 %v2085
        %5133 = vmatprep.subr.bf16.mxu0 %v2118
        %5134 = vmatpush1.bf16.msra.mxu0 %v2117
        %5135 = vmatprep.subr.bf16.mxu0 %v2150
        %5136 = vmatpush1.bf16.msra.mxu0 %v2149
        %5137 = vmatprep.subr.bf16.mxu0 %v2182
        %5138 = vmatpush1.bf16.msra.mxu0 %v2181
        %5139 = vmatprep.subr.bf16.mxu0 %v2214
        %5140 = vmatpush1.bf16.msra.mxu0 %v2213
        %5141 = vmatprep.subr.bf16.mxu0 %v2246
        %5142 = vmatpush1.bf16.msra.mxu0 %v2245
        %5143 = vmatprep.subr.bf16.mxu0 %v2278
        %5144 = vmatpush1.bf16.msra.mxu0 %v2277
        %5145 = vmatprep.subr.bf16.mxu0 %v2310
        %5146 = vmatpush1.bf16.msra.mxu0 %v2309
        %5147 = vmatprep.subr.bf16.mxu0 %v2342
        %5148 = vmatpush1.bf16.msra.mxu0 %v2341
        %5149 = vmatprep.mubr.bf16.mxu0 %v3426
        %5150 = vmatmul.mubr.bf16.gmra.mrb[0].mxu0 %v3424
        %v5151 = vpop.f32.mrb[0].mxu0
        %v5152 = vadd.f32 %v5111, %v5151
        %v5153 = vpop.f32.mrb[0].mxu0
        %v5154 = vadd.f32 %v5113, %v5153
        %v5155 = vpop.f32.mrb[0].mxu0
        %v5156 = vpop.f32.mrb[0].mxu0
        %5157 = vdwg.mxu0
        %5158 = vmatprep.subr.bf16.mxu0 %v2374
        %5159 = vmatpush1.bf16.msra.mxu0 %v2373
        %5160 = vmatprep.subr.bf16.mxu0 %v2406
        %5161 = vmatpush1.bf16.msra.mxu0 %v2405
        %5162 = vmatprep.subr.bf16.mxu0 %v2438
        %5163 = vmatpush1.bf16.msra.mxu0 %v2437
        %5164 = vmatprep.subr.bf16.mxu0 %v2470
        %5165 = vmatpush1.bf16.msra.mxu0 %v2469
        %5166 = vmatprep.subr.bf16.mxu0 %v2502
        %5167 = vmatpush1.bf16.msra.mxu0 %v2501
        %5168 = vmatprep.subr.bf16.mxu0 %v2534
        %5169 = vmatpush1.bf16.msra.mxu0 %v2533
        %5170 = vmatprep.subr.bf16.mxu0 %v2566
        %5171 = vmatpush1.bf16.msra.mxu0 %v2565
        %5172 = vmatprep.subr.bf16.mxu0 %v2598
        %5173 = vmatpush1.bf16.msra.mxu0 %v2597
        %5174 = vmatprep.subr.bf16.mxu0 %v2630
        %5175 = vmatpush1.bf16.msra.mxu0 %v2629
        %5176 = vmatprep.subr.bf16.mxu0 %v2662
        %5177 = vmatpush1.bf16.msra.mxu0 %v2661
        %5178 = vmatprep.subr.bf16.mxu0 %v2694
        %5179 = vmatpush1.bf16.msra.mxu0 %v2693
        %5180 = vmatprep.subr.bf16.mxu0 %v2726
        %5181 = vmatpush1.bf16.msra.mxu0 %v2725
        %5182 = vmatprep.subr.bf16.mxu0 %v2758
        %5183 = vmatpush1.bf16.msra.mxu0 %v2757
        %5184 = vmatprep.subr.bf16.mxu0 %v2790
        %5185 = vmatpush1.bf16.msra.mxu0 %v2789
        %5186 = vmatprep.subr.bf16.mxu0 %v2822
        %5187 = vmatpush1.bf16.msra.mxu0 %v2821
        %5188 = vmatprep.subr.bf16.mxu0 %v2854
        %5189 = vmatpush1.bf16.msra.mxu0 %v2853
        %5190 = vmatprep.mubr.bf16.mxu0 %v3423
        %5191 = vmatmul.mubr.bf16.gmra.mrb[0].mxu0 %v3409
        %v5192 = vpop.f32.mrb[0].mxu0
        %v5193 = vadd.f32 %v5152, %v5192
        %v5194 = vpop.f32.mrb[0].mxu0
        %v5195 = vadd.f32 %v5154, %v5194
        %v5196 = vpop.f32.mrb[0].mxu0
        %v5197 = vpop.f32.mrb[0].mxu0
        %5198 = vdwg.mxu0
        %5199 = vmatprep.subr.bf16.mxu0 %v2886
        %5200 = vmatpush1.bf16.msra.mxu0 %v2885
        %5201 = vmatprep.subr.bf16.mxu0 %v2918
        %5202 = vmatpush1.bf16.msra.mxu0 %v2917
        %5203 = vmatprep.subr.bf16.mxu0 %v2950
        %5204 = vmatpush1.bf16.msra.mxu0 %v2949
        %5205 = vmatprep.subr.bf16.mxu0 %v2982
        %5206 = vmatpush1.bf16.msra.mxu0 %v2981
        %5207 = vmatprep.subr.bf16.mxu0 %v3014
        %5208 = vmatpush1.bf16.msra.mxu0 %v3013
        %5209 = vmatprep.subr.bf16.mxu0 %v3046
        %5210 = vmatpush1.bf16.msra.mxu0 %v3045
        %5211 = vmatprep.subr.bf16.mxu0 %v3078
        %5212 = vmatpush1.bf16.msra.mxu0 %v3077
        %5213 = vmatprep.subr.bf16.mxu0 %v3110
        %5214 = vmatpush1.bf16.msra.mxu0 %v3109
        %5215 = vmatprep.subr.bf16.mxu0 %v3142
        %5216 = vmatpush1.bf16.msra.mxu0 %v3141
        %5217 = vmatprep.subr.bf16.mxu0 %v3174
        %5218 = vmatpush1.bf16.msra.mxu0 %v3173
        %5219 = vmatprep.subr.bf16.mxu0 %v3206
        %5220 = vmatpush1.bf16.msra.mxu0 %v3205
        %5221 = vmatprep.subr.bf16.mxu0 %v3238
        %5222 = vmatpush1.bf16.msra.mxu0 %v3237
        %5223 = vmatprep.subr.bf16.mxu0 %v3270
        %5224 = vmatpush1.bf16.msra.mxu0 %v3269
        %5225 = vmatprep.subr.bf16.mxu0 %v3302
        %5226 = vmatpush1.bf16.msra.mxu0 %v3301
        %5227 = vmatprep.subr.bf16.mxu0 %v3334
        %5228 = vmatpush1.bf16.msra.mxu0 %v3333
        %5229 = vmatprep.subr.bf16.mxu0 %v3366
        %5230 = vmatpush1.bf16.msra.mxu0 %v3365
        %5231 = vmatprep.mubr.bf16.mxu0 %v3427
        %5232 = vmatmul.mubr.bf16.gmra.mrb[0].mxu0 %v3425
        %v5233 = vpop.f32.mrb[0].mxu0
        %v5234 = vadd.f32 %v5193, %v5233
        %v5235 = vpop.f32.mrb[0].mxu0
        %v5236 = vadd.f32 %v5195, %v5235
        %v5237 = vpop.f32.mrb[0].mxu0
        %v5238 = vpop.f32.mrb[0].mxu0
        %5239 = vdwg.mxu0
        %5240 = vmatprep.subr.bf16.mxu0 %v1352
        %5241 = vmatpush1.bf16.msra.mxu0 %v1351
        %5242 = vmatprep.subr.bf16.mxu0 %v1384
        %5243 = vmatpush1.bf16.msra.mxu0 %v1383
        %5244 = vmatprep.subr.bf16.mxu0 %v1416
        %5245 = vmatpush1.bf16.msra.mxu0 %v1415
        %5246 = vmatprep.subr.bf16.mxu0 %v1448
        %5247 = vmatpush1.bf16.msra.mxu0 %v1447
        %5248 = vmatprep.subr.bf16.mxu0 %v1480
        %5249 = vmatpush1.bf16.msra.mxu0 %v1479
        %5250 = vmatprep.subr.bf16.mxu0 %v1512
        %5251 = vmatpush1.bf16.msra.mxu0 %v1511
        %5252 = vmatprep.subr.bf16.mxu0 %v1544
        %5253 = vmatpush1.bf16.msra.mxu0 %v1543
        %5254 = vmatprep.subr.bf16.mxu0 %v1576
        %5255 = vmatpush1.bf16.msra.mxu0 %v1575
        %5256 = vmatprep.subr.bf16.mxu0 %v1608
        %5257 = vmatpush1.bf16.msra.mxu0 %v1607
        %5258 = vmatprep.subr.bf16.mxu0 %v1640
        %5259 = vmatpush1.bf16.msra.mxu0 %v1639
        %5260 = vmatprep.subr.bf16.mxu0 %v1672
        %5261 = vmatpush1.bf16.msra.mxu0 %v1671
        %5262 = vmatprep.subr.bf16.mxu0 %v1704
        %5263 = vmatpush1.bf16.msra.mxu0 %v1703
        %5264 = vmatprep.subr.bf16.mxu0 %v1736
        %5265 = vmatpush1.bf16.msra.mxu0 %v1735
        %5266 = vmatprep.subr.bf16.mxu0 %v1768
        %5267 = vmatpush1.bf16.msra.mxu0 %v1767
        %5268 = vmatprep.subr.bf16.mxu0 %v1800
        %5269 = vmatpush1.bf16.msra.mxu0 %v1799
        %5270 = vmatprep.subr.bf16.mxu0 %v1832
        %5271 = vmatpush1.bf16.msra.mxu0 %v1831
        %5272 = vmatprep.mubr.bf16.mxu0 %v3416
        %5273 = vmatmul.mubr.bf16.gmra.mrb[0].mxu0 %v3402
        %v5274 = vpop.f32.mrb[0].mxu0
        %v5275 = vadd.f32 0.0, %v5274
        %v5276 = vpop.f32.mrb[0].mxu0
        %v5277 = vadd.f32 0.0, %v5276
        %v5278 = vpop.f32.mrb[0].mxu0
        %v5279 = vpop.f32.mrb[0].mxu0
        %5280 = vdwg.mxu0
        %5281 = vmatprep.subr.bf16.mxu0 %v1864
        %5282 = vmatpush1.bf16.msra.mxu0 %v1863
        %5283 = vmatprep.subr.bf16.mxu0 %v1896
        %5284 = vmatpush1.bf16.msra.mxu0 %v1895
        %5285 = vmatprep.subr.bf16.mxu0 %v1928
        %5286 = vmatpush1.bf16.msra.mxu0 %v1927
        %5287 = vmatprep.subr.bf16.mxu0 %v1960
        %5288 = vmatpush1.bf16.msra.mxu0 %v1959
        %5289 = vmatprep.subr.bf16.mxu0 %v1992
        %5290 = vmatpush1.bf16.msra.mxu0 %v1991
        %5291 = vmatprep.subr.bf16.mxu0 %v2024
        %5292 = vmatpush1.bf16.msra.mxu0 %v2023
        %5293 = vmatprep.subr.bf16.mxu0 %v2056
        %5294 = vmatpush1.bf16.msra.mxu0 %v2055
        %5295 = vmatprep.subr.bf16.mxu0 %v2088
        %5296 = vmatpush1.bf16.msra.mxu0 %v2087
        %5297 = vmatprep.subr.bf16.mxu0 %v2120
        %5298 = vmatpush1.bf16.msra.mxu0 %v2119
        %5299 = vmatprep.subr.bf16.mxu0 %v2152
        %5300 = vmatpush1.bf16.msra.mxu0 %v2151
        %5301 = vmatprep.subr.bf16.mxu0 %v2184
        %5302 = vmatpush1.bf16.msra.mxu0 %v2183
        %5303 = vmatprep.subr.bf16.mxu0 %v2216
        %5304 = vmatpush1.bf16.msra.mxu0 %v2215
        %5305 = vmatprep.subr.bf16.mxu0 %v2248
        %5306 = vmatpush1.bf16.msra.mxu0 %v2247
        %5307 = vmatprep.subr.bf16.mxu0 %v2280
        %5308 = vmatpush1.bf16.msra.mxu0 %v2279
        %5309 = vmatprep.subr.bf16.mxu0 %v2312
        %5310 = vmatpush1.bf16.msra.mxu0 %v2311
        %5311 = vmatprep.subr.bf16.mxu0 %v2344
        %5312 = vmatpush1.bf16.msra.mxu0 %v2343
        %5313 = vmatprep.mubr.bf16.mxu0 %v3426
        %5314 = vmatmul.mubr.bf16.gmra.mrb[0].mxu0 %v3424
        %v5315 = vpop.f32.mrb[0].mxu0
        %v5316 = vadd.f32 %v5275, %v5315
        %v5317 = vpop.f32.mrb[0].mxu0
        %v5318 = vadd.f32 %v5277, %v5317
        %v5319 = vpop.f32.mrb[0].mxu0
        %v5320 = vpop.f32.mrb[0].mxu0
        %5321 = vdwg.mxu0
        %5322 = vmatprep.subr.bf16.mxu0 %v2376
        %5323 = vmatpush1.bf16.msra.mxu0 %v2375
        %5324 = vmatprep.subr.bf16.mxu0 %v2408
        %5325 = vmatpush1.bf16.msra.mxu0 %v2407
        %5326 = vmatprep.subr.bf16.mxu0 %v2440
        %5327 = vmatpush1.bf16.msra.mxu0 %v2439
        %5328 = vmatprep.subr.bf16.mxu0 %v2472
        %5329 = vmatpush1.bf16.msra.mxu0 %v2471
        %5330 = vmatprep.subr.bf16.mxu0 %v2504
        %5331 = vmatpush1.bf16.msra.mxu0 %v2503
        %5332 = vmatprep.subr.bf16.mxu0 %v2536
        %5333 = vmatpush1.bf16.msra.mxu0 %v2535
        %5334 = vmatprep.subr.bf16.mxu0 %v2568
        %5335 = vmatpush1.bf16.msra.mxu0 %v2567
        %5336 = vmatprep.subr.bf16.mxu0 %v2600
        %5337 = vmatpush1.bf16.msra.mxu0 %v2599
        %5338 = vmatprep.subr.bf16.mxu0 %v2632
        %5339 = vmatpush1.bf16.msra.mxu0 %v2631
        %5340 = vmatprep.subr.bf16.mxu0 %v2664
        %5341 = vmatpush1.bf16.msra.mxu0 %v2663
        %5342 = vmatprep.subr.bf16.mxu0 %v2696
        %5343 = vmatpush1.bf16.msra.mxu0 %v2695
        %5344 = vmatprep.subr.bf16.mxu0 %v2728
        %5345 = vmatpush1.bf16.msra.mxu0 %v2727
        %5346 = vmatprep.subr.bf16.mxu0 %v2760
        %5347 = vmatpush1.bf16.msra.mxu0 %v2759
        %5348 = vmatprep.subr.bf16.mxu0 %v2792
        %5349 = vmatpush1.bf16.msra.mxu0 %v2791
        %5350 = vmatprep.subr.bf16.mxu0 %v2824
        %5351 = vmatpush1.bf16.msra.mxu0 %v2823
        %5352 = vmatprep.subr.bf16.mxu0 %v2856
        %5353 = vmatpush1.bf16.msra.mxu0 %v2855
        %5354 = vmatprep.mubr.bf16.mxu0 %v3423
        %5355 = vmatmul.mubr.bf16.gmra.mrb[0].mxu0 %v3409
        %v5356 = vpop.f32.mrb[0].mxu0
        %v5357 = vadd.f32 %v5316, %v5356
        %v5358 = vpop.f32.mrb[0].mxu0
        %v5359 = vadd.f32 %v5318, %v5358
        %v5360 = vpop.f32.mrb[0].mxu0
        %v5361 = vpop.f32.mrb[0].mxu0
        %5362 = vdwg.mxu0
        %5363 = vmatprep.subr.bf16.mxu0 %v2888
        %5364 = vmatpush1.bf16.msra.mxu0 %v2887
        %5365 = vmatprep.subr.bf16.mxu0 %v2920
        %5366 = vmatpush1.bf16.msra.mxu0 %v2919
        %5367 = vmatprep.subr.bf16.mxu0 %v2952
        %5368 = vmatpush1.bf16.msra.mxu0 %v2951
        %5369 = vmatprep.subr.bf16.mxu0 %v2984
        %5370 = vmatpush1.bf16.msra.mxu0 %v2983
        %5371 = vmatprep.subr.bf16.mxu0 %v3016
        %5372 = vmatpush1.bf16.msra.mxu0 %v3015
        %5373 = vmatprep.subr.bf16.mxu0 %v3048
        %5374 = vmatpush1.bf16.msra.mxu0 %v3047
        %5375 = vmatprep.subr.bf16.mxu0 %v3080
        %5376 = vmatpush1.bf16.msra.mxu0 %v3079
        %5377 = vmatprep.subr.bf16.mxu0 %v3112
        %5378 = vmatpush1.bf16.msra.mxu0 %v3111
        %5379 = vmatprep.subr.bf16.mxu0 %v3144
        %5380 = vmatpush1.bf16.msra.mxu0 %v3143
        %5381 = vmatprep.subr.bf16.mxu0 %v3176
        %5382 = vmatpush1.bf16.msra.mxu0 %v3175
        %5383 = vmatprep.subr.bf16.mxu0 %v3208
        %5384 = vmatpush1.bf16.msra.mxu0 %v3207
        %5385 = vmatprep.subr.bf16.mxu0 %v3240
        %5386 = vmatpush1.bf16.msra.mxu0 %v3239
        %5387 = vmatprep.subr.bf16.mxu0 %v3272
        %5388 = vmatpush1.bf16.msra.mxu0 %v3271
        %5389 = vmatprep.subr.bf16.mxu0 %v3304
        %5390 = vmatpush1.bf16.msra.mxu0 %v3303
        %5391 = vmatprep.subr.bf16.mxu0 %v3336
        %5392 = vmatpush1.bf16.msra.mxu0 %v3335
        %5393 = vmatprep.subr.bf16.mxu0 %v3368
        %5394 = vmatpush1.bf16.msra.mxu0 %v3367
        %5395 = vmatprep.mubr.bf16.mxu0 %v3427
        %5396 = vmatmul.mubr.bf16.gmra.mrb[0].mxu0 %v3425
        %v5397 = vpop.f32.mrb[0].mxu0
        %v5398 = vadd.f32 %v5357, %v5397
        %v5399 = vpop.f32.mrb[0].mxu0
        %v5400 = vadd.f32 %v5359, %v5399
        %v5401 = vpop.f32.mrb[0].mxu0
        %v5402 = vpop.f32.mrb[0].mxu0
        %5403 = vdwg.mxu0
        %5404 = vmatprep.subr.bf16.mxu0 %v1354
        %5405 = vmatpush1.bf16.msra.mxu0 %v1353
        %5406 = vmatprep.subr.bf16.mxu0 %v1386
        %5407 = vmatpush1.bf16.msra.mxu0 %v1385
        %5408 = vmatprep.subr.bf16.mxu0 %v1418
        %5409 = vmatpush1.bf16.msra.mxu0 %v1417
        %5410 = vmatprep.subr.bf16.mxu0 %v1450
        %5411 = vmatpush1.bf16.msra.mxu0 %v1449
        %5412 = vmatprep.subr.bf16.mxu0 %v1482
        %5413 = vmatpush1.bf16.msra.mxu0 %v1481
        %5414 = vmatprep.subr.bf16.mxu0 %v1514
        %5415 = vmatpush1.bf16.msra.mxu0 %v1513
        %5416 = vmatprep.subr.bf16.mxu0 %v1546
        %5417 = vmatpush1.bf16.msra.mxu0 %v1545
        %5418 = vmatprep.subr.bf16.mxu0 %v1578
        %5419 = vmatpush1.bf16.msra.mxu0 %v1577
        %5420 = vmatprep.subr.bf16.mxu0 %v1610
        %5421 = vmatpush1.bf16.msra.mxu0 %v1609
        %5422 = vmatprep.subr.bf16.mxu0 %v1642
        %5423 = vmatpush1.bf16.msra.mxu0 %v1641
        %5424 = vmatprep.subr.bf16.mxu0 %v1674
        %5425 = vmatpush1.bf16.msra.mxu0 %v1673
        %5426 = vmatprep.subr.bf16.mxu0 %v1706
        %5427 = vmatpush1.bf16.msra.mxu0 %v1705
        %5428 = vmatprep.subr.bf16.mxu0 %v1738
        %5429 = vmatpush1.bf16.msra.mxu0 %v1737
        %5430 = vmatprep.subr.bf16.mxu0 %v1770
        %5431 = vmatpush1.bf16.msra.mxu0 %v1769
        %5432 = vmatprep.subr.bf16.mxu0 %v1802
        %5433 = vmatpush1.bf16.msra.mxu0 %v1801
        %5434 = vmatprep.subr.bf16.mxu0 %v1834
        %5435 = vmatpush1.bf16.msra.mxu0 %v1833
        %5436 = vmatprep.mubr.bf16.mxu0 %v3416
        %5437 = vmatmul.mubr.bf16.gmra.mrb[0].mxu0 %v3402
        %v5438 = vpop.f32.mrb[0].mxu0
        %v5439 = vadd.f32 0.0, %v5438
        %v5440 = vpop.f32.mrb[0].mxu0
        %v5441 = vadd.f32 0.0, %v5440
        %v5442 = vpop.f32.mrb[0].mxu0
        %v5443 = vpop.f32.mrb[0].mxu0
        %5444 = vdwg.mxu0
        %5445 = vmatprep.subr.bf16.mxu0 %v1866
        %5446 = vmatpush1.bf16.msra.mxu0 %v1865
        %5447 = vmatprep.subr.bf16.mxu0 %v1898
        %5448 = vmatpush1.bf16.msra.mxu0 %v1897
        %5449 = vmatprep.subr.bf16.mxu0 %v1930
        %5450 = vmatpush1.bf16.msra.mxu0 %v1929
        %5451 = vmatprep.subr.bf16.mxu0 %v1962
        %5452 = vmatpush1.bf16.msra.mxu0 %v1961
        %5453 = vmatprep.subr.bf16.mxu0 %v1994
        %5454 = vmatpush1.bf16.msra.mxu0 %v1993
        %5455 = vmatprep.subr.bf16.mxu0 %v2026
        %5456 = vmatpush1.bf16.msra.mxu0 %v2025
        %5457 = vmatprep.subr.bf16.mxu0 %v2058
        %5458 = vmatpush1.bf16.msra.mxu0 %v2057
        %5459 = vmatprep.subr.bf16.mxu0 %v2090
        %5460 = vmatpush1.bf16.msra.mxu0 %v2089
        %5461 = vmatprep.subr.bf16.mxu0 %v2122
        %5462 = vmatpush1.bf16.msra.mxu0 %v2121
        %5463 = vmatprep.subr.bf16.mxu0 %v2154
        %5464 = vmatpush1.bf16.msra.mxu0 %v2153
        %5465 = vmatprep.subr.bf16.mxu0 %v2186
        %5466 = vmatpush1.bf16.msra.mxu0 %v2185
        %5467 = vmatprep.subr.bf16.mxu0 %v2218
        %5468 = vmatpush1.bf16.msra.mxu0 %v2217
        %5469 = vmatprep.subr.bf16.mxu0 %v2250
        %5470 = vmatpush1.bf16.msra.mxu0 %v2249
        %5471 = vmatprep.subr.bf16.mxu0 %v2282
        %5472 = vmatpush1.bf16.msra.mxu0 %v2281
        %5473 = vmatprep.subr.bf16.mxu0 %v2314
        %5474 = vmatpush1.bf16.msra.mxu0 %v2313
        %5475 = vmatprep.subr.bf16.mxu0 %v2346
        %5476 = vmatpush1.bf16.msra.mxu0 %v2345
        %5477 = vmatprep.mubr.bf16.mxu0 %v3426
        %5478 = vmatmul.mubr.bf16.gmra.mrb[0].mxu0 %v3424
        %v5479 = vpop.f32.mrb[0].mxu0
        %v5480 = vadd.f32 %v5439, %v5479
        %v5481 = vpop.f32.mrb[0].mxu0
        %v5482 = vadd.f32 %v5441, %v5481
        %v5483 = vpop.f32.mrb[0].mxu0
        %v5484 = vpop.f32.mrb[0].mxu0
        %5485 = vdwg.mxu0
        %5486 = vmatprep.subr.bf16.mxu0 %v2378
        %5487 = vmatpush1.bf16.msra.mxu0 %v2377
        %5488 = vmatprep.subr.bf16.mxu0 %v2410
        %5489 = vmatpush1.bf16.msra.mxu0 %v2409
        %5490 = vmatprep.subr.bf16.mxu0 %v2442
        %5491 = vmatpush1.bf16.msra.mxu0 %v2441
        %5492 = vmatprep.subr.bf16.mxu0 %v2474
        %5493 = vmatpush1.bf16.msra.mxu0 %v2473
        %5494 = vmatprep.subr.bf16.mxu0 %v2506
        %5495 = vmatpush1.bf16.msra.mxu0 %v2505
        %5496 = vmatprep.subr.bf16.mxu0 %v2538
        %5497 = vmatpush1.bf16.msra.mxu0 %v2537
        %5498 = vmatprep.subr.bf16.mxu0 %v2570
        %5499 = vmatpush1.bf16.msra.mxu0 %v2569
        %5500 = vmatprep.subr.bf16.mxu0 %v2602
        %5501 = vmatpush1.bf16.msra.mxu0 %v2601
        %5502 = vmatprep.subr.bf16.mxu0 %v2634
        %5503 = vmatpush1.bf16.msra.mxu0 %v2633
        %5504 = vmatprep.subr.bf16.mxu0 %v2666
        %5505 = vmatpush1.bf16.msra.mxu0 %v2665
        %5506 = vmatprep.subr.bf16.mxu0 %v2698
        %5507 = vmatpush1.bf16.msra.mxu0 %v2697
        %5508 = vmatprep.subr.bf16.mxu0 %v2730
        %5509 = vmatpush1.bf16.msra.mxu0 %v2729
        %5510 = vmatprep.subr.bf16.mxu0 %v2762
        %5511 = vmatpush1.bf16.msra.mxu0 %v2761
        %5512 = vmatprep.subr.bf16.mxu0 %v2794
        %5513 = vmatpush1.bf16.msra.mxu0 %v2793
        %5514 = vmatprep.subr.bf16.mxu0 %v2826
        %5515 = vmatpush1.bf16.msra.mxu0 %v2825
        %5516 = vmatprep.subr.bf16.mxu0 %v2858
        %5517 = vmatpush1.bf16.msra.mxu0 %v2857
        %5518 = vmatprep.mubr.bf16.mxu0 %v3423
        %5519 = vmatmul.mubr.bf16.gmra.mrb[0].mxu0 %v3409
        %v5520 = vpop.f32.mrb[0].mxu0
        %v5521 = vadd.f32 %v5480, %v5520
        %v5522 = vpop.f32.mrb[0].mxu0
        %v5523 = vadd.f32 %v5482, %v5522
        %v5524 = vpop.f32.mrb[0].mxu0
        %v5525 = vpop.f32.mrb[0].mxu0
        %5526 = vdwg.mxu0
        %5527 = vmatprep.subr.bf16.mxu0 %v2890
        %5528 = vmatpush1.bf16.msra.mxu0 %v2889
        %5529 = vmatprep.subr.bf16.mxu0 %v2922
        %5530 = vmatpush1.bf16.msra.mxu0 %v2921
        %5531 = vmatprep.subr.bf16.mxu0 %v2954
        %5532 = vmatpush1.bf16.msra.mxu0 %v2953
        %5533 = vmatprep.subr.bf16.mxu0 %v2986
        %5534 = vmatpush1.bf16.msra.mxu0 %v2985
        %5535 = vmatprep.subr.bf16.mxu0 %v3018
        %5536 = vmatpush1.bf16.msra.mxu0 %v3017
        %5537 = vmatprep.subr.bf16.mxu0 %v3050
        %5538 = vmatpush1.bf16.msra.mxu0 %v3049
        %5539 = vmatprep.subr.bf16.mxu0 %v3082
        %5540 = vmatpush1.bf16.msra.mxu0 %v3081
        %5541 = vmatprep.subr.bf16.mxu0 %v3114
        %5542 = vmatpush1.bf16.msra.mxu0 %v3113
        %5543 = vmatprep.subr.bf16.mxu0 %v3146
        %5544 = vmatpush1.bf16.msra.mxu0 %v3145
        %5545 = vmatprep.subr.bf16.mxu0 %v3178
        %5546 = vmatpush1.bf16.msra.mxu0 %v3177
        %5547 = vmatprep.subr.bf16.mxu0 %v3210
        %5548 = vmatpush1.bf16.msra.mxu0 %v3209
        %5549 = vmatprep.subr.bf16.mxu0 %v3242
        %5550 = vmatpush1.bf16.msra.mxu0 %v3241
        %5551 = vmatprep.subr.bf16.mxu0 %v3274
        %5552 = vmatpush1.bf16.msra.mxu0 %v3273
        %5553 = vmatprep.subr.bf16.mxu0 %v3306
        %5554 = vmatpush1.bf16.msra.mxu0 %v3305
        %5555 = vmatprep.subr.bf16.mxu0 %v3338
        %5556 = vmatpush1.bf16.msra.mxu0 %v3337
        %5557 = vmatprep.subr.bf16.mxu0 %v3370
        %5558 = vmatpush1.bf16.msra.mxu0 %v3369
        %5559 = vmatprep.mubr.bf16.mxu0 %v3427
        %5560 = vmatmul.mubr.bf16.gmra.mrb[0].mxu0 %v3425
        %v5561 = vpop.f32.mrb[0].mxu0
        %v5562 = vadd.f32 %v5521, %v5561
        %v5563 = vpop.f32.mrb[0].mxu0
        %v5564 = vadd.f32 %v5523, %v5563
        %v5565 = vpop.f32.mrb[0].mxu0
        %v5566 = vpop.f32.mrb[0].mxu0
        %5567 = vdwg.mxu0
        %5568 = vmatprep.subr.bf16.mxu0 %v1356
        %5569 = vmatpush1.bf16.msra.mxu0 %v1355
        %5570 = vmatprep.subr.bf16.mxu0 %v1388
        %5571 = vmatpush1.bf16.msra.mxu0 %v1387
        %5572 = vmatprep.subr.bf16.mxu0 %v1420
        %5573 = vmatpush1.bf16.msra.mxu0 %v1419
        %5574 = vmatprep.subr.bf16.mxu0 %v1452
        %5575 = vmatpush1.bf16.msra.mxu0 %v1451
        %5576 = vmatprep.subr.bf16.mxu0 %v1484
        %5577 = vmatpush1.bf16.msra.mxu0 %v1483
        %5578 = vmatprep.subr.bf16.mxu0 %v1516
        %5579 = vmatpush1.bf16.msra.mxu0 %v1515
        %5580 = vmatprep.subr.bf16.mxu0 %v1548
        %5581 = vmatpush1.bf16.msra.mxu0 %v1547
        %5582 = vmatprep.subr.bf16.mxu0 %v1580
        %5583 = vmatpush1.bf16.msra.mxu0 %v1579
        %5584 = vmatprep.subr.bf16.mxu0 %v1612
        %5585 = vmatpush1.bf16.msra.mxu0 %v1611
        %5586 = vmatprep.subr.bf16.mxu0 %v1644
        %5587 = vmatpush1.bf16.msra.mxu0 %v1643
        %5588 = vmatprep.subr.bf16.mxu0 %v1676
        %5589 = vmatpush1.bf16.msra.mxu0 %v1675
        %5590 = vmatprep.subr.bf16.mxu0 %v1708
        %5591 = vmatpush1.bf16.msra.mxu0 %v1707
        %5592 = vmatprep.subr.bf16.mxu0 %v1740
        %5593 = vmatpush1.bf16.msra.mxu0 %v1739
        %5594 = vmatprep.subr.bf16.mxu0 %v1772
        %5595 = vmatpush1.bf16.msra.mxu0 %v1771
        %5596 = vmatprep.subr.bf16.mxu0 %v1804
        %5597 = vmatpush1.bf16.msra.mxu0 %v1803
        %5598 = vmatprep.subr.bf16.mxu0 %v1836
        %5599 = vmatpush1.bf16.msra.mxu0 %v1835
        %5600 = vmatprep.mubr.bf16.mxu0 %v3416
        %5601 = vmatmul.mubr.bf16.gmra.mrb[0].mxu0 %v3402
        %v5602 = vpop.f32.mrb[0].mxu0
        %v5603 = vadd.f32 0.0, %v5602
        %v5604 = vpop.f32.mrb[0].mxu0
        %v5605 = vadd.f32 0.0, %v5604
        %v5606 = vpop.f32.mrb[0].mxu0
        %v5607 = vpop.f32.mrb[0].mxu0
        %5608 = vdwg.mxu0
        %5609 = vmatprep.subr.bf16.mxu0 %v1868
        %5610 = vmatpush1.bf16.msra.mxu0 %v1867
        %5611 = vmatprep.subr.bf16.mxu0 %v1900
        %5612 = vmatpush1.bf16.msra.mxu0 %v1899
        %5613 = vmatprep.subr.bf16.mxu0 %v1932
        %5614 = vmatpush1.bf16.msra.mxu0 %v1931
        %5615 = vmatprep.subr.bf16.mxu0 %v1964
        %5616 = vmatpush1.bf16.msra.mxu0 %v1963
        %5617 = vmatprep.subr.bf16.mxu0 %v1996
        %5618 = vmatpush1.bf16.msra.mxu0 %v1995
        %5619 = vmatprep.subr.bf16.mxu0 %v2028
        %5620 = vmatpush1.bf16.msra.mxu0 %v2027
        %5621 = vmatprep.subr.bf16.mxu0 %v2060
        %5622 = vmatpush1.bf16.msra.mxu0 %v2059
        %5623 = vmatprep.subr.bf16.mxu0 %v2092
        %5624 = vmatpush1.bf16.msra.mxu0 %v2091
        %5625 = vmatprep.subr.bf16.mxu0 %v2124
        %5626 = vmatpush1.bf16.msra.mxu0 %v2123
        %5627 = vmatprep.subr.bf16.mxu0 %v2156
        %5628 = vmatpush1.bf16.msra.mxu0 %v2155
        %5629 = vmatprep.subr.bf16.mxu0 %v2188
        %5630 = vmatpush1.bf16.msra.mxu0 %v2187
        %5631 = vmatprep.subr.bf16.mxu0 %v2220
        %5632 = vmatpush1.bf16.msra.mxu0 %v2219
        %5633 = vmatprep.subr.bf16.mxu0 %v2252
        %5634 = vmatpush1.bf16.msra.mxu0 %v2251
        %5635 = vmatprep.subr.bf16.mxu0 %v2284
        %5636 = vmatpush1.bf16.msra.mxu0 %v2283
        %5637 = vmatprep.subr.bf16.mxu0 %v2316
        %5638 = vmatpush1.bf16.msra.mxu0 %v2315
        %5639 = vmatprep.subr.bf16.mxu0 %v2348
        %5640 = vmatpush1.bf16.msra.mxu0 %v2347
        %5641 = vmatprep.mubr.bf16.mxu0 %v3426
        %5642 = vmatmul.mubr.bf16.gmra.mrb[0].mxu0 %v3424
        %v5643 = vpop.f32.mrb[0].mxu0
        %v5644 = vadd.f32 %v5603, %v5643
        %v5645 = vpop.f32.mrb[0].mxu0
        %v5646 = vadd.f32 %v5605, %v5645
        %v5647 = vpop.f32.mrb[0].mxu0
        %v5648 = vpop.f32.mrb[0].mxu0
        %5649 = vdwg.mxu0
        %5650 = vmatprep.subr.bf16.mxu0 %v2380
        %5651 = vmatpush1.bf16.msra.mxu0 %v2379
        %5652 = vmatprep.subr.bf16.mxu0 %v2412
        %5653 = vmatpush1.bf16.msra.mxu0 %v2411
        %5654 = vmatprep.subr.bf16.mxu0 %v2444
        %5655 = vmatpush1.bf16.msra.mxu0 %v2443
        %5656 = vmatprep.subr.bf16.mxu0 %v2476
        %5657 = vmatpush1.bf16.msra.mxu0 %v2475
        %5658 = vmatprep.subr.bf16.mxu0 %v2508
        %5659 = vmatpush1.bf16.msra.mxu0 %v2507
        %5660 = vmatprep.subr.bf16.mxu0 %v2540
        %5661 = vmatpush1.bf16.msra.mxu0 %v2539
        %5662 = vmatprep.subr.bf16.mxu0 %v2572
        %5663 = vmatpush1.bf16.msra.mxu0 %v2571
        %5664 = vmatprep.subr.bf16.mxu0 %v2604
        %5665 = vmatpush1.bf16.msra.mxu0 %v2603
        %5666 = vmatprep.subr.bf16.mxu0 %v2636
        %5667 = vmatpush1.bf16.msra.mxu0 %v2635
        %5668 = vmatprep.subr.bf16.mxu0 %v2668
        %5669 = vmatpush1.bf16.msra.mxu0 %v2667
        %5670 = vmatprep.subr.bf16.mxu0 %v2700
        %5671 = vmatpush1.bf16.msra.mxu0 %v2699
        %5672 = vmatprep.subr.bf16.mxu0 %v2732
        %5673 = vmatpush1.bf16.msra.mxu0 %v2731
        %5674 = vmatprep.subr.bf16.mxu0 %v2764
        %5675 = vmatpush1.bf16.msra.mxu0 %v2763
        %5676 = vmatprep.subr.bf16.mxu0 %v2796
        %5677 = vmatpush1.bf16.msra.mxu0 %v2795
        %5678 = vmatprep.subr.bf16.mxu0 %v2828
        %5679 = vmatpush1.bf16.msra.mxu0 %v2827
        %5680 = vmatprep.subr.bf16.mxu0 %v2860
        %5681 = vmatpush1.bf16.msra.mxu0 %v2859
        %5682 = vmatprep.mubr.bf16.mxu0 %v3423
        %5683 = vmatmul.mubr.bf16.gmra.mrb[0].mxu0 %v3409
        %v5684 = vpop.f32.mrb[0].mxu0
        %v5685 = vadd.f32 %v5644, %v5684
        %v5686 = vpop.f32.mrb[0].mxu0
        %v5687 = vadd.f32 %v5646, %v5686
        %v5688 = vpop.f32.mrb[0].mxu0
        %v5689 = vpop.f32.mrb[0].mxu0
        %5690 = vdwg.mxu0
        %5691 = vmatprep.subr.bf16.mxu0 %v2892
        %5692 = vmatpush1.bf16.msra.mxu0 %v2891
        %5693 = vmatprep.subr.bf16.mxu0 %v2924
        %5694 = vmatpush1.bf16.msra.mxu0 %v2923
        %5695 = vmatprep.subr.bf16.mxu0 %v2956
        %5696 = vmatpush1.bf16.msra.mxu0 %v2955
        %5697 = vmatprep.subr.bf16.mxu0 %v2988
        %5698 = vmatpush1.bf16.msra.mxu0 %v2987
        %5699 = vmatprep.subr.bf16.mxu0 %v3020
        %5700 = vmatpush1.bf16.msra.mxu0 %v3019
        %5701 = vmatprep.subr.bf16.mxu0 %v3052
        %5702 = vmatpush1.bf16.msra.mxu0 %v3051
        %5703 = vmatprep.subr.bf16.mxu0 %v3084
        %5704 = vmatpush1.bf16.msra.mxu0 %v3083
        %5705 = vmatprep.subr.bf16.mxu0 %v3116
        %5706 = vmatpush1.bf16.msra.mxu0 %v3115
        %5707 = vmatprep.subr.bf16.mxu0 %v3148
        %5708 = vmatpush1.bf16.msra.mxu0 %v3147
        %5709 = vmatprep.subr.bf16.mxu0 %v3180
        %5710 = vmatpush1.bf16.msra.mxu0 %v3179
        %5711 = vmatprep.subr.bf16.mxu0 %v3212
        %5712 = vmatpush1.bf16.msra.mxu0 %v3211
        %5713 = vmatprep.subr.bf16.mxu0 %v3244
        %5714 = vmatpush1.bf16.msra.mxu0 %v3243
        %5715 = vmatprep.subr.bf16.mxu0 %v3276
        %5716 = vmatpush1.bf16.msra.mxu0 %v3275
        %5717 = vmatprep.subr.bf16.mxu0 %v3308
        %5718 = vmatpush1.bf16.msra.mxu0 %v3307
        %5719 = vmatprep.subr.bf16.mxu0 %v3340
        %5720 = vmatpush1.bf16.msra.mxu0 %v3339
        %5721 = vmatprep.subr.bf16.mxu0 %v3372
        %5722 = vmatpush1.bf16.msra.mxu0 %v3371
        %5723 = vmatprep.mubr.bf16.mxu0 %v3427
        %5724 = vmatmul.mubr.bf16.gmra.mrb[0].mxu0 %v3425
        %v5725 = vpop.f32.mrb[0].mxu0
        %v5726 = vadd.f32 %v5685, %v5725
        %v5727 = vpop.f32.mrb[0].mxu0
        %v5728 = vadd.f32 %v5687, %v5727
        %v5729 = vpop.f32.mrb[0].mxu0
        %v5730 = vpop.f32.mrb[0].mxu0
        %5731 = vdwg.mxu0
        %5732 = vmatprep.subr.bf16.mxu0 %v1358
        %5733 = vmatpush1.bf16.msra.mxu0 %v1357
        %5734 = vmatprep.subr.bf16.mxu0 %v1390
        %5735 = vmatpush1.bf16.msra.mxu0 %v1389
        %5736 = vmatprep.subr.bf16.mxu0 %v1422
        %5737 = vmatpush1.bf16.msra.mxu0 %v1421
        %5738 = vmatprep.subr.bf16.mxu0 %v1454
        %5739 = vmatpush1.bf16.msra.mxu0 %v1453
        %5740 = vmatprep.subr.bf16.mxu0 %v1486
        %5741 = vmatpush1.bf16.msra.mxu0 %v1485
        %5742 = vmatprep.subr.bf16.mxu0 %v1518
        %5743 = vmatpush1.bf16.msra.mxu0 %v1517
        %5744 = vmatprep.subr.bf16.mxu0 %v1550
        %5745 = vmatpush1.bf16.msra.mxu0 %v1549
        %5746 = vmatprep.subr.bf16.mxu0 %v1582
        %5747 = vmatpush1.bf16.msra.mxu0 %v1581
        %5748 = vmatprep.subr.bf16.mxu0 %v1614
        %5749 = vmatpush1.bf16.msra.mxu0 %v1613
        %5750 = vmatprep.subr.bf16.mxu0 %v1646
        %5751 = vmatpush1.bf16.msra.mxu0 %v1645
        %5752 = vmatprep.subr.bf16.mxu0 %v1678
        %5753 = vmatpush1.bf16.msra.mxu0 %v1677
        %5754 = vmatprep.subr.bf16.mxu0 %v1710
        %5755 = vmatpush1.bf16.msra.mxu0 %v1709
        %5756 = vmatprep.subr.bf16.mxu0 %v1742
        %5757 = vmatpush1.bf16.msra.mxu0 %v1741
        %5758 = vmatprep.subr.bf16.mxu0 %v1774
        %5759 = vmatpush1.bf16.msra.mxu0 %v1773
        %5760 = vmatprep.subr.bf16.mxu0 %v1806
        %5761 = vmatpush1.bf16.msra.mxu0 %v1805
        %5762 = vmatprep.subr.bf16.mxu0 %v1838
        %5763 = vmatpush1.bf16.msra.mxu0 %v1837
        %5764 = vmatprep.mubr.bf16.mxu0 %v3416
        %5765 = vmatmul.mubr.bf16.gmra.mrb[0].mxu0 %v3402
        %v5766 = vpop.f32.mrb[0].mxu0
        %v5767 = vadd.f32 0.0, %v5766
        %v5768 = vpop.f32.mrb[0].mxu0
        %v5769 = vadd.f32 0.0, %v5768
        %v5770 = vpop.f32.mrb[0].mxu0
        %v5771 = vpop.f32.mrb[0].mxu0
        %5772 = vdwg.mxu0
        %5773 = vmatprep.subr.bf16.mxu0 %v1870
        %5774 = vmatpush1.bf16.msra.mxu0 %v1869
        %5775 = vmatprep.subr.bf16.mxu0 %v1902
        %5776 = vmatpush1.bf16.msra.mxu0 %v1901
        %5777 = vmatprep.subr.bf16.mxu0 %v1934
        %5778 = vmatpush1.bf16.msra.mxu0 %v1933
        %5779 = vmatprep.subr.bf16.mxu0 %v1966
        %5780 = vmatpush1.bf16.msra.mxu0 %v1965
        %5781 = vmatprep.subr.bf16.mxu0 %v1998
        %5782 = vmatpush1.bf16.msra.mxu0 %v1997
        %5783 = vmatprep.subr.bf16.mxu0 %v2030
        %5784 = vmatpush1.bf16.msra.mxu0 %v2029
        %5785 = vmatprep.subr.bf16.mxu0 %v2062
        %5786 = vmatpush1.bf16.msra.mxu0 %v2061
        %5787 = vmatprep.subr.bf16.mxu0 %v2094
        %5788 = vmatpush1.bf16.msra.mxu0 %v2093
        %5789 = vmatprep.subr.bf16.mxu0 %v2126
        %5790 = vmatpush1.bf16.msra.mxu0 %v2125
        %5791 = vmatprep.subr.bf16.mxu0 %v2158
        %5792 = vmatpush1.bf16.msra.mxu0 %v2157
        %5793 = vmatprep.subr.bf16.mxu0 %v2190
        %5794 = vmatpush1.bf16.msra.mxu0 %v2189
        %5795 = vmatprep.subr.bf16.mxu0 %v2222
        %5796 = vmatpush1.bf16.msra.mxu0 %v2221
        %5797 = vmatprep.subr.bf16.mxu0 %v2254
        %5798 = vmatpush1.bf16.msra.mxu0 %v2253
        %5799 = vmatprep.subr.bf16.mxu0 %v2286
        %5800 = vmatpush1.bf16.msra.mxu0 %v2285
        %5801 = vmatprep.subr.bf16.mxu0 %v2318
        %5802 = vmatpush1.bf16.msra.mxu0 %v2317
        %5803 = vmatprep.subr.bf16.mxu0 %v2350
        %5804 = vmatpush1.bf16.msra.mxu0 %v2349
        %5805 = vmatprep.mubr.bf16.mxu0 %v3426
        %5806 = vmatmul.mubr.bf16.gmra.mrb[0].mxu0 %v3424
        %v5807 = vpop.f32.mrb[0].mxu0
        %v5808 = vadd.f32 %v5767, %v5807
        %v5809 = vpop.f32.mrb[0].mxu0
        %v5810 = vadd.f32 %v5769, %v5809
        %v5811 = vpop.f32.mrb[0].mxu0
        %v5812 = vpop.f32.mrb[0].mxu0
        %5813 = vdwg.mxu0
        %5814 = vmatprep.subr.bf16.mxu0 %v2382
        %5815 = vmatpush1.bf16.msra.mxu0 %v2381
        %5816 = vmatprep.subr.bf16.mxu0 %v2414
        %5817 = vmatpush1.bf16.msra.mxu0 %v2413
        %5818 = vmatprep.subr.bf16.mxu0 %v2446
        %5819 = vmatpush1.bf16.msra.mxu0 %v2445
        %5820 = vmatprep.subr.bf16.mxu0 %v2478
        %5821 = vmatpush1.bf16.msra.mxu0 %v2477
        %5822 = vmatprep.subr.bf16.mxu0 %v2510
        %5823 = vmatpush1.bf16.msra.mxu0 %v2509
        %5824 = vmatprep.subr.bf16.mxu0 %v2542
        %5825 = vmatpush1.bf16.msra.mxu0 %v2541
        %5826 = vmatprep.subr.bf16.mxu0 %v2574
        %5827 = vmatpush1.bf16.msra.mxu0 %v2573
        %5828 = vmatprep.subr.bf16.mxu0 %v2606
        %5829 = vmatpush1.bf16.msra.mxu0 %v2605
        %5830 = vmatprep.subr.bf16.mxu0 %v2638
        %5831 = vmatpush1.bf16.msra.mxu0 %v2637
        %5832 = vmatprep.subr.bf16.mxu0 %v2670
        %5833 = vmatpush1.bf16.msra.mxu0 %v2669
        %5834 = vmatprep.subr.bf16.mxu0 %v2702
        %5835 = vmatpush1.bf16.msra.mxu0 %v2701
        %5836 = vmatprep.subr.bf16.mxu0 %v2734
        %5837 = vmatpush1.bf16.msra.mxu0 %v2733
        %5838 = vmatprep.subr.bf16.mxu0 %v2766
        %5839 = vmatpush1.bf16.msra.mxu0 %v2765
        %5840 = vmatprep.subr.bf16.mxu0 %v2798
        %5841 = vmatpush1.bf16.msra.mxu0 %v2797
        %5842 = vmatprep.subr.bf16.mxu0 %v2830
        %5843 = vmatpush1.bf16.msra.mxu0 %v2829
        %5844 = vmatprep.subr.bf16.mxu0 %v2862
        %5845 = vmatpush1.bf16.msra.mxu0 %v2861
        %5846 = vmatprep.mubr.bf16.mxu0 %v3423
        %5847 = vmatmul.mubr.bf16.gmra.mrb[0].mxu0 %v3409
        %v5848 = vpop.f32.mrb[0].mxu0
        %v5849 = vadd.f32 %v5808, %v5848
        %v5850 = vpop.f32.mrb[0].mxu0
        %v5851 = vadd.f32 %v5810, %v5850
        %v5852 = vpop.f32.mrb[0].mxu0
        %v5853 = vpop.f32.mrb[0].mxu0
        %5854 = vdwg.mxu0
        %5855 = vmatprep.subr.bf16.mxu0 %v2894
        %5856 = vmatpush1.bf16.msra.mxu0 %v2893
        %5857 = vmatprep.subr.bf16.mxu0 %v2926
        %5858 = vmatpush1.bf16.msra.mxu0 %v2925
        %5859 = vmatprep.subr.bf16.mxu0 %v2958
        %5860 = vmatpush1.bf16.msra.mxu0 %v2957
        %5861 = vmatprep.subr.bf16.mxu0 %v2990
        %5862 = vmatpush1.bf16.msra.mxu0 %v2989
        %5863 = vmatprep.subr.bf16.mxu0 %v3022
        %5864 = vmatpush1.bf16.msra.mxu0 %v3021
        %5865 = vmatprep.subr.bf16.mxu0 %v3054
        %5866 = vmatpush1.bf16.msra.mxu0 %v3053
        %5867 = vmatprep.subr.bf16.mxu0 %v3086
        %5868 = vmatpush1.bf16.msra.mxu0 %v3085
        %5869 = vmatprep.subr.bf16.mxu0 %v3118
        %5870 = vmatpush1.bf16.msra.mxu0 %v3117
        %5871 = vmatprep.subr.bf16.mxu0 %v3150
        %5872 = vmatpush1.bf16.msra.mxu0 %v3149
        %5873 = vmatprep.subr.bf16.mxu0 %v3182
        %5874 = vmatpush1.bf16.msra.mxu0 %v3181
        %5875 = vmatprep.subr.bf16.mxu0 %v3214
        %5876 = vmatpush1.bf16.msra.mxu0 %v3213
        %5877 = vmatprep.subr.bf16.mxu0 %v3246
        %5878 = vmatpush1.bf16.msra.mxu0 %v3245
        %5879 = vmatprep.subr.bf16.mxu0 %v3278
        %5880 = vmatpush1.bf16.msra.mxu0 %v3277
        %5881 = vmatprep.subr.bf16.mxu0 %v3310
        %5882 = vmatpush1.bf16.msra.mxu0 %v3309
        %5883 = vmatprep.subr.bf16.mxu0 %v3342
        %5884 = vmatpush1.bf16.msra.mxu0 %v3341
        %5885 = vmatprep.subr.bf16.mxu0 %v3374
        %5886 = vmatpush1.bf16.msra.mxu0 %v3373
        %5887 = vmatprep.mubr.bf16.mxu0 %v3427
        %5888 = vmatmul.mubr.bf16.gmra.mrb[0].mxu0 %v3425
        %v5889 = vpop.f32.mrb[0].mxu0
        %v5890 = vadd.f32 %v5849, %v5889
        %v5891 = vpop.f32.mrb[0].mxu0
        %v5892 = vadd.f32 %v5851, %v5891
        %v5893 = vpop.f32.mrb[0].mxu0
        %v5894 = vpop.f32.mrb[0].mxu0
        %5895 = vdwg.mxu0
        %5896 = vmatprep.subr.bf16.mxu0 %v1360
        %5897 = vmatpush1.bf16.msra.mxu0 %v1359
        %5898 = vmatprep.subr.bf16.mxu0 %v1392
        %5899 = vmatpush1.bf16.msra.mxu0 %v1391
        %5900 = vmatprep.subr.bf16.mxu0 %v1424
        %5901 = vmatpush1.bf16.msra.mxu0 %v1423
        %5902 = vmatprep.subr.bf16.mxu0 %v1456
        %5903 = vmatpush1.bf16.msra.mxu0 %v1455
        %5904 = vmatprep.subr.bf16.mxu0 %v1488
        %5905 = vmatpush1.bf16.msra.mxu0 %v1487
        %5906 = vmatprep.subr.bf16.mxu0 %v1520
        %5907 = vmatpush1.bf16.msra.mxu0 %v1519
        %5908 = vmatprep.subr.bf16.mxu0 %v1552
        %5909 = vmatpush1.bf16.msra.mxu0 %v1551
        %5910 = vmatprep.subr.bf16.mxu0 %v1584
        %5911 = vmatpush1.bf16.msra.mxu0 %v1583
        %5912 = vmatprep.subr.bf16.mxu0 %v1616
        %5913 = vmatpush1.bf16.msra.mxu0 %v1615
        %5914 = vmatprep.subr.bf16.mxu0 %v1648
        %5915 = vmatpush1.bf16.msra.mxu0 %v1647
        %5916 = vmatprep.subr.bf16.mxu0 %v1680
        %5917 = vmatpush1.bf16.msra.mxu0 %v1679
        %5918 = vmatprep.subr.bf16.mxu0 %v1712
        %5919 = vmatpush1.bf16.msra.mxu0 %v1711
        %5920 = vmatprep.subr.bf16.mxu0 %v1744
        %5921 = vmatpush1.bf16.msra.mxu0 %v1743
        %5922 = vmatprep.subr.bf16.mxu0 %v1776
        %5923 = vmatpush1.bf16.msra.mxu0 %v1775
        %5924 = vmatprep.subr.bf16.mxu0 %v1808
        %5925 = vmatpush1.bf16.msra.mxu0 %v1807
        %5926 = vmatprep.subr.bf16.mxu0 %v1840
        %5927 = vmatpush1.bf16.msra.mxu0 %v1839
        %5928 = vmatprep.mubr.bf16.mxu0 %v3416
        %5929 = vmatmul.mubr.bf16.gmra.mrb[0].mxu0 %v3402
        %v5930 = vpop.f32.mrb[0].mxu0
        %v5931 = vadd.f32 0.0, %v5930
        %v5932 = vpop.f32.mrb[0].mxu0
        %v5933 = vadd.f32 0.0, %v5932
        %v5934 = vpop.f32.mrb[0].mxu0
        %v5935 = vpop.f32.mrb[0].mxu0
        %5936 = vdwg.mxu0
        %5937 = vmatprep.subr.bf16.mxu0 %v1872
        %5938 = vmatpush1.bf16.msra.mxu0 %v1871
        %5939 = vmatprep.subr.bf16.mxu0 %v1904
        %5940 = vmatpush1.bf16.msra.mxu0 %v1903
        %5941 = vmatprep.subr.bf16.mxu0 %v1936
        %5942 = vmatpush1.bf16.msra.mxu0 %v1935
        %5943 = vmatprep.subr.bf16.mxu0 %v1968
        %5944 = vmatpush1.bf16.msra.mxu0 %v1967
        %5945 = vmatprep.subr.bf16.mxu0 %v2000
        %5946 = vmatpush1.bf16.msra.mxu0 %v1999
        %5947 = vmatprep.subr.bf16.mxu0 %v2032
        %5948 = vmatpush1.bf16.msra.mxu0 %v2031
        %5949 = vmatprep.subr.bf16.mxu0 %v2064
        %5950 = vmatpush1.bf16.msra.mxu0 %v2063
        %5951 = vmatprep.subr.bf16.mxu0 %v2096
        %5952 = vmatpush1.bf16.msra.mxu0 %v2095
        %5953 = vmatprep.subr.bf16.mxu0 %v2128
        %5954 = vmatpush1.bf16.msra.mxu0 %v2127
        %5955 = vmatprep.subr.bf16.mxu0 %v2160
        %5956 = vmatpush1.bf16.msra.mxu0 %v2159
        %5957 = vmatprep.subr.bf16.mxu0 %v2192
        %5958 = vmatpush1.bf16.msra.mxu0 %v2191
        %5959 = vmatprep.subr.bf16.mxu0 %v2224
        %5960 = vmatpush1.bf16.msra.mxu0 %v2223
        %5961 = vmatprep.subr.bf16.mxu0 %v2256
        %5962 = vmatpush1.bf16.msra.mxu0 %v2255
        %5963 = vmatprep.subr.bf16.mxu0 %v2288
        %5964 = vmatpush1.bf16.msra.mxu0 %v2287
        %5965 = vmatprep.subr.bf16.mxu0 %v2320
        %5966 = vmatpush1.bf16.msra.mxu0 %v2319
        %5967 = vmatprep.subr.bf16.mxu0 %v2352
        %5968 = vmatpush1.bf16.msra.mxu0 %v2351
        %5969 = vmatprep.mubr.bf16.mxu0 %v3426
        %5970 = vmatmul.mubr.bf16.gmra.mrb[0].mxu0 %v3424
        %v5971 = vpop.f32.mrb[0].mxu0
        %v5972 = vadd.f32 %v5931, %v5971
        %v5973 = vpop.f32.mrb[0].mxu0
        %v5974 = vadd.f32 %v5933, %v5973
        %v5975 = vpop.f32.mrb[0].mxu0
        %v5976 = vpop.f32.mrb[0].mxu0
        %5977 = vdwg.mxu0
        %5978 = vmatprep.subr.bf16.mxu0 %v2384
        %5979 = vmatpush1.bf16.msra.mxu0 %v2383
        %5980 = vmatprep.subr.bf16.mxu0 %v2416
        %5981 = vmatpush1.bf16.msra.mxu0 %v2415
        %5982 = vmatprep.subr.bf16.mxu0 %v2448
        %5983 = vmatpush1.bf16.msra.mxu0 %v2447
        %5984 = vmatprep.subr.bf16.mxu0 %v2480
        %5985 = vmatpush1.bf16.msra.mxu0 %v2479
        %5986 = vmatprep.subr.bf16.mxu0 %v2512
        %5987 = vmatpush1.bf16.msra.mxu0 %v2511
        %5988 = vmatprep.subr.bf16.mxu0 %v2544
        %5989 = vmatpush1.bf16.msra.mxu0 %v2543
        %5990 = vmatprep.subr.bf16.mxu0 %v2576
        %5991 = vmatpush1.bf16.msra.mxu0 %v2575
        %5992 = vmatprep.subr.bf16.mxu0 %v2608
        %5993 = vmatpush1.bf16.msra.mxu0 %v2607
        %5994 = vmatprep.subr.bf16.mxu0 %v2640
        %5995 = vmatpush1.bf16.msra.mxu0 %v2639
        %5996 = vmatprep.subr.bf16.mxu0 %v2672
        %5997 = vmatpush1.bf16.msra.mxu0 %v2671
        %5998 = vmatprep.subr.bf16.mxu0 %v2704
        %5999 = vmatpush1.bf16.msra.mxu0 %v2703
        %6000 = vmatprep.subr.bf16.mxu0 %v2736
        %6001 = vmatpush1.bf16.msra.mxu0 %v2735
        %6002 = vmatprep.subr.bf16.mxu0 %v2768
        %6003 = vmatpush1.bf16.msra.mxu0 %v2767
        %6004 = vmatprep.subr.bf16.mxu0 %v2800
        %6005 = vmatpush1.bf16.msra.mxu0 %v2799
        %6006 = vmatprep.subr.bf16.mxu0 %v2832
        %6007 = vmatpush1.bf16.msra.mxu0 %v2831
        %6008 = vmatprep.subr.bf16.mxu0 %v2864
        %6009 = vmatpush1.bf16.msra.mxu0 %v2863
        %6010 = vmatprep.mubr.bf16.mxu0 %v3423
        %6011 = vmatmul.mubr.bf16.gmra.mrb[0].mxu0 %v3409
        %v6012 = vpop.f32.mrb[0].mxu0
        %v6013 = vadd.f32 %v5972, %v6012
        %v6014 = vpop.f32.mrb[0].mxu0
        %v6015 = vadd.f32 %v5974, %v6014
        %v6016 = vpop.f32.mrb[0].mxu0
        %v6017 = vpop.f32.mrb[0].mxu0
        %6018 = vdwg.mxu0
        %6019 = vmatprep.subr.bf16.mxu0 %v2896
        %6020 = vmatpush1.bf16.msra.mxu0 %v2895
        %6021 = vmatprep.subr.bf16.mxu0 %v2928
        %6022 = vmatpush1.bf16.msra.mxu0 %v2927
        %6023 = vmatprep.subr.bf16.mxu0 %v2960
        %6024 = vmatpush1.bf16.msra.mxu0 %v2959
        %6025 = vmatprep.subr.bf16.mxu0 %v2992
        %6026 = vmatpush1.bf16.msra.mxu0 %v2991
        %6027 = vmatprep.subr.bf16.mxu0 %v3024
        %6028 = vmatpush1.bf16.msra.mxu0 %v3023
        %6029 = vmatprep.subr.bf16.mxu0 %v3056
        %6030 = vmatpush1.bf16.msra.mxu0 %v3055
        %6031 = vmatprep.subr.bf16.mxu0 %v3088
        %6032 = vmatpush1.bf16.msra.mxu0 %v3087
        %6033 = vmatprep.subr.bf16.mxu0 %v3120
        %6034 = vmatpush1.bf16.msra.mxu0 %v3119
        %6035 = vmatprep.subr.bf16.mxu0 %v3152
        %6036 = vmatpush1.bf16.msra.mxu0 %v3151
        %6037 = vmatprep.subr.bf16.mxu0 %v3184
        %6038 = vmatpush1.bf16.msra.mxu0 %v3183
        %6039 = vmatprep.subr.bf16.mxu0 %v3216
        %6040 = vmatpush1.bf16.msra.mxu0 %v3215
        %6041 = vmatprep.subr.bf16.mxu0 %v3248
        %6042 = vmatpush1.bf16.msra.mxu0 %v3247
        %6043 = vmatprep.subr.bf16.mxu0 %v3280
        %6044 = vmatpush1.bf16.msra.mxu0 %v3279
        %6045 = vmatprep.subr.bf16.mxu0 %v3312
        %6046 = vmatpush1.bf16.msra.mxu0 %v3311
        %6047 = vmatprep.subr.bf16.mxu0 %v3344
        %6048 = vmatpush1.bf16.msra.mxu0 %v3343
        %6049 = vmatprep.subr.bf16.mxu0 %v3376
        %6050 = vmatpush1.bf16.msra.mxu0 %v3375
        %6051 = vmatprep.mubr.bf16.mxu0 %v3427
        %6052 = vmatmul.mubr.bf16.gmra.mrb[0].mxu0 %v3425
        %v6053 = vpop.f32.mrb[0].mxu0
        %v6054 = vadd.f32 %v6013, %v6053
        %v6055 = vpop.f32.mrb[0].mxu0
        %v6056 = vadd.f32 %v6015, %v6055
        %v6057 = vpop.f32.mrb[0].mxu0
        %v6058 = vpop.f32.mrb[0].mxu0
        %6059 = vdwg.mxu0
        %v6060 = vld [vmem:[%s258] sm:$0xff]
        %v6061 = vld [vmem:[%s258 + $0x8] sm:$0xff]
        %v6062 = vld [vmem:[%s258 + $0x10] sm:$0xff]
        %v6063 = vld [vmem:[%s258 + $0x18] sm:$0xff]
        %v6068 = vlaneseq
        %v6069 = vshrl.u32 %v6068, 7
        %v6070 = vsub.s32 0, %v6069
        %v6071 = vrot.slane %v6060, %v6070
        %v6072 = vlaneseq
        %v6073 = vshrl.u32 %v6072, 7
        %v6074 = vsub.s32 1, %v6073
        %v6075 = vrot.slane %v6060, %v6074
        %v6076 = vlaneseq
        %v6077 = vshrl.u32 %v6076, 7
        %v6078 = vsub.s32 2, %v6077
        %v6079 = vrot.slane %v6060, %v6078
        %v6080 = vlaneseq
        %v6081 = vshrl.u32 %v6080, 7
        %v6082 = vsub.s32 3, %v6081
        %v6083 = vrot.slane %v6060, %v6082
        %v6084 = vlaneseq
        %v6085 = vshrl.u32 %v6084, 7
        %v6086 = vsub.s32 4, %v6085
        %v6087 = vrot.slane %v6060, %v6086
        %v6088 = vlaneseq
        %v6089 = vshrl.u32 %v6088, 7
        %v6090 = vsub.s32 5, %v6089
        %v6091 = vrot.slane %v6060, %v6090
        %v6092 = vlaneseq
        %v6093 = vshrl.u32 %v6092, 7
        %v6094 = vsub.s32 6, %v6093
        %v6095 = vrot.slane %v6060, %v6094
        %v6096 = vlaneseq
        %v6097 = vshrl.u32 %v6096, 7
        %v6098 = vsub.s32 7, %v6097
        %v6099 = vrot.slane %v6060, %v6098
        %v6100 = vlaneseq
        %v6101 = vshrl.u32 %v6100, 7
        %v6102 = vsub.s32 0, %v6101
        %v6103 = vrot.slane %v6061, %v6102
        %v6104 = vlaneseq
        %v6105 = vshrl.u32 %v6104, 7
        %v6106 = vsub.s32 1, %v6105
        %v6107 = vrot.slane %v6061, %v6106
        %v6108 = vlaneseq
        %v6109 = vshrl.u32 %v6108, 7
        %v6110 = vsub.s32 2, %v6109
        %v6111 = vrot.slane %v6061, %v6110
        %v6112 = vlaneseq
        %v6113 = vshrl.u32 %v6112, 7
        %v6114 = vsub.s32 3, %v6113
        %v6115 = vrot.slane %v6061, %v6114
        %v6116 = vlaneseq
        %v6117 = vshrl.u32 %v6116, 7
        %v6118 = vsub.s32 4, %v6117
        %v6119 = vrot.slane %v6061, %v6118
        %v6120 = vlaneseq
        %v6121 = vshrl.u32 %v6120, 7
        %v6122 = vsub.s32 5, %v6121
        %v6123 = vrot.slane %v6061, %v6122
        %v6124 = vlaneseq
        %v6125 = vshrl.u32 %v6124, 7
        %v6126 = vsub.s32 6, %v6125
        %v6127 = vrot.slane %v6061, %v6126
        %v6128 = vlaneseq
        %v6129 = vshrl.u32 %v6128, 7
        %v6130 = vsub.s32 7, %v6129
        %v6131 = vrot.slane %v6061, %v6130
        %v6132 = vlaneseq
        %v6133 = vshrl.u32 %v6132, 7
        %v6134 = vsub.s32 0, %v6133
        %v6135 = vrot.slane %v6062, %v6134
        %v6136 = vlaneseq
        %v6137 = vshrl.u32 %v6136, 7
        %v6138 = vsub.s32 1, %v6137
        %v6139 = vrot.slane %v6062, %v6138
        %v6140 = vlaneseq
        %v6141 = vshrl.u32 %v6140, 7
        %v6142 = vsub.s32 2, %v6141
        %v6143 = vrot.slane %v6062, %v6142
        %v6144 = vlaneseq
        %v6145 = vshrl.u32 %v6144, 7
        %v6146 = vsub.s32 3, %v6145
        %v6147 = vrot.slane %v6062, %v6146
        %v6148 = vlaneseq
        %v6149 = vshrl.u32 %v6148, 7
        %v6150 = vsub.s32 4, %v6149
        %v6151 = vrot.slane %v6062, %v6150
        %v6152 = vlaneseq
        %v6153 = vshrl.u32 %v6152, 7
        %v6154 = vsub.s32 5, %v6153
        %v6155 = vrot.slane %v6062, %v6154
        %v6156 = vlaneseq
        %v6157 = vshrl.u32 %v6156, 7
        %v6158 = vsub.s32 6, %v6157
        %v6159 = vrot.slane %v6062, %v6158
        %v6160 = vlaneseq
        %v6161 = vshrl.u32 %v6160, 7
        %v6162 = vsub.s32 7, %v6161
        %v6163 = vrot.slane %v6062, %v6162
        %v6164 = vlaneseq
        %v6165 = vshrl.u32 %v6164, 7
        %v6166 = vsub.s32 0, %v6165
        %v6167 = vrot.slane %v6063, %v6166
        %v6168 = vlaneseq
        %v6169 = vshrl.u32 %v6168, 7
        %v6170 = vsub.s32 1, %v6169
        %v6171 = vrot.slane %v6063, %v6170
        %v6172 = vlaneseq
        %v6173 = vshrl.u32 %v6172, 7
        %v6174 = vsub.s32 2, %v6173
        %v6175 = vrot.slane %v6063, %v6174
        %v6176 = vlaneseq
        %v6177 = vshrl.u32 %v6176, 7
        %v6178 = vsub.s32 3, %v6177
        %v6179 = vrot.slane %v6063, %v6178
        %v6180 = vlaneseq
        %v6181 = vshrl.u32 %v6180, 7
        %v6182 = vsub.s32 4, %v6181
        %v6183 = vrot.slane %v6063, %v6182
        %v6184 = vlaneseq
        %v6185 = vshrl.u32 %v6184, 7
        %v6186 = vsub.s32 5, %v6185
        %v6187 = vrot.slane %v6063, %v6186
        %v6188 = vlaneseq
        %v6189 = vshrl.u32 %v6188, 7
        %v6190 = vsub.s32 6, %v6189
        %v6191 = vrot.slane %v6063, %v6190
        %v6192 = vlaneseq
        %v6193 = vshrl.u32 %v6192, 7
        %v6194 = vsub.s32 7, %v6193
        %v6195 = vrot.slane %v6063, %v6194
        %v6228 = vmul.f32 %v3594, %v6071
        %v6229 = vmul.f32 %v3596, %v6075
        %v6230 = vmul.f32 %v3758, %v6079
        %v6231 = vmul.f32 %v3760, %v6083
        %v6232 = vmul.f32 %v3922, %v6087
        %v6233 = vmul.f32 %v3924, %v6091
        %v6234 = vmul.f32 %v4086, %v6095
        %v6235 = vmul.f32 %v4088, %v6099
        %v6236 = vmul.f32 %v4250, %v6103
        %v6237 = vmul.f32 %v4252, %v6107
        %v6238 = vmul.f32 %v4414, %v6111
        %v6239 = vmul.f32 %v4416, %v6115
        %v6240 = vmul.f32 %v4578, %v6119
        %v6241 = vmul.f32 %v4580, %v6123
        %v6242 = vmul.f32 %v4742, %v6127
        %v6243 = vmul.f32 %v4744, %v6131
        %v6244 = vmul.f32 %v4906, %v6135
        %v6245 = vmul.f32 %v4908, %v6139
        %v6246 = vmul.f32 %v5070, %v6143
        %v6247 = vmul.f32 %v5072, %v6147
        %v6248 = vmul.f32 %v5234, %v6151
        %v6249 = vmul.f32 %v5236, %v6155
        %v6250 = vmul.f32 %v5398, %v6159
        %v6251 = vmul.f32 %v5400, %v6163
        %v6252 = vmul.f32 %v5562, %v6167
        %v6253 = vmul.f32 %v5564, %v6171
        %v6254 = vmul.f32 %v5726, %v6175
        %v6255 = vmul.f32 %v5728, %v6179
        %v6256 = vmul.f32 %v5890, %v6183
        %v6257 = vmul.f32 %v5892, %v6187
        %v6258 = vmul.f32 %v6054, %v6191
        %v6259 = vmul.f32 %v6056, %v6195
        %v6260 = vld [vmem:[%s267] sm:$0xff]
        %v6261 = vld [vmem:[%s267 + $0x8] sm:$0xff]
        %v6262 = vld [vmem:[%s267 + $0x10] sm:$0xff]
        %v6263 = vld [vmem:[%s267 + $0x18] sm:$0xff]
        %v6268 = vlaneseq
        %v6269 = vshrl.u32 %v6268, 7
        %v6270 = vsub.s32 0, %v6269
        %v6271 = vrot.slane %v6260, %v6270
        %v6272 = vlaneseq
        %v6273 = vshrl.u32 %v6272, 7
        %v6274 = vsub.s32 1, %v6273
        %v6275 = vrot.slane %v6260, %v6274
        %v6276 = vlaneseq
        %v6277 = vshrl.u32 %v6276, 7
        %v6278 = vsub.s32 2, %v6277
        %v6279 = vrot.slane %v6260, %v6278
        %v6280 = vlaneseq
        %v6281 = vshrl.u32 %v6280, 7
        %v6282 = vsub.s32 3, %v6281
        %v6283 = vrot.slane %v6260, %v6282
        %v6284 = vlaneseq
        %v6285 = vshrl.u32 %v6284, 7
        %v6286 = vsub.s32 4, %v6285
        %v6287 = vrot.slane %v6260, %v6286
        %v6288 = vlaneseq
        %v6289 = vshrl.u32 %v6288, 7
        %v6290 = vsub.s32 5, %v6289
        %v6291 = vrot.slane %v6260, %v6290
        %v6292 = vlaneseq
        %v6293 = vshrl.u32 %v6292, 7
        %v6294 = vsub.s32 6, %v6293
        %v6295 = vrot.slane %v6260, %v6294
        %v6296 = vlaneseq
        %v6297 = vshrl.u32 %v6296, 7
        %v6298 = vsub.s32 7, %v6297
        %v6299 = vrot.slane %v6260, %v6298
        %v6300 = vlaneseq
        %v6301 = vshrl.u32 %v6300, 7
        %v6302 = vsub.s32 0, %v6301
        %v6303 = vrot.slane %v6261, %v6302
        %v6304 = vlaneseq
        %v6305 = vshrl.u32 %v6304, 7
        %v6306 = vsub.s32 1, %v6305
        %v6307 = vrot.slane %v6261, %v6306
        %v6308 = vlaneseq
        %v6309 = vshrl.u32 %v6308, 7
        %v6310 = vsub.s32 2, %v6309
        %v6311 = vrot.slane %v6261, %v6310
        %v6312 = vlaneseq
        %v6313 = vshrl.u32 %v6312, 7
        %v6314 = vsub.s32 3, %v6313
        %v6315 = vrot.slane %v6261, %v6314
        %v6316 = vlaneseq
        %v6317 = vshrl.u32 %v6316, 7
        %v6318 = vsub.s32 4, %v6317
        %v6319 = vrot.slane %v6261, %v6318
        %v6320 = vlaneseq
        %v6321 = vshrl.u32 %v6320, 7
        %v6322 = vsub.s32 5, %v6321
        %v6323 = vrot.slane %v6261, %v6322
        %v6324 = vlaneseq
        %v6325 = vshrl.u32 %v6324, 7
        %v6326 = vsub.s32 6, %v6325
        %v6327 = vrot.slane %v6261, %v6326
        %v6328 = vlaneseq
        %v6329 = vshrl.u32 %v6328, 7
        %v6330 = vsub.s32 7, %v6329
        %v6331 = vrot.slane %v6261, %v6330
        %v6332 = vlaneseq
        %v6333 = vshrl.u32 %v6332, 7
        %v6334 = vsub.s32 0, %v6333
        %v6335 = vrot.slane %v6262, %v6334
        %v6336 = vlaneseq
        %v6337 = vshrl.u32 %v6336, 7
        %v6338 = vsub.s32 1, %v6337
        %v6339 = vrot.slane %v6262, %v6338
        %v6340 = vlaneseq
        %v6341 = vshrl.u32 %v6340, 7
        %v6342 = vsub.s32 2, %v6341
        %v6343 = vrot.slane %v6262, %v6342
        %v6344 = vlaneseq
        %v6345 = vshrl.u32 %v6344, 7
        %v6346 = vsub.s32 3, %v6345
        %v6347 = vrot.slane %v6262, %v6346
        %v6348 = vlaneseq
        %v6349 = vshrl.u32 %v6348, 7
        %v6350 = vsub.s32 4, %v6349
        %v6351 = vrot.slane %v6262, %v6350
        %v6352 = vlaneseq
        %v6353 = vshrl.u32 %v6352, 7
        %v6354 = vsub.s32 5, %v6353
        %v6355 = vrot.slane %v6262, %v6354
        %v6356 = vlaneseq
        %v6357 = vshrl.u32 %v6356, 7
        %v6358 = vsub.s32 6, %v6357
        %v6359 = vrot.slane %v6262, %v6358
        %v6360 = vlaneseq
        %v6361 = vshrl.u32 %v6360, 7
        %v6362 = vsub.s32 7, %v6361
        %v6363 = vrot.slane %v6262, %v6362
        %v6364 = vlaneseq
        %v6365 = vshrl.u32 %v6364, 7
        %v6366 = vsub.s32 0, %v6365
        %v6367 = vrot.slane %v6263, %v6366
        %v6368 = vlaneseq
        %v6369 = vshrl.u32 %v6368, 7
        %v6370 = vsub.s32 1, %v6369
        %v6371 = vrot.slane %v6263, %v6370
        %v6372 = vlaneseq
        %v6373 = vshrl.u32 %v6372, 7
        %v6374 = vsub.s32 2, %v6373
        %v6375 = vrot.slane %v6263, %v6374
        %v6376 = vlaneseq
        %v6377 = vshrl.u32 %v6376, 7
        %v6378 = vsub.s32 3, %v6377
        %v6379 = vrot.slane %v6263, %v6378
        %v6380 = vlaneseq
        %v6381 = vshrl.u32 %v6380, 7
        %v6382 = vsub.s32 4, %v6381
        %v6383 = vrot.slane %v6263, %v6382
        %v6384 = vlaneseq
        %v6385 = vshrl.u32 %v6384, 7
        %v6386 = vsub.s32 5, %v6385
        %v6387 = vrot.slane %v6263, %v6386
        %v6388 = vlaneseq
        %v6389 = vshrl.u32 %v6388, 7
        %v6390 = vsub.s32 6, %v6389
        %v6391 = vrot.slane %v6263, %v6390
        %v6392 = vlaneseq
        %v6393 = vshrl.u32 %v6392, 7
        %v6394 = vsub.s32 7, %v6393
        %v6395 = vrot.slane %v6263, %v6394
        %v6428 = vadd.f32 %v6228, %v6271
        %v6429 = vadd.f32 %v6229, %v6275
        %v6430 = vadd.f32 %v6230, %v6279
        %v6431 = vadd.f32 %v6231, %v6283
        %v6432 = vadd.f32 %v6232, %v6287
        %v6433 = vadd.f32 %v6233, %v6291
        %v6434 = vadd.f32 %v6234, %v6295
        %v6435 = vadd.f32 %v6235, %v6299
        %v6436 = vadd.f32 %v6236, %v6303
        %v6437 = vadd.f32 %v6237, %v6307
        %v6438 = vadd.f32 %v6238, %v6311
        %v6439 = vadd.f32 %v6239, %v6315
        %v6440 = vadd.f32 %v6240, %v6319
        %v6441 = vadd.f32 %v6241, %v6323
        %v6442 = vadd.f32 %v6242, %v6327
        %v6443 = vadd.f32 %v6243, %v6331
        %v6444 = vadd.f32 %v6244, %v6335
        %v6445 = vadd.f32 %v6245, %v6339
        %v6446 = vadd.f32 %v6246, %v6343
        %v6447 = vadd.f32 %v6247, %v6347
        %v6448 = vadd.f32 %v6248, %v6351
        %v6449 = vadd.f32 %v6249, %v6355
        %v6450 = vadd.f32 %v6250, %v6359
        %v6451 = vadd.f32 %v6251, %v6363
        %v6452 = vadd.f32 %v6252, %v6367
        %v6453 = vadd.f32 %v6253, %v6371
        %v6454 = vadd.f32 %v6254, %v6375
        %v6455 = vadd.f32 %v6255, %v6379
        %v6456 = vadd.f32 %v6256, %v6383
        %v6457 = vadd.f32 %v6257, %v6387
        %v6458 = vadd.f32 %v6258, %v6391
        %v6459 = vadd.f32 %v6259, %v6395
        %v6460 = vtanh.pop %v6428
        %v6461 = vtanh.pop %v6429
        %v6462 = vtanh.pop %v6430
        %v6463 = vtanh.pop %v6431
        %v6464 = vtanh.pop %v6432
        %v6465 = vtanh.pop %v6433
        %v6466 = vtanh.pop %v6434
        %v6467 = vtanh.pop %v6435
        %v6468 = vtanh.pop %v6436
        %v6469 = vtanh.pop %v6437
        %v6470 = vtanh.pop %v6438
        %v6471 = vtanh.pop %v6439
        %v6472 = vtanh.pop %v6440
        %v6473 = vtanh.pop %v6441
        %v6474 = vtanh.pop %v6442
        %v6475 = vtanh.pop %v6443
        %v6476 = vtanh.pop %v6444
        %v6477 = vtanh.pop %v6445
        %v6478 = vtanh.pop %v6446
        %v6479 = vtanh.pop %v6447
        %v6480 = vtanh.pop %v6448
        %v6481 = vtanh.pop %v6449
        %v6482 = vtanh.pop %v6450
        %v6483 = vtanh.pop %v6451
        %v6484 = vtanh.pop %v6452
        %v6485 = vtanh.pop %v6453
        %v6486 = vtanh.pop %v6454
        %v6487 = vtanh.pop %v6455
        %v6488 = vtanh.pop %v6456
        %v6489 = vtanh.pop %v6457
        %v6490 = vtanh.pop %v6458
        %v6491 = vtanh.pop %v6459
        %v6524 = vcombine.low %v6460, %v6461
        %v6525 = vcombine.low %v6462, %v6463
        %v6527 = vunpack.c.l.s4 1983009808
        %v6528 = vunpack.c.0.s8 %v6527
        %v6529 = vlaneseq
        %v6530 = vshrl.u32 %v6529, 7
        %v6531 = vsub.s32 %v6528, %v6530
        %v6532 = vrot.slane %v6524, %v6531
        %v6534 = vunpack.c.l.s4 1983009808
        %v6535 = vunpack.c.0.s8 %v6534
        %v6536 = vlaneseq
        %v6537 = vshrl.u32 %v6536, 7
        %v6538 = vsub.s32 %v6535, %v6537
        %v6539 = vrot.slane %v6525, %v6538
        %v6540 = vcombine.low %v6532, %v6539
        %v6541 = vcombine.low %v6464, %v6465
        %v6542 = vcombine.low %v6466, %v6467
        %v6544 = vunpack.c.l.s4 1983009808
        %v6545 = vunpack.c.0.s8 %v6544
        %v6546 = vlaneseq
        %v6547 = vshrl.u32 %v6546, 7
        %v6548 = vsub.s32 %v6545, %v6547
        %v6549 = vrot.slane %v6541, %v6548
        %v6551 = vunpack.c.l.s4 1983009808
        %v6552 = vunpack.c.0.s8 %v6551
        %v6553 = vlaneseq
        %v6554 = vshrl.u32 %v6553, 7
        %v6555 = vsub.s32 %v6552, %v6554
        %v6556 = vrot.slane %v6542, %v6555
        %v6557 = vcombine.low %v6549, %v6556
        %v6558 = vcombine.low %v6468, %v6469
        %v6559 = vcombine.low %v6470, %v6471
        %v6561 = vunpack.c.l.s4 1983009808
        %v6562 = vunpack.c.0.s8 %v6561
        %v6563 = vlaneseq
        %v6564 = vshrl.u32 %v6563, 7
        %v6565 = vsub.s32 %v6562, %v6564
        %v6566 = vrot.slane %v6558, %v6565
        %v6568 = vunpack.c.l.s4 1983009808
        %v6569 = vunpack.c.0.s8 %v6568
        %v6570 = vlaneseq
        %v6571 = vshrl.u32 %v6570, 7
        %v6572 = vsub.s32 %v6569, %v6571
        %v6573 = vrot.slane %v6559, %v6572
        %v6574 = vcombine.low %v6566, %v6573
        %v6575 = vcombine.low %v6472, %v6473
        %v6576 = vcombine.low %v6474, %v6475
        %v6578 = vunpack.c.l.s4 1983009808
        %v6579 = vunpack.c.0.s8 %v6578
        %v6580 = vlaneseq
        %v6581 = vshrl.u32 %v6580, 7
        %v6582 = vsub.s32 %v6579, %v6581
        %v6583 = vrot.slane %v6575, %v6582
        %v6585 = vunpack.c.l.s4 1983009808
        %v6586 = vunpack.c.0.s8 %v6585
        %v6587 = vlaneseq
        %v6588 = vshrl.u32 %v6587, 7
        %v6589 = vsub.s32 %v6586, %v6588
        %v6590 = vrot.slane %v6576, %v6589
        %v6591 = vcombine.low %v6583, %v6590
        %v6592 = vcombine.low %v6476, %v6477
        %v6593 = vcombine.low %v6478, %v6479
        %v6595 = vunpack.c.l.s4 1983009808
        %v6596 = vunpack.c.0.s8 %v6595
        %v6597 = vlaneseq
        %v6598 = vshrl.u32 %v6597, 7
        %v6599 = vsub.s32 %v6596, %v6598
        %v6600 = vrot.slane %v6592, %v6599
        %v6602 = vunpack.c.l.s4 1983009808
        %v6603 = vunpack.c.0.s8 %v6602
        %v6604 = vlaneseq
        %v6605 = vshrl.u32 %v6604, 7
        %v6606 = vsub.s32 %v6603, %v6605
        %v6607 = vrot.slane %v6593, %v6606
        %v6608 = vcombine.low %v6600, %v6607
        %v6609 = vcombine.low %v6480, %v6481
        %v6610 = vcombine.low %v6482, %v6483
        %v6612 = vunpack.c.l.s4 1983009808
        %v6613 = vunpack.c.0.s8 %v6612
        %v6614 = vlaneseq
        %v6615 = vshrl.u32 %v6614, 7
        %v6616 = vsub.s32 %v6613, %v6615
        %v6617 = vrot.slane %v6609, %v6616
        %v6619 = vunpack.c.l.s4 1983009808
        %v6620 = vunpack.c.0.s8 %v6619
        %v6621 = vlaneseq
        %v6622 = vshrl.u32 %v6621, 7
        %v6623 = vsub.s32 %v6620, %v6622
        %v6624 = vrot.slane %v6610, %v6623
        %v6625 = vcombine.low %v6617, %v6624
        %v6626 = vcombine.low %v6484, %v6485
        %v6627 = vcombine.low %v6486, %v6487
        %v6629 = vunpack.c.l.s4 1983009808
        %v6630 = vunpack.c.0.s8 %v6629
        %v6631 = vlaneseq
        %v6632 = vshrl.u32 %v6631, 7
        %v6633 = vsub.s32 %v6630, %v6632
        %v6634 = vrot.slane %v6626, %v6633
        %v6636 = vunpack.c.l.s4 1983009808
        %v6637 = vunpack.c.0.s8 %v6636
        %v6638 = vlaneseq
        %v6639 = vshrl.u32 %v6638, 7
        %v6640 = vsub.s32 %v6637, %v6639
        %v6641 = vrot.slane %v6627, %v6640
        %v6642 = vcombine.low %v6634, %v6641
        %v6643 = vcombine.low %v6488, %v6489
        %v6644 = vcombine.low %v6490, %v6491
        %v6646 = vunpack.c.l.s4 1983009808
        %v6647 = vunpack.c.0.s8 %v6646
        %v6648 = vlaneseq
        %v6649 = vshrl.u32 %v6648, 7
        %v6650 = vsub.s32 %v6647, %v6649
        %v6651 = vrot.slane %v6643, %v6650
        %v6653 = vunpack.c.l.s4 1983009808
        %v6654 = vunpack.c.0.s8 %v6653
        %v6655 = vlaneseq
        %v6656 = vshrl.u32 %v6655, 7
        %v6657 = vsub.s32 %v6654, %v6656
        %v6658 = vrot.slane %v6644, %v6657
        %v6659 = vcombine.low %v6651, %v6658
        %6668 = vst [vmem:[%s301] sm:$0xff] %v6540
        %6669 = vst [vmem:[%s301 + $0x8] sm:$0xff] %v6557
        %6670 = vst [vmem:[%s301 + $0x10] sm:$0xff] %v6574
        %6671 = vst [vmem:[%s301 + $0x18] sm:$0xff] %v6591
        %6672 = vst [vmem:[%s301 + $0x20] sm:$0xff] %v6608
        %6673 = vst [vmem:[%s301 + $0x28] sm:$0xff] %v6625
        %6674 = vst [vmem:[%s301 + $0x30] sm:$0xff] %v6642
        %6675 = vst [vmem:[%s301 + $0x38] sm:$0xff] %v6659
        %s6676 = sand.u32 %s132, 1
        %s6677 = scalar_lea.sflag [#allocation4], %s6676
        %s6678 = sand.u32 %s132, 1
        %s6679 = smul.addr %s6678, 64
        %s6680 = scalar_lea.vmem [#allocation10], %s6679
        // Predicated region
        $region53: #{tpu_custom_call.1} parent=35 // pred_check
          %p6681 = pneg %p142
        $region54: #{tpu_custom_call.1} parent=35 // pred_check_branch
          %6683 = sbr.rel (%p6681) target = $region56
        $region55: #{tpu_custom_call.1} parent=35 // pred_region
          %s6684 = smul.u32 32, %s25
          %s6686 = ssub.s32 1024, 1024
          %6687 = vsyncadd %s6677, %s6686
          %s6688 = smul.addr %s6684, 32
          %s6689 = scalar_lea.hbm %s4, %s6688
          %s6691 = sshll.u32 %s6680, 4
          %s6692 = int_to_ptr.vmem [resolvable:$true] %s6691
          %6694 = dma.vmem_to_hbm [thread:$0]  %s6692, 1024, %s6689, %s6677
        $region56: #{tpu_custom_call.1} parent=35 // pred_fallthru
          _
      $region36: #{tpu_custom_call.1} parent=5 // pred_fallthru
        _
      %p6695 = scmp.le.s32.totalorder 2, %s20
      // Predicated region
      $region57: #{tpu_custom_call.1} parent=5 // pred_check
        %p6696 = pneg %p6695
      $region58: #{tpu_custom_call.1} parent=5 // pred_check_branch
        %6698 = sbr.rel (%p6696) target = $region60
      $region59: #{tpu_custom_call.1} parent=5 // pred_region
        %s6699 = ssub.s32 %s20, 2
        // Predicated region
        $region61: #{tpu_custom_call.1} parent=59 // pred_check
          %p6700 = pneg %p148
        $region62: #{tpu_custom_call.1} parent=59 // pred_check_branch
          %6702 = sbr.rel (%p6700) target = $region64
        $region63: #{tpu_custom_call.1} parent=59 // pred_region
          %s6703 = sand.u32 %s133, 1
          %s6704 = scalar_lea.sflag [#allocation4], %s6703
          %s6705 = sand.u32 %s133, 1
          %s6706 = smul.addr %s6705, 64
          %s6707 = scalar_lea.vmem [#allocation10], %s6706
          %6708 = dma.done %s6704, 1024
        $region64: #{tpu_custom_call.1} parent=59 // pred_fallthru
          _
      $region60: #{tpu_custom_call.1} parent=5 // pred_fallthru
        _
    $region6: #{tpu_custom_call.1} parent=1 // loop_footer
      %s24 = sadd.s32 1, %s20
    $region7: #{tpu_custom_call.1} parent=1 // loop_footer_branch
      %19 = sbr.rel target = $region3
    $region8: #{tpu_custom_call.1} parent=1 // loop_exit
      _
    %6709 = vsyncpa [#allocation3], 1
    %s6710 = scalar_lea.sflag [#allocation3], 1
    %6711 = vsyncpa %s6710, 1
    %6712 = vsyncpa [#allocation6], 1
    %s6713 = scalar_lea.sflag [#allocation6], 1
    %6714 = vsyncpa %s6713, 1
    %6715 = vsyncpa [#allocation9], 1
    %s6716 = scalar_lea.sflag [#allocation9], 1
    %6717 = vsyncpa %s6716, 1
    %6718 = vsyncpa [#allocation4], 1
    %s6719 = scalar_lea.sflag [#allocation4], 1
    %6720 = vsyncpa %s6719, 1

</llo_original>
